<compile_context>
chip_gen: v6e
topology: v6e:2x2x1
jax: 0.10.0
libtpu: 0.0.40
codegen_flags: <defaults>
</compile_context>

<pallas_src>
from collections import Counter
from functools import partial

import numpy as np
import jax
import jax.numpy as jnp
from jax.experimental import pallas as pl
from jax.experimental.pallas import tpu as pltpu


MATMUL_DTYPE = jnp.bfloat16   # MXU operand dtype; accumulation stays float32.
BN_EPS = 1e-5
# Multiple of 128 (lane-dense output stores).  1024 fits the default scoped
# VMEM on v5e (16 MiB) / v6e (32 MiB) / v7x (32 MiB); on v7x, TILE_N=2048 with
# pltpu.CompilerParams(vmem_limit_bytes=...) raised is a good alternative.
DEFAULT_TILE_N = 1024


# --------------------------------------------------------------------------
# Kernels
# --------------------------------------------------------------------------

def _stats1_kernel(x_ref, w1_ref, b1_ref, sum_ref, sumsq_ref, *, n_valid):
    """Pass 1: accumulate global BN-1 sum / sum-of-squares over all N tiles."""
    i = pl.program_id(0)

    @pl.when(i == 0)
    def _():
        sum_ref[...] = jnp.zeros_like(sum_ref)
        sumsq_ref[...] = jnp.zeros_like(sumsq_ref)

    tile = x_ref.shape[0]
    xb = x_ref[...].astype(MATMUL_DTYPE)                      # in-kernel cast
    h = jnp.dot(xb, w1_ref[...], preferred_element_type=jnp.float32) + b1_ref[...]
    h = jnp.maximum(h, 0.0)
    # Mask zero-padded rows out of the batch statistics.
    row = jax.lax.broadcasted_iota(jnp.int32, (tile, 1), 0) + i * tile
    h = jnp.where(row < n_valid, h, 0.0)
    sum_ref[...] += jnp.sum(h, axis=0, keepdims=True)
    sumsq_ref[...] += jnp.sum(h * h, axis=0, keepdims=True)


def _stats2_kernel(x_ref, w1_ref, b1_ref, sc1_ref, sh1_ref, w2_ref, b2_ref,
                   sum_ref, sumsq_ref, *, n_valid):
    """Pass 2: recompute layer 1, apply BN-1, layer 2; accumulate BN-2 stats."""
    i = pl.program_id(0)

    @pl.when(i == 0)
    def _():
        sum_ref[...] = jnp.zeros_like(sum_ref)
        sumsq_ref[...] = jnp.zeros_like(sumsq_ref)

    tile = x_ref.shape[0]
    xb = x_ref[...].astype(MATMUL_DTYPE)
    h1 = jnp.maximum(
        jnp.dot(xb, w1_ref[...], preferred_element_type=jnp.float32) + b1_ref[...], 0.0)
    # Normalize + bf16 cast fused into the layer-2 matmul input (one sweep).
    h1n = (h1 * sc1_ref[...] + sh1_ref[...]).astype(MATMUL_DTYPE)
    h2 = jnp.maximum(
        jnp.dot(h1n, w2_ref[...], preferred_element_type=jnp.float32) + b2_ref[...], 0.0)
    row = jax.lax.broadcasted_iota(jnp.int32, (tile, 1), 0) + i * tile
    h2 = jnp.where(row < n_valid, h2, 0.0)
    sum_ref[...] += jnp.sum(h2, axis=0, keepdims=True)
    sumsq_ref[...] += jnp.sum(h2 * h2, axis=0, keepdims=True)


def _final_kernel(x_ref, w1_ref, b1_ref, sc1_ref, sh1_ref,
                  w2_ref, b2_ref, sc2_ref, sh2_ref,
                  w3_ref, b3_ref, out_ref, *, ensemble):
    """Pass 3: full forward, per-member argmax, majority vote. One tile / step."""
    tile = x_ref.shape[0]
    E = ensemble
    C = w3_ref.shape[1] // E

    xb = x_ref[...].astype(MATMUL_DTYPE)
    h1 = jnp.maximum(
        jnp.dot(xb, w1_ref[...], preferred_element_type=jnp.float32) + b1_ref[...], 0.0)
    h1n = (h1 * sc1_ref[...] + sh1_ref[...]).astype(MATMUL_DTYPE)
    h2 = jnp.maximum(
        jnp.dot(h1n, w2_ref[...], preferred_element_type=jnp.float32) + b2_ref[...], 0.0)
    h2n = (h2 * sc2_ref[...] + sh2_ref[...]).astype(MATMUL_DTYPE)
    logits = jnp.dot(h2n, w3_ref[...], preferred_element_type=jnp.float32) + b3_ref[...]

    # Per-member argmax (torch.max dim=1: first index achieving the max).
    preds = []
    for e in range(E):
        lg = logits[:, e * C:(e + 1) * C]
        mx = jnp.max(lg, axis=-1, keepdims=True)
        cls = jax.lax.broadcasted_iota(jnp.int32, lg.shape, 1)
        preds.append(jnp.min(jnp.where(lg >= mx, cls, C), axis=-1))     # (tile,)

    # Majority vote (Counter.most_common: ties -> earliest member index).
    counts = []
    for k in range(E):
        c = (preds[0] == preds[k]).astype(jnp.int32)
        for j in range(1, E):
            c = c + (preds[j] == preds[k]).astype(jnp.int32)
        counts.append(c)
    maxc = counts[0]
    for k in range(1, E):
        maxc = jnp.maximum(maxc, counts[k])
    winner = preds[E - 1]
    for k in range(E - 2, -1, -1):            # smallest member index with max count
        winner = jnp.where(counts[k] == maxc, preds[k], winner)

    # Lane-dense (1, TILE_N) store (unmasked full-width vst).
    out_ref[...] = winner.astype(out_ref.dtype).reshape(1, tile)


# --------------------------------------------------------------------------
# Wrapper
# --------------------------------------------------------------------------

def prepare_fused_params(params, matmul_dtype=MATMUL_DTYPE):
    """One-time weight prep (hoisted out of the per-call path).

    Layer-1 weights are concatenated along the output axis (fused wide matmul);
    layers 2/3 become block-diagonal matrices so the whole ensemble is two wide
    matmuls per tile instead of 2E narrow ones.  Matmul weights are cast to
    bf16; the zero blocks stay exactly zero.
    """
    (w1, b1, g1, be1, w2, b2, g2, be2, w3, b3) = params
    E, dim, h1 = w1.shape
    h2 = w2.shape[2]
    c = w3.shape[2]

    w1_all = jnp.transpose(w1, (1, 0, 2)).reshape(dim, E * h1).astype(matmul_dtype)
    w2_bd = jnp.zeros((E * h1, E * h2), jnp.float32)
    w3_bd = jnp.zeros((E * h2, E * c), jnp.float32)
    for e in range(E):
        w2_bd = w2_bd.at[e * h1:(e + 1) * h1, e * h2:(e + 1) * h2].set(w2[e])
        w3_bd = w3_bd.at[e * h2:(e + 1) * h2, e * c:(e + 1) * c].set(w3[e])

    return {
        "w1": w1_all,
        "b1": b1.reshape(1, E * h1).astype(jnp.float32),
        "g1": g1.reshape(1, E * h1).astype(jnp.float32),
        "be1": be1.reshape(1, E * h1).astype(jnp.float32),
        "w2": w2_bd.astype(matmul_dtype),
        "b2": b2.reshape(1, E * h2).astype(jnp.float32),
        "g2": g2.reshape(1, E * h2).astype(jnp.float32),
        "be2": be2.reshape(1, E * h2).astype(jnp.float32),
        "w3": w3_bd.astype(matmul_dtype),
        "b3": b3.reshape(1, E * c).astype(jnp.float32),
    }


def _const_spec(arr):
    # Small weight array: whole-array block with a constant index_map -> fetched
    # once, resident in VMEM for every grid step.
    return pl.BlockSpec(arr.shape, lambda i: (0, 0))


@partial(jax.jit, static_argnames=("ensemble", "tile_n"))
def pixel_classifier_ensemble_forward(x, fused, *, ensemble, tile_n=DEFAULT_TILE_N):
    """Returns (predictions[N] float32 class ids, aux dict of BN stats/scales)."""
    assert tile_n % 128 == 0, "tile_n must be a multiple of 128 (lane-dense output)"
    n, dim = x.shape
    E = ensemble
    F1 = fused["w1"].shape[1]            # E * 128
    F2 = fused["w2"].shape[1]            # E * 32
    F3 = fused["w3"].shape[1]            # E * num_class

    num_tiles = -(-n // tile_n)
    n_pad = num_tiles * tile_n
    if n_pad != n:
        x = jnp.pad(x, ((0, n_pad - n), (0, 0)))
    grid = (num_tiles,)

    x_spec = pl.BlockSpec((tile_n, dim), lambda i: (i, 0))

    def stat_out(f):
        return (jax.ShapeDtypeStruct((1, f), jnp.float32),
                jax.ShapeDtypeStruct((1, f), jnp.float32))

    def stat_specs(f):
        return (pl.BlockSpec((1, f), lambda i: (0, 0)),
                pl.BlockSpec((1, f), lambda i: (0, 0)))

    wbytes = (dim * F1 + F1 * F2 + F2 * F3) * 2

    # ---- pass 1: global BN-1 statistics (accumulator -> "arbitrary") --------
    sum1, sumsq1 = pl.pallas_call(
        partial(_stats1_kernel, n_valid=n),
        out_shape=stat_out(F1),
        grid=grid,
        in_specs=[x_spec, _const_spec(fused["w1"]), _const_spec(fused["b1"])],
        out_specs=stat_specs(F1),
        compiler_params=pltpu.CompilerParams(dimension_semantics=("arbitrary",)),
        cost_estimate=pl.CostEstimate(
            flops=2 * n_pad * dim * F1, transcendentals=0,
            bytes_accessed=n_pad * dim * 4 + dim * F1 * 2 + 3 * F1 * 4),
    )(x, fused["w1"], fused["b1"])

    inv_n = 1.0 / n
    mean1 = sum1 * inv_n
    var1 = jnp.maximum(sumsq1 * inv_n - mean1 * mean1, 0.0)
    scale1 = fused["g1"] * jax.lax.rsqrt(var1 + BN_EPS)       # fold gamma*rsqrt
    shift1 = fused["be1"] - mean1 * scale1

    # ---- pass 2: global BN-2 statistics --------------------------------------
    sum2, sumsq2 = pl.pallas_call(
        partial(_stats2_kernel, n_valid=n),
        out_shape=stat_out(F2),
        grid=grid,
        in_specs=[x_spec, _const_spec(fused["w1"]), _const_spec(fused["b1"]),
                  _const_spec(scale1), _const_spec(shift1),
                  _const_spec(fused["w2"]), _const_spec(fused["b2"])],
        out_specs=stat_specs(F2),
        compiler_params=pltpu.CompilerParams(dimension_semantics=("arbitrary",)),
        cost_estimate=pl.CostEstimate(
            flops=2 * n_pad * (dim * F1 + F1 * F2), transcendentals=0,
            bytes_accessed=n_pad * dim * 4 + (dim * F1 + F1 * F2) * 2 + 3 * F2 * 4),
    )(x, fused["w1"], fused["b1"], scale1, shift1, fused["w2"], fused["b2"])

    mean2 = sum2 * inv_n
    var2 = jnp.maximum(sumsq2 * inv_n - mean2 * mean2, 0.0)
    scale2 = fused["g2"] * jax.lax.rsqrt(var2 + BN_EPS)
    shift2 = fused["be2"] - mean2 * scale2

    # ---- pass 3: full forward + argmax + vote (independent tiles -> parallel) -
    out = pl.pallas_call(
        partial(_final_kernel, ensemble=E),
        out_shape=jax.ShapeDtypeStruct((1, n_pad), jnp.float32),
        grid=grid,
        in_specs=[x_spec,
                  _const_spec(fused["w1"]), _const_spec(fused["b1"]),
                  _const_spec(scale1), _const_spec(shift1),
                  _const_spec(fused["w2"]), _const_spec(fused["b2"]),
                  _const_spec(scale2), _const_spec(shift2),
                  _const_spec(fused["w3"]), _const_spec(fused["b3"])],
        out_specs=pl.BlockSpec((1, tile_n), lambda i: (0, i)),
        compiler_params=pltpu.CompilerParams(dimension_semantics=("parallel",)),
        cost_estimate=pl.CostEstimate(
            flops=2 * n_pad * (dim * F1 + F1 * F2 + F2 * F3), transcendentals=0,
            bytes_accessed=n_pad * dim * 4 + wbytes + n_pad * 4),
    )(x, fused["w1"], fused["b1"], scale1, shift1,
      fused["w2"], fused["b2"], scale2, shift2,
      fused["w3"], fused["b3"])

    preds = out[0, :n]
    aux = {"mean1": mean1, "var1": var1, "scale1": scale1, "shift1": shift1,
           "mean2": mean2, "var2": var2, "scale2": scale2, "shift2": shift2}
    return preds, aux


# --------------------------------------------------------------------------
# Deterministic parameter init + pure-JAX reference
# --------------------------------------------------------------------------

def init_params(key, E, dim, n_cls):
    # numpy_class < 30 branch of pixel_classifier: dim -> 128 -> 32 -> n_cls
    h1, h2 = 128, 32
    keys = jax.random.split(key, 10)

    def lin(kw, kb, fan_in, fan_out):
        bound = 1.0 / np.sqrt(fan_in)
        w = jax.random.uniform(kw, (E, fan_in, fan_out), jnp.float32, -bound, bound)
        b = jax.random.uniform(kb, (E, 1, fan_out), jnp.float32, -bound, bound)
        return w, b

    w1, b1 = lin(keys[0], keys[1], dim, h1)
    w2, b2 = lin(keys[2], keys[3], h1, h2)
    w3, b3 = lin(keys[4], keys[5], h2, n_cls)
    g1 = 1.0 + 0.1 * jax.random.normal(keys[6], (E, 1, h1), jnp.float32)
    be1 = 0.1 * jax.random.normal(keys[7], (E, 1, h1), jnp.float32)
    g2 = 1.0 + 0.1 * jax.random.normal(keys[8], (E, 1, h2), jnp.float32)
    be2 = 0.1 * jax.random.normal(keys[9], (E, 1, h2), jnp.float32)
    return (w1, b1, g1, be1, w2, b2, g2, be2, w3, b3)


def reference_forward(x, params, bn_stats=None, matmul_dtype=MATMUL_DTYPE,
                      return_stats=False):
    """Pure-JAX per-member replica of the PyTorch forward (incl. Counter vote).

    If bn_stats is given (fused (1, E*F) scale/shift arrays, e.g. the kernel's),
    BN uses them; otherwise train-mode stats are computed from the full batch.
    Uses the same bf16-operand / f32-accumulate matmuls as the kernel.
    """
    (w1, b1, g1, be1, w2, b2, g2, be2, w3, b3) = params
    E, _, H1 = w1.shape
    H2 = w2.shape[2]
    xb = x.astype(matmul_dtype)
    member_preds = []
    m1s, v1s, m2s, v2s = [], [], [], []
    for e in range(E):
        h1 = jnp.dot(xb, w1[e].astype(matmul_dtype),
                     preferred_element_type=jnp.float32) + b1[e]
        h1 = jnp.maximum(h1, 0.0)
        if bn_stats is None:
            m1 = jnp.mean(h1, axis=0, keepdims=True)
            v1 = jnp.mean((h1 - m1) ** 2, axis=0, keepdims=True)
            sc1 = g1[e] * jax.lax.rsqrt(v1 + BN_EPS)
            sh1 = be1[e] - m1 * sc1
            m1s.append(m1); v1s.append(v1)
        else:
            sc1 = bn_stats["scale1"][:, e * H1:(e + 1) * H1]
            sh1 = bn_stats["shift1"][:, e * H1:(e + 1) * H1]
        h1n = (h1 * sc1 + sh1).astype(matmul_dtype)
        h2 = jnp.dot(h1n, w2[e].astype(matmul_dtype),
                     preferred_element_type=jnp.float32) + b2[e]
        h2 = jnp.maximum(h2, 0.0)
        if bn_stats is None:
            m2 = jnp.mean(h2, axis=0, keepdims=True)
            v2 = jnp.mean((h2 - m2) ** 2, axis=0, keepdims=True)
            sc2 = g2[e] * jax.lax.rsqrt(v2 + BN_EPS)
            sh2 = be2[e] - m2 * sc2
            m2s.append(m2); v2s.append(v2)
        else:
            sc2 = bn_stats["scale2"][:, e * H2:(e + 1) * H2]
            sh2 = bn_stats["shift2"][:, e * H2:(e + 1) * H2]
        h2n = (h2 * sc2 + sh2).astype(matmul_dtype)
        logits = jnp.dot(h2n, w3[e].astype(matmul_dtype),
                         preferred_element_type=jnp.float32) + b3[e]
        member_preds.append(np.asarray(jnp.argmax(logits, axis=1)).astype(np.float32))

    results_mat = np.stack(member_preds, axis=1)         # (N, E) float, like torch
    results = np.asarray(
        [Counter(results_mat[i, :]).most_common(1)[0][0]
         for i in range(results_mat.shape[0])], dtype=np.float32)
    if not return_stats:
        return results
    stats = {"mean1": jnp.concatenate(m1s, axis=1), "var1": jnp.concatenate(v1s, axis=1),
             "mean2": jnp.concatenate(m2s, axis=1), "var2": jnp.concatenate(v2s, axis=1)}
    return results, stats


if __name__ == "__main__":
    # Small but non-trivial shapes: N is NOT a multiple of TILE_N so the
    # zero-padding + BN row-masking path is exercised, and the grid has 3 tiles.
    N, DIM, NUM_CLASS, ENSEMBLE = 300, 32, 8, 5
    TILE_N = 128     # small tile for the test; production default is 1024.

    key = jax.random.PRNGKey(0)
    kx, kp = jax.random.split(key)
    x = jax.random.normal(kx, (N, DIM), jnp.float32)
    params = init_params(kp, ENSEMBLE, DIM, NUM_CLASS)

    fused = prepare_fused_params(params)        # one-time weight prep (hoisted)
    out, aux = pixel_classifier_ensemble_forward(
        x, fused, ensemble=ENSEMBLE, tile_n=TILE_N)
    out = jax.block_until_ready(out)
    assert out.shape == (N,) and out.dtype == jnp.float32

    # (1) Two-pass global BN statistics vs an independent full-batch reference
    #     (fp tolerance: only the f32 reduction order differs).
    ref_indep, ref_stats = reference_forward(x, params, bn_stats=None, return_stats=True)
    for k_stat in ("mean1", "var1", "mean2", "var2"):
        np.testing.assert_allclose(np.asarray(aux[k_stat]),
                                   np.asarray(ref_stats[k_stat]),
                                   rtol=5e-3, atol=5e-4)

    # (2) Exact class-id check: per-member reference driven by the kernel's own
    #     BN scale/shift.  The fused-wide / block-diagonal matmuls are bit-exact
    #     w.r.t. the per-member formulation (zero blocks contribute exact +0.0),
    #     so argmax + vote must match exactly.
    ref_same_stats = reference_forward(x, params, bn_stats=aux)
    np.testing.assert_array_equal(np.asarray(out), ref_same_stats)

    # (3) End-to-end agreement with the fully independent reference (near-tie
    #     logits may flip under the differing BN-stat reduction order).
    agreement = float(np.mean(np.asarray(out) == ref_indep))
    assert agreement >= 0.98, f"agreement with independent reference too low: {agreement}"

    print("KERNEL_OK")
</pallas_src>

<mosaic_0001>
module attributes {stable_mosaic.version = 11 : i64} {
  func.func @_stats1_kernel(%arg0: i32, %arg1: memref<128x32xf32, #tpu.memory_space<vmem>>, %arg2: memref<32x640xbf16, #tpu.memory_space<vmem>>, %arg3: memref<1x640xf32, #tpu.memory_space<vmem>>, %arg4: memref<1x640xf32, #tpu.memory_space<vmem>>, %arg5: memref<1x640xf32, #tpu.memory_space<vmem>>) attributes {dimension_semantics = [#tpu.dimension_semantics<arbitrary>], iteration_bounds = array<i64: 3>, scalar_prefetch = 0 : i64, scratch_operands = 0 : i64, tpu.core_type = #tpu.core_type<tc>, window_params = [{transform_indices = @transform_0, window_bounds = array<i64: 128, 32>}, {pipeline_mode = #tpu.pipeline_mode<synchronous>, transform_indices = @transform_1, window_bounds = array<i64: 32, 640>}, {pipeline_mode = #tpu.pipeline_mode<synchronous>, transform_indices = @transform_2, window_bounds = array<i64: 1, 640>}, {pipeline_mode = #tpu.pipeline_mode<synchronous>, transform_indices = @transform_3, window_bounds = array<i64: 1, 640>}, {pipeline_mode = #tpu.pipeline_mode<synchronous>, transform_indices = @transform_4, window_bounds = array<i64: 1, 640>}]} {
    %c0_i32 = arith.constant 0 : i32
    %0 = arith.cmpi eq, %arg0, %c0_i32 : i32
    %1 = arith.extui %0 : i1 to i32
    %c0_i32_0 = arith.constant 0 : i32
    %2 = arith.cmpi ne, %1, %c0_i32_0 : i32
    scf.if %2 {
      %cst_18 = arith.constant 0.000000e+00 : f32
      %33 = vector.broadcast %cst_18 : f32 to vector<1x640xf32>
      %c0_19 = arith.constant 0 : index
      %c0_20 = arith.constant 0 : index
      %34 = vector.load %arg4[%c0_19, %c0_20] : memref<1x640xf32, #tpu.memory_space<vmem>>, vector<1x640xf32>
      tpu.vector_store %arg4[%c0_19, %c0_20], %33 {strides = array<i32>} : memref<1x640xf32, #tpu.memory_space<vmem>>, vector<1x640xf32>,
      %cst_21 = arith.constant 0.000000e+00 : f32
      %35 = vector.broadcast %cst_21 : f32 to vector<1x640xf32>
      %c0_22 = arith.constant 0 : index
      %c0_23 = arith.constant 0 : index
      %36 = vector.load %arg5[%c0_22, %c0_23] : memref<1x640xf32, #tpu.memory_space<vmem>>, vector<1x640xf32>
      tpu.vector_store %arg5[%c0_22, %c0_23], %35 {strides = array<i32>} : memref<1x640xf32, #tpu.memory_space<vmem>>, vector<1x640xf32>,
    } else {
    }
    %c0 = arith.constant 0 : index
    %c0_1 = arith.constant 0 : index
    %3 = vector.load %arg1[%c0, %c0_1] : memref<128x32xf32, #tpu.memory_space<vmem>>, vector<128x32xf32>
    %4 = arith.truncf %3 : vector<128x32xf32> to vector<128x32xbf16>
    %c0_2 = arith.constant 0 : index
    %c0_3 = arith.constant 0 : index
    %5 = vector.load %arg2[%c0_2, %c0_3] : memref<32x640xbf16, #tpu.memory_space<vmem>>, vector<32x640xbf16>
    %cst = arith.constant dense<0.000000e+00> : vector<128x640xf32>
    %6 = tpu.matmul %4, %5, %cst {dimension_numbers = #tpu.dot_dimension_numbers<[1], [0], [0], [1], [0, 0, 1, 1], [], []>} : vector<128x32xbf16>, vector<32x640xbf16>, vector<128x640xf32> -> vector<128x640xf32>
    %c0_4 = arith.constant 0 : index
    %c0_5 = arith.constant 0 : index
    %7 = vector.load %arg3[%c0_4, %c0_5] : memref<1x640xf32, #tpu.memory_space<vmem>>, vector<1x640xf32>
    %8 = vector.broadcast %7 : vector<1x640xf32> to vector<128x640xf32>
    %9 = arith.addf %6, %8 : vector<128x640xf32>
    %cst_6 = arith.constant 0.000000e+00 : f32
    %10 = vector.broadcast %cst_6 : f32 to vector<128x640xf32>
    %11 = arith.maximumf %9, %10 : vector<128x640xf32>
    %12 = tpu.iota {dimensions = array<i32: 0>} : vector<128x1xi32>
    %c128_i32 = arith.constant 128 : i32
    %13 = arith.muli %arg0, %c128_i32 : i32
    %14 = vector.broadcast %13 : i32 to vector<128x1xi32>
    %15 = arith.addi %12, %14 : vector<128x1xi32>
    %c300_i32 = arith.constant 300 : i32
    %16 = vector.broadcast %c300_i32 : i32 to vector<128x1xi32>
    %17 = arith.cmpi slt, %15, %16 : vector<128x1xi32>
    %cst_7 = arith.constant 0.000000e+00 : f32
    %18 = vector.shape_cast %17 : vector<128x1xi1> to vector<128x1xi1>
    %19 = vector.broadcast %18 : vector<128x1xi1> to vector<128x640xi1>
    %20 = vector.broadcast %cst_7 : f32 to vector<128x640xf32>
    %21 = arith.select %19, %11, %20 : vector<128x640xi1>, vector<128x640xf32>
    %c0_8 = arith.constant 0 : index
    %c0_9 = arith.constant 0 : index
    %22 = vector.load %arg4[%c0_8, %c0_9] : memref<1x640xf32, #tpu.memory_space<vmem>>, vector<1x640xf32>
    %cst_10 = arith.constant dense<0.000000e+00> : vector<640xf32>
    %23 = vector.multi_reduction <add>, %21, %cst_10 [0] : vector<128x640xf32> to vector<640xf32>
    %24 = vector.shape_cast %23 : vector<640xf32> to vector<1x640xf32>
    %25 = arith.addf %22, %24 : vector<1x640xf32>
    %c0_11 = arith.constant 0 : index
    %c0_12 = arith.constant 0 : index
    %26 = vector.load %arg4[%c0_11, %c0_12] : memref<1x640xf32, #tpu.memory_space<vmem>>, vector<1x640xf32>
    tpu.vector_store %arg4[%c0_11, %c0_12], %25 {strides = array<i32>} : memref<1x640xf32, #tpu.memory_space<vmem>>, vector<1x640xf32>,
    %c0_13 = arith.constant 0 : index
    %c0_14 = arith.constant 0 : index
    %27 = vector.load %arg5[%c0_13, %c0_14] : memref<1x640xf32, #tpu.memory_space<vmem>>, vector<1x640xf32>
    %28 = arith.mulf %21, %21 : vector<128x640xf32>
    %cst_15 = arith.constant dense<0.000000e+00> : vector<640xf32>
    %29 = vector.multi_reduction <add>, %28, %cst_15 [0] : vector<128x640xf32> to vector<640xf32>
    %30 = vector.shape_cast %29 : vector<640xf32> to vector<1x640xf32>
    %31 = arith.addf %27, %30 : vector<1x640xf32>
    %c0_16 = arith.constant 0 : index
    %c0_17 = arith.constant 0 : index
    %32 = vector.load %arg5[%c0_16, %c0_17] : memref<1x640xf32, #tpu.memory_space<vmem>>, vector<1x640xf32>
    tpu.vector_store %arg5[%c0_16, %c0_17], %31 {strides = array<i32>} : memref<1x640xf32, #tpu.memory_space<vmem>>, vector<1x640xf32>,
    return
  }
  func.func @transform_0(%arg0: i32) -> (i32, i32) {
    %c0_i32 = arith.constant 0 : i32
    %c0_i32_0 = arith.constant 0 : i32
    return %arg0, %c0_i32 : i32, i32
  }
  func.func @transform_1(%arg0: i32) -> (i32, i32) {
    %c0_i32 = arith.constant 0 : i32
    %c0_i32_0 = arith.constant 0 : i32
    %c0_i32_1 = arith.constant 0 : i32
    return %c0_i32, %c0_i32_0 : i32, i32
  }
  func.func @transform_2(%arg0: i32) -> (i32, i32) {
    %c0_i32 = arith.constant 0 : i32
    %c0_i32_0 = arith.constant 0 : i32
    %c0_i32_1 = arith.constant 0 : i32
    return %c0_i32, %c0_i32_0 : i32, i32
  }
  func.func @transform_3(%arg0: i32) -> (i32, i32) {
    %c0_i32 = arith.constant 0 : i32
    %c0_i32_0 = arith.constant 0 : i32
    %c0_i32_1 = arith.constant 0 : i32
    return %c0_i32, %c0_i32_0 : i32, i32
  }
  func.func @transform_4(%arg0: i32) -> (i32, i32) {
    %c0_i32 = arith.constant 0 : i32
    %c0_i32_0 = arith.constant 0 : i32
    %c0_i32_1 = arith.constant 0 : i32
    return %c0_i32, %c0_i32_0 : i32, i32
  }
}

module attributes {stable_mosaic.version = 11 : i64} {
  func.func @_stats2_kernel(%arg0: i32, %arg1: memref<128x32xf32, #tpu.memory_space<vmem>>, %arg2: memref<32x640xbf16, #tpu.memory_space<vmem>>, %arg3: memref<1x640xf32, #tpu.memory_space<vmem>>, %arg4: memref<1x640xf32, #tpu.memory_space<vmem>>, %arg5: memref<1x640xf32, #tpu.memory_space<vmem>>, %arg6: memref<640x160xbf16, #tpu.memory_space<vmem>>, %arg7: memref<1x160xf32, #tpu.memory_space<vmem>>, %arg8: memref<1x160xf32, #tpu.memory_space<vmem>>, %arg9: memref<1x160xf32, #tpu.memory_space<vmem>>) attributes {dimension_semantics = [#tpu.dimension_semantics<arbitrary>], iteration_bounds = array<i64: 3>, scalar_prefetch = 0 : i64, scratch_operands = 0 : i64, tpu.core_type = #tpu.core_type<tc>, window_params = [{transform_indices = @transform_0, window_bounds = array<i64: 128, 32>}, {pipeline_mode = #tpu.pipeline_mode<synchronous>, transform_indices = @transform_1, window_bounds = array<i64: 32, 640>}, {pipeline_mode = #tpu.pipeline_mode<synchronous>, transform_indices = @transform_2, window_bounds = array<i64: 1, 640>}, {pipeline_mode = #tpu.pipeline_mode<synchronous>, transform_indices = @transform_3, window_bounds = array<i64: 1, 640>}, {pipeline_mode = #tpu.pipeline_mode<synchronous>, transform_indices = @transform_4, window_bounds = array<i64: 1, 640>}, {pipeline_mode = #tpu.pipeline_mode<synchronous>, transform_indices = @transform_5, window_bounds = array<i64: 640, 160>}, {pipeline_mode = #tpu.pipeline_mode<synchronous>, transform_indices = @transform_6, window_bounds = array<i64: 1, 160>}, {pipeline_mode = #tpu.pipeline_mode<synchronous>, transform_indices = @transform_7, window_bounds = array<i64: 1, 160>}, {pipeline_mode = #tpu.pipeline_mode<synchronous>, transform_indices = @transform_8, window_bounds = array<i64: 1, 160>}]} {
    %c0_i32 = arith.constant 0 : i32
    %0 = arith.cmpi eq, %arg0, %c0_i32 : i32
    %1 = arith.extui %0 : i1 to i32
    %c0_i32_0 = arith.constant 0 : i32
    %2 = arith.cmpi ne, %1, %c0_i32_0 : i32
    scf.if %2 {
      %cst_28 = arith.constant 0.000000e+00 : f32
      %47 = vector.broadcast %cst_28 : f32 to vector<1x160xf32>
      %c0_29 = arith.constant 0 : index
      %c0_30 = arith.constant 0 : index
      %48 = vector.load %arg8[%c0_29, %c0_30] : memref<1x160xf32, #tpu.memory_space<vmem>>, vector<1x160xf32>
      tpu.vector_store %arg8[%c0_29, %c0_30], %47 {strides = array<i32>} : memref<1x160xf32, #tpu.memory_space<vmem>>, vector<1x160xf32>,
      %cst_31 = arith.constant 0.000000e+00 : f32
      %49 = vector.broadcast %cst_31 : f32 to vector<1x160xf32>
      %c0_32 = arith.constant 0 : index
      %c0_33 = arith.constant 0 : index
      %50 = vector.load %arg9[%c0_32, %c0_33] : memref<1x160xf32, #tpu.memory_space<vmem>>, vector<1x160xf32>
      tpu.vector_store %arg9[%c0_32, %c0_33], %49 {strides = array<i32>} : memref<1x160xf32, #tpu.memory_space<vmem>>, vector<1x160xf32>,
    } else {
    }
    %c0 = arith.constant 0 : index
    %c0_1 = arith.constant 0 : index
    %3 = vector.load %arg1[%c0, %c0_1] : memref<128x32xf32, #tpu.memory_space<vmem>>, vector<128x32xf32>
    %4 = arith.truncf %3 : vector<128x32xf32> to vector<128x32xbf16>
    %c0_2 = arith.constant 0 : index
    %c0_3 = arith.constant 0 : index
    %5 = vector.load %arg2[%c0_2, %c0_3] : memref<32x640xbf16, #tpu.memory_space<vmem>>, vector<32x640xbf16>
    %cst = arith.constant dense<0.000000e+00> : vector<128x640xf32>
    %6 = tpu.matmul %4, %5, %cst {dimension_numbers = #tpu.dot_dimension_numbers<[1], [0], [0], [1], [0, 0, 1, 1], [], []>} : vector<128x32xbf16>, vector<32x640xbf16>, vector<128x640xf32> -> vector<128x640xf32>
    %c0_4 = arith.constant 0 : index
    %c0_5 = arith.constant 0 : index
    %7 = vector.load %arg3[%c0_4, %c0_5] : memref<1x640xf32, #tpu.memory_space<vmem>>, vector<1x640xf32>
    %8 = vector.broadcast %7 : vector<1x640xf32> to vector<128x640xf32>
    %9 = arith.addf %6, %8 : vector<128x640xf32>
    %cst_6 = arith.constant 0.000000e+00 : f32
    %10 = vector.broadcast %cst_6 : f32 to vector<128x640xf32>
    %11 = arith.maximumf %9, %10 : vector<128x640xf32>
    %c0_7 = arith.constant 0 : index
    %c0_8 = arith.constant 0 : index
    %12 = vector.load %arg4[%c0_7, %c0_8] : memref<1x640xf32, #tpu.memory_space<vmem>>, vector<1x640xf32>
    %13 = vector.broadcast %12 : vector<1x640xf32> to vector<128x640xf32>
    %14 = arith.mulf %11, %13 : vector<128x640xf32>
    %c0_9 = arith.constant 0 : index
    %c0_10 = arith.constant 0 : index
    %15 = vector.load %arg5[%c0_9, %c0_10] : memref<1x640xf32, #tpu.memory_space<vmem>>, vector<1x640xf32>
    %16 = vector.broadcast %15 : vector<1x640xf32> to vector<128x640xf32>
    %17 = arith.addf %14, %16 : vector<128x640xf32>
    %18 = arith.truncf %17 : vector<128x640xf32> to vector<128x640xbf16>
    %c0_11 = arith.constant 0 : index
    %c0_12 = arith.constant 0 : index
    %19 = vector.load %arg6[%c0_11, %c0_12] : memref<640x160xbf16, #tpu.memory_space<vmem>>, vector<640x160xbf16>
    %cst_13 = arith.constant dense<0.000000e+00> : vector<128x160xf32>
    %20 = tpu.matmul %18, %19, %cst_13 {dimension_numbers = #tpu.dot_dimension_numbers<[1], [0], [0], [1], [0, 0, 1, 1], [], []>} : vector<128x640xbf16>, vector<640x160xbf16>, vector<128x160xf32> -> vector<128x160xf32>
    %c0_14 = arith.constant 0 : index
    %c0_15 = arith.constant 0 : index
    %21 = vector.load %arg7[%c0_14, %c0_15] : memref<1x160xf32, #tpu.memory_space<vmem>>, vector<1x160xf32>
    %22 = vector.broadcast %21 : vector<1x160xf32> to vector<128x160xf32>
    %23 = arith.addf %20, %22 : vector<128x160xf32>
    %cst_16 = arith.constant 0.000000e+00 : f32
    %24 = vector.broadcast %cst_16 : f32 to vector<128x160xf32>
    %25 = arith.maximumf %23, %24 : vector<128x160xf32>
    %26 = tpu.iota {dimensions = array<i32: 0>} : vector<128x1xi32>
    %c128_i32 = arith.constant 128 : i32
    %27 = arith.muli %arg0, %c128_i32 : i32
    %28 = vector.broadcast %27 : i32 to vector<128x1xi32>
    %29 = arith.addi %26, %28 : vector<128x1xi32>
    %c300_i32 = arith.constant 300 : i32
    %30 = vector.broadcast %c300_i32 : i32 to vector<128x1xi32>
    %31 = arith.cmpi slt, %29, %30 : vector<128x1xi32>
    %cst_17 = arith.constant 0.000000e+00 : f32
    %32 = vector.shape_cast %31 : vector<128x1xi1> to vector<128x1xi1>
    %33 = vector.broadcast %32 : vector<128x1xi1> to vector<128x160xi1>
    %34 = vector.broadcast %cst_17 : f32 to vector<128x160xf32>
    %35 = arith.select %33, %25, %34 : vector<128x160xi1>, vector<128x160xf32>
    %c0_18 = arith.constant 0 : index
    %c0_19 = arith.constant 0 : index
    %36 = vector.load %arg8[%c0_18, %c0_19] : memref<1x160xf32, #tpu.memory_space<vmem>>, vector<1x160xf32>
    %cst_20 = arith.constant dense<0.000000e+00> : vector<160xf32>
    %37 = vector.multi_reduction <add>, %35, %cst_20 [0] : vector<128x160xf32> to vector<160xf32>
    %38 = vector.shape_cast %37 : vector<160xf32> to vector<1x160xf32>
    %39 = arith.addf %36, %38 : vector<1x160xf32>
    %c0_21 = arith.constant 0 : index
    %c0_22 = arith.constant 0 : index
    %40 = vector.load %arg8[%c0_21, %c0_22] : memref<1x160xf32, #tpu.memory_space<vmem>>, vector<1x160xf32>
    tpu.vector_store %arg8[%c0_21, %c0_22], %39 {strides = array<i32>} : memref<1x160xf32, #tpu.memory_space<vmem>>, vector<1x160xf32>,
    %c0_23 = arith.constant 0 : index
    %c0_24 = arith.constant 0 : index
    %41 = vector.load %arg9[%c0_23, %c0_24] : memref<1x160xf32, #tpu.memory_space<vmem>>, vector<1x160xf32>
    %42 = arith.mulf %35, %35 : vector<128x160xf32>
    %cst_25 = arith.constant dense<0.000000e+00> : vector<160xf32>
    %43 = vector.multi_reduction <add>, %42, %cst_25 [0] : vector<128x160xf32> to vector<160xf32>
    %44 = vector.shape_cast %43 : vector<160xf32> to vector<1x160xf32>
    %45 = arith.addf %41, %44 : vector<1x160xf32>
    %c0_26 = arith.constant 0 : index
    %c0_27 = arith.constant 0 : index
    %46 = vector.load %arg9[%c0_26, %c0_27] : memref<1x160xf32, #tpu.memory_space<vmem>>, vector<1x160xf32>
    tpu.vector_store %arg9[%c0_26, %c0_27], %45 {strides = array<i32>} : memref<1x160xf32, #tpu.memory_space<vmem>>, vector<1x160xf32>,
    return
  }
  func.func @transform_0(%arg0: i32) -> (i32, i32) {
    %c0_i32 = arith.constant 0 : i32
    %c0_i32_0 = arith.constant 0 : i32
    return %arg0, %c0_i32 : i32, i32
  }
  func.func @transform_1(%arg0: i32) -> (i32, i32) {
    %c0_i32 = arith.constant 0 : i32
    %c0_i32_0 = arith.constant 0 : i32
    %c0_i32_1 = arith.constant 0 : i32
    return %c0_i32, %c0_i32_0 : i32, i32
  }
  func.func @transform_2(%arg0: i32) -> (i32, i32) {
    %c0_i32 = arith.constant 0 : i32
    %c0_i32_0 = arith.constant 0 : i32
    %c0_i32_1 = arith.constant 0 : i32
    return %c0_i32, %c0_i32_0 : i32, i32
  }
  func.func @transform_3(%arg0: i32) -> (i32, i32) {
    %c0_i32 = arith.constant 0 : i32
    %c0_i32_0 = arith.constant 0 : i32
    %c0_i32_1 = arith.constant 0 : i32
    return %c0_i32, %c0_i32_0 : i32, i32
  }
  func.func @transform_4(%arg0: i32) -> (i32, i32) {
    %c0_i32 = arith.constant 0 : i32
    %c0_i32_0 = arith.constant 0 : i32
    %c0_i32_1 = arith.constant 0 : i32
    return %c0_i32, %c0_i32_0 : i32, i32
  }
  func.func @transform_5(%arg0: i32) -> (i32, i32) {
    %c0_i32 = arith.constant 0 : i32
    %c0_i32_0 = arith.constant 0 : i32
    %c0_i32_1 = arith.constant 0 : i32
    return %c0_i32, %c0_i32_0 : i32, i32
  }
  func.func @transform_6(%arg0: i32) -> (i32, i32) {
    %c0_i32 = arith.constant 0 : i32
    %c0_i32_0 = arith.constant 0 : i32
    %c0_i32_1 = arith.constant 0 : i32
    return %c0_i32, %c0_i32_0 : i32, i32
  }
  func.func @transform_7(%arg0: i32) -> (i32, i32) {
    %c0_i32 = arith.constant 0 : i32
    %c0_i32_0 = arith.constant 0 : i32
    %c0_i32_1 = arith.constant 0 : i32
    return %c0_i32, %c0_i32_0 : i32, i32
  }
  func.func @transform_8(%arg0: i32) -> (i32, i32) {
    %c0_i32 = arith.constant 0 : i32
    %c0_i32_0 = arith.constant 0 : i32
    %c0_i32_1 = arith.constant 0 : i32
    return %c0_i32, %c0_i32_0 : i32, i32
  }
}

module attributes {stable_mosaic.version = 11 : i64} {
  func.func @_final_kernel(%arg0: i32, %arg1: memref<128x32xf32, #tpu.memory_space<vmem>>, %arg2: memref<32x640xbf16, #tpu.memory_space<vmem>>, %arg3: memref<1x640xf32, #tpu.memory_space<vmem>>, %arg4: memref<1x640xf32, #tpu.memory_space<vmem>>, %arg5: memref<1x640xf32, #tpu.memory_space<vmem>>, %arg6: memref<640x160xbf16, #tpu.memory_space<vmem>>, %arg7: memref<1x160xf32, #tpu.memory_space<vmem>>, %arg8: memref<1x160xf32, #tpu.memory_space<vmem>>, %arg9: memref<1x160xf32, #tpu.memory_space<vmem>>, %arg10: memref<160x40xbf16, #tpu.memory_space<vmem>>, %arg11: memref<1x40xf32, #tpu.memory_space<vmem>>, %arg12: memref<1x128xf32, #tpu.memory_space<vmem>>) attributes {dimension_semantics = [#tpu.dimension_semantics<parallel>], iteration_bounds = array<i64: 3>, scalar_prefetch = 0 : i64, scratch_operands = 0 : i64, tpu.core_type = #tpu.core_type<tc>, window_params = [{transform_indices = @transform_0, window_bounds = array<i64: 128, 32>}, {pipeline_mode = #tpu.pipeline_mode<synchronous>, transform_indices = @transform_1, window_bounds = array<i64: 32, 640>}, {pipeline_mode = #tpu.pipeline_mode<synchronous>, transform_indices = @transform_2, window_bounds = array<i64: 1, 640>}, {pipeline_mode = #tpu.pipeline_mode<synchronous>, transform_indices = @transform_3, window_bounds = array<i64: 1, 640>}, {pipeline_mode = #tpu.pipeline_mode<synchronous>, transform_indices = @transform_4, window_bounds = array<i64: 1, 640>}, {pipeline_mode = #tpu.pipeline_mode<synchronous>, transform_indices = @transform_5, window_bounds = array<i64: 640, 160>}, {pipeline_mode = #tpu.pipeline_mode<synchronous>, transform_indices = @transform_6, window_bounds = array<i64: 1, 160>}, {pipeline_mode = #tpu.pipeline_mode<synchronous>, transform_indices = @transform_7, window_bounds = array<i64: 1, 160>}, {pipeline_mode = #tpu.pipeline_mode<synchronous>, transform_indices = @transform_8, window_bounds = array<i64: 1, 160>}, {pipeline_mode = #tpu.pipeline_mode<synchronous>, transform_indices = @transform_9, window_bounds = array<i64: 160, 40>}, {pipeline_mode = #tpu.pipeline_mode<synchronous>, transform_indices = @transform_10, window_bounds = array<i64: 1, 40>}, {transform_indices = @transform_11, window_bounds = array<i64: 1, 128>}]} {
    %c0 = arith.constant 0 : index
    %c0_0 = arith.constant 0 : index
    %0 = vector.load %arg1[%c0, %c0_0] : memref<128x32xf32, #tpu.memory_space<vmem>>, vector<128x32xf32>
    %1 = arith.truncf %0 : vector<128x32xf32> to vector<128x32xbf16>
    %c0_1 = arith.constant 0 : index
    %c0_2 = arith.constant 0 : index
    %2 = vector.load %arg2[%c0_1, %c0_2] : memref<32x640xbf16, #tpu.memory_space<vmem>>, vector<32x640xbf16>
    %cst = arith.constant dense<0.000000e+00> : vector<128x640xf32>
    %3 = tpu.matmul %1, %2, %cst {dimension_numbers = #tpu.dot_dimension_numbers<[1], [0], [0], [1], [0, 0, 1, 1], [], []>} : vector<128x32xbf16>, vector<32x640xbf16>, vector<128x640xf32> -> vector<128x640xf32>
    %c0_3 = arith.constant 0 : index
    %c0_4 = arith.constant 0 : index
    %4 = vector.load %arg3[%c0_3, %c0_4] : memref<1x640xf32, #tpu.memory_space<vmem>>, vector<1x640xf32>
    %5 = vector.broadcast %4 : vector<1x640xf32> to vector<128x640xf32>
    %6 = arith.addf %3, %5 : vector<128x640xf32>
    %cst_5 = arith.constant 0.000000e+00 : f32
    %7 = vector.broadcast %cst_5 : f32 to vector<128x640xf32>
    %8 = arith.maximumf %6, %7 : vector<128x640xf32>
    %c0_6 = arith.constant 0 : index
    %c0_7 = arith.constant 0 : index
    %9 = vector.load %arg4[%c0_6, %c0_7] : memref<1x640xf32, #tpu.memory_space<vmem>>, vector<1x640xf32>
    %10 = vector.broadcast %9 : vector<1x640xf32> to vector<128x640xf32>
    %11 = arith.mulf %8, %10 : vector<128x640xf32>
    %c0_8 = arith.constant 0 : index
    %c0_9 = arith.constant 0 : index
    %12 = vector.load %arg5[%c0_8, %c0_9] : memref<1x640xf32, #tpu.memory_space<vmem>>, vector<1x640xf32>
    %13 = vector.broadcast %12 : vector<1x640xf32> to vector<128x640xf32>
    %14 = arith.addf %11, %13 : vector<128x640xf32>
    %15 = arith.truncf %14 : vector<128x640xf32> to vector<128x640xbf16>
    %c0_10 = arith.constant 0 : index
    %c0_11 = arith.constant 0 : index
    %16 = vector.load %arg6[%c0_10, %c0_11] : memref<640x160xbf16, #tpu.memory_space<vmem>>, vector<640x160xbf16>
    %cst_12 = arith.constant dense<0.000000e+00> : vector<128x160xf32>
    %17 = tpu.matmul %15, %16, %cst_12 {dimension_numbers = #tpu.dot_dimension_numbers<[1], [0], [0], [1], [0, 0, 1, 1], [], []>} : vector<128x640xbf16>, vector<640x160xbf16>, vector<128x160xf32> -> vector<128x160xf32>
    %c0_13 = arith.constant 0 : index
    %c0_14 = arith.constant 0 : index
    %18 = vector.load %arg7[%c0_13, %c0_14] : memref<1x160xf32, #tpu.memory_space<vmem>>, vector<1x160xf32>
    %19 = vector.broadcast %18 : vector<1x160xf32> to vector<128x160xf32>
    %20 = arith.addf %17, %19 : vector<128x160xf32>
    %cst_15 = arith.constant 0.000000e+00 : f32
    %21 = vector.broadcast %cst_15 : f32 to vector<128x160xf32>
    %22 = arith.maximumf %20, %21 : vector<128x160xf32>
    %c0_16 = arith.constant 0 : index
    %c0_17 = arith.constant 0 : index
    %23 = vector.load %arg8[%c0_16, %c0_17] : memref<1x160xf32, #tpu.memory_space<vmem>>, vector<1x160xf32>
    %24 = vector.broadcast %23 : vector<1x160xf32> to vector<128x160xf32>
    %25 = arith.mulf %22, %24 : vector<128x160xf32>
    %c0_18 = arith.constant 0 : index
    %c0_19 = arith.constant 0 : index
    %26 = vector.load %arg9[%c0_18, %c0_19] : memref<1x160xf32, #tpu.memory_space<vmem>>, vector<1x160xf32>
    %27 = vector.broadcast %26 : vector<1x160xf32> to vector<128x160xf32>
    %28 = arith.addf %25, %27 : vector<128x160xf32>
    %29 = arith.truncf %28 : vector<128x160xf32> to vector<128x160xbf16>
    %c0_20 = arith.constant 0 : index
    %c0_21 = arith.constant 0 : index
    %30 = vector.load %arg10[%c0_20, %c0_21] : memref<160x40xbf16, #tpu.memory_space<vmem>>, vector<160x40xbf16>
    %cst_22 = arith.constant dense<0.000000e+00> : vector<128x40xf32>
    %31 = tpu.matmul %29, %30, %cst_22 {dimension_numbers = #tpu.dot_dimension_numbers<[1], [0], [0], [1], [0, 0, 1, 1], [], []>} : vector<128x160xbf16>, vector<160x40xbf16>, vector<128x40xf32> -> vector<128x40xf32>
    %c0_23 = arith.constant 0 : index
    %c0_24 = arith.constant 0 : index
    %32 = vector.load %arg11[%c0_23, %c0_24] : memref<1x40xf32, #tpu.memory_space<vmem>>, vector<1x40xf32>
    %33 = vector.broadcast %32 : vector<1x40xf32> to vector<128x40xf32>
    %34 = arith.addf %31, %33 : vector<128x40xf32>
    %35 = vector.extract_strided_slice %34 {offsets = [0, 0], sizes = [128, 8], strides = [1, 1]} : vector<128x40xf32> to vector<128x8xf32>
    %cst_25 = arith.constant dense<0xFF800000> : vector<128xf32>
    %36 = vector.multi_reduction <maximumf>, %35, %cst_25 [1] : vector<128x8xf32> to vector<128xf32>
    %37 = vector.shape_cast %36 : vector<128xf32> to vector<128x1xf32>
    %38 = tpu.iota {dimensions = array<i32: 1>} : vector<128x8xi32>
    %39 = vector.broadcast %37 : vector<128x1xf32> to vector<128x8xf32>
    %40 = arith.cmpf oge, %35, %39 : vector<128x8xf32>
    %c8_i32 = arith.constant 8 : i32
    %41 = vector.broadcast %c8_i32 : i32 to vector<128x8xi32>
    %42 = arith.select %40, %38, %41 : vector<128x8xi1>, vector<128x8xi32>
    %cst_26 = arith.constant dense<2147483647> : vector<128xi32>
    %43 = vector.multi_reduction <minsi>, %42, %cst_26 [1] : vector<128x8xi32> to vector<128xi32>
    %44 = vector.extract_strided_slice %34 {offsets = [0, 8], sizes = [128, 8], strides = [1, 1]} : vector<128x40xf32> to vector<128x8xf32>
    %cst_27 = arith.constant dense<0xFF800000> : vector<128xf32>
    %45 = vector.multi_reduction <maximumf>, %44, %cst_27 [1] : vector<128x8xf32> to vector<128xf32>
    %46 = vector.shape_cast %45 : vector<128xf32> to vector<128x1xf32>
    %47 = tpu.iota {dimensions = array<i32: 1>} : vector<128x8xi32>
    %48 = vector.broadcast %46 : vector<128x1xf32> to vector<128x8xf32>
    %49 = arith.cmpf oge, %44, %48 : vector<128x8xf32>
    %c8_i32_28 = arith.constant 8 : i32
    %50 = vector.broadcast %c8_i32_28 : i32 to vector<128x8xi32>
    %51 = arith.select %49, %47, %50 : vector<128x8xi1>, vector<128x8xi32>
    %cst_29 = arith.constant dense<2147483647> : vector<128xi32>
    %52 = vector.multi_reduction <minsi>, %51, %cst_29 [1] : vector<128x8xi32> to vector<128xi32>
    %53 = vector.extract_strided_slice %34 {offsets = [0, 16], sizes = [128, 8], strides = [1, 1]} : vector<128x40xf32> to vector<128x8xf32>
    %cst_30 = arith.constant dense<0xFF800000> : vector<128xf32>
    %54 = vector.multi_reduction <maximumf>, %53, %cst_30 [1] : vector<128x8xf32> to vector<128xf32>
    %55 = vector.shape_cast %54 : vector<128xf32> to vector<128x1xf32>
    %56 = tpu.iota {dimensions = array<i32: 1>} : vector<128x8xi32>
    %57 = vector.broadcast %55 : vector<128x1xf32> to vector<128x8xf32>
    %58 = arith.cmpf oge, %53, %57 : vector<128x8xf32>
    %c8_i32_31 = arith.constant 8 : i32
    %59 = vector.broadcast %c8_i32_31 : i32 to vector<128x8xi32>
    %60 = arith.select %58, %56, %59 : vector<128x8xi1>, vector<128x8xi32>
    %cst_32 = arith.constant dense<2147483647> : vector<128xi32>
    %61 = vector.multi_reduction <minsi>, %60, %cst_32 [1] : vector<128x8xi32> to vector<128xi32>
    %62 = vector.extract_strided_slice %34 {offsets = [0, 24], sizes = [128, 8], strides = [1, 1]} : vector<128x40xf32> to vector<128x8xf32>
    %cst_33 = arith.constant dense<0xFF800000> : vector<128xf32>
    %63 = vector.multi_reduction <maximumf>, %62, %cst_33 [1] : vector<128x8xf32> to vector<128xf32>
    %64 = vector.shape_cast %63 : vector<128xf32> to vector<128x1xf32>
    %65 = tpu.iota {dimensions = array<i32: 1>} : vector<128x8xi32>
    %66 = vector.broadcast %64 : vector<128x1xf32> to vector<128x8xf32>
    %67 = arith.cmpf oge, %62, %66 : vector<128x8xf32>
    %c8_i32_34 = arith.constant 8 : i32
    %68 = vector.broadcast %c8_i32_34 : i32 to vector<128x8xi32>
    %69 = arith.select %67, %65, %68 : vector<128x8xi1>, vector<128x8xi32>
    %cst_35 = arith.constant dense<2147483647> : vector<128xi32>
    %70 = vector.multi_reduction <minsi>, %69, %cst_35 [1] : vector<128x8xi32> to vector<128xi32>
    %71 = vector.extract_strided_slice %34 {offsets = [0, 32], sizes = [128, 8], strides = [1, 1]} : vector<128x40xf32> to vector<128x8xf32>
    %cst_36 = arith.constant dense<0xFF800000> : vector<128xf32>
    %72 = vector.multi_reduction <maximumf>, %71, %cst_36 [1] : vector<128x8xf32> to vector<128xf32>
    %73 = vector.shape_cast %72 : vector<128xf32> to vector<128x1xf32>
    %74 = tpu.iota {dimensions = array<i32: 1>} : vector<128x8xi32>
    %75 = vector.broadcast %73 : vector<128x1xf32> to vector<128x8xf32>
    %76 = arith.cmpf oge, %71, %75 : vector<128x8xf32>
    %c8_i32_37 = arith.constant 8 : i32
    %77 = vector.broadcast %c8_i32_37 : i32 to vector<128x8xi32>
    %78 = arith.select %76, %74, %77 : vector<128x8xi1>, vector<128x8xi32>
    %cst_38 = arith.constant dense<2147483647> : vector<128xi32>
    %79 = vector.multi_reduction <minsi>, %78, %cst_38 [1] : vector<128x8xi32> to vector<128xi32>
    %80 = arith.cmpi eq, %43, %43 : vector<128xi32>
    %81 = arith.extui %80 : vector<128xi1> to vector<128xi32>
    %82 = arith.cmpi eq, %52, %43 : vector<128xi32>
    %83 = arith.extui %82 : vector<128xi1> to vector<128xi32>
    %84 = arith.addi %81, %83 : vector<128xi32>
    %85 = arith.cmpi eq, %61, %43 : vector<128xi32>
    %86 = arith.extui %85 : vector<128xi1> to vector<128xi32>
    %87 = arith.addi %84, %86 : vector<128xi32>
    %88 = arith.cmpi eq, %70, %43 : vector<128xi32>
    %89 = arith.extui %88 : vector<128xi1> to vector<128xi32>
    %90 = arith.addi %87, %89 : vector<128xi32>
    %91 = arith.cmpi eq, %79, %43 : vector<128xi32>
    %92 = arith.extui %91 : vector<128xi1> to vector<128xi32>
    %93 = arith.addi %90, %92 : vector<128xi32>
    %94 = arith.cmpi eq, %43, %52 : vector<128xi32>
    %95 = arith.extui %94 : vector<128xi1> to vector<128xi32>
    %96 = arith.cmpi eq, %52, %52 : vector<128xi32>
    %97 = arith.extui %96 : vector<128xi1> to vector<128xi32>
    %98 = arith.addi %95, %97 : vector<128xi32>
    %99 = arith.cmpi eq, %61, %52 : vector<128xi32>
    %100 = arith.extui %99 : vector<128xi1> to vector<128xi32>
    %101 = arith.addi %98, %100 : vector<128xi32>
    %102 = arith.cmpi eq, %70, %52 : vector<128xi32>
    %103 = arith.extui %102 : vector<128xi1> to vector<128xi32>
    %104 = arith.addi %101, %103 : vector<128xi32>
    %105 = arith.cmpi eq, %79, %52 : vector<128xi32>
    %106 = arith.extui %105 : vector<128xi1> to vector<128xi32>
    %107 = arith.addi %104, %106 : vector<128xi32>
    %108 = arith.cmpi eq, %43, %61 : vector<128xi32>
    %109 = arith.extui %108 : vector<128xi1> to vector<128xi32>
    %110 = arith.cmpi eq, %52, %61 : vector<128xi32>
    %111 = arith.extui %110 : vector<128xi1> to vector<128xi32>
    %112 = arith.addi %109, %111 : vector<128xi32>
    %113 = arith.cmpi eq, %61, %61 : vector<128xi32>
    %114 = arith.extui %113 : vector<128xi1> to vector<128xi32>
    %115 = arith.addi %112, %114 : vector<128xi32>
    %116 = arith.cmpi eq, %70, %61 : vector<128xi32>
    %117 = arith.extui %116 : vector<128xi1> to vector<128xi32>
    %118 = arith.addi %115, %117 : vector<128xi32>
    %119 = arith.cmpi eq, %79, %61 : vector<128xi32>
    %120 = arith.extui %119 : vector<128xi1> to vector<128xi32>
    %121 = arith.addi %118, %120 : vector<128xi32>
    %122 = arith.cmpi eq, %43, %70 : vector<128xi32>
    %123 = arith.extui %122 : vector<128xi1> to vector<128xi32>
    %124 = arith.cmpi eq, %52, %70 : vector<128xi32>
    %125 = arith.extui %124 : vector<128xi1> to vector<128xi32>
    %126 = arith.addi %123, %125 : vector<128xi32>
    %127 = arith.cmpi eq, %61, %70 : vector<128xi32>
    %128 = arith.extui %127 : vector<128xi1> to vector<128xi32>
    %129 = arith.addi %126, %128 : vector<128xi32>
    %130 = arith.cmpi eq, %70, %70 : vector<128xi32>
    %131 = arith.extui %130 : vector<128xi1> to vector<128xi32>
    %132 = arith.addi %129, %131 : vector<128xi32>
    %133 = arith.cmpi eq, %79, %70 : vector<128xi32>
    %134 = arith.extui %133 : vector<128xi1> to vector<128xi32>
    %135 = arith.addi %132, %134 : vector<128xi32>
    %136 = arith.cmpi eq, %43, %79 : vector<128xi32>
    %137 = arith.extui %136 : vector<128xi1> to vector<128xi32>
    %138 = arith.cmpi eq, %52, %79 : vector<128xi32>
    %139 = arith.extui %138 : vector<128xi1> to vector<128xi32>
    %140 = arith.addi %137, %139 : vector<128xi32>
    %141 = arith.cmpi eq, %61, %79 : vector<128xi32>
    %142 = arith.extui %141 : vector<128xi1> to vector<128xi32>
    %143 = arith.addi %140, %142 : vector<128xi32>
    %144 = arith.cmpi eq, %70, %79 : vector<128xi32>
    %145 = arith.extui %144 : vector<128xi1> to vector<128xi32>
    %146 = arith.addi %143, %145 : vector<128xi32>
    %147 = arith.cmpi eq, %79, %79 : vector<128xi32>
    %148 = arith.extui %147 : vector<128xi1> to vector<128xi32>
    %149 = arith.addi %146, %148 : vector<128xi32>
    %150 = arith.maxsi %93, %107 : vector<128xi32>
    %151 = arith.maxsi %150, %121 : vector<128xi32>
    %152 = arith.maxsi %151, %135 : vector<128xi32>
    %153 = arith.maxsi %152, %149 : vector<128xi32>
    %154 = arith.cmpi eq, %135, %153 : vector<128xi32>
    %155 = arith.select %154, %70, %79 : vector<128xi1>, vector<128xi32>
    %156 = arith.cmpi eq, %121, %153 : vector<128xi32>
    %157 = arith.select %156, %61, %155 : vector<128xi1>, vector<128xi32>
    %158 = arith.cmpi eq, %107, %153 : vector<128xi32>
    %159 = arith.select %158, %52, %157 : vector<128xi1>, vector<128xi32>
    %160 = arith.cmpi eq, %93, %153 : vector<128xi32>
    %161 = arith.select %160, %43, %159 : vector<128xi1>, vector<128xi32>
    %162 = arith.sitofp %161 : vector<128xi32> to vector<128xf32>
    %163 = vector.shape_cast %162 : vector<128xf32> to vector<1x128xf32>
    %c0_39 = arith.constant 0 : index
    %c0_40 = arith.constant 0 : index
    %164 = vector.load %arg12[%c0_39, %c0_40] : memref<1x128xf32, #tpu.memory_space<vmem>>, vector<1x128xf32>
    tpu.vector_store %arg12[%c0_39, %c0_40], %163 {strides = array<i32>} : memref<1x128xf32, #tpu.memory_space<vmem>>, vector<1x128xf32>,
    return
  }
  func.func @transform_0(%arg0: i32) -> (i32, i32) {
    %c0_i32 = arith.constant 0 : i32
    %c0_i32_0 = arith.constant 0 : i32
    return %arg0, %c0_i32 : i32, i32
  }
  func.func @transform_1(%arg0: i32) -> (i32, i32) {
    %c0_i32 = arith.constant 0 : i32
    %c0_i32_0 = arith.constant 0 : i32
    %c0_i32_1 = arith.constant 0 : i32
    return %c0_i32, %c0_i32_0 : i32, i32
  }
  func.func @transform_2(%arg0: i32) -> (i32, i32) {
    %c0_i32 = arith.constant 0 : i32
    %c0_i32_0 = arith.constant 0 : i32
    %c0_i32_1 = arith.constant 0 : i32
    return %c0_i32, %c0_i32_0 : i32, i32
  }
  func.func @transform_3(%arg0: i32) -> (i32, i32) {
    %c0_i32 = arith.constant 0 : i32
    %c0_i32_0 = arith.constant 0 : i32
    %c0_i32_1 = arith.constant 0 : i32
    return %c0_i32, %c0_i32_0 : i32, i32
  }
  func.func @transform_4(%arg0: i32) -> (i32, i32) {
    %c0_i32 = arith.constant 0 : i32
    %c0_i32_0 = arith.constant 0 : i32
    %c0_i32_1 = arith.constant 0 : i32
    return %c0_i32, %c0_i32_0 : i32, i32
  }
  func.func @transform_5(%arg0: i32) -> (i32, i32) {
    %c0_i32 = arith.constant 0 : i32
    %c0_i32_0 = arith.constant 0 : i32
    %c0_i32_1 = arith.constant 0 : i32
    return %c0_i32, %c0_i32_0 : i32, i32
  }
  func.func @transform_6(%arg0: i32) -> (i32, i32) {
    %c0_i32 = arith.constant 0 : i32
    %c0_i32_0 = arith.constant 0 : i32
    %c0_i32_1 = arith.constant 0 : i32
    return %c0_i32, %c0_i32_0 : i32, i32
  }
  func.func @transform_7(%arg0: i32) -> (i32, i32) {
    %c0_i32 = arith.constant 0 : i32
    %c0_i32_0 = arith.constant 0 : i32
    %c0_i32_1 = arith.constant 0 : i32
    return %c0_i32, %c0_i32_0 : i32, i32
  }
  func.func @transform_8(%arg0: i32) -> (i32, i32) {
    %c0_i32 = arith.constant 0 : i32
    %c0_i32_0 = arith.constant 0 : i32
    %c0_i32_1 = arith.constant 0 : i32
    return %c0_i32, %c0_i32_0 : i32, i32
  }
  func.func @transform_9(%arg0: i32) -> (i32, i32) {
    %c0_i32 = arith.constant 0 : i32
    %c0_i32_0 = arith.constant 0 : i32
    %c0_i32_1 = arith.constant 0 : i32
    return %c0_i32, %c0_i32_0 : i32, i32
  }
  func.func @transform_10(%arg0: i32) -> (i32, i32) {
    %c0_i32 = arith.constant 0 : i32
    %c0_i32_0 = arith.constant 0 : i32
    %c0_i32_1 = arith.constant 0 : i32
    return %c0_i32, %c0_i32_0 : i32, i32
  }
  func.func @transform_11(%arg0: i32) -> (i32, i32) {
    %c0_i32 = arith.constant 0 : i32
    %c0_i32_0 = arith.constant 0 : i32
    return %c0_i32, %arg0 : i32, i32
  }
}

</mosaic_0001>

<llo_original>
// kernel: pixel_classifier_ensemble_forward.3
$region0: #{pixel_classifier_ensemble_forward.3}
  #allocation0 [shape = 'u32[]', space=smem, size = 0x4, offset = 0x4, fixed_abs, tag = 'smem constant byte address 0x4 - core index']
  #allocation1 [shape = 'u32[144,128]{1,0:T(1,128)}', space=vmem, size = 0x12000, scoped, tag = 'internal scratch']
  %s0 = inlined_call_operand.vmem [shape: f32[384,32], index: 0, kind: input, shape index: {}]
  %s1 = inlined_call_operand.vmem [shape: bf16[32,640], index: 1, kind: input, shape index: {}]
  %s2 = inlined_call_operand.vmem [shape: f32[1,640], index: 2, kind: input, shape index: {}]
  %s3 = inlined_call_operand.vmem [shape: f32[1,640], index: 3, kind: output, shape index: {0}]
  %s4 = inlined_call_operand.vmem [shape: f32[1,640], index: 4, kind: output, shape index: {1}]
  %5 = xla_tuple %s3, %s4
  %s6 = sld [smem:[#allocation0]]
  $region57: #{pixel_classifier_ensemble_forward.3} parent=0
    _
  %s8 = ssub.s32 1, %s6
  %s9 = scalar_select 0, %s8, %s6
  loop: start=0, step=1, limit=5
  $region2: #{pixel_classifier_ensemble_forward.3} parent=0 // loop_pre_header
    _
  $region3: #{pixel_classifier_ensemble_forward.3} parent=0 // loop_header
    %s11 = sphi 0, %s15
    %p12 = scmp.ge.s32.totalorder %s11, 5
    %s21 = sphi 0, %s23
    %s24 = sphi 0, %s21
    %s25 = sphi 0, %s24
    %s41 = sphi 0, %s25
    %s45 = sphi 0, %s45
    %s47 = sphi 0, %s45
    %s48 = sphi 0, %s47
    %s62 = sphi 0, %s48
    %s66 = sphi 0, %s66
    %s68 = sphi 0, %s66
    %s69 = sphi 0, %s68
    %s83 = sphi 0, %s69
    %s87 = sphi 0, %s87
    %s89 = sphi 0, %s87
    %s90 = sphi 0, %s89
    %s104 = sphi 0, %s90
    %s108 = sphi 0, %s108
    %s110 = sphi 0, %s108
    %s111 = sphi 0, %s110
    %s125 = sphi 0, %s111
  $region4: #{pixel_classifier_ensemble_forward.3} parent=0 // loop_header_branch
    %14 = sbr.rel (%p12) target = $region8
  $region5: #{pixel_classifier_ensemble_forward.3} parent=0 // loop_body
    %s16 = ssub.s32 %s11, 1
    %s17 = ssub.s32 %s11, 2
    %s18 = sadd.s32 %s11, 1
    %s19 = ssub.s32 %s11, %s18
    %p20 = scmp.eq.s32.totalorder %s19, 0
    %s22 = sadd.s32 %s21, 1
    %s23 = scalar_select %p20, %s21, %s22
    %p26 = pneg %p20
    %p27 = scmp.eq.s32.totalorder %s11, 2
    %p28 = por %p26, %p27
    %p29 = scmp.ne.s32.totalorder %s21, %s24
    %p30 = scmp.eq.s32.totalorder %s11, 0
    %p31 = por %p29, %p30
    %p32 = scmp.ne.s32.totalorder %s21, %s24
    %p33 = scmp.eq.s32.totalorder %s16, 2
    %p34 = por %p32, %p33
    %p35 = scmp.ne.s32.totalorder %s24, %s25
    %p36 = scmp.eq.s32.totalorder %s16, 0
    %p37 = por %p35, %p36
    %p38 = scmp.ne.s32.totalorder %s24, %s25
    %p39 = scmp.eq.s32.totalorder %s17, 2
    %p40 = por %p38, %p39
    %p42 = scmp.ne.s32.totalorder %s25, %s41
    %p43 = scmp.eq.s32.totalorder %s17, 0
    %p44 = por %p42, %p43
    %s46 = sadd.s32 %s45, 1
    %p49 = scmp.eq.s32.totalorder %s11, 2
    %p50 = scmp.ne.s32.totalorder %s45, %s47
    %p51 = scmp.eq.s32.totalorder %s11, 0
    %p52 = por %p50, %p51
    %p53 = scmp.ne.s32.totalorder %s45, %s47
    %p54 = scmp.eq.s32.totalorder %s16, 2
    %p55 = por %p53, %p54
    %p56 = scmp.ne.s32.totalorder %s47, %s48
    %p57 = scmp.eq.s32.totalorder %s16, 0
    %p58 = por %p56, %p57
    %p59 = scmp.ne.s32.totalorder %s47, %s48
    %p60 = scmp.eq.s32.totalorder %s17, 2
    %p61 = por %p59, %p60
    %p63 = scmp.ne.s32.totalorder %s48, %s62
    %p64 = scmp.eq.s32.totalorder %s17, 0
    %p65 = por %p63, %p64
    %s67 = sadd.s32 %s66, 1
    %p70 = scmp.eq.s32.totalorder %s11, 2
    %p71 = scmp.ne.s32.totalorder %s66, %s68
    %p72 = scmp.eq.s32.totalorder %s11, 0
    %p73 = por %p71, %p72
    %p74 = scmp.ne.s32.totalorder %s66, %s68
    %p75 = scmp.eq.s32.totalorder %s16, 2
    %p76 = por %p74, %p75
    %p77 = scmp.ne.s32.totalorder %s68, %s69
    %p78 = scmp.eq.s32.totalorder %s16, 0
    %p79 = por %p77, %p78
    %p80 = scmp.ne.s32.totalorder %s68, %s69
    %p81 = scmp.eq.s32.totalorder %s17, 2
    %p82 = por %p80, %p81
    %p84 = scmp.ne.s32.totalorder %s69, %s83
    %p85 = scmp.eq.s32.totalorder %s17, 0
    %p86 = por %p84, %p85
    %s88 = sadd.s32 %s87, 1
    %p91 = scmp.eq.s32.totalorder %s11, 2
    %p92 = scmp.ne.s32.totalorder %s87, %s89
    %p93 = scmp.eq.s32.totalorder %s11, 0
    %p94 = por %p92, %p93
    %p95 = scmp.ne.s32.totalorder %s87, %s89
    %p96 = scmp.eq.s32.totalorder %s16, 2
    %p97 = por %p95, %p96
    %p98 = scmp.ne.s32.totalorder %s89, %s90
    %p99 = scmp.eq.s32.totalorder %s16, 0
    %p100 = por %p98, %p99
    %p101 = scmp.ne.s32.totalorder %s89, %s90
    %p102 = scmp.eq.s32.totalorder %s17, 2
    %p103 = por %p101, %p102
    %p105 = scmp.ne.s32.totalorder %s90, %s104
    %p106 = scmp.eq.s32.totalorder %s17, 0
    %p107 = por %p105, %p106
    %s109 = sadd.s32 %s108, 1
    %p112 = scmp.eq.s32.totalorder %s11, 2
    %p113 = scmp.ne.s32.totalorder %s108, %s110
    %p114 = scmp.eq.s32.totalorder %s11, 0
    %p115 = por %p113, %p114
    %p116 = scmp.ne.s32.totalorder %s108, %s110
    %p117 = scmp.eq.s32.totalorder %s16, 2
    %p118 = por %p116, %p117
    %p119 = scmp.ne.s32.totalorder %s110, %s111
    %p120 = scmp.eq.s32.totalorder %s16, 0
    %p121 = por %p119, %p120
    %p122 = scmp.ne.s32.totalorder %s110, %s111
    %p123 = scmp.eq.s32.totalorder %s17, 2
    %p124 = por %p122, %p123
    %p126 = scmp.ne.s32.totalorder %s111, %s125
    %p127 = scmp.eq.s32.totalorder %s17, 0
    %p128 = por %p126, %p127
    %p129 = scmp.le.s32.totalorder 1, %s11
    %p130 = scmp.lt.s32.totalorder %s11, 4
    %p131 = pnand %p129, %p130
    %p132 = pneg %p131
    // Predicated region
    $region9: #{pixel_classifier_ensemble_forward.3} parent=5 // pred_check
      _
    $region10: #{pixel_classifier_ensemble_forward.3} parent=5 // pred_check_branch
      %134 = sbr.rel (%p131) target = $region12
    $region11: #{pixel_classifier_ensemble_forward.3} parent=5 // pred_region
      %s135 = ssub.s32 %s11, 1
      // Predicated region
      $region13: #{pixel_classifier_ensemble_forward.3} parent=11 // pred_check
        %p136 = pneg %p58
      $region14: #{pixel_classifier_ensemble_forward.3} parent=11 // pred_check_branch
        %138 = sbr.rel (%p136) target = $region16
      $region15: #{pixel_classifier_ensemble_forward.3} parent=11 // pred_region
        _
      $region16: #{pixel_classifier_ensemble_forward.3} parent=11 // pred_fallthru
        _
      // Predicated region
      $region17: #{pixel_classifier_ensemble_forward.3} parent=11 // pred_check
        %p139 = pneg %p79
      $region18: #{pixel_classifier_ensemble_forward.3} parent=11 // pred_check_branch
        %141 = sbr.rel (%p139) target = $region20
      $region19: #{pixel_classifier_ensemble_forward.3} parent=11 // pred_region
        _
      $region20: #{pixel_classifier_ensemble_forward.3} parent=11 // pred_fallthru
        _
    $region12: #{pixel_classifier_ensemble_forward.3} parent=5 // pred_fallthru
      _
    %p142 = scmp.lt.s32.totalorder %s11, 3
    // Predicated region
    $region21: #{pixel_classifier_ensemble_forward.3} parent=5 // pred_check
      %p143 = pneg %p142
    $region22: #{pixel_classifier_ensemble_forward.3} parent=5 // pred_check_branch
      %145 = sbr.rel (%p143) target = $region24
    $region23: #{pixel_classifier_ensemble_forward.3} parent=5 // pred_region
      // Predicated region
      $region25: #{pixel_classifier_ensemble_forward.3} parent=23 // pred_check
        %p146 = pneg %p31
      $region26: #{pixel_classifier_ensemble_forward.3} parent=23 // pred_check_branch
        %148 = sbr.rel (%p146) target = $region28
      $region27: #{pixel_classifier_ensemble_forward.3} parent=23 // pred_region
        %s149 = smul.u32 16, %s11
        %p150 = scmp.lt.s32.totalorder %s149, 47
        %s151 = scalar_select %p150, %s149, 47
        %s152 = smul.addr %s151, 8
        %s153 = scalar_lea.vmem %s0, %s152
        %s154 = smul.u32 16, %s11
      $region28: #{pixel_classifier_ensemble_forward.3} parent=23 // pred_fallthru
        _
    $region24: #{pixel_classifier_ensemble_forward.3} parent=5 // pred_fallthru
      _
    %p155 = scmp.le.s32.totalorder 1, %s11
    %p156 = scmp.lt.s32.totalorder %s11, 4
    %p157 = pnand %p155, %p156
    %p158 = pneg %p157
    // Predicated region
    $region29: #{pixel_classifier_ensemble_forward.3} parent=5 // pred_check
      _
    $region30: #{pixel_classifier_ensemble_forward.3} parent=5 // pred_check_branch
      %160 = sbr.rel (%p157) target = $region32
    $region31: #{pixel_classifier_ensemble_forward.3} parent=5 // pred_region
      %s161 = ssub.s32 %s11, 1
      %s162 = smul.u32 16, %s16
      %p163 = scmp.lt.s32.totalorder %s162, 47
      %s164 = scalar_select %p163, %s162, 47
      %s165 = smul.addr %s164, 8
      %s166 = scalar_lea.vmem %s0, %s165
      %p167 = pneg %p37
      %p168 = pneg %p34
      %p169 = pneg %p58
      %p170 = pneg %p55
      %p171 = pneg %p79
      %p172 = pneg %p76
      %p173 = pneg %p100
      %p174 = pneg %p97
      %p175 = pneg %p121
      %p176 = pneg %p118
      %s177 = smul.u32 16, %s16
      %p178 = scmp.lt.s32.totalorder %s177, 47
      %s179 = scalar_select %p178, %s177, 47
      %s180 = smul.addr %s179, 8
      %s181 = scalar_lea.vmem %s0, %s180
      %s182 = smul.u32 16, %s16
      %p184 = scmp.eq.s32.totalorder %s16, 0
      // Predicated region
      $region33: #{pixel_classifier_ensemble_forward.3} parent=31 // pred_check
        %p185 = pneg %p184
      $region34: #{pixel_classifier_ensemble_forward.3} parent=31 // pred_check_branch
        %187 = sbr.rel (%p185) target = $region36
      $region35: #{pixel_classifier_ensemble_forward.3} parent=31 // pred_region
        %v188 = vlaneseq
        %vm189 = vcmp.ge.s32.totalorder %v188, 0
        %vm190 = vcmp.lt.s32.totalorder %v188, 640
        %vm191 = vmand %vm189, %vm190
        %192 = vst.msk [vmem:[%s3] sm:$0x1f] %vm191, 0.0
        %193 = vst.msk [vmem:[%s4] sm:$0x1f] %vm191, 0.0
      $region36: #{pixel_classifier_ensemble_forward.3} parent=31 // pred_fallthru
        _
      %v194 = vld [vmem:[%s181] sm:$0xff]
      %v195 = vld [vmem:[%s181 + $0x8] sm:$0xff]
      %v196 = vld [vmem:[%s181 + $0x10] sm:$0xff]
      %v197 = vld [vmem:[%s181 + $0x18] sm:$0xff]
      %v198 = vld [vmem:[%s181 + $0x20] sm:$0xff]
      %v199 = vld [vmem:[%s181 + $0x28] sm:$0xff]
      %v200 = vld [vmem:[%s181 + $0x30] sm:$0xff]
      %v201 = vld [vmem:[%s181 + $0x38] sm:$0xff]
      %v202 = vld [vmem:[%s181 + $0x40] sm:$0xff]
      %v203 = vld [vmem:[%s181 + $0x48] sm:$0xff]
      %v204 = vld [vmem:[%s181 + $0x50] sm:$0xff]
      %v205 = vld [vmem:[%s181 + $0x58] sm:$0xff]
      %v206 = vld [vmem:[%s181 + $0x60] sm:$0xff]
      %v207 = vld [vmem:[%s181 + $0x68] sm:$0xff]
      %v208 = vld [vmem:[%s181 + $0x70] sm:$0xff]
      %v209 = vld [vmem:[%s181 + $0x78] sm:$0xff]
      %v210 = vpack.c.bf16 %v195, %v194
      %v211 = vpack.c.bf16 %v197, %v196
      %v212 = vpack.c.bf16 %v199, %v198
      %v213 = vpack.c.bf16 %v201, %v200
      %v214 = vpack.c.bf16 %v203, %v202
      %v215 = vpack.c.bf16 %v205, %v204
      %v216 = vpack.c.bf16 %v207, %v206
      %v217 = vpack.c.bf16 %v209, %v208
      %v218 = vld [vmem:[%s1] sm:$0xff]
      %v219 = vld [vmem:[%s1 + $0x8] sm:$0xff]
      %v220 = vld [vmem:[%s1 + $0x10] sm:$0xf]
      %v221 = vld [vmem:[%s1 + $0x14] sm:$0xff]
      %v222 = vld [vmem:[%s1 + $0x1c] sm:$0xff]
      %v223 = vld [vmem:[%s1 + $0x24] sm:$0xf]
      %v224 = vld [vmem:[%s1 + $0x28] sm:$0xff]
      %v225 = vld [vmem:[%s1 + $0x30] sm:$0xff]
      %v226 = vld [vmem:[%s1 + $0x38] sm:$0xf]
      %v227 = vld [vmem:[%s1 + $0x3c] sm:$0xff]
      %v228 = vld [vmem:[%s1 + $0x44] sm:$0xff]
      %v229 = vld [vmem:[%s1 + $0x4c] sm:$0xf]
      %v230 = vld [vmem:[%s2] sm:$0x1f]
      %v232 = vlaneseq
      %v233 = vshrl.u32 %v232, 7
      %v234 = vsub.s32 0, %v233
      %v235 = vrot.slane %v230, %v234
      %v236 = vlaneseq
      %v237 = vshrl.u32 %v236, 7
      %v238 = vsub.s32 1, %v237
      %v239 = vrot.slane %v230, %v238
      %v240 = vlaneseq
      %v241 = vshrl.u32 %v240, 7
      %v242 = vsub.s32 2, %v241
      %v243 = vrot.slane %v230, %v242
      %v244 = vlaneseq
      %v245 = vshrl.u32 %v244, 7
      %v246 = vsub.s32 3, %v245
      %v247 = vrot.slane %v230, %v246
      %v248 = vlaneseq
      %v249 = vshrl.u32 %v248, 7
      %v250 = vsub.s32 4, %v249
      %v251 = vrot.slane %v230, %v250
      %v269 = vunpack.c.l.b16 %v218
      %v270 = vunpack.c.h.b16 %v218
      %v271 = vunpack.c.l.b16 %v219
      %v272 = vunpack.c.h.b16 %v219
      %v273 = vunpack.c.l.b16 %v220
      %v274 = vunpack.c.l.b16 %v221
      %v275 = vunpack.c.h.b16 %v221
      %v276 = vunpack.c.l.b16 %v222
      %v277 = vunpack.c.h.b16 %v222
      %v278 = vunpack.c.l.b16 %v223
      %v279 = vunpack.c.l.b16 %v224
      %v280 = vunpack.c.h.b16 %v224
      %v281 = vunpack.c.l.b16 %v225
      %v282 = vunpack.c.h.b16 %v225
      %v283 = vunpack.c.l.b16 %v226
      %v284 = vunpack.c.l.b16 %v227
      %v285 = vunpack.c.h.b16 %v227
      %v286 = vunpack.c.l.b16 %v228
      %v287 = vunpack.c.h.b16 %v228
      %v288 = vunpack.c.l.b16 %v229
      %v289 = vpack.c.b16 %v274, %v269
      %v290 = vpack.c.b16 %v275, %v270
      %v291 = vpack.c.b16 %v276, %v271
      %v292 = vpack.c.b16 %v277, %v272
      %v293 = vpack.c.b16 %v278, %v273
      %v294 = vpack.c.b16 %v284, %v279
      %v295 = vpack.c.b16 %v285, %v280
      %v296 = vpack.c.b16 %v286, %v281
      %v297 = vpack.c.b16 %v287, %v282
      %v298 = vpack.c.b16 %v288, %v283
      %vm309 = vcmask 261120
      %v311 = vsel %vm309, %v210, 0
      %v314 = vsel %vm309, %v211, 0
      %v317 = vsel %vm309, %v212, 0
      %v320 = vsel %vm309, %v213, 0
      %v323 = vsel %vm309, %v214, 0
      %v326 = vsel %vm309, %v215, 0
      %v329 = vsel %vm309, %v216, 0
      %v332 = vsel %vm309, %v217, 0
      %334 = vmatprep.subr.bf16.mxu0 0
      %335 = vmatpush1.bf16.msra.mxu0 0
      %336 = vmatprep.subr.bf16.mxu0 0
      %337 = vmatpush1.bf16.msra.mxu0 0
      %338 = vmatprep.subr.bf16.mxu0 0
      %339 = vmatpush1.bf16.msra.mxu0 0
      %340 = vmatprep.subr.bf16.mxu0 0
      %341 = vmatpush1.bf16.msra.mxu0 0
      %342 = vmatprep.subr.bf16.mxu0 0
      %343 = vmatpush1.bf16.msra.mxu0 0
      %344 = vmatprep.subr.bf16.mxu0 0
      %345 = vmatpush1.bf16.msra.mxu0 0
      %346 = vmatprep.subr.bf16.mxu0 %v295
      %347 = vmatpush1.bf16.msra.mxu0 %v294
      %348 = vmatprep.subr.bf16.mxu0 %v290
      %349 = vmatpush1.bf16.msra.mxu0 %v289
      %350 = vmatprep.subr.bf16.mxu0 0
      %351 = vmatpush2.bf16.msra.mxu0 0
      %352 = vmatprep.subr.bf16.mxu0 0
      %353 = vmatpush2.bf16.msra.mxu0 0
      %354 = vmatprep.subr.bf16.mxu0 0
      %355 = vmatpush2.bf16.msra.mxu0 0
      %356 = vmatprep.subr.bf16.mxu0 0
      %357 = vmatpush2.bf16.msra.mxu0 0
      %358 = vmatprep.subr.bf16.mxu0 0
      %359 = vmatpush2.bf16.msra.mxu0 0
      %360 = vmatprep.subr.bf16.mxu0 0
      %361 = vmatpush2.bf16.msra.mxu0 0
      %362 = vmatprep.subr.bf16.mxu0 0
      %363 = vmatpush2.bf16.msra.mxu0 0
      %364 = vmatprep.subr.bf16.mxu0 0
      %365 = vmatpush2.bf16.msra.mxu0 0
      %366 = vmatprep.mubr.bf16.mxu0 0
      %367 = vmatmul.mubr.bf16.gmra.mxu0 %v311
      %v368 = vpop.f32.mrf.mxu0
      %v369 = vadd.f32 %v235, %v368
      %v370 = vpop.f32.mrf.mxu0
      %v371 = vadd.f32 %v239, %v370
      %v372 = vpop.f32.mrf.mxu0
      %v373 = vadd.f32 %v235, %v372
      %v374 = vpop.f32.mrf.mxu0
      %v375 = vadd.f32 %v239, %v374
      %376 = vmatprep.mubr.bf16.mxu0 0
      %377 = vmatmul.mubr.bf16.gmra.mxu0 %v314
      %v378 = vpop.f32.mrf.mxu0
      %v379 = vadd.f32 %v235, %v378
      %v380 = vpop.f32.mrf.mxu0
      %v381 = vadd.f32 %v239, %v380
      %v382 = vpop.f32.mrf.mxu0
      %v383 = vadd.f32 %v235, %v382
      %v384 = vpop.f32.mrf.mxu0
      %v385 = vadd.f32 %v239, %v384
      %386 = vmatprep.mubr.bf16.mxu0 0
      %387 = vmatmul.mubr.bf16.gmra.mxu0 %v317
      %v388 = vpop.f32.mrf.mxu0
      %v389 = vadd.f32 %v235, %v388
      %v390 = vpop.f32.mrf.mxu0
      %v391 = vadd.f32 %v239, %v390
      %v392 = vpop.f32.mrf.mxu0
      %v393 = vadd.f32 %v235, %v392
      %v394 = vpop.f32.mrf.mxu0
      %v395 = vadd.f32 %v239, %v394
      %396 = vmatprep.mubr.bf16.mxu0 0
      %397 = vmatmul.mubr.bf16.gmra.mxu0 %v320
      %v398 = vpop.f32.mrf.mxu0
      %v399 = vadd.f32 %v235, %v398
      %v400 = vpop.f32.mrf.mxu0
      %v401 = vadd.f32 %v239, %v400
      %v402 = vpop.f32.mrf.mxu0
      %v403 = vadd.f32 %v235, %v402
      %v404 = vpop.f32.mrf.mxu0
      %v405 = vadd.f32 %v239, %v404
      %406 = vmatprep.mubr.bf16.mxu0 0
      %407 = vmatmul.mubr.bf16.gmra.mxu0 %v323
      %v408 = vpop.f32.mrf.mxu0
      %v409 = vadd.f32 %v235, %v408
      %v410 = vpop.f32.mrf.mxu0
      %v411 = vadd.f32 %v239, %v410
      %v412 = vpop.f32.mrf.mxu0
      %v413 = vadd.f32 %v235, %v412
      %v414 = vpop.f32.mrf.mxu0
      %v415 = vadd.f32 %v239, %v414
      %416 = vmatprep.mubr.bf16.mxu0 0
      %417 = vmatmul.mubr.bf16.gmra.mxu0 %v326
      %v418 = vpop.f32.mrf.mxu0
      %v419 = vadd.f32 %v235, %v418
      %v420 = vpop.f32.mrf.mxu0
      %v421 = vadd.f32 %v239, %v420
      %v422 = vpop.f32.mrf.mxu0
      %v423 = vadd.f32 %v235, %v422
      %v424 = vpop.f32.mrf.mxu0
      %v425 = vadd.f32 %v239, %v424
      %426 = vmatprep.mubr.bf16.mxu0 0
      %427 = vmatmul.mubr.bf16.gmra.mxu0 %v329
      %v428 = vpop.f32.mrf.mxu0
      %v429 = vadd.f32 %v235, %v428
      %v430 = vpop.f32.mrf.mxu0
      %v431 = vadd.f32 %v239, %v430
      %v432 = vpop.f32.mrf.mxu0
      %v433 = vadd.f32 %v235, %v432
      %v434 = vpop.f32.mrf.mxu0
      %v435 = vadd.f32 %v239, %v434
      %436 = vmatprep.mubr.bf16.mxu0 0
      %437 = vmatmul.mubr.bf16.gmra.mxu0 %v332
      %v438 = vpop.f32.mrf.mxu0
      %v439 = vadd.f32 %v235, %v438
      %v440 = vpop.f32.mrf.mxu0
      %v441 = vadd.f32 %v239, %v440
      %v442 = vpop.f32.mrf.mxu0
      %v443 = vadd.f32 %v235, %v442
      %v444 = vpop.f32.mrf.mxu0
      %v445 = vadd.f32 %v239, %v444
      %446 = vdwg.mxu0
      %447 = vmatprep.subr.bf16.mxu0 0
      %448 = vmatpush1.bf16.msra.mxu0 0
      %449 = vmatprep.subr.bf16.mxu0 0
      %450 = vmatpush1.bf16.msra.mxu0 0
      %451 = vmatprep.subr.bf16.mxu0 0
      %452 = vmatpush1.bf16.msra.mxu0 0
      %453 = vmatprep.subr.bf16.mxu0 0
      %454 = vmatpush1.bf16.msra.mxu0 0
      %455 = vmatprep.subr.bf16.mxu0 0
      %456 = vmatpush1.bf16.msra.mxu0 0
      %457 = vmatprep.subr.bf16.mxu0 0
      %458 = vmatpush1.bf16.msra.mxu0 0
      %459 = vmatprep.subr.bf16.mxu0 %v297
      %460 = vmatpush1.bf16.msra.mxu0 %v296
      %461 = vmatprep.subr.bf16.mxu0 %v292
      %462 = vmatpush1.bf16.msra.mxu0 %v291
      %463 = vmatprep.subr.bf16.mxu0 0
      %464 = vmatpush2.bf16.msra.mxu0 0
      %465 = vmatprep.subr.bf16.mxu0 0
      %466 = vmatpush2.bf16.msra.mxu0 0
      %467 = vmatprep.subr.bf16.mxu0 0
      %468 = vmatpush2.bf16.msra.mxu0 0
      %469 = vmatprep.subr.bf16.mxu0 0
      %470 = vmatpush2.bf16.msra.mxu0 0
      %471 = vmatprep.subr.bf16.mxu0 0
      %472 = vmatpush2.bf16.msra.mxu0 0
      %473 = vmatprep.subr.bf16.mxu0 0
      %474 = vmatpush2.bf16.msra.mxu0 0
      %475 = vmatprep.subr.bf16.mxu0 0
      %476 = vmatpush2.bf16.msra.mxu0 0
      %477 = vmatprep.subr.bf16.mxu0 0
      %478 = vmatpush2.bf16.msra.mxu0 0
      %479 = vmatprep.mubr.bf16.mxu0 0
      %480 = vmatmul.mubr.bf16.gmra.mxu0 %v311
      %v481 = vpop.f32.mrf.mxu0
      %v482 = vadd.f32 %v243, %v481
      %v483 = vpop.f32.mrf.mxu0
      %v484 = vadd.f32 %v247, %v483
      %v485 = vpop.f32.mrf.mxu0
      %v486 = vadd.f32 %v243, %v485
      %v487 = vpop.f32.mrf.mxu0
      %v488 = vadd.f32 %v247, %v487
      %489 = vmatprep.mubr.bf16.mxu0 0
      %490 = vmatmul.mubr.bf16.gmra.mxu0 %v314
      %v491 = vpop.f32.mrf.mxu0
      %v492 = vadd.f32 %v243, %v491
      %v493 = vpop.f32.mrf.mxu0
      %v494 = vadd.f32 %v247, %v493
      %v495 = vpop.f32.mrf.mxu0
      %v496 = vadd.f32 %v243, %v495
      %v497 = vpop.f32.mrf.mxu0
      %v498 = vadd.f32 %v247, %v497
      %499 = vmatprep.mubr.bf16.mxu0 0
      %500 = vmatmul.mubr.bf16.gmra.mxu0 %v317
      %v501 = vpop.f32.mrf.mxu0
      %v502 = vadd.f32 %v243, %v501
      %v503 = vpop.f32.mrf.mxu0
      %v504 = vadd.f32 %v247, %v503
      %v505 = vpop.f32.mrf.mxu0
      %v506 = vadd.f32 %v243, %v505
      %v507 = vpop.f32.mrf.mxu0
      %v508 = vadd.f32 %v247, %v507
      %509 = vmatprep.mubr.bf16.mxu0 0
      %510 = vmatmul.mubr.bf16.gmra.mxu0 %v320
      %v511 = vpop.f32.mrf.mxu0
      %v512 = vadd.f32 %v243, %v511
      %v513 = vpop.f32.mrf.mxu0
      %v514 = vadd.f32 %v247, %v513
      %v515 = vpop.f32.mrf.mxu0
      %v516 = vadd.f32 %v243, %v515
      %v517 = vpop.f32.mrf.mxu0
      %v518 = vadd.f32 %v247, %v517
      %519 = vmatprep.mubr.bf16.mxu0 0
      %520 = vmatmul.mubr.bf16.gmra.mxu0 %v323
      %v521 = vpop.f32.mrf.mxu0
      %v522 = vadd.f32 %v243, %v521
      %v523 = vpop.f32.mrf.mxu0
      %v524 = vadd.f32 %v247, %v523
      %v525 = vpop.f32.mrf.mxu0
      %v526 = vadd.f32 %v243, %v525
      %v527 = vpop.f32.mrf.mxu0
      %v528 = vadd.f32 %v247, %v527
      %529 = vmatprep.mubr.bf16.mxu0 0
      %530 = vmatmul.mubr.bf16.gmra.mxu0 %v326
      %v531 = vpop.f32.mrf.mxu0
      %v532 = vadd.f32 %v243, %v531
      %v533 = vpop.f32.mrf.mxu0
      %v534 = vadd.f32 %v247, %v533
      %v535 = vpop.f32.mrf.mxu0
      %v536 = vadd.f32 %v243, %v535
      %v537 = vpop.f32.mrf.mxu0
      %v538 = vadd.f32 %v247, %v537
      %539 = vmatprep.mubr.bf16.mxu0 0
      %540 = vmatmul.mubr.bf16.gmra.mxu0 %v329
      %v541 = vpop.f32.mrf.mxu0
      %v542 = vadd.f32 %v243, %v541
      %v543 = vpop.f32.mrf.mxu0
      %v544 = vadd.f32 %v247, %v543
      %v545 = vpop.f32.mrf.mxu0
      %v546 = vadd.f32 %v243, %v545
      %v547 = vpop.f32.mrf.mxu0
      %v548 = vadd.f32 %v247, %v547
      %549 = vmatprep.mubr.bf16.mxu0 0
      %550 = vmatmul.mubr.bf16.gmra.mxu0 %v332
      %v551 = vpop.f32.mrf.mxu0
      %v552 = vadd.f32 %v243, %v551
      %v553 = vpop.f32.mrf.mxu0
      %v554 = vadd.f32 %v247, %v553
      %v555 = vpop.f32.mrf.mxu0
      %v556 = vadd.f32 %v243, %v555
      %v557 = vpop.f32.mrf.mxu0
      %v558 = vadd.f32 %v247, %v557
      %559 = vdwg.mxu0
      %560 = vmatprep.subr.bf16.mxu0 0
      %561 = vmatpush1.bf16.msra.mxu0 0
      %562 = vmatprep.subr.bf16.mxu0 0
      %563 = vmatpush1.bf16.msra.mxu0 0
      %564 = vmatprep.subr.bf16.mxu0 0
      %565 = vmatpush1.bf16.msra.mxu0 0
      %566 = vmatprep.subr.bf16.mxu0 0
      %567 = vmatpush1.bf16.msra.mxu0 0
      %568 = vmatprep.subr.bf16.mxu0 0
      %569 = vmatpush1.bf16.msra.mxu0 0
      %570 = vmatprep.subr.bf16.mxu0 0
      %571 = vmatpush1.bf16.msra.mxu0 0
      %572 = vmatprep.subr.bf16.mxu0 0
      %573 = vmatpush1.bf16.msra.mxu0 %v298
      %574 = vmatprep.subr.bf16.mxu0 0
      %575 = vmatpush1.bf16.msra.mxu0 %v293
      %576 = vmatprep.subr.bf16.mxu0 0
      %577 = vmatpush2.bf16.msra.mxu0 0
      %578 = vmatprep.subr.bf16.mxu0 0
      %579 = vmatpush2.bf16.msra.mxu0 0
      %580 = vmatprep.subr.bf16.mxu0 0
      %581 = vmatpush2.bf16.msra.mxu0 0
      %582 = vmatprep.subr.bf16.mxu0 0
      %583 = vmatpush2.bf16.msra.mxu0 0
      %584 = vmatprep.subr.bf16.mxu0 0
      %585 = vmatpush2.bf16.msra.mxu0 0
      %586 = vmatprep.subr.bf16.mxu0 0
      %587 = vmatpush2.bf16.msra.mxu0 0
      %588 = vmatprep.subr.bf16.mxu0 0
      %589 = vmatpush2.bf16.msra.mxu0 0
      %590 = vmatprep.subr.bf16.mxu0 0
      %591 = vmatpush2.bf16.msra.mxu0 0
      %592 = vmatprep.mubr.bf16.mxu0 0
      %593 = vmatmul.mubr.bf16.gmra.mxu0 %v311
      %v594 = vpop.f32.mrf.mxu0
      %v595 = vadd.f32 %v251, %v594
      %v596 = vpop.f32.mrf.mxu0
      %v597 = vpop.f32.mrf.mxu0
      %v598 = vadd.f32 %v251, %v597
      %v599 = vpop.f32.mrf.mxu0
      %600 = vmatprep.mubr.bf16.mxu0 0
      %601 = vmatmul.mubr.bf16.gmra.mxu0 %v314
      %v602 = vpop.f32.mrf.mxu0
      %v603 = vadd.f32 %v251, %v602
      %v604 = vpop.f32.mrf.mxu0
      %v605 = vpop.f32.mrf.mxu0
      %v606 = vadd.f32 %v251, %v605
      %v607 = vpop.f32.mrf.mxu0
      %608 = vmatprep.mubr.bf16.mxu0 0
      %609 = vmatmul.mubr.bf16.gmra.mxu0 %v317
      %v610 = vpop.f32.mrf.mxu0
      %v611 = vadd.f32 %v251, %v610
      %v612 = vpop.f32.mrf.mxu0
      %v613 = vpop.f32.mrf.mxu0
      %v614 = vadd.f32 %v251, %v613
      %v615 = vpop.f32.mrf.mxu0
      %616 = vmatprep.mubr.bf16.mxu0 0
      %617 = vmatmul.mubr.bf16.gmra.mxu0 %v320
      %v618 = vpop.f32.mrf.mxu0
      %v619 = vadd.f32 %v251, %v618
      %v620 = vpop.f32.mrf.mxu0
      %v621 = vpop.f32.mrf.mxu0
      %v622 = vadd.f32 %v251, %v621
      %v623 = vpop.f32.mrf.mxu0
      %624 = vmatprep.mubr.bf16.mxu0 0
      %625 = vmatmul.mubr.bf16.gmra.mxu0 %v323
      %v626 = vpop.f32.mrf.mxu0
      %v627 = vadd.f32 %v251, %v626
      %v628 = vpop.f32.mrf.mxu0
      %v629 = vpop.f32.mrf.mxu0
      %v630 = vadd.f32 %v251, %v629
      %v631 = vpop.f32.mrf.mxu0
      %632 = vmatprep.mubr.bf16.mxu0 0
      %633 = vmatmul.mubr.bf16.gmra.mxu0 %v326
      %v634 = vpop.f32.mrf.mxu0
      %v635 = vadd.f32 %v251, %v634
      %v636 = vpop.f32.mrf.mxu0
      %v637 = vpop.f32.mrf.mxu0
      %v638 = vadd.f32 %v251, %v637
      %v639 = vpop.f32.mrf.mxu0
      %640 = vmatprep.mubr.bf16.mxu0 0
      %641 = vmatmul.mubr.bf16.gmra.mxu0 %v329
      %v642 = vpop.f32.mrf.mxu0
      %v643 = vadd.f32 %v251, %v642
      %v644 = vpop.f32.mrf.mxu0
      %v645 = vpop.f32.mrf.mxu0
      %v646 = vadd.f32 %v251, %v645
      %v647 = vpop.f32.mrf.mxu0
      %648 = vmatprep.mubr.bf16.mxu0 0
      %649 = vmatmul.mubr.bf16.gmra.mxu0 %v332
      %v650 = vpop.f32.mrf.mxu0
      %v651 = vadd.f32 %v251, %v650
      %v652 = vpop.f32.mrf.mxu0
      %v653 = vpop.f32.mrf.mxu0
      %v654 = vadd.f32 %v251, %v653
      %v655 = vpop.f32.mrf.mxu0
      %656 = vdwg.mxu0
      %v657 = vmax.f32 %v369, 0.0
      %v658 = vmax.f32 %v371, 0.0
      %v659 = vmax.f32 %v482, 0.0
      %v660 = vmax.f32 %v484, 0.0
      %v661 = vmax.f32 %v595, 0.0
      %v662 = vmax.f32 %v373, 0.0
      %v663 = vmax.f32 %v375, 0.0
      %v664 = vmax.f32 %v486, 0.0
      %v665 = vmax.f32 %v488, 0.0
      %v666 = vmax.f32 %v598, 0.0
      %v667 = vmax.f32 %v379, 0.0
      %v668 = vmax.f32 %v381, 0.0
      %v669 = vmax.f32 %v492, 0.0
      %v670 = vmax.f32 %v494, 0.0
      %v671 = vmax.f32 %v603, 0.0
      %v672 = vmax.f32 %v383, 0.0
      %v673 = vmax.f32 %v385, 0.0
      %v674 = vmax.f32 %v496, 0.0
      %v675 = vmax.f32 %v498, 0.0
      %v676 = vmax.f32 %v606, 0.0
      %v677 = vmax.f32 %v389, 0.0
      %v678 = vmax.f32 %v391, 0.0
      %v679 = vmax.f32 %v502, 0.0
      %v680 = vmax.f32 %v504, 0.0
      %v681 = vmax.f32 %v611, 0.0
      %v682 = vmax.f32 %v393, 0.0
      %v683 = vmax.f32 %v395, 0.0
      %v684 = vmax.f32 %v506, 0.0
      %v685 = vmax.f32 %v508, 0.0
      %v686 = vmax.f32 %v614, 0.0
      %v687 = vmax.f32 %v399, 0.0
      %v688 = vmax.f32 %v401, 0.0
      %v689 = vmax.f32 %v512, 0.0
      %v690 = vmax.f32 %v514, 0.0
      %v691 = vmax.f32 %v619, 0.0
      %v692 = vmax.f32 %v403, 0.0
      %v693 = vmax.f32 %v405, 0.0
      %v694 = vmax.f32 %v516, 0.0
      %v695 = vmax.f32 %v518, 0.0
      %v696 = vmax.f32 %v622, 0.0
      %v697 = vmax.f32 %v409, 0.0
      %v698 = vmax.f32 %v411, 0.0
      %v699 = vmax.f32 %v522, 0.0
      %v700 = vmax.f32 %v524, 0.0
      %v701 = vmax.f32 %v627, 0.0
      %v702 = vmax.f32 %v413, 0.0
      %v703 = vmax.f32 %v415, 0.0
      %v704 = vmax.f32 %v526, 0.0
      %v705 = vmax.f32 %v528, 0.0
      %v706 = vmax.f32 %v630, 0.0
      %v707 = vmax.f32 %v419, 0.0
      %v708 = vmax.f32 %v421, 0.0
      %v709 = vmax.f32 %v532, 0.0
      %v710 = vmax.f32 %v534, 0.0
      %v711 = vmax.f32 %v635, 0.0
      %v712 = vmax.f32 %v423, 0.0
      %v713 = vmax.f32 %v425, 0.0
      %v714 = vmax.f32 %v536, 0.0
      %v715 = vmax.f32 %v538, 0.0
      %v716 = vmax.f32 %v638, 0.0
      %v717 = vmax.f32 %v429, 0.0
      %v718 = vmax.f32 %v431, 0.0
      %v719 = vmax.f32 %v542, 0.0
      %v720 = vmax.f32 %v544, 0.0
      %v721 = vmax.f32 %v643, 0.0
      %v722 = vmax.f32 %v433, 0.0
      %v723 = vmax.f32 %v435, 0.0
      %v724 = vmax.f32 %v546, 0.0
      %v725 = vmax.f32 %v548, 0.0
      %v726 = vmax.f32 %v646, 0.0
      %v727 = vmax.f32 %v439, 0.0
      %v728 = vmax.f32 %v441, 0.0
      %v729 = vmax.f32 %v552, 0.0
      %v730 = vmax.f32 %v554, 0.0
      %v731 = vmax.f32 %v651, 0.0
      %v732 = vmax.f32 %v443, 0.0
      %v733 = vmax.f32 %v445, 0.0
      %v734 = vmax.f32 %v556, 0.0
      %v735 = vmax.f32 %v558, 0.0
      %v736 = vmax.f32 %v654, 0.0
      %v737 = vlaneseq
      %v738 = vshrl.u32 %v737, 7
      %v739 = vadd.s32 %v738, 8
      %v740 = vadd.s32 %v738, 16
      %v741 = vadd.s32 %v738, 24
      %v742 = vadd.s32 %v738, 32
      %v743 = vadd.s32 %v738, 40
      %v744 = vadd.s32 %v738, 48
      %v745 = vadd.s32 %v738, 56
      %v746 = vadd.s32 %v738, 64
      %v747 = vadd.s32 %v738, 72
      %v748 = vadd.s32 %v738, 80
      %v749 = vadd.s32 %v738, 88
      %v750 = vadd.s32 %v738, 96
      %v751 = vadd.s32 %v738, 104
      %v752 = vadd.s32 %v738, 112
      %v753 = vadd.s32 %v738, 120
      %s754 = smul.u32 %s16, 128
      %v755 = vstv %s754
      %v756 = vadd.s32 %v738, %v755
      %v757 = vadd.s32 %v739, %v755
      %v758 = vadd.s32 %v740, %v755
      %v759 = vadd.s32 %v741, %v755
      %v760 = vadd.s32 %v742, %v755
      %v761 = vadd.s32 %v743, %v755
      %v762 = vadd.s32 %v744, %v755
      %v763 = vadd.s32 %v745, %v755
      %v764 = vadd.s32 %v746, %v755
      %v765 = vadd.s32 %v747, %v755
      %v766 = vadd.s32 %v748, %v755
      %v767 = vadd.s32 %v749, %v755
      %v768 = vadd.s32 %v750, %v755
      %v769 = vadd.s32 %v751, %v755
      %v770 = vadd.s32 %v752, %v755
      %v771 = vadd.s32 %v753, %v755
      %vm772 = vcmp.lt.s32.totalorder %v756, 300
      %vm773 = vcmp.lt.s32.totalorder %v757, 300
      %vm774 = vcmp.lt.s32.totalorder %v758, 300
      %vm775 = vcmp.lt.s32.totalorder %v759, 300
      %vm776 = vcmp.lt.s32.totalorder %v760, 300
      %vm777 = vcmp.lt.s32.totalorder %v761, 300
      %vm778 = vcmp.lt.s32.totalorder %v762, 300
      %vm779 = vcmp.lt.s32.totalorder %v763, 300
      %vm780 = vcmp.lt.s32.totalorder %v764, 300
      %vm781 = vcmp.lt.s32.totalorder %v765, 300
      %vm782 = vcmp.lt.s32.totalorder %v766, 300
      %vm783 = vcmp.lt.s32.totalorder %v767, 300
      %vm784 = vcmp.lt.s32.totalorder %v768, 300
      %vm785 = vcmp.lt.s32.totalorder %v769, 300
      %vm786 = vcmp.lt.s32.totalorder %v770, 300
      %vm787 = vcmp.lt.s32.totalorder %v771, 300
      %v788 = vsel %vm772, 1, 0
      %v789 = vsel %vm773, 1, 0
      %v790 = vsel %vm774, 1, 0
      %v791 = vsel %vm775, 1, 0
      %v792 = vsel %vm776, 1, 0
      %v793 = vsel %vm777, 1, 0
      %v794 = vsel %vm778, 1, 0
      %v795 = vsel %vm779, 1, 0
      %v796 = vsel %vm780, 1, 0
      %v797 = vsel %vm781, 1, 0
      %v798 = vsel %vm782, 1, 0
      %v799 = vsel %vm783, 1, 0
      %v800 = vsel %vm784, 1, 0
      %v801 = vsel %vm785, 1, 0
      %v802 = vsel %vm786, 1, 0
      %v803 = vsel %vm787, 1, 0
      %vm804 = vcmp.eq.s32.totalorder %v788, 1
      %vm805 = vcmp.eq.s32.totalorder %v789, 1
      %vm806 = vcmp.eq.s32.totalorder %v790, 1
      %vm807 = vcmp.eq.s32.totalorder %v791, 1
      %vm808 = vcmp.eq.s32.totalorder %v792, 1
      %vm809 = vcmp.eq.s32.totalorder %v793, 1
      %vm810 = vcmp.eq.s32.totalorder %v794, 1
      %vm811 = vcmp.eq.s32.totalorder %v795, 1
      %vm812 = vcmp.eq.s32.totalorder %v796, 1
      %vm813 = vcmp.eq.s32.totalorder %v797, 1
      %vm814 = vcmp.eq.s32.totalorder %v798, 1
      %vm815 = vcmp.eq.s32.totalorder %v799, 1
      %vm816 = vcmp.eq.s32.totalorder %v800, 1
      %vm817 = vcmp.eq.s32.totalorder %v801, 1
      %vm818 = vcmp.eq.s32.totalorder %v802, 1
      %vm819 = vcmp.eq.s32.totalorder %v803, 1
      %v820 = vsel %vm804, %v657, 0.0
      %v821 = vsel %vm804, %v658, 0.0
      %v822 = vsel %vm804, %v659, 0.0
      %v823 = vsel %vm804, %v660, 0.0
      %v824 = vsel %vm804, %v661, 0.0
      %v825 = vsel %vm805, %v662, 0.0
      %v826 = vsel %vm805, %v663, 0.0
      %v827 = vsel %vm805, %v664, 0.0
      %v828 = vsel %vm805, %v665, 0.0
      %v829 = vsel %vm805, %v666, 0.0
      %v830 = vsel %vm806, %v667, 0.0
      %v831 = vsel %vm806, %v668, 0.0
      %v832 = vsel %vm806, %v669, 0.0
      %v833 = vsel %vm806, %v670, 0.0
      %v834 = vsel %vm806, %v671, 0.0
      %v835 = vsel %vm807, %v672, 0.0
      %v836 = vsel %vm807, %v673, 0.0
      %v837 = vsel %vm807, %v674, 0.0
      %v838 = vsel %vm807, %v675, 0.0
      %v839 = vsel %vm807, %v676, 0.0
      %v840 = vsel %vm808, %v677, 0.0
      %v841 = vsel %vm808, %v678, 0.0
      %v842 = vsel %vm808, %v679, 0.0
      %v843 = vsel %vm808, %v680, 0.0
      %v844 = vsel %vm808, %v681, 0.0
      %v845 = vsel %vm809, %v682, 0.0
      %v846 = vsel %vm809, %v683, 0.0
      %v847 = vsel %vm809, %v684, 0.0
      %v848 = vsel %vm809, %v685, 0.0
      %v849 = vsel %vm809, %v686, 0.0
      %v850 = vsel %vm810, %v687, 0.0
      %v851 = vsel %vm810, %v688, 0.0
      %v852 = vsel %vm810, %v689, 0.0
      %v853 = vsel %vm810, %v690, 0.0
      %v854 = vsel %vm810, %v691, 0.0
      %v855 = vsel %vm811, %v692, 0.0
      %v856 = vsel %vm811, %v693, 0.0
      %v857 = vsel %vm811, %v694, 0.0
      %v858 = vsel %vm811, %v695, 0.0
      %v859 = vsel %vm811, %v696, 0.0
      %v860 = vsel %vm812, %v697, 0.0
      %v861 = vsel %vm812, %v698, 0.0
      %v862 = vsel %vm812, %v699, 0.0
      %v863 = vsel %vm812, %v700, 0.0
      %v864 = vsel %vm812, %v701, 0.0
      %v865 = vsel %vm813, %v702, 0.0
      %v866 = vsel %vm813, %v703, 0.0
      %v867 = vsel %vm813, %v704, 0.0
      %v868 = vsel %vm813, %v705, 0.0
      %v869 = vsel %vm813, %v706, 0.0
      %v870 = vsel %vm814, %v707, 0.0
      %v871 = vsel %vm814, %v708, 0.0
      %v872 = vsel %vm814, %v709, 0.0
      %v873 = vsel %vm814, %v710, 0.0
      %v874 = vsel %vm814, %v711, 0.0
      %v875 = vsel %vm815, %v712, 0.0
      %v876 = vsel %vm815, %v713, 0.0
      %v877 = vsel %vm815, %v714, 0.0
      %v878 = vsel %vm815, %v715, 0.0
      %v879 = vsel %vm815, %v716, 0.0
      %v880 = vsel %vm816, %v717, 0.0
      %v881 = vsel %vm816, %v718, 0.0
      %v882 = vsel %vm816, %v719, 0.0
      %v883 = vsel %vm816, %v720, 0.0
      %v884 = vsel %vm816, %v721, 0.0
      %v885 = vsel %vm817, %v722, 0.0
      %v886 = vsel %vm817, %v723, 0.0
      %v887 = vsel %vm817, %v724, 0.0
      %v888 = vsel %vm817, %v725, 0.0
      %v889 = vsel %vm817, %v726, 0.0
      %v890 = vsel %vm818, %v727, 0.0
      %v891 = vsel %vm818, %v728, 0.0
      %v892 = vsel %vm818, %v729, 0.0
      %v893 = vsel %vm818, %v730, 0.0
      %v894 = vsel %vm818, %v731, 0.0
      %v895 = vsel %vm819, %v732, 0.0
      %v896 = vsel %vm819, %v733, 0.0
      %v897 = vsel %vm819, %v734, 0.0
      %v898 = vsel %vm819, %v735, 0.0
      %v899 = vsel %vm819, %v736, 0.0
      %v900 = vld [vmem:[%s3] sm:$0x1f]
      %v901 = vadd.f32 %v820, %v825
      %v902 = vadd.f32 %v901, %v830
      %v903 = vadd.f32 %v902, %v835
      %v904 = vadd.f32 %v903, %v840
      %v905 = vadd.f32 %v904, %v845
      %v906 = vadd.f32 %v905, %v850
      %v907 = vadd.f32 %v906, %v855
      %v908 = vadd.f32 %v907, %v860
      %v909 = vadd.f32 %v908, %v865
      %v910 = vadd.f32 %v909, %v870
      %v911 = vadd.f32 %v910, %v875
      %v912 = vadd.f32 %v911, %v880
      %v913 = vadd.f32 %v912, %v885
      %v914 = vadd.f32 %v913, %v890
      %v915 = vadd.f32 %v914, %v895
      %v916 = vrot.slane %v915, 4
      %v917 = vadd.f32 %v915, %v916
      %v918 = vrot.slane %v917, 2
      %v919 = vadd.f32 %v917, %v918
      %v920 = vrot.slane %v919, 1
      %v921 = vadd.f32 %v919, %v920
      %v922 = vadd.f32 %v821, %v826
      %v923 = vadd.f32 %v922, %v831
      %v924 = vadd.f32 %v923, %v836
      %v925 = vadd.f32 %v924, %v841
      %v926 = vadd.f32 %v925, %v846
      %v927 = vadd.f32 %v926, %v851
      %v928 = vadd.f32 %v927, %v856
      %v929 = vadd.f32 %v928, %v861
      %v930 = vadd.f32 %v929, %v866
      %v931 = vadd.f32 %v930, %v871
      %v932 = vadd.f32 %v931, %v876
      %v933 = vadd.f32 %v932, %v881
      %v934 = vadd.f32 %v933, %v886
      %v935 = vadd.f32 %v934, %v891
      %v936 = vadd.f32 %v935, %v896
      %v937 = vrot.slane %v936, 4
      %v938 = vadd.f32 %v936, %v937
      %v939 = vrot.slane %v938, 2
      %v940 = vadd.f32 %v938, %v939
      %v941 = vrot.slane %v940, 1
      %v942 = vadd.f32 %v940, %v941
      %v943 = vadd.f32 %v822, %v827
      %v944 = vadd.f32 %v943, %v832
      %v945 = vadd.f32 %v944, %v837
      %v946 = vadd.f32 %v945, %v842
      %v947 = vadd.f32 %v946, %v847
      %v948 = vadd.f32 %v947, %v852
      %v949 = vadd.f32 %v948, %v857
      %v950 = vadd.f32 %v949, %v862
      %v951 = vadd.f32 %v950, %v867
      %v952 = vadd.f32 %v951, %v872
      %v953 = vadd.f32 %v952, %v877
      %v954 = vadd.f32 %v953, %v882
      %v955 = vadd.f32 %v954, %v887
      %v956 = vadd.f32 %v955, %v892
      %v957 = vadd.f32 %v956, %v897
      %v958 = vrot.slane %v957, 4
      %v959 = vadd.f32 %v957, %v958
      %v960 = vrot.slane %v959, 2
      %v961 = vadd.f32 %v959, %v960
      %v962 = vrot.slane %v961, 1
      %v963 = vadd.f32 %v961, %v962
      %v964 = vadd.f32 %v823, %v828
      %v965 = vadd.f32 %v964, %v833
      %v966 = vadd.f32 %v965, %v838
      %v967 = vadd.f32 %v966, %v843
      %v968 = vadd.f32 %v967, %v848
      %v969 = vadd.f32 %v968, %v853
      %v970 = vadd.f32 %v969, %v858
      %v971 = vadd.f32 %v970, %v863
      %v972 = vadd.f32 %v971, %v868
      %v973 = vadd.f32 %v972, %v873
      %v974 = vadd.f32 %v973, %v878
      %v975 = vadd.f32 %v974, %v883
      %v976 = vadd.f32 %v975, %v888
      %v977 = vadd.f32 %v976, %v893
      %v978 = vadd.f32 %v977, %v898
      %v979 = vrot.slane %v978, 4
      %v980 = vadd.f32 %v978, %v979
      %v981 = vrot.slane %v980, 2
      %v982 = vadd.f32 %v980, %v981
      %v983 = vrot.slane %v982, 1
      %v984 = vadd.f32 %v982, %v983
      %v985 = vadd.f32 %v824, %v829
      %v986 = vadd.f32 %v985, %v834
      %v987 = vadd.f32 %v986, %v839
      %v988 = vadd.f32 %v987, %v844
      %v989 = vadd.f32 %v988, %v849
      %v990 = vadd.f32 %v989, %v854
      %v991 = vadd.f32 %v990, %v859
      %v992 = vadd.f32 %v991, %v864
      %v993 = vadd.f32 %v992, %v869
      %v994 = vadd.f32 %v993, %v874
      %v995 = vadd.f32 %v994, %v879
      %v996 = vadd.f32 %v995, %v884
      %v997 = vadd.f32 %v996, %v889
      %v998 = vadd.f32 %v997, %v894
      %v999 = vadd.f32 %v998, %v899
      %v1000 = vrot.slane %v999, 4
      %v1001 = vadd.f32 %v999, %v1000
      %v1002 = vrot.slane %v1001, 2
      %v1003 = vadd.f32 %v1001, %v1002
      %v1004 = vrot.slane %v1003, 1
      %v1005 = vadd.f32 %v1003, %v1004
      %v1011 = vcombine.low %v921, %v942
      %v1012 = vcombine.low %v963, %v984
      %v1014 = vunpack.c.l.s4 1966171168
      %v1015 = vunpack.c.0.s8 %v1014
      %v1016 = vlaneseq
      %v1017 = vshrl.u32 %v1016, 7
      %v1018 = vsub.s32 %v1015, %v1017
      %v1019 = vrot.slane %v1011, %v1018
      %v1021 = vunpack.c.l.s4 1966171168
      %v1022 = vunpack.c.0.s8 %v1021
      %v1023 = vlaneseq
      %v1024 = vshrl.u32 %v1023, 7
      %v1025 = vsub.s32 %v1022, %v1024
      %v1026 = vrot.slane %v1012, %v1025
      %v1028 = vunpack.c.l.s4 1966171168
      %v1029 = vunpack.c.0.s8 %v1028
      %v1030 = vlaneseq
      %v1031 = vshrl.u32 %v1030, 7
      %v1032 = vsub.s32 %v1029, %v1031
      %v1033 = vrot.slane %v1005, %v1032
      %v1034 = vcombine.low %v1019, %v1026
      %v1036 = vunpack.c.l.s4 1966171168
      %v1037 = vunpack.c.0.s8 %v1036
      %v1038 = vlaneseq
      %v1039 = vshrl.u32 %v1038, 7
      %v1040 = vsub.s32 %v1037, %v1039
      %v1041 = vrot.slane %v1034, %v1040
      %v1043 = vunpack.c.l.s4 1966171168
      %v1044 = vunpack.c.0.s8 %v1043
      %v1045 = vlaneseq
      %v1046 = vshrl.u32 %v1045, 7
      %v1047 = vsub.s32 %v1044, %v1046
      %v1048 = vrot.slane %v1033, %v1047
      %v1049 = vcombine.low %v1041, %v1048
      %v1051 = vadd.f32 %v900, %v1049
      %v1052 = vlaneseq
      %vm1053 = vcmp.ge.s32.totalorder %v1052, 0
      %vm1054 = vcmp.lt.s32.totalorder %v1052, 640
      %vm1055 = vmand %vm1053, %vm1054
      %1056 = vst.msk [vmem:[%s3] sm:$0x1f] %vm1055, %v1051
      %v1057 = vld [vmem:[%s4] sm:$0x1f]
      %v1058 = vmul.f32 %v820, %v820
      %v1059 = vmul.f32 %v821, %v821
      %v1060 = vmul.f32 %v822, %v822
      %v1061 = vmul.f32 %v823, %v823
      %v1062 = vmul.f32 %v824, %v824
      %v1063 = vmul.f32 %v825, %v825
      %v1064 = vmul.f32 %v826, %v826
      %v1065 = vmul.f32 %v827, %v827
      %v1066 = vmul.f32 %v828, %v828
      %v1067 = vmul.f32 %v829, %v829
      %v1068 = vmul.f32 %v830, %v830
      %v1069 = vmul.f32 %v831, %v831
      %v1070 = vmul.f32 %v832, %v832
      %v1071 = vmul.f32 %v833, %v833
      %v1072 = vmul.f32 %v834, %v834
      %v1073 = vmul.f32 %v835, %v835
      %v1074 = vmul.f32 %v836, %v836
      %v1075 = vmul.f32 %v837, %v837
      %v1076 = vmul.f32 %v838, %v838
      %v1077 = vmul.f32 %v839, %v839
      %v1078 = vmul.f32 %v840, %v840
      %v1079 = vmul.f32 %v841, %v841
      %v1080 = vmul.f32 %v842, %v842
      %v1081 = vmul.f32 %v843, %v843
      %v1082 = vmul.f32 %v844, %v844
      %v1083 = vmul.f32 %v845, %v845
      %v1084 = vmul.f32 %v846, %v846
      %v1085 = vmul.f32 %v847, %v847
      %v1086 = vmul.f32 %v848, %v848
      %v1087 = vmul.f32 %v849, %v849
      %v1088 = vmul.f32 %v850, %v850
      %v1089 = vmul.f32 %v851, %v851
      %v1090 = vmul.f32 %v852, %v852
      %v1091 = vmul.f32 %v853, %v853
      %v1092 = vmul.f32 %v854, %v854
      %v1093 = vmul.f32 %v855, %v855
      %v1094 = vmul.f32 %v856, %v856
      %v1095 = vmul.f32 %v857, %v857
      %v1096 = vmul.f32 %v858, %v858
      %v1097 = vmul.f32 %v859, %v859
      %v1098 = vmul.f32 %v860, %v860
      %v1099 = vmul.f32 %v861, %v861
      %v1100 = vmul.f32 %v862, %v862
      %v1101 = vmul.f32 %v863, %v863
      %v1102 = vmul.f32 %v864, %v864
      %v1103 = vmul.f32 %v865, %v865
      %v1104 = vmul.f32 %v866, %v866
      %v1105 = vmul.f32 %v867, %v867
      %v1106 = vmul.f32 %v868, %v868
      %v1107 = vmul.f32 %v869, %v869
      %v1108 = vmul.f32 %v870, %v870
      %v1109 = vmul.f32 %v871, %v871
      %v1110 = vmul.f32 %v872, %v872
      %v1111 = vmul.f32 %v873, %v873
      %v1112 = vmul.f32 %v874, %v874
      %v1113 = vmul.f32 %v875, %v875
      %v1114 = vmul.f32 %v876, %v876
      %v1115 = vmul.f32 %v877, %v877
      %v1116 = vmul.f32 %v878, %v878
      %v1117 = vmul.f32 %v879, %v879
      %v1118 = vmul.f32 %v880, %v880
      %v1119 = vmul.f32 %v881, %v881
      %v1120 = vmul.f32 %v882, %v882
      %v1121 = vmul.f32 %v883, %v883
      %v1122 = vmul.f32 %v884, %v884
      %v1123 = vmul.f32 %v885, %v885
      %v1124 = vmul.f32 %v886, %v886
      %v1125 = vmul.f32 %v887, %v887
      %v1126 = vmul.f32 %v888, %v888
      %v1127 = vmul.f32 %v889, %v889
      %v1128 = vmul.f32 %v890, %v890
      %v1129 = vmul.f32 %v891, %v891
      %v1130 = vmul.f32 %v892, %v892
      %v1131 = vmul.f32 %v893, %v893
      %v1132 = vmul.f32 %v894, %v894
      %v1133 = vmul.f32 %v895, %v895
      %v1134 = vmul.f32 %v896, %v896
      %v1135 = vmul.f32 %v897, %v897
      %v1136 = vmul.f32 %v898, %v898
      %v1137 = vmul.f32 %v899, %v899
      %v1138 = vadd.f32 %v1058, %v1063
      %v1139 = vadd.f32 %v1138, %v1068
      %v1140 = vadd.f32 %v1139, %v1073
      %v1141 = vadd.f32 %v1140, %v1078
      %v1142 = vadd.f32 %v1141, %v1083
      %v1143 = vadd.f32 %v1142, %v1088
      %v1144 = vadd.f32 %v1143, %v1093
      %v1145 = vadd.f32 %v1144, %v1098
      %v1146 = vadd.f32 %v1145, %v1103
      %v1147 = vadd.f32 %v1146, %v1108
      %v1148 = vadd.f32 %v1147, %v1113
      %v1149 = vadd.f32 %v1148, %v1118
      %v1150 = vadd.f32 %v1149, %v1123
      %v1151 = vadd.f32 %v1150, %v1128
      %v1152 = vadd.f32 %v1151, %v1133
      %v1153 = vrot.slane %v1152, 4
      %v1154 = vadd.f32 %v1152, %v1153
      %v1155 = vrot.slane %v1154, 2
      %v1156 = vadd.f32 %v1154, %v1155
      %v1157 = vrot.slane %v1156, 1
      %v1158 = vadd.f32 %v1156, %v1157
      %v1159 = vadd.f32 %v1059, %v1064
      %v1160 = vadd.f32 %v1159, %v1069
      %v1161 = vadd.f32 %v1160, %v1074
      %v1162 = vadd.f32 %v1161, %v1079
      %v1163 = vadd.f32 %v1162, %v1084
      %v1164 = vadd.f32 %v1163, %v1089
      %v1165 = vadd.f32 %v1164, %v1094
      %v1166 = vadd.f32 %v1165, %v1099
      %v1167 = vadd.f32 %v1166, %v1104
      %v1168 = vadd.f32 %v1167, %v1109
      %v1169 = vadd.f32 %v1168, %v1114
      %v1170 = vadd.f32 %v1169, %v1119
      %v1171 = vadd.f32 %v1170, %v1124
      %v1172 = vadd.f32 %v1171, %v1129
      %v1173 = vadd.f32 %v1172, %v1134
      %v1174 = vrot.slane %v1173, 4
      %v1175 = vadd.f32 %v1173, %v1174
      %v1176 = vrot.slane %v1175, 2
      %v1177 = vadd.f32 %v1175, %v1176
      %v1178 = vrot.slane %v1177, 1
      %v1179 = vadd.f32 %v1177, %v1178
      %v1180 = vadd.f32 %v1060, %v1065
      %v1181 = vadd.f32 %v1180, %v1070
      %v1182 = vadd.f32 %v1181, %v1075
      %v1183 = vadd.f32 %v1182, %v1080
      %v1184 = vadd.f32 %v1183, %v1085
      %v1185 = vadd.f32 %v1184, %v1090
      %v1186 = vadd.f32 %v1185, %v1095
      %v1187 = vadd.f32 %v1186, %v1100
      %v1188 = vadd.f32 %v1187, %v1105
      %v1189 = vadd.f32 %v1188, %v1110
      %v1190 = vadd.f32 %v1189, %v1115
      %v1191 = vadd.f32 %v1190, %v1120
      %v1192 = vadd.f32 %v1191, %v1125
      %v1193 = vadd.f32 %v1192, %v1130
      %v1194 = vadd.f32 %v1193, %v1135
      %v1195 = vrot.slane %v1194, 4
      %v1196 = vadd.f32 %v1194, %v1195
      %v1197 = vrot.slane %v1196, 2
      %v1198 = vadd.f32 %v1196, %v1197
      %v1199 = vrot.slane %v1198, 1
      %v1200 = vadd.f32 %v1198, %v1199
      %v1201 = vadd.f32 %v1061, %v1066
      %v1202 = vadd.f32 %v1201, %v1071
      %v1203 = vadd.f32 %v1202, %v1076
      %v1204 = vadd.f32 %v1203, %v1081
      %v1205 = vadd.f32 %v1204, %v1086
      %v1206 = vadd.f32 %v1205, %v1091
      %v1207 = vadd.f32 %v1206, %v1096
      %v1208 = vadd.f32 %v1207, %v1101
      %v1209 = vadd.f32 %v1208, %v1106
      %v1210 = vadd.f32 %v1209, %v1111
      %v1211 = vadd.f32 %v1210, %v1116
      %v1212 = vadd.f32 %v1211, %v1121
      %v1213 = vadd.f32 %v1212, %v1126
      %v1214 = vadd.f32 %v1213, %v1131
      %v1215 = vadd.f32 %v1214, %v1136
      %v1216 = vrot.slane %v1215, 4
      %v1217 = vadd.f32 %v1215, %v1216
      %v1218 = vrot.slane %v1217, 2
      %v1219 = vadd.f32 %v1217, %v1218
      %v1220 = vrot.slane %v1219, 1
      %v1221 = vadd.f32 %v1219, %v1220
      %v1222 = vadd.f32 %v1062, %v1067
      %v1223 = vadd.f32 %v1222, %v1072
      %v1224 = vadd.f32 %v1223, %v1077
      %v1225 = vadd.f32 %v1224, %v1082
      %v1226 = vadd.f32 %v1225, %v1087
      %v1227 = vadd.f32 %v1226, %v1092
      %v1228 = vadd.f32 %v1227, %v1097
      %v1229 = vadd.f32 %v1228, %v1102
      %v1230 = vadd.f32 %v1229, %v1107
      %v1231 = vadd.f32 %v1230, %v1112
      %v1232 = vadd.f32 %v1231, %v1117
      %v1233 = vadd.f32 %v1232, %v1122
      %v1234 = vadd.f32 %v1233, %v1127
      %v1235 = vadd.f32 %v1234, %v1132
      %v1236 = vadd.f32 %v1235, %v1137
      %v1237 = vrot.slane %v1236, 4
      %v1238 = vadd.f32 %v1236, %v1237
      %v1239 = vrot.slane %v1238, 2
      %v1240 = vadd.f32 %v1238, %v1239
      %v1241 = vrot.slane %v1240, 1
      %v1242 = vadd.f32 %v1240, %v1241
      %v1248 = vcombine.low %v1158, %v1179
      %v1249 = vcombine.low %v1200, %v1221
      %v1251 = vunpack.c.l.s4 1966171168
      %v1252 = vunpack.c.0.s8 %v1251
      %v1253 = vlaneseq
      %v1254 = vshrl.u32 %v1253, 7
      %v1255 = vsub.s32 %v1252, %v1254
      %v1256 = vrot.slane %v1248, %v1255
      %v1258 = vunpack.c.l.s4 1966171168
      %v1259 = vunpack.c.0.s8 %v1258
      %v1260 = vlaneseq
      %v1261 = vshrl.u32 %v1260, 7
      %v1262 = vsub.s32 %v1259, %v1261
      %v1263 = vrot.slane %v1249, %v1262
      %v1265 = vunpack.c.l.s4 1966171168
      %v1266 = vunpack.c.0.s8 %v1265
      %v1267 = vlaneseq
      %v1268 = vshrl.u32 %v1267, 7
      %v1269 = vsub.s32 %v1266, %v1268
      %v1270 = vrot.slane %v1242, %v1269
      %v1271 = vcombine.low %v1256, %v1263
      %v1273 = vunpack.c.l.s4 1966171168
      %v1274 = vunpack.c.0.s8 %v1273
      %v1275 = vlaneseq
      %v1276 = vshrl.u32 %v1275, 7
      %v1277 = vsub.s32 %v1274, %v1276
      %v1278 = vrot.slane %v1271, %v1277
      %v1280 = vunpack.c.l.s4 1966171168
      %v1281 = vunpack.c.0.s8 %v1280
      %v1282 = vlaneseq
      %v1283 = vshrl.u32 %v1282, 7
      %v1284 = vsub.s32 %v1281, %v1283
      %v1285 = vrot.slane %v1270, %v1284
      %v1286 = vcombine.low %v1278, %v1285
      %v1288 = vadd.f32 %v1057, %v1286
      %1289 = vst.msk [vmem:[%s4] sm:$0x1f] %vm1055, %v1288
      // Predicated region
      $region37: #{pixel_classifier_ensemble_forward.3} parent=31 // pred_check
        %p1290 = pneg %p97
      $region38: #{pixel_classifier_ensemble_forward.3} parent=31 // pred_check_branch
        %1292 = sbr.rel (%p1290) target = $region40
      $region39: #{pixel_classifier_ensemble_forward.3} parent=31 // pred_region
        _
      $region40: #{pixel_classifier_ensemble_forward.3} parent=31 // pred_fallthru
        _
      // Predicated region
      $region41: #{pixel_classifier_ensemble_forward.3} parent=31 // pred_check
        %p1293 = pneg %p118
      $region42: #{pixel_classifier_ensemble_forward.3} parent=31 // pred_check_branch
        %1295 = sbr.rel (%p1293) target = $region44
      $region43: #{pixel_classifier_ensemble_forward.3} parent=31 // pred_region
        _
      $region44: #{pixel_classifier_ensemble_forward.3} parent=31 // pred_fallthru
        _
      // Predicated region
      $region45: #{pixel_classifier_ensemble_forward.3} parent=31 // pred_check
        %p1296 = pneg %p97
      $region46: #{pixel_classifier_ensemble_forward.3} parent=31 // pred_check_branch
        %1298 = sbr.rel (%p1296) target = $region48
      $region47: #{pixel_classifier_ensemble_forward.3} parent=31 // pred_region
        _
      $region48: #{pixel_classifier_ensemble_forward.3} parent=31 // pred_fallthru
        _
      // Predicated region
      $region49: #{pixel_classifier_ensemble_forward.3} parent=31 // pred_check
        %p1299 = pneg %p118
      $region50: #{pixel_classifier_ensemble_forward.3} parent=31 // pred_check_branch
        %1301 = sbr.rel (%p1299) target = $region52
      $region51: #{pixel_classifier_ensemble_forward.3} parent=31 // pred_region
        _
      $region52: #{pixel_classifier_ensemble_forward.3} parent=31 // pred_fallthru
        _
    $region32: #{pixel_classifier_ensemble_forward.3} parent=5 // pred_fallthru
      _
    %p1302 = scmp.le.s32.totalorder 2, %s11
    // Predicated region
    $region53: #{pixel_classifier_ensemble_forward.3} parent=5 // pred_check
      %p1303 = pneg %p1302
    $region54: #{pixel_classifier_ensemble_forward.3} parent=5 // pred_check_branch
      %1305 = sbr.rel (%p1303) target = $region56
    $region55: #{pixel_classifier_ensemble_forward.3} parent=5 // pred_region
      %s1306 = ssub.s32 %s11, 2
    $region56: #{pixel_classifier_ensemble_forward.3} parent=5 // pred_fallthru
      _
  $region6: #{pixel_classifier_ensemble_forward.3} parent=0 // loop_footer
    %s15 = sadd.s32 1, %s11
  $region7: #{pixel_classifier_ensemble_forward.3} parent=0 // loop_footer_branch
    %10 = sbr.rel target = $region3
  $region8: #{pixel_classifier_ensemble_forward.3} parent=0 // loop_exit
    _

// kernel: pixel_classifier_ensemble_forward.4
$region0: #{pixel_classifier_ensemble_forward.4}
  #allocation0 [shape = 'u32[]', space=smem, size = 0x4, offset = 0x4, fixed_abs, tag = 'smem constant byte address 0x4 - core index']
  #allocation1 [shape = 'u32[144,128]{1,0:T(1,128)}', space=vmem, size = 0x12000, scoped, tag = 'internal scratch']
  %s0 = inlined_call_operand.vmem [shape: f32[384,32], index: 0, kind: input, shape index: {}]
  %s1 = inlined_call_operand.vmem [shape: bf16[32,640], index: 1, kind: input, shape index: {}]
  %s2 = inlined_call_operand.vmem [shape: f32[1,640], index: 2, kind: input, shape index: {}]
  %s3 = inlined_call_operand.vmem [shape: f32[1,640], index: 3, kind: input, shape index: {}]
  %s4 = inlined_call_operand.vmem [shape: f32[1,640], index: 4, kind: input, shape index: {}]
  %s5 = inlined_call_operand.vmem [shape: bf16[640,160], index: 5, kind: input, shape index: {}]
  %s6 = inlined_call_operand.vmem [shape: f32[1,160], index: 6, kind: input, shape index: {}]
  %s7 = inlined_call_operand.vmem [shape: f32[1,160], index: 7, kind: output, shape index: {0}]
  %s8 = inlined_call_operand.vmem [shape: f32[1,160], index: 8, kind: output, shape index: {1}]
  %9 = xla_tuple %s7, %s8
  %s10 = sld [smem:[#allocation0]]
  $region73: #{pixel_classifier_ensemble_forward.4} parent=0
    _
  %s12 = ssub.s32 1, %s10
  %s13 = scalar_select 0, %s12, %s10
  loop: start=0, step=1, limit=5
  $region2: #{pixel_classifier_ensemble_forward.4} parent=0 // loop_pre_header
    _
  $region3: #{pixel_classifier_ensemble_forward.4} parent=0 // loop_header
    %s15 = sphi 0, %s19
    %p16 = scmp.ge.s32.totalorder %s15, 5
    %s25 = sphi 0, %s27
    %s28 = sphi 0, %s25
    %s29 = sphi 0, %s28
    %s45 = sphi 0, %s29
    %s49 = sphi 0, %s49
    %s51 = sphi 0, %s49
    %s52 = sphi 0, %s51
    %s66 = sphi 0, %s52
    %s70 = sphi 0, %s70
    %s72 = sphi 0, %s70
    %s73 = sphi 0, %s72
    %s87 = sphi 0, %s73
    %s91 = sphi 0, %s91
    %s93 = sphi 0, %s91
    %s94 = sphi 0, %s93
    %s108 = sphi 0, %s94
    %s112 = sphi 0, %s112
    %s114 = sphi 0, %s112
    %s115 = sphi 0, %s114
    %s129 = sphi 0, %s115
    %s133 = sphi 0, %s133
    %s135 = sphi 0, %s133
    %s136 = sphi 0, %s135
    %s150 = sphi 0, %s136
    %s154 = sphi 0, %s154
    %s156 = sphi 0, %s154
    %s157 = sphi 0, %s156
    %s171 = sphi 0, %s157
    %s175 = sphi 0, %s175
    %s177 = sphi 0, %s175
    %s178 = sphi 0, %s177
    %s192 = sphi 0, %s178
    %s196 = sphi 0, %s196
    %s198 = sphi 0, %s196
    %s199 = sphi 0, %s198
    %s213 = sphi 0, %s199
  $region4: #{pixel_classifier_ensemble_forward.4} parent=0 // loop_header_branch
    %18 = sbr.rel (%p16) target = $region8
  $region5: #{pixel_classifier_ensemble_forward.4} parent=0 // loop_body
    %s20 = ssub.s32 %s15, 1
    %s21 = ssub.s32 %s15, 2
    %s22 = sadd.s32 %s15, 1
    %s23 = ssub.s32 %s15, %s22
    %p24 = scmp.eq.s32.totalorder %s23, 0
    %s26 = sadd.s32 %s25, 1
    %s27 = scalar_select %p24, %s25, %s26
    %p30 = pneg %p24
    %p31 = scmp.eq.s32.totalorder %s15, 2
    %p32 = por %p30, %p31
    %p33 = scmp.ne.s32.totalorder %s25, %s28
    %p34 = scmp.eq.s32.totalorder %s15, 0
    %p35 = por %p33, %p34
    %p36 = scmp.ne.s32.totalorder %s25, %s28
    %p37 = scmp.eq.s32.totalorder %s20, 2
    %p38 = por %p36, %p37
    %p39 = scmp.ne.s32.totalorder %s28, %s29
    %p40 = scmp.eq.s32.totalorder %s20, 0
    %p41 = por %p39, %p40
    %p42 = scmp.ne.s32.totalorder %s28, %s29
    %p43 = scmp.eq.s32.totalorder %s21, 2
    %p44 = por %p42, %p43
    %p46 = scmp.ne.s32.totalorder %s29, %s45
    %p47 = scmp.eq.s32.totalorder %s21, 0
    %p48 = por %p46, %p47
    %s50 = sadd.s32 %s49, 1
    %p53 = scmp.eq.s32.totalorder %s15, 2
    %p54 = scmp.ne.s32.totalorder %s49, %s51
    %p55 = scmp.eq.s32.totalorder %s15, 0
    %p56 = por %p54, %p55
    %p57 = scmp.ne.s32.totalorder %s49, %s51
    %p58 = scmp.eq.s32.totalorder %s20, 2
    %p59 = por %p57, %p58
    %p60 = scmp.ne.s32.totalorder %s51, %s52
    %p61 = scmp.eq.s32.totalorder %s20, 0
    %p62 = por %p60, %p61
    %p63 = scmp.ne.s32.totalorder %s51, %s52
    %p64 = scmp.eq.s32.totalorder %s21, 2
    %p65 = por %p63, %p64
    %p67 = scmp.ne.s32.totalorder %s52, %s66
    %p68 = scmp.eq.s32.totalorder %s21, 0
    %p69 = por %p67, %p68
    %s71 = sadd.s32 %s70, 1
    %p74 = scmp.eq.s32.totalorder %s15, 2
    %p75 = scmp.ne.s32.totalorder %s70, %s72
    %p76 = scmp.eq.s32.totalorder %s15, 0
    %p77 = por %p75, %p76
    %p78 = scmp.ne.s32.totalorder %s70, %s72
    %p79 = scmp.eq.s32.totalorder %s20, 2
    %p80 = por %p78, %p79
    %p81 = scmp.ne.s32.totalorder %s72, %s73
    %p82 = scmp.eq.s32.totalorder %s20, 0
    %p83 = por %p81, %p82
    %p84 = scmp.ne.s32.totalorder %s72, %s73
    %p85 = scmp.eq.s32.totalorder %s21, 2
    %p86 = por %p84, %p85
    %p88 = scmp.ne.s32.totalorder %s73, %s87
    %p89 = scmp.eq.s32.totalorder %s21, 0
    %p90 = por %p88, %p89
    %s92 = sadd.s32 %s91, 1
    %p95 = scmp.eq.s32.totalorder %s15, 2
    %p96 = scmp.ne.s32.totalorder %s91, %s93
    %p97 = scmp.eq.s32.totalorder %s15, 0
    %p98 = por %p96, %p97
    %p99 = scmp.ne.s32.totalorder %s91, %s93
    %p100 = scmp.eq.s32.totalorder %s20, 2
    %p101 = por %p99, %p100
    %p102 = scmp.ne.s32.totalorder %s93, %s94
    %p103 = scmp.eq.s32.totalorder %s20, 0
    %p104 = por %p102, %p103
    %p105 = scmp.ne.s32.totalorder %s93, %s94
    %p106 = scmp.eq.s32.totalorder %s21, 2
    %p107 = por %p105, %p106
    %p109 = scmp.ne.s32.totalorder %s94, %s108
    %p110 = scmp.eq.s32.totalorder %s21, 0
    %p111 = por %p109, %p110
    %s113 = sadd.s32 %s112, 1
    %p116 = scmp.eq.s32.totalorder %s15, 2
    %p117 = scmp.ne.s32.totalorder %s112, %s114
    %p118 = scmp.eq.s32.totalorder %s15, 0
    %p119 = por %p117, %p118
    %p120 = scmp.ne.s32.totalorder %s112, %s114
    %p121 = scmp.eq.s32.totalorder %s20, 2
    %p122 = por %p120, %p121
    %p123 = scmp.ne.s32.totalorder %s114, %s115
    %p124 = scmp.eq.s32.totalorder %s20, 0
    %p125 = por %p123, %p124
    %p126 = scmp.ne.s32.totalorder %s114, %s115
    %p127 = scmp.eq.s32.totalorder %s21, 2
    %p128 = por %p126, %p127
    %p130 = scmp.ne.s32.totalorder %s115, %s129
    %p131 = scmp.eq.s32.totalorder %s21, 0
    %p132 = por %p130, %p131
    %s134 = sadd.s32 %s133, 1
    %p137 = scmp.eq.s32.totalorder %s15, 2
    %p138 = scmp.ne.s32.totalorder %s133, %s135
    %p139 = scmp.eq.s32.totalorder %s15, 0
    %p140 = por %p138, %p139
    %p141 = scmp.ne.s32.totalorder %s133, %s135
    %p142 = scmp.eq.s32.totalorder %s20, 2
    %p143 = por %p141, %p142
    %p144 = scmp.ne.s32.totalorder %s135, %s136
    %p145 = scmp.eq.s32.totalorder %s20, 0
    %p146 = por %p144, %p145
    %p147 = scmp.ne.s32.totalorder %s135, %s136
    %p148 = scmp.eq.s32.totalorder %s21, 2
    %p149 = por %p147, %p148
    %p151 = scmp.ne.s32.totalorder %s136, %s150
    %p152 = scmp.eq.s32.totalorder %s21, 0
    %p153 = por %p151, %p152
    %s155 = sadd.s32 %s154, 1
    %p158 = scmp.eq.s32.totalorder %s15, 2
    %p159 = scmp.ne.s32.totalorder %s154, %s156
    %p160 = scmp.eq.s32.totalorder %s15, 0
    %p161 = por %p159, %p160
    %p162 = scmp.ne.s32.totalorder %s154, %s156
    %p163 = scmp.eq.s32.totalorder %s20, 2
    %p164 = por %p162, %p163
    %p165 = scmp.ne.s32.totalorder %s156, %s157
    %p166 = scmp.eq.s32.totalorder %s20, 0
    %p167 = por %p165, %p166
    %p168 = scmp.ne.s32.totalorder %s156, %s157
    %p169 = scmp.eq.s32.totalorder %s21, 2
    %p170 = por %p168, %p169
    %p172 = scmp.ne.s32.totalorder %s157, %s171
    %p173 = scmp.eq.s32.totalorder %s21, 0
    %p174 = por %p172, %p173
    %s176 = sadd.s32 %s175, 1
    %p179 = scmp.eq.s32.totalorder %s15, 2
    %p180 = scmp.ne.s32.totalorder %s175, %s177
    %p181 = scmp.eq.s32.totalorder %s15, 0
    %p182 = por %p180, %p181
    %p183 = scmp.ne.s32.totalorder %s175, %s177
    %p184 = scmp.eq.s32.totalorder %s20, 2
    %p185 = por %p183, %p184
    %p186 = scmp.ne.s32.totalorder %s177, %s178
    %p187 = scmp.eq.s32.totalorder %s20, 0
    %p188 = por %p186, %p187
    %p189 = scmp.ne.s32.totalorder %s177, %s178
    %p190 = scmp.eq.s32.totalorder %s21, 2
    %p191 = por %p189, %p190
    %p193 = scmp.ne.s32.totalorder %s178, %s192
    %p194 = scmp.eq.s32.totalorder %s21, 0
    %p195 = por %p193, %p194
    %s197 = sadd.s32 %s196, 1
    %p200 = scmp.eq.s32.totalorder %s15, 2
    %p201 = scmp.ne.s32.totalorder %s196, %s198
    %p202 = scmp.eq.s32.totalorder %s15, 0
    %p203 = por %p201, %p202
    %p204 = scmp.ne.s32.totalorder %s196, %s198
    %p205 = scmp.eq.s32.totalorder %s20, 2
    %p206 = por %p204, %p205
    %p207 = scmp.ne.s32.totalorder %s198, %s199
    %p208 = scmp.eq.s32.totalorder %s20, 0
    %p209 = por %p207, %p208
    %p210 = scmp.ne.s32.totalorder %s198, %s199
    %p211 = scmp.eq.s32.totalorder %s21, 2
    %p212 = por %p210, %p211
    %p214 = scmp.ne.s32.totalorder %s199, %s213
    %p215 = scmp.eq.s32.totalorder %s21, 0
    %p216 = por %p214, %p215
    %p217 = scmp.le.s32.totalorder 1, %s15
    %p218 = scmp.lt.s32.totalorder %s15, 4
    %p219 = pnand %p217, %p218
    %p220 = pneg %p219
    // Predicated region
    $region9: #{pixel_classifier_ensemble_forward.4} parent=5 // pred_check
      _
    $region10: #{pixel_classifier_ensemble_forward.4} parent=5 // pred_check_branch
      %222 = sbr.rel (%p219) target = $region12
    $region11: #{pixel_classifier_ensemble_forward.4} parent=5 // pred_region
      %s223 = ssub.s32 %s15, 1
      // Predicated region
      $region13: #{pixel_classifier_ensemble_forward.4} parent=11 // pred_check
        %p224 = pneg %p62
      $region14: #{pixel_classifier_ensemble_forward.4} parent=11 // pred_check_branch
        %226 = sbr.rel (%p224) target = $region16
      $region15: #{pixel_classifier_ensemble_forward.4} parent=11 // pred_region
        _
      $region16: #{pixel_classifier_ensemble_forward.4} parent=11 // pred_fallthru
        _
      // Predicated region
      $region17: #{pixel_classifier_ensemble_forward.4} parent=11 // pred_check
        %p227 = pneg %p83
      $region18: #{pixel_classifier_ensemble_forward.4} parent=11 // pred_check_branch
        %229 = sbr.rel (%p227) target = $region20
      $region19: #{pixel_classifier_ensemble_forward.4} parent=11 // pred_region
        _
      $region20: #{pixel_classifier_ensemble_forward.4} parent=11 // pred_fallthru
        _
      // Predicated region
      $region21: #{pixel_classifier_ensemble_forward.4} parent=11 // pred_check
        %p230 = pneg %p104
      $region22: #{pixel_classifier_ensemble_forward.4} parent=11 // pred_check_branch
        %232 = sbr.rel (%p230) target = $region24
      $region23: #{pixel_classifier_ensemble_forward.4} parent=11 // pred_region
        _
      $region24: #{pixel_classifier_ensemble_forward.4} parent=11 // pred_fallthru
        _
      // Predicated region
      $region25: #{pixel_classifier_ensemble_forward.4} parent=11 // pred_check
        %p233 = pneg %p125
      $region26: #{pixel_classifier_ensemble_forward.4} parent=11 // pred_check_branch
        %235 = sbr.rel (%p233) target = $region28
      $region27: #{pixel_classifier_ensemble_forward.4} parent=11 // pred_region
        _
      $region28: #{pixel_classifier_ensemble_forward.4} parent=11 // pred_fallthru
        _
      // Predicated region
      $region29: #{pixel_classifier_ensemble_forward.4} parent=11 // pred_check
        %p236 = pneg %p146
      $region30: #{pixel_classifier_ensemble_forward.4} parent=11 // pred_check_branch
        %238 = sbr.rel (%p236) target = $region32
      $region31: #{pixel_classifier_ensemble_forward.4} parent=11 // pred_region
        _
      $region32: #{pixel_classifier_ensemble_forward.4} parent=11 // pred_fallthru
        _
      // Predicated region
      $region33: #{pixel_classifier_ensemble_forward.4} parent=11 // pred_check
        %p239 = pneg %p167
      $region34: #{pixel_classifier_ensemble_forward.4} parent=11 // pred_check_branch
        %241 = sbr.rel (%p239) target = $region36
      $region35: #{pixel_classifier_ensemble_forward.4} parent=11 // pred_region
        _
      $region36: #{pixel_classifier_ensemble_forward.4} parent=11 // pred_fallthru
        _
    $region12: #{pixel_classifier_ensemble_forward.4} parent=5 // pred_fallthru
      _
    %p242 = scmp.lt.s32.totalorder %s15, 3
    // Predicated region
    $region37: #{pixel_classifier_ensemble_forward.4} parent=5 // pred_check
      %p243 = pneg %p242
    $region38: #{pixel_classifier_ensemble_forward.4} parent=5 // pred_check_branch
      %245 = sbr.rel (%p243) target = $region40
    $region39: #{pixel_classifier_ensemble_forward.4} parent=5 // pred_region
      // Predicated region
      $region41: #{pixel_classifier_ensemble_forward.4} parent=39 // pred_check
        %p246 = pneg %p35
      $region42: #{pixel_classifier_ensemble_forward.4} parent=39 // pred_check_branch
        %248 = sbr.rel (%p246) target = $region44
      $region43: #{pixel_classifier_ensemble_forward.4} parent=39 // pred_region
        %s249 = smul.u32 16, %s15
        %p250 = scmp.lt.s32.totalorder %s249, 47
        %s251 = scalar_select %p250, %s249, 47
        %s252 = smul.addr %s251, 8
        %s253 = scalar_lea.vmem %s0, %s252
        %s254 = smul.u32 16, %s15
      $region44: #{pixel_classifier_ensemble_forward.4} parent=39 // pred_fallthru
        _
    $region40: #{pixel_classifier_ensemble_forward.4} parent=5 // pred_fallthru
      _
    %p255 = scmp.le.s32.totalorder 1, %s15
    %p256 = scmp.lt.s32.totalorder %s15, 4
    %p257 = pnand %p255, %p256
    %p258 = pneg %p257
    // Predicated region
    $region45: #{pixel_classifier_ensemble_forward.4} parent=5 // pred_check
      _
    $region46: #{pixel_classifier_ensemble_forward.4} parent=5 // pred_check_branch
      %260 = sbr.rel (%p257) target = $region48
    $region47: #{pixel_classifier_ensemble_forward.4} parent=5 // pred_region
      %s261 = ssub.s32 %s15, 1
      %s262 = smul.u32 16, %s20
      %p263 = scmp.lt.s32.totalorder %s262, 47
      %s264 = scalar_select %p263, %s262, 47
      %s265 = smul.addr %s264, 8
      %s266 = scalar_lea.vmem %s0, %s265
      %p267 = pneg %p41
      %p268 = pneg %p38
      %p269 = pneg %p62
      %p270 = pneg %p59
      %p271 = pneg %p83
      %p272 = pneg %p80
      %p273 = pneg %p104
      %p274 = pneg %p101
      %p275 = pneg %p125
      %p276 = pneg %p122
      %p277 = pneg %p146
      %p278 = pneg %p143
      %p279 = pneg %p167
      %p280 = pneg %p164
      %p281 = pneg %p188
      %p282 = pneg %p185
      %p283 = pneg %p209
      %p284 = pneg %p206
      %s285 = smul.u32 16, %s20
      %p286 = scmp.lt.s32.totalorder %s285, 47
      %s287 = scalar_select %p286, %s285, 47
      %s288 = smul.addr %s287, 8
      %s289 = scalar_lea.vmem %s0, %s288
      %s290 = smul.u32 16, %s20
      %p292 = scmp.eq.s32.totalorder %s20, 0
      // Predicated region
      $region49: #{pixel_classifier_ensemble_forward.4} parent=47 // pred_check
        %p293 = pneg %p292
      $region50: #{pixel_classifier_ensemble_forward.4} parent=47 // pred_check_branch
        %295 = sbr.rel (%p293) target = $region52
      $region51: #{pixel_classifier_ensemble_forward.4} parent=47 // pred_region
        %v296 = vlaneseq
        %vm297 = vcmp.ge.s32.totalorder %v296, 0
        %vm298 = vcmp.lt.s32.totalorder %v296, 160
        %vm299 = vmand %vm297, %vm298
        %300 = vst.msk [vmem:[%s7] sm:$0x3] %vm299, 0.0
        %301 = vst.msk [vmem:[%s8] sm:$0x3] %vm299, 0.0
      $region52: #{pixel_classifier_ensemble_forward.4} parent=47 // pred_fallthru
        _
      %v302 = vld [vmem:[%s289] sm:$0xff]
      %v303 = vld [vmem:[%s289 + $0x8] sm:$0xff]
      %v304 = vld [vmem:[%s289 + $0x10] sm:$0xff]
      %v305 = vld [vmem:[%s289 + $0x18] sm:$0xff]
      %v306 = vld [vmem:[%s289 + $0x20] sm:$0xff]
      %v307 = vld [vmem:[%s289 + $0x28] sm:$0xff]
      %v308 = vld [vmem:[%s289 + $0x30] sm:$0xff]
      %v309 = vld [vmem:[%s289 + $0x38] sm:$0xff]
      %v310 = vld [vmem:[%s289 + $0x40] sm:$0xff]
      %v311 = vld [vmem:[%s289 + $0x48] sm:$0xff]
      %v312 = vld [vmem:[%s289 + $0x50] sm:$0xff]
      %v313 = vld [vmem:[%s289 + $0x58] sm:$0xff]
      %v314 = vld [vmem:[%s289 + $0x60] sm:$0xff]
      %v315 = vld [vmem:[%s289 + $0x68] sm:$0xff]
      %v316 = vld [vmem:[%s289 + $0x70] sm:$0xff]
      %v317 = vld [vmem:[%s289 + $0x78] sm:$0xff]
      %v318 = vpack.c.bf16 %v303, %v302
      %v319 = vpack.c.bf16 %v305, %v304
      %v320 = vpack.c.bf16 %v307, %v306
      %v321 = vpack.c.bf16 %v309, %v308
      %v322 = vpack.c.bf16 %v311, %v310
      %v323 = vpack.c.bf16 %v313, %v312
      %v324 = vpack.c.bf16 %v315, %v314
      %v325 = vpack.c.bf16 %v317, %v316
      %v326 = vld [vmem:[%s1] sm:$0xff]
      %v327 = vld [vmem:[%s1 + $0x8] sm:$0xff]
      %v328 = vld [vmem:[%s1 + $0x10] sm:$0xf]
      %v329 = vld [vmem:[%s1 + $0x14] sm:$0xff]
      %v330 = vld [vmem:[%s1 + $0x1c] sm:$0xff]
      %v331 = vld [vmem:[%s1 + $0x24] sm:$0xf]
      %v332 = vld [vmem:[%s1 + $0x28] sm:$0xff]
      %v333 = vld [vmem:[%s1 + $0x30] sm:$0xff]
      %v334 = vld [vmem:[%s1 + $0x38] sm:$0xf]
      %v335 = vld [vmem:[%s1 + $0x3c] sm:$0xff]
      %v336 = vld [vmem:[%s1 + $0x44] sm:$0xff]
      %v337 = vld [vmem:[%s1 + $0x4c] sm:$0xf]
      %v338 = vld [vmem:[%s2] sm:$0x1f]
      %v340 = vlaneseq
      %v341 = vshrl.u32 %v340, 7
      %v342 = vsub.s32 0, %v341
      %v343 = vrot.slane %v338, %v342
      %v344 = vlaneseq
      %v345 = vshrl.u32 %v344, 7
      %v346 = vsub.s32 1, %v345
      %v347 = vrot.slane %v338, %v346
      %v348 = vlaneseq
      %v349 = vshrl.u32 %v348, 7
      %v350 = vsub.s32 2, %v349
      %v351 = vrot.slane %v338, %v350
      %v352 = vlaneseq
      %v353 = vshrl.u32 %v352, 7
      %v354 = vsub.s32 3, %v353
      %v355 = vrot.slane %v338, %v354
      %v356 = vlaneseq
      %v357 = vshrl.u32 %v356, 7
      %v358 = vsub.s32 4, %v357
      %v359 = vrot.slane %v338, %v358
      %v377 = vunpack.c.l.b16 %v326
      %v378 = vunpack.c.h.b16 %v326
      %v379 = vunpack.c.l.b16 %v327
      %v380 = vunpack.c.h.b16 %v327
      %v381 = vunpack.c.l.b16 %v328
      %v382 = vunpack.c.l.b16 %v329
      %v383 = vunpack.c.h.b16 %v329
      %v384 = vunpack.c.l.b16 %v330
      %v385 = vunpack.c.h.b16 %v330
      %v386 = vunpack.c.l.b16 %v331
      %v387 = vunpack.c.l.b16 %v332
      %v388 = vunpack.c.h.b16 %v332
      %v389 = vunpack.c.l.b16 %v333
      %v390 = vunpack.c.h.b16 %v333
      %v391 = vunpack.c.l.b16 %v334
      %v392 = vunpack.c.l.b16 %v335
      %v393 = vunpack.c.h.b16 %v335
      %v394 = vunpack.c.l.b16 %v336
      %v395 = vunpack.c.h.b16 %v336
      %v396 = vunpack.c.l.b16 %v337
      %v397 = vpack.c.b16 %v382, %v377
      %v398 = vpack.c.b16 %v383, %v378
      %v399 = vpack.c.b16 %v384, %v379
      %v400 = vpack.c.b16 %v385, %v380
      %v401 = vpack.c.b16 %v386, %v381
      %v402 = vpack.c.b16 %v392, %v387
      %v403 = vpack.c.b16 %v393, %v388
      %v404 = vpack.c.b16 %v394, %v389
      %v405 = vpack.c.b16 %v395, %v390
      %v406 = vpack.c.b16 %v396, %v391
      %vm417 = vcmask 261120
      %v419 = vsel %vm417, %v318, 0
      %v422 = vsel %vm417, %v319, 0
      %v425 = vsel %vm417, %v320, 0
      %v428 = vsel %vm417, %v321, 0
      %v431 = vsel %vm417, %v322, 0
      %v434 = vsel %vm417, %v323, 0
      %v437 = vsel %vm417, %v324, 0
      %v440 = vsel %vm417, %v325, 0
      %442 = vmatprep.subr.bf16.mxu0 0
      %443 = vmatpush1.bf16.msra.mxu0 0
      %444 = vmatprep.subr.bf16.mxu0 0
      %445 = vmatpush1.bf16.msra.mxu0 0
      %446 = vmatprep.subr.bf16.mxu0 0
      %447 = vmatpush1.bf16.msra.mxu0 0
      %448 = vmatprep.subr.bf16.mxu0 0
      %449 = vmatpush1.bf16.msra.mxu0 0
      %450 = vmatprep.subr.bf16.mxu0 0
      %451 = vmatpush1.bf16.msra.mxu0 0
      %452 = vmatprep.subr.bf16.mxu0 0
      %453 = vmatpush1.bf16.msra.mxu0 0
      %454 = vmatprep.subr.bf16.mxu0 %v403
      %455 = vmatpush1.bf16.msra.mxu0 %v402
      %456 = vmatprep.subr.bf16.mxu0 %v398
      %457 = vmatpush1.bf16.msra.mxu0 %v397
      %458 = vmatprep.subr.bf16.mxu0 0
      %459 = vmatpush2.bf16.msra.mxu0 0
      %460 = vmatprep.subr.bf16.mxu0 0
      %461 = vmatpush2.bf16.msra.mxu0 0
      %462 = vmatprep.subr.bf16.mxu0 0
      %463 = vmatpush2.bf16.msra.mxu0 0
      %464 = vmatprep.subr.bf16.mxu0 0
      %465 = vmatpush2.bf16.msra.mxu0 0
      %466 = vmatprep.subr.bf16.mxu0 0
      %467 = vmatpush2.bf16.msra.mxu0 0
      %468 = vmatprep.subr.bf16.mxu0 0
      %469 = vmatpush2.bf16.msra.mxu0 0
      %470 = vmatprep.subr.bf16.mxu0 0
      %471 = vmatpush2.bf16.msra.mxu0 0
      %472 = vmatprep.subr.bf16.mxu0 0
      %473 = vmatpush2.bf16.msra.mxu0 0
      %474 = vmatprep.mubr.bf16.mxu0 0
      %475 = vmatmul.mubr.bf16.gmra.mxu0 %v419
      %v476 = vpop.f32.mrf.mxu0
      %v477 = vadd.f32 %v343, %v476
      %v478 = vpop.f32.mrf.mxu0
      %v479 = vadd.f32 %v347, %v478
      %v480 = vpop.f32.mrf.mxu0
      %v481 = vadd.f32 %v343, %v480
      %v482 = vpop.f32.mrf.mxu0
      %v483 = vadd.f32 %v347, %v482
      %484 = vmatprep.mubr.bf16.mxu0 0
      %485 = vmatmul.mubr.bf16.gmra.mxu0 %v422
      %v486 = vpop.f32.mrf.mxu0
      %v487 = vadd.f32 %v343, %v486
      %v488 = vpop.f32.mrf.mxu0
      %v489 = vadd.f32 %v347, %v488
      %v490 = vpop.f32.mrf.mxu0
      %v491 = vadd.f32 %v343, %v490
      %v492 = vpop.f32.mrf.mxu0
      %v493 = vadd.f32 %v347, %v492
      %494 = vmatprep.mubr.bf16.mxu0 0
      %495 = vmatmul.mubr.bf16.gmra.mxu0 %v425
      %v496 = vpop.f32.mrf.mxu0
      %v497 = vadd.f32 %v343, %v496
      %v498 = vpop.f32.mrf.mxu0
      %v499 = vadd.f32 %v347, %v498
      %v500 = vpop.f32.mrf.mxu0
      %v501 = vadd.f32 %v343, %v500
      %v502 = vpop.f32.mrf.mxu0
      %v503 = vadd.f32 %v347, %v502
      %504 = vmatprep.mubr.bf16.mxu0 0
      %505 = vmatmul.mubr.bf16.gmra.mxu0 %v428
      %v506 = vpop.f32.mrf.mxu0
      %v507 = vadd.f32 %v343, %v506
      %v508 = vpop.f32.mrf.mxu0
      %v509 = vadd.f32 %v347, %v508
      %v510 = vpop.f32.mrf.mxu0
      %v511 = vadd.f32 %v343, %v510
      %v512 = vpop.f32.mrf.mxu0
      %v513 = vadd.f32 %v347, %v512
      %514 = vmatprep.mubr.bf16.mxu0 0
      %515 = vmatmul.mubr.bf16.gmra.mxu0 %v431
      %v516 = vpop.f32.mrf.mxu0
      %v517 = vadd.f32 %v343, %v516
      %v518 = vpop.f32.mrf.mxu0
      %v519 = vadd.f32 %v347, %v518
      %v520 = vpop.f32.mrf.mxu0
      %v521 = vadd.f32 %v343, %v520
      %v522 = vpop.f32.mrf.mxu0
      %v523 = vadd.f32 %v347, %v522
      %524 = vmatprep.mubr.bf16.mxu0 0
      %525 = vmatmul.mubr.bf16.gmra.mxu0 %v434
      %v526 = vpop.f32.mrf.mxu0
      %v527 = vadd.f32 %v343, %v526
      %v528 = vpop.f32.mrf.mxu0
      %v529 = vadd.f32 %v347, %v528
      %v530 = vpop.f32.mrf.mxu0
      %v531 = vadd.f32 %v343, %v530
      %v532 = vpop.f32.mrf.mxu0
      %v533 = vadd.f32 %v347, %v532
      %534 = vmatprep.mubr.bf16.mxu0 0
      %535 = vmatmul.mubr.bf16.gmra.mxu0 %v437
      %v536 = vpop.f32.mrf.mxu0
      %v537 = vadd.f32 %v343, %v536
      %v538 = vpop.f32.mrf.mxu0
      %v539 = vadd.f32 %v347, %v538
      %v540 = vpop.f32.mrf.mxu0
      %v541 = vadd.f32 %v343, %v540
      %v542 = vpop.f32.mrf.mxu0
      %v543 = vadd.f32 %v347, %v542
      %544 = vmatprep.mubr.bf16.mxu0 0
      %545 = vmatmul.mubr.bf16.gmra.mxu0 %v440
      %v546 = vpop.f32.mrf.mxu0
      %v547 = vadd.f32 %v343, %v546
      %v548 = vpop.f32.mrf.mxu0
      %v549 = vadd.f32 %v347, %v548
      %v550 = vpop.f32.mrf.mxu0
      %v551 = vadd.f32 %v343, %v550
      %v552 = vpop.f32.mrf.mxu0
      %v553 = vadd.f32 %v347, %v552
      %554 = vdwg.mxu0
      %555 = vmatprep.subr.bf16.mxu0 0
      %556 = vmatpush1.bf16.msra.mxu0 0
      %557 = vmatprep.subr.bf16.mxu0 0
      %558 = vmatpush1.bf16.msra.mxu0 0
      %559 = vmatprep.subr.bf16.mxu0 0
      %560 = vmatpush1.bf16.msra.mxu0 0
      %561 = vmatprep.subr.bf16.mxu0 0
      %562 = vmatpush1.bf16.msra.mxu0 0
      %563 = vmatprep.subr.bf16.mxu0 0
      %564 = vmatpush1.bf16.msra.mxu0 0
      %565 = vmatprep.subr.bf16.mxu0 0
      %566 = vmatpush1.bf16.msra.mxu0 0
      %567 = vmatprep.subr.bf16.mxu0 %v405
      %568 = vmatpush1.bf16.msra.mxu0 %v404
      %569 = vmatprep.subr.bf16.mxu0 %v400
      %570 = vmatpush1.bf16.msra.mxu0 %v399
      %571 = vmatprep.subr.bf16.mxu0 0
      %572 = vmatpush2.bf16.msra.mxu0 0
      %573 = vmatprep.subr.bf16.mxu0 0
      %574 = vmatpush2.bf16.msra.mxu0 0
      %575 = vmatprep.subr.bf16.mxu0 0
      %576 = vmatpush2.bf16.msra.mxu0 0
      %577 = vmatprep.subr.bf16.mxu0 0
      %578 = vmatpush2.bf16.msra.mxu0 0
      %579 = vmatprep.subr.bf16.mxu0 0
      %580 = vmatpush2.bf16.msra.mxu0 0
      %581 = vmatprep.subr.bf16.mxu0 0
      %582 = vmatpush2.bf16.msra.mxu0 0
      %583 = vmatprep.subr.bf16.mxu0 0
      %584 = vmatpush2.bf16.msra.mxu0 0
      %585 = vmatprep.subr.bf16.mxu0 0
      %586 = vmatpush2.bf16.msra.mxu0 0
      %587 = vmatprep.mubr.bf16.mxu0 0
      %588 = vmatmul.mubr.bf16.gmra.mxu0 %v419
      %v589 = vpop.f32.mrf.mxu0
      %v590 = vadd.f32 %v351, %v589
      %v591 = vpop.f32.mrf.mxu0
      %v592 = vadd.f32 %v355, %v591
      %v593 = vpop.f32.mrf.mxu0
      %v594 = vadd.f32 %v351, %v593
      %v595 = vpop.f32.mrf.mxu0
      %v596 = vadd.f32 %v355, %v595
      %597 = vmatprep.mubr.bf16.mxu0 0
      %598 = vmatmul.mubr.bf16.gmra.mxu0 %v422
      %v599 = vpop.f32.mrf.mxu0
      %v600 = vadd.f32 %v351, %v599
      %v601 = vpop.f32.mrf.mxu0
      %v602 = vadd.f32 %v355, %v601
      %v603 = vpop.f32.mrf.mxu0
      %v604 = vadd.f32 %v351, %v603
      %v605 = vpop.f32.mrf.mxu0
      %v606 = vadd.f32 %v355, %v605
      %607 = vmatprep.mubr.bf16.mxu0 0
      %608 = vmatmul.mubr.bf16.gmra.mxu0 %v425
      %v609 = vpop.f32.mrf.mxu0
      %v610 = vadd.f32 %v351, %v609
      %v611 = vpop.f32.mrf.mxu0
      %v612 = vadd.f32 %v355, %v611
      %v613 = vpop.f32.mrf.mxu0
      %v614 = vadd.f32 %v351, %v613
      %v615 = vpop.f32.mrf.mxu0
      %v616 = vadd.f32 %v355, %v615
      %617 = vmatprep.mubr.bf16.mxu0 0
      %618 = vmatmul.mubr.bf16.gmra.mxu0 %v428
      %v619 = vpop.f32.mrf.mxu0
      %v620 = vadd.f32 %v351, %v619
      %v621 = vpop.f32.mrf.mxu0
      %v622 = vadd.f32 %v355, %v621
      %v623 = vpop.f32.mrf.mxu0
      %v624 = vadd.f32 %v351, %v623
      %v625 = vpop.f32.mrf.mxu0
      %v626 = vadd.f32 %v355, %v625
      %627 = vmatprep.mubr.bf16.mxu0 0
      %628 = vmatmul.mubr.bf16.gmra.mxu0 %v431
      %v629 = vpop.f32.mrf.mxu0
      %v630 = vadd.f32 %v351, %v629
      %v631 = vpop.f32.mrf.mxu0
      %v632 = vadd.f32 %v355, %v631
      %v633 = vpop.f32.mrf.mxu0
      %v634 = vadd.f32 %v351, %v633
      %v635 = vpop.f32.mrf.mxu0
      %v636 = vadd.f32 %v355, %v635
      %637 = vmatprep.mubr.bf16.mxu0 0
      %638 = vmatmul.mubr.bf16.gmra.mxu0 %v434
      %v639 = vpop.f32.mrf.mxu0
      %v640 = vadd.f32 %v351, %v639
      %v641 = vpop.f32.mrf.mxu0
      %v642 = vadd.f32 %v355, %v641
      %v643 = vpop.f32.mrf.mxu0
      %v644 = vadd.f32 %v351, %v643
      %v645 = vpop.f32.mrf.mxu0
      %v646 = vadd.f32 %v355, %v645
      %647 = vmatprep.mubr.bf16.mxu0 0
      %648 = vmatmul.mubr.bf16.gmra.mxu0 %v437
      %v649 = vpop.f32.mrf.mxu0
      %v650 = vadd.f32 %v351, %v649
      %v651 = vpop.f32.mrf.mxu0
      %v652 = vadd.f32 %v355, %v651
      %v653 = vpop.f32.mrf.mxu0
      %v654 = vadd.f32 %v351, %v653
      %v655 = vpop.f32.mrf.mxu0
      %v656 = vadd.f32 %v355, %v655
      %657 = vmatprep.mubr.bf16.mxu0 0
      %658 = vmatmul.mubr.bf16.gmra.mxu0 %v440
      %v659 = vpop.f32.mrf.mxu0
      %v660 = vadd.f32 %v351, %v659
      %v661 = vpop.f32.mrf.mxu0
      %v662 = vadd.f32 %v355, %v661
      %v663 = vpop.f32.mrf.mxu0
      %v664 = vadd.f32 %v351, %v663
      %v665 = vpop.f32.mrf.mxu0
      %v666 = vadd.f32 %v355, %v665
      %667 = vdwg.mxu0
      %668 = vmatprep.subr.bf16.mxu0 0
      %669 = vmatpush1.bf16.msra.mxu0 0
      %670 = vmatprep.subr.bf16.mxu0 0
      %671 = vmatpush1.bf16.msra.mxu0 0
      %672 = vmatprep.subr.bf16.mxu0 0
      %673 = vmatpush1.bf16.msra.mxu0 0
      %674 = vmatprep.subr.bf16.mxu0 0
      %675 = vmatpush1.bf16.msra.mxu0 0
      %676 = vmatprep.subr.bf16.mxu0 0
      %677 = vmatpush1.bf16.msra.mxu0 0
      %678 = vmatprep.subr.bf16.mxu0 0
      %679 = vmatpush1.bf16.msra.mxu0 0
      %680 = vmatprep.subr.bf16.mxu0 0
      %681 = vmatpush1.bf16.msra.mxu0 %v406
      %682 = vmatprep.subr.bf16.mxu0 0
      %683 = vmatpush1.bf16.msra.mxu0 %v401
      %684 = vmatprep.subr.bf16.mxu0 0
      %685 = vmatpush2.bf16.msra.mxu0 0
      %686 = vmatprep.subr.bf16.mxu0 0
      %687 = vmatpush2.bf16.msra.mxu0 0
      %688 = vmatprep.subr.bf16.mxu0 0
      %689 = vmatpush2.bf16.msra.mxu0 0
      %690 = vmatprep.subr.bf16.mxu0 0
      %691 = vmatpush2.bf16.msra.mxu0 0
      %692 = vmatprep.subr.bf16.mxu0 0
      %693 = vmatpush2.bf16.msra.mxu0 0
      %694 = vmatprep.subr.bf16.mxu0 0
      %695 = vmatpush2.bf16.msra.mxu0 0
      %696 = vmatprep.subr.bf16.mxu0 0
      %697 = vmatpush2.bf16.msra.mxu0 0
      %698 = vmatprep.subr.bf16.mxu0 0
      %699 = vmatpush2.bf16.msra.mxu0 0
      %700 = vmatprep.mubr.bf16.mxu0 0
      %701 = vmatmul.mubr.bf16.gmra.mxu0 %v419
      %v702 = vpop.f32.mrf.mxu0
      %v703 = vadd.f32 %v359, %v702
      %v704 = vpop.f32.mrf.mxu0
      %v705 = vpop.f32.mrf.mxu0
      %v706 = vadd.f32 %v359, %v705
      %v707 = vpop.f32.mrf.mxu0
      %708 = vmatprep.mubr.bf16.mxu0 0
      %709 = vmatmul.mubr.bf16.gmra.mxu0 %v422
      %v710 = vpop.f32.mrf.mxu0
      %v711 = vadd.f32 %v359, %v710
      %v712 = vpop.f32.mrf.mxu0
      %v713 = vpop.f32.mrf.mxu0
      %v714 = vadd.f32 %v359, %v713
      %v715 = vpop.f32.mrf.mxu0
      %716 = vmatprep.mubr.bf16.mxu0 0
      %717 = vmatmul.mubr.bf16.gmra.mxu0 %v425
      %v718 = vpop.f32.mrf.mxu0
      %v719 = vadd.f32 %v359, %v718
      %v720 = vpop.f32.mrf.mxu0
      %v721 = vpop.f32.mrf.mxu0
      %v722 = vadd.f32 %v359, %v721
      %v723 = vpop.f32.mrf.mxu0
      %724 = vmatprep.mubr.bf16.mxu0 0
      %725 = vmatmul.mubr.bf16.gmra.mxu0 %v428
      %v726 = vpop.f32.mrf.mxu0
      %v727 = vadd.f32 %v359, %v726
      %v728 = vpop.f32.mrf.mxu0
      %v729 = vpop.f32.mrf.mxu0
      %v730 = vadd.f32 %v359, %v729
      %v731 = vpop.f32.mrf.mxu0
      %732 = vmatprep.mubr.bf16.mxu0 0
      %733 = vmatmul.mubr.bf16.gmra.mxu0 %v431
      %v734 = vpop.f32.mrf.mxu0
      %v735 = vadd.f32 %v359, %v734
      %v736 = vpop.f32.mrf.mxu0
      %v737 = vpop.f32.mrf.mxu0
      %v738 = vadd.f32 %v359, %v737
      %v739 = vpop.f32.mrf.mxu0
      %740 = vmatprep.mubr.bf16.mxu0 0
      %741 = vmatmul.mubr.bf16.gmra.mxu0 %v434
      %v742 = vpop.f32.mrf.mxu0
      %v743 = vadd.f32 %v359, %v742
      %v744 = vpop.f32.mrf.mxu0
      %v745 = vpop.f32.mrf.mxu0
      %v746 = vadd.f32 %v359, %v745
      %v747 = vpop.f32.mrf.mxu0
      %748 = vmatprep.mubr.bf16.mxu0 0
      %749 = vmatmul.mubr.bf16.gmra.mxu0 %v437
      %v750 = vpop.f32.mrf.mxu0
      %v751 = vadd.f32 %v359, %v750
      %v752 = vpop.f32.mrf.mxu0
      %v753 = vpop.f32.mrf.mxu0
      %v754 = vadd.f32 %v359, %v753
      %v755 = vpop.f32.mrf.mxu0
      %756 = vmatprep.mubr.bf16.mxu0 0
      %757 = vmatmul.mubr.bf16.gmra.mxu0 %v440
      %v758 = vpop.f32.mrf.mxu0
      %v759 = vadd.f32 %v359, %v758
      %v760 = vpop.f32.mrf.mxu0
      %v761 = vpop.f32.mrf.mxu0
      %v762 = vadd.f32 %v359, %v761
      %v763 = vpop.f32.mrf.mxu0
      %764 = vdwg.mxu0
      %v765 = vmax.f32 %v477, 0.0
      %v766 = vmax.f32 %v479, 0.0
      %v767 = vmax.f32 %v590, 0.0
      %v768 = vmax.f32 %v592, 0.0
      %v769 = vmax.f32 %v703, 0.0
      %v770 = vmax.f32 %v481, 0.0
      %v771 = vmax.f32 %v483, 0.0
      %v772 = vmax.f32 %v594, 0.0
      %v773 = vmax.f32 %v596, 0.0
      %v774 = vmax.f32 %v706, 0.0
      %v775 = vmax.f32 %v487, 0.0
      %v776 = vmax.f32 %v489, 0.0
      %v777 = vmax.f32 %v600, 0.0
      %v778 = vmax.f32 %v602, 0.0
      %v779 = vmax.f32 %v711, 0.0
      %v780 = vmax.f32 %v491, 0.0
      %v781 = vmax.f32 %v493, 0.0
      %v782 = vmax.f32 %v604, 0.0
      %v783 = vmax.f32 %v606, 0.0
      %v784 = vmax.f32 %v714, 0.0
      %v785 = vmax.f32 %v497, 0.0
      %v786 = vmax.f32 %v499, 0.0
      %v787 = vmax.f32 %v610, 0.0
      %v788 = vmax.f32 %v612, 0.0
      %v789 = vmax.f32 %v719, 0.0
      %v790 = vmax.f32 %v501, 0.0
      %v791 = vmax.f32 %v503, 0.0
      %v792 = vmax.f32 %v614, 0.0
      %v793 = vmax.f32 %v616, 0.0
      %v794 = vmax.f32 %v722, 0.0
      %v795 = vmax.f32 %v507, 0.0
      %v796 = vmax.f32 %v509, 0.0
      %v797 = vmax.f32 %v620, 0.0
      %v798 = vmax.f32 %v622, 0.0
      %v799 = vmax.f32 %v727, 0.0
      %v800 = vmax.f32 %v511, 0.0
      %v801 = vmax.f32 %v513, 0.0
      %v802 = vmax.f32 %v624, 0.0
      %v803 = vmax.f32 %v626, 0.0
      %v804 = vmax.f32 %v730, 0.0
      %v805 = vmax.f32 %v517, 0.0
      %v806 = vmax.f32 %v519, 0.0
      %v807 = vmax.f32 %v630, 0.0
      %v808 = vmax.f32 %v632, 0.0
      %v809 = vmax.f32 %v735, 0.0
      %v810 = vmax.f32 %v521, 0.0
      %v811 = vmax.f32 %v523, 0.0
      %v812 = vmax.f32 %v634, 0.0
      %v813 = vmax.f32 %v636, 0.0
      %v814 = vmax.f32 %v738, 0.0
      %v815 = vmax.f32 %v527, 0.0
      %v816 = vmax.f32 %v529, 0.0
      %v817 = vmax.f32 %v640, 0.0
      %v818 = vmax.f32 %v642, 0.0
      %v819 = vmax.f32 %v743, 0.0
      %v820 = vmax.f32 %v531, 0.0
      %v821 = vmax.f32 %v533, 0.0
      %v822 = vmax.f32 %v644, 0.0
      %v823 = vmax.f32 %v646, 0.0
      %v824 = vmax.f32 %v746, 0.0
      %v825 = vmax.f32 %v537, 0.0
      %v826 = vmax.f32 %v539, 0.0
      %v827 = vmax.f32 %v650, 0.0
      %v828 = vmax.f32 %v652, 0.0
      %v829 = vmax.f32 %v751, 0.0
      %v830 = vmax.f32 %v541, 0.0
      %v831 = vmax.f32 %v543, 0.0
      %v832 = vmax.f32 %v654, 0.0
      %v833 = vmax.f32 %v656, 0.0
      %v834 = vmax.f32 %v754, 0.0
      %v835 = vmax.f32 %v547, 0.0
      %v836 = vmax.f32 %v549, 0.0
      %v837 = vmax.f32 %v660, 0.0
      %v838 = vmax.f32 %v662, 0.0
      %v839 = vmax.f32 %v759, 0.0
      %v840 = vmax.f32 %v551, 0.0
      %v841 = vmax.f32 %v553, 0.0
      %v842 = vmax.f32 %v664, 0.0
      %v843 = vmax.f32 %v666, 0.0
      %v844 = vmax.f32 %v762, 0.0
      %v845 = vld [vmem:[%s3] sm:$0x1f]
      %v847 = vlaneseq
      %v848 = vshrl.u32 %v847, 7
      %v849 = vsub.s32 0, %v848
      %v850 = vrot.slane %v845, %v849
      %v851 = vlaneseq
      %v852 = vshrl.u32 %v851, 7
      %v853 = vsub.s32 1, %v852
      %v854 = vrot.slane %v845, %v853
      %v855 = vlaneseq
      %v856 = vshrl.u32 %v855, 7
      %v857 = vsub.s32 2, %v856
      %v858 = vrot.slane %v845, %v857
      %v859 = vlaneseq
      %v860 = vshrl.u32 %v859, 7
      %v861 = vsub.s32 3, %v860
      %v862 = vrot.slane %v845, %v861
      %v863 = vlaneseq
      %v864 = vshrl.u32 %v863, 7
      %v865 = vsub.s32 4, %v864
      %v866 = vrot.slane %v845, %v865
      %v872 = vmul.f32 %v765, %v850
      %v873 = vmul.f32 %v766, %v854
      %v874 = vmul.f32 %v767, %v858
      %v875 = vmul.f32 %v768, %v862
      %v876 = vmul.f32 %v769, %v866
      %v877 = vmul.f32 %v770, %v850
      %v878 = vmul.f32 %v771, %v854
      %v879 = vmul.f32 %v772, %v858
      %v880 = vmul.f32 %v773, %v862
      %v881 = vmul.f32 %v774, %v866
      %v882 = vmul.f32 %v775, %v850
      %v883 = vmul.f32 %v776, %v854
      %v884 = vmul.f32 %v777, %v858
      %v885 = vmul.f32 %v778, %v862
      %v886 = vmul.f32 %v779, %v866
      %v887 = vmul.f32 %v780, %v850
      %v888 = vmul.f32 %v781, %v854
      %v889 = vmul.f32 %v782, %v858
      %v890 = vmul.f32 %v783, %v862
      %v891 = vmul.f32 %v784, %v866
      %v892 = vmul.f32 %v785, %v850
      %v893 = vmul.f32 %v786, %v854
      %v894 = vmul.f32 %v787, %v858
      %v895 = vmul.f32 %v788, %v862
      %v896 = vmul.f32 %v789, %v866
      %v897 = vmul.f32 %v790, %v850
      %v898 = vmul.f32 %v791, %v854
      %v899 = vmul.f32 %v792, %v858
      %v900 = vmul.f32 %v793, %v862
      %v901 = vmul.f32 %v794, %v866
      %v902 = vmul.f32 %v795, %v850
      %v903 = vmul.f32 %v796, %v854
      %v904 = vmul.f32 %v797, %v858
      %v905 = vmul.f32 %v798, %v862
      %v906 = vmul.f32 %v799, %v866
      %v907 = vmul.f32 %v800, %v850
      %v908 = vmul.f32 %v801, %v854
      %v909 = vmul.f32 %v802, %v858
      %v910 = vmul.f32 %v803, %v862
      %v911 = vmul.f32 %v804, %v866
      %v912 = vmul.f32 %v805, %v850
      %v913 = vmul.f32 %v806, %v854
      %v914 = vmul.f32 %v807, %v858
      %v915 = vmul.f32 %v808, %v862
      %v916 = vmul.f32 %v809, %v866
      %v917 = vmul.f32 %v810, %v850
      %v918 = vmul.f32 %v811, %v854
      %v919 = vmul.f32 %v812, %v858
      %v920 = vmul.f32 %v813, %v862
      %v921 = vmul.f32 %v814, %v866
      %v922 = vmul.f32 %v815, %v850
      %v923 = vmul.f32 %v816, %v854
      %v924 = vmul.f32 %v817, %v858
      %v925 = vmul.f32 %v818, %v862
      %v926 = vmul.f32 %v819, %v866
      %v927 = vmul.f32 %v820, %v850
      %v928 = vmul.f32 %v821, %v854
      %v929 = vmul.f32 %v822, %v858
      %v930 = vmul.f32 %v823, %v862
      %v931 = vmul.f32 %v824, %v866
      %v932 = vmul.f32 %v825, %v850
      %v933 = vmul.f32 %v826, %v854
      %v934 = vmul.f32 %v827, %v858
      %v935 = vmul.f32 %v828, %v862
      %v936 = vmul.f32 %v829, %v866
      %v937 = vmul.f32 %v830, %v850
      %v938 = vmul.f32 %v831, %v854
      %v939 = vmul.f32 %v832, %v858
      %v940 = vmul.f32 %v833, %v862
      %v941 = vmul.f32 %v834, %v866
      %v942 = vmul.f32 %v835, %v850
      %v943 = vmul.f32 %v836, %v854
      %v944 = vmul.f32 %v837, %v858
      %v945 = vmul.f32 %v838, %v862
      %v946 = vmul.f32 %v839, %v866
      %v947 = vmul.f32 %v840, %v850
      %v948 = vmul.f32 %v841, %v854
      %v949 = vmul.f32 %v842, %v858
      %v950 = vmul.f32 %v843, %v862
      %v951 = vmul.f32 %v844, %v866
      %v952 = vld [vmem:[%s4] sm:$0x1f]
      %v954 = vlaneseq
      %v955 = vshrl.u32 %v954, 7
      %v956 = vsub.s32 0, %v955
      %v957 = vrot.slane %v952, %v956
      %v958 = vlaneseq
      %v959 = vshrl.u32 %v958, 7
      %v960 = vsub.s32 1, %v959
      %v961 = vrot.slane %v952, %v960
      %v962 = vlaneseq
      %v963 = vshrl.u32 %v962, 7
      %v964 = vsub.s32 2, %v963
      %v965 = vrot.slane %v952, %v964
      %v966 = vlaneseq
      %v967 = vshrl.u32 %v966, 7
      %v968 = vsub.s32 3, %v967
      %v969 = vrot.slane %v952, %v968
      %v970 = vlaneseq
      %v971 = vshrl.u32 %v970, 7
      %v972 = vsub.s32 4, %v971
      %v973 = vrot.slane %v952, %v972
      %v979 = vadd.f32 %v872, %v957
      %v980 = vadd.f32 %v873, %v961
      %v981 = vadd.f32 %v874, %v965
      %v982 = vadd.f32 %v875, %v969
      %v983 = vadd.f32 %v876, %v973
      %v984 = vadd.f32 %v877, %v957
      %v985 = vadd.f32 %v878, %v961
      %v986 = vadd.f32 %v879, %v965
      %v987 = vadd.f32 %v880, %v969
      %v988 = vadd.f32 %v881, %v973
      %v989 = vadd.f32 %v882, %v957
      %v990 = vadd.f32 %v883, %v961
      %v991 = vadd.f32 %v884, %v965
      %v992 = vadd.f32 %v885, %v969
      %v993 = vadd.f32 %v886, %v973
      %v994 = vadd.f32 %v887, %v957
      %v995 = vadd.f32 %v888, %v961
      %v996 = vadd.f32 %v889, %v965
      %v997 = vadd.f32 %v890, %v969
      %v998 = vadd.f32 %v891, %v973
      %v999 = vadd.f32 %v892, %v957
      %v1000 = vadd.f32 %v893, %v961
      %v1001 = vadd.f32 %v894, %v965
      %v1002 = vadd.f32 %v895, %v969
      %v1003 = vadd.f32 %v896, %v973
      %v1004 = vadd.f32 %v897, %v957
      %v1005 = vadd.f32 %v898, %v961
      %v1006 = vadd.f32 %v899, %v965
      %v1007 = vadd.f32 %v900, %v969
      %v1008 = vadd.f32 %v901, %v973
      %v1009 = vadd.f32 %v902, %v957
      %v1010 = vadd.f32 %v903, %v961
      %v1011 = vadd.f32 %v904, %v965
      %v1012 = vadd.f32 %v905, %v969
      %v1013 = vadd.f32 %v906, %v973
      %v1014 = vadd.f32 %v907, %v957
      %v1015 = vadd.f32 %v908, %v961
      %v1016 = vadd.f32 %v909, %v965
      %v1017 = vadd.f32 %v910, %v969
      %v1018 = vadd.f32 %v911, %v973
      %v1019 = vadd.f32 %v912, %v957
      %v1020 = vadd.f32 %v913, %v961
      %v1021 = vadd.f32 %v914, %v965
      %v1022 = vadd.f32 %v915, %v969
      %v1023 = vadd.f32 %v916, %v973
      %v1024 = vadd.f32 %v917, %v957
      %v1025 = vadd.f32 %v918, %v961
      %v1026 = vadd.f32 %v919, %v965
      %v1027 = vadd.f32 %v920, %v969
      %v1028 = vadd.f32 %v921, %v973
      %v1029 = vadd.f32 %v922, %v957
      %v1030 = vadd.f32 %v923, %v961
      %v1031 = vadd.f32 %v924, %v965
      %v1032 = vadd.f32 %v925, %v969
      %v1033 = vadd.f32 %v926, %v973
      %v1034 = vadd.f32 %v927, %v957
      %v1035 = vadd.f32 %v928, %v961
      %v1036 = vadd.f32 %v929, %v965
      %v1037 = vadd.f32 %v930, %v969
      %v1038 = vadd.f32 %v931, %v973
      %v1039 = vadd.f32 %v932, %v957
      %v1040 = vadd.f32 %v933, %v961
      %v1041 = vadd.f32 %v934, %v965
      %v1042 = vadd.f32 %v935, %v969
      %v1043 = vadd.f32 %v936, %v973
      %v1044 = vadd.f32 %v937, %v957
      %v1045 = vadd.f32 %v938, %v961
      %v1046 = vadd.f32 %v939, %v965
      %v1047 = vadd.f32 %v940, %v969
      %v1048 = vadd.f32 %v941, %v973
      %v1049 = vadd.f32 %v942, %v957
      %v1050 = vadd.f32 %v943, %v961
      %v1051 = vadd.f32 %v944, %v965
      %v1052 = vadd.f32 %v945, %v969
      %v1053 = vadd.f32 %v946, %v973
      %v1054 = vadd.f32 %v947, %v957
      %v1055 = vadd.f32 %v948, %v961
      %v1056 = vadd.f32 %v949, %v965
      %v1057 = vadd.f32 %v950, %v969
      %v1058 = vadd.f32 %v951, %v973
      %v1059 = vpack.c.bf16 %v984, %v979
      %v1060 = vpack.c.bf16 %v985, %v980
      %v1061 = vpack.c.bf16 %v986, %v981
      %v1062 = vpack.c.bf16 %v987, %v982
      %v1063 = vpack.c.bf16 %v988, %v983
      %v1064 = vpack.c.bf16 %v994, %v989
      %v1065 = vpack.c.bf16 %v995, %v990
      %v1066 = vpack.c.bf16 %v996, %v991
      %v1067 = vpack.c.bf16 %v997, %v992
      %v1068 = vpack.c.bf16 %v998, %v993
      %v1069 = vpack.c.bf16 %v1004, %v999
      %v1070 = vpack.c.bf16 %v1005, %v1000
      %v1071 = vpack.c.bf16 %v1006, %v1001
      %v1072 = vpack.c.bf16 %v1007, %v1002
      %v1073 = vpack.c.bf16 %v1008, %v1003
      %v1074 = vpack.c.bf16 %v1014, %v1009
      %v1075 = vpack.c.bf16 %v1015, %v1010
      %v1076 = vpack.c.bf16 %v1016, %v1011
      %v1077 = vpack.c.bf16 %v1017, %v1012
      %v1078 = vpack.c.bf16 %v1018, %v1013
      %v1079 = vpack.c.bf16 %v1024, %v1019
      %v1080 = vpack.c.bf16 %v1025, %v1020
      %v1081 = vpack.c.bf16 %v1026, %v1021
      %v1082 = vpack.c.bf16 %v1027, %v1022
      %v1083 = vpack.c.bf16 %v1028, %v1023
      %v1084 = vpack.c.bf16 %v1034, %v1029
      %v1085 = vpack.c.bf16 %v1035, %v1030
      %v1086 = vpack.c.bf16 %v1036, %v1031
      %v1087 = vpack.c.bf16 %v1037, %v1032
      %v1088 = vpack.c.bf16 %v1038, %v1033
      %v1089 = vpack.c.bf16 %v1044, %v1039
      %v1090 = vpack.c.bf16 %v1045, %v1040
      %v1091 = vpack.c.bf16 %v1046, %v1041
      %v1092 = vpack.c.bf16 %v1047, %v1042
      %v1093 = vpack.c.bf16 %v1048, %v1043
      %v1094 = vpack.c.bf16 %v1054, %v1049
      %v1095 = vpack.c.bf16 %v1055, %v1050
      %v1096 = vpack.c.bf16 %v1056, %v1051
      %v1097 = vpack.c.bf16 %v1057, %v1052
      %v1098 = vpack.c.bf16 %v1058, %v1053
      %v1099 = vld [vmem:[%s5] sm:$0xff]
      %v1100 = vld [vmem:[%s5 + $0x8] sm:$0xff]
      %v1101 = vld [vmem:[%s5 + $0x10] sm:$0xff]
      %v1102 = vld [vmem:[%s5 + $0x18] sm:$0xff]
      %v1103 = vld [vmem:[%s5 + $0x20] sm:$0xff]
      %v1104 = vld [vmem:[%s5 + $0x28] sm:$0xff]
      %v1105 = vld [vmem:[%s5 + $0x30] sm:$0xff]
      %v1106 = vld [vmem:[%s5 + $0x38] sm:$0xff]
      %v1107 = vld [vmem:[%s5 + $0x40] sm:$0xff]
      %v1108 = vld [vmem:[%s5 + $0x48] sm:$0xff]
      %v1109 = vld [vmem:[%s5 + $0x50] sm:$0xff]
      %v1110 = vld [vmem:[%s5 + $0x58] sm:$0xff]
      %v1111 = vld [vmem:[%s5 + $0x60] sm:$0xff]
      %v1112 = vld [vmem:[%s5 + $0x68] sm:$0xff]
      %v1113 = vld [vmem:[%s5 + $0x70] sm:$0xff]
      %v1114 = vld [vmem:[%s5 + $0x78] sm:$0xff]
      %v1115 = vld [vmem:[%s5 + $0x80] sm:$0xff]
      %v1116 = vld [vmem:[%s5 + $0x88] sm:$0xff]
      %v1117 = vld [vmem:[%s5 + $0x90] sm:$0xff]
      %v1118 = vld [vmem:[%s5 + $0x98] sm:$0xff]
      %v1119 = vld [vmem:[%s5 + $0xa0] sm:$0xff]
      %v1120 = vld [vmem:[%s5 + $0xa8] sm:$0xff]
      %v1121 = vld [vmem:[%s5 + $0xb0] sm:$0xff]
      %v1122 = vld [vmem:[%s5 + $0xb8] sm:$0xff]
      %v1123 = vld [vmem:[%s5 + $0xc0] sm:$0xff]
      %v1124 = vld [vmem:[%s5 + $0xc8] sm:$0xff]
      %v1125 = vld [vmem:[%s5 + $0xd0] sm:$0xff]
      %v1126 = vld [vmem:[%s5 + $0xd8] sm:$0xff]
      %v1127 = vld [vmem:[%s5 + $0xe0] sm:$0xff]
      %v1128 = vld [vmem:[%s5 + $0xe8] sm:$0xff]
      %v1129 = vld [vmem:[%s5 + $0xf0] sm:$0xff]
      %v1130 = vld [vmem:[%s5 + $0xf8] sm:$0xff]
      %v1131 = vld [vmem:[%s5 + $0x100] sm:$0xff]
      %v1132 = vld [vmem:[%s5 + $0x108] sm:$0xff]
      %v1133 = vld [vmem:[%s5 + $0x110] sm:$0xff]
      %v1134 = vld [vmem:[%s5 + $0x118] sm:$0xff]
      %v1135 = vld [vmem:[%s5 + $0x120] sm:$0xff]
      %v1136 = vld [vmem:[%s5 + $0x128] sm:$0xff]
      %v1137 = vld [vmem:[%s5 + $0x130] sm:$0xff]
      %v1138 = vld [vmem:[%s5 + $0x138] sm:$0xff]
      %v1139 = vld [vmem:[%s5 + $0x140] sm:$0xff]
      %v1140 = vld [vmem:[%s5 + $0x148] sm:$0xff]
      %v1141 = vld [vmem:[%s5 + $0x150] sm:$0xff]
      %v1142 = vld [vmem:[%s5 + $0x158] sm:$0xff]
      %v1143 = vld [vmem:[%s5 + $0x160] sm:$0xff]
      %v1144 = vld [vmem:[%s5 + $0x168] sm:$0xff]
      %v1145 = vld [vmem:[%s5 + $0x170] sm:$0xff]
      %v1146 = vld [vmem:[%s5 + $0x178] sm:$0xff]
      %v1147 = vld [vmem:[%s5 + $0x180] sm:$0xff]
      %v1148 = vld [vmem:[%s5 + $0x188] sm:$0xff]
      %v1149 = vld [vmem:[%s5 + $0x190] sm:$0xff]
      %v1150 = vld [vmem:[%s5 + $0x198] sm:$0xff]
      %v1151 = vld [vmem:[%s5 + $0x1a0] sm:$0xff]
      %v1152 = vld [vmem:[%s5 + $0x1a8] sm:$0xff]
      %v1153 = vld [vmem:[%s5 + $0x1b0] sm:$0xff]
      %v1154 = vld [vmem:[%s5 + $0x1b8] sm:$0xff]
      %v1155 = vld [vmem:[%s5 + $0x1c0] sm:$0xff]
      %v1156 = vld [vmem:[%s5 + $0x1c8] sm:$0xff]
      %v1157 = vld [vmem:[%s5 + $0x1d0] sm:$0xff]
      %v1158 = vld [vmem:[%s5 + $0x1d8] sm:$0xff]
      %v1159 = vld [vmem:[%s5 + $0x1e0] sm:$0xff]
      %v1160 = vld [vmem:[%s5 + $0x1e8] sm:$0xff]
      %v1161 = vld [vmem:[%s5 + $0x1f0] sm:$0xff]
      %v1162 = vld [vmem:[%s5 + $0x1f8] sm:$0xff]
      %v1163 = vld [vmem:[%s5 + $0x200] sm:$0xff]
      %v1164 = vld [vmem:[%s5 + $0x208] sm:$0xff]
      %v1165 = vld [vmem:[%s5 + $0x210] sm:$0xff]
      %v1166 = vld [vmem:[%s5 + $0x218] sm:$0xff]
      %v1167 = vld [vmem:[%s5 + $0x220] sm:$0xff]
      %v1168 = vld [vmem:[%s5 + $0x228] sm:$0xff]
      %v1169 = vld [vmem:[%s5 + $0x230] sm:$0xff]
      %v1170 = vld [vmem:[%s5 + $0x238] sm:$0xff]
      %v1171 = vld [vmem:[%s5 + $0x240] sm:$0xff]
      %v1172 = vld [vmem:[%s5 + $0x248] sm:$0xff]
      %v1173 = vld [vmem:[%s5 + $0x250] sm:$0xff]
      %v1174 = vld [vmem:[%s5 + $0x258] sm:$0xff]
      %v1175 = vld [vmem:[%s5 + $0x260] sm:$0xff]
      %v1176 = vld [vmem:[%s5 + $0x268] sm:$0xff]
      %v1177 = vld [vmem:[%s5 + $0x270] sm:$0xff]
      %v1178 = vld [vmem:[%s5 + $0x278] sm:$0xff]
      %v1179 = vld [vmem:[%s6] sm:$0x3]
      %v1181 = vlaneseq
      %v1182 = vshrl.u32 %v1181, 7
      %v1183 = vsub.s32 0, %v1182
      %v1184 = vrot.slane %v1179, %v1183
      %v1185 = vlaneseq
      %v1186 = vshrl.u32 %v1185, 7
      %v1187 = vsub.s32 1, %v1186
      %v1188 = vrot.slane %v1179, %v1187
      %v1271 = vunpack.c.l.b16 %v1099
      %v1272 = vunpack.c.h.b16 %v1099
      %v1273 = vunpack.c.l.b16 %v1100
      %v1274 = vunpack.c.h.b16 %v1100
      %v1275 = vunpack.c.l.b16 %v1101
      %v1276 = vunpack.c.h.b16 %v1101
      %v1277 = vunpack.c.l.b16 %v1102
      %v1278 = vunpack.c.h.b16 %v1102
      %v1279 = vunpack.c.l.b16 %v1103
      %v1280 = vunpack.c.h.b16 %v1103
      %v1281 = vunpack.c.l.b16 %v1104
      %v1282 = vunpack.c.h.b16 %v1104
      %v1283 = vunpack.c.l.b16 %v1105
      %v1284 = vunpack.c.h.b16 %v1105
      %v1285 = vunpack.c.l.b16 %v1106
      %v1286 = vunpack.c.h.b16 %v1106
      %v1287 = vunpack.c.l.b16 %v1107
      %v1288 = vunpack.c.h.b16 %v1107
      %v1289 = vunpack.c.l.b16 %v1108
      %v1290 = vunpack.c.h.b16 %v1108
      %v1291 = vunpack.c.l.b16 %v1109
      %v1292 = vunpack.c.h.b16 %v1109
      %v1293 = vunpack.c.l.b16 %v1110
      %v1294 = vunpack.c.h.b16 %v1110
      %v1295 = vunpack.c.l.b16 %v1111
      %v1296 = vunpack.c.h.b16 %v1111
      %v1297 = vunpack.c.l.b16 %v1112
      %v1298 = vunpack.c.h.b16 %v1112
      %v1299 = vunpack.c.l.b16 %v1113
      %v1300 = vunpack.c.h.b16 %v1113
      %v1301 = vunpack.c.l.b16 %v1114
      %v1302 = vunpack.c.h.b16 %v1114
      %v1303 = vunpack.c.l.b16 %v1115
      %v1304 = vunpack.c.h.b16 %v1115
      %v1305 = vunpack.c.l.b16 %v1116
      %v1306 = vunpack.c.h.b16 %v1116
      %v1307 = vunpack.c.l.b16 %v1117
      %v1308 = vunpack.c.h.b16 %v1117
      %v1309 = vunpack.c.l.b16 %v1118
      %v1310 = vunpack.c.h.b16 %v1118
      %v1311 = vunpack.c.l.b16 %v1119
      %v1312 = vunpack.c.h.b16 %v1119
      %v1313 = vunpack.c.l.b16 %v1120
      %v1314 = vunpack.c.h.b16 %v1120
      %v1315 = vunpack.c.l.b16 %v1121
      %v1316 = vunpack.c.h.b16 %v1121
      %v1317 = vunpack.c.l.b16 %v1122
      %v1318 = vunpack.c.h.b16 %v1122
      %v1319 = vunpack.c.l.b16 %v1123
      %v1320 = vunpack.c.h.b16 %v1123
      %v1321 = vunpack.c.l.b16 %v1124
      %v1322 = vunpack.c.h.b16 %v1124
      %v1323 = vunpack.c.l.b16 %v1125
      %v1324 = vunpack.c.h.b16 %v1125
      %v1325 = vunpack.c.l.b16 %v1126
      %v1326 = vunpack.c.h.b16 %v1126
      %v1327 = vunpack.c.l.b16 %v1127
      %v1328 = vunpack.c.h.b16 %v1127
      %v1329 = vunpack.c.l.b16 %v1128
      %v1330 = vunpack.c.h.b16 %v1128
      %v1331 = vunpack.c.l.b16 %v1129
      %v1332 = vunpack.c.h.b16 %v1129
      %v1333 = vunpack.c.l.b16 %v1130
      %v1334 = vunpack.c.h.b16 %v1130
      %v1335 = vunpack.c.l.b16 %v1131
      %v1336 = vunpack.c.h.b16 %v1131
      %v1337 = vunpack.c.l.b16 %v1132
      %v1338 = vunpack.c.h.b16 %v1132
      %v1339 = vunpack.c.l.b16 %v1133
      %v1340 = vunpack.c.h.b16 %v1133
      %v1341 = vunpack.c.l.b16 %v1134
      %v1342 = vunpack.c.h.b16 %v1134
      %v1343 = vunpack.c.l.b16 %v1135
      %v1344 = vunpack.c.h.b16 %v1135
      %v1345 = vunpack.c.l.b16 %v1136
      %v1346 = vunpack.c.h.b16 %v1136
      %v1347 = vunpack.c.l.b16 %v1137
      %v1348 = vunpack.c.h.b16 %v1137
      %v1349 = vunpack.c.l.b16 %v1138
      %v1350 = vunpack.c.h.b16 %v1138
      %v1351 = vunpack.c.l.b16 %v1139
      %v1352 = vunpack.c.h.b16 %v1139
      %v1353 = vunpack.c.l.b16 %v1140
      %v1354 = vunpack.c.h.b16 %v1140
      %v1355 = vunpack.c.l.b16 %v1141
      %v1356 = vunpack.c.h.b16 %v1141
      %v1357 = vunpack.c.l.b16 %v1142
      %v1358 = vunpack.c.h.b16 %v1142
      %v1359 = vunpack.c.l.b16 %v1143
      %v1360 = vunpack.c.h.b16 %v1143
      %v1361 = vunpack.c.l.b16 %v1144
      %v1362 = vunpack.c.h.b16 %v1144
      %v1363 = vunpack.c.l.b16 %v1145
      %v1364 = vunpack.c.h.b16 %v1145
      %v1365 = vunpack.c.l.b16 %v1146
      %v1366 = vunpack.c.h.b16 %v1146
      %v1367 = vunpack.c.l.b16 %v1147
      %v1368 = vunpack.c.h.b16 %v1147
      %v1369 = vunpack.c.l.b16 %v1148
      %v1370 = vunpack.c.h.b16 %v1148
      %v1371 = vunpack.c.l.b16 %v1149
      %v1372 = vunpack.c.h.b16 %v1149
      %v1373 = vunpack.c.l.b16 %v1150
      %v1374 = vunpack.c.h.b16 %v1150
      %v1375 = vunpack.c.l.b16 %v1151
      %v1376 = vunpack.c.h.b16 %v1151
      %v1377 = vunpack.c.l.b16 %v1152
      %v1378 = vunpack.c.h.b16 %v1152
      %v1379 = vunpack.c.l.b16 %v1153
      %v1380 = vunpack.c.h.b16 %v1153
      %v1381 = vunpack.c.l.b16 %v1154
      %v1382 = vunpack.c.h.b16 %v1154
      %v1383 = vunpack.c.l.b16 %v1155
      %v1384 = vunpack.c.h.b16 %v1155
      %v1385 = vunpack.c.l.b16 %v1156
      %v1386 = vunpack.c.h.b16 %v1156
      %v1387 = vunpack.c.l.b16 %v1157
      %v1388 = vunpack.c.h.b16 %v1157
      %v1389 = vunpack.c.l.b16 %v1158
      %v1390 = vunpack.c.h.b16 %v1158
      %v1391 = vunpack.c.l.b16 %v1159
      %v1392 = vunpack.c.h.b16 %v1159
      %v1393 = vunpack.c.l.b16 %v1160
      %v1394 = vunpack.c.h.b16 %v1160
      %v1395 = vunpack.c.l.b16 %v1161
      %v1396 = vunpack.c.h.b16 %v1161
      %v1397 = vunpack.c.l.b16 %v1162
      %v1398 = vunpack.c.h.b16 %v1162
      %v1399 = vunpack.c.l.b16 %v1163
      %v1400 = vunpack.c.h.b16 %v1163
      %v1401 = vunpack.c.l.b16 %v1164
      %v1402 = vunpack.c.h.b16 %v1164
      %v1403 = vunpack.c.l.b16 %v1165
      %v1404 = vunpack.c.h.b16 %v1165
      %v1405 = vunpack.c.l.b16 %v1166
      %v1406 = vunpack.c.h.b16 %v1166
      %v1407 = vunpack.c.l.b16 %v1167
      %v1408 = vunpack.c.h.b16 %v1167
      %v1409 = vunpack.c.l.b16 %v1168
      %v1410 = vunpack.c.h.b16 %v1168
      %v1411 = vunpack.c.l.b16 %v1169
      %v1412 = vunpack.c.h.b16 %v1169
      %v1413 = vunpack.c.l.b16 %v1170
      %v1414 = vunpack.c.h.b16 %v1170
      %v1415 = vunpack.c.l.b16 %v1171
      %v1416 = vunpack.c.h.b16 %v1171
      %v1417 = vunpack.c.l.b16 %v1172
      %v1418 = vunpack.c.h.b16 %v1172
      %v1419 = vunpack.c.l.b16 %v1173
      %v1420 = vunpack.c.h.b16 %v1173
      %v1421 = vunpack.c.l.b16 %v1174
      %v1422 = vunpack.c.h.b16 %v1174
      %v1423 = vunpack.c.l.b16 %v1175
      %v1424 = vunpack.c.h.b16 %v1175
      %v1425 = vunpack.c.l.b16 %v1176
      %v1426 = vunpack.c.h.b16 %v1176
      %v1427 = vunpack.c.l.b16 %v1177
      %v1428 = vunpack.c.h.b16 %v1177
      %v1429 = vunpack.c.l.b16 %v1178
      %v1430 = vunpack.c.h.b16 %v1178
      %v1431 = vpack.c.b16 %v1273, %v1271
      %v1432 = vpack.c.b16 %v1274, %v1272
      %v1433 = vpack.c.b16 %v1277, %v1275
      %v1434 = vpack.c.b16 %v1278, %v1276
      %v1435 = vpack.c.b16 %v1281, %v1279
      %v1436 = vpack.c.b16 %v1282, %v1280
      %v1437 = vpack.c.b16 %v1285, %v1283
      %v1438 = vpack.c.b16 %v1286, %v1284
      %v1439 = vpack.c.b16 %v1289, %v1287
      %v1440 = vpack.c.b16 %v1290, %v1288
      %v1441 = vpack.c.b16 %v1293, %v1291
      %v1442 = vpack.c.b16 %v1294, %v1292
      %v1443 = vpack.c.b16 %v1297, %v1295
      %v1444 = vpack.c.b16 %v1298, %v1296
      %v1445 = vpack.c.b16 %v1301, %v1299
      %v1446 = vpack.c.b16 %v1302, %v1300
      %v1447 = vpack.c.b16 %v1305, %v1303
      %v1448 = vpack.c.b16 %v1306, %v1304
      %v1449 = vpack.c.b16 %v1309, %v1307
      %v1450 = vpack.c.b16 %v1310, %v1308
      %v1451 = vpack.c.b16 %v1313, %v1311
      %v1452 = vpack.c.b16 %v1314, %v1312
      %v1453 = vpack.c.b16 %v1317, %v1315
      %v1454 = vpack.c.b16 %v1318, %v1316
      %v1455 = vpack.c.b16 %v1321, %v1319
      %v1456 = vpack.c.b16 %v1322, %v1320
      %v1457 = vpack.c.b16 %v1325, %v1323
      %v1458 = vpack.c.b16 %v1326, %v1324
      %v1459 = vpack.c.b16 %v1329, %v1327
      %v1460 = vpack.c.b16 %v1330, %v1328
      %v1461 = vpack.c.b16 %v1333, %v1331
      %v1462 = vpack.c.b16 %v1334, %v1332
      %v1463 = vpack.c.b16 %v1337, %v1335
      %v1464 = vpack.c.b16 %v1338, %v1336
      %v1465 = vpack.c.b16 %v1341, %v1339
      %v1466 = vpack.c.b16 %v1342, %v1340
      %v1467 = vpack.c.b16 %v1345, %v1343
      %v1468 = vpack.c.b16 %v1346, %v1344
      %v1469 = vpack.c.b16 %v1349, %v1347
      %v1470 = vpack.c.b16 %v1350, %v1348
      %v1471 = vpack.c.b16 %v1353, %v1351
      %v1472 = vpack.c.b16 %v1354, %v1352
      %v1473 = vpack.c.b16 %v1357, %v1355
      %v1474 = vpack.c.b16 %v1358, %v1356
      %v1475 = vpack.c.b16 %v1361, %v1359
      %v1476 = vpack.c.b16 %v1362, %v1360
      %v1477 = vpack.c.b16 %v1365, %v1363
      %v1478 = vpack.c.b16 %v1366, %v1364
      %v1479 = vpack.c.b16 %v1369, %v1367
      %v1480 = vpack.c.b16 %v1370, %v1368
      %v1481 = vpack.c.b16 %v1373, %v1371
      %v1482 = vpack.c.b16 %v1374, %v1372
      %v1483 = vpack.c.b16 %v1377, %v1375
      %v1484 = vpack.c.b16 %v1378, %v1376
      %v1485 = vpack.c.b16 %v1381, %v1379
      %v1486 = vpack.c.b16 %v1382, %v1380
      %v1487 = vpack.c.b16 %v1385, %v1383
      %v1488 = vpack.c.b16 %v1386, %v1384
      %v1489 = vpack.c.b16 %v1389, %v1387
      %v1490 = vpack.c.b16 %v1390, %v1388
      %v1491 = vpack.c.b16 %v1393, %v1391
      %v1492 = vpack.c.b16 %v1394, %v1392
      %v1493 = vpack.c.b16 %v1397, %v1395
      %v1494 = vpack.c.b16 %v1398, %v1396
      %v1495 = vpack.c.b16 %v1401, %v1399
      %v1496 = vpack.c.b16 %v1402, %v1400
      %v1497 = vpack.c.b16 %v1405, %v1403
      %v1498 = vpack.c.b16 %v1406, %v1404
      %v1499 = vpack.c.b16 %v1409, %v1407
      %v1500 = vpack.c.b16 %v1410, %v1408
      %v1501 = vpack.c.b16 %v1413, %v1411
      %v1502 = vpack.c.b16 %v1414, %v1412
      %v1503 = vpack.c.b16 %v1417, %v1415
      %v1504 = vpack.c.b16 %v1418, %v1416
      %v1505 = vpack.c.b16 %v1421, %v1419
      %v1506 = vpack.c.b16 %v1422, %v1420
      %v1507 = vpack.c.b16 %v1425, %v1423
      %v1508 = vpack.c.b16 %v1426, %v1424
      %v1509 = vpack.c.b16 %v1429, %v1427
      %v1510 = vpack.c.b16 %v1430, %v1428
      %1591 = vmatprep.subr.bf16.mxu0 %v1446
      %1592 = vmatpush1.bf16.msra.mxu0 %v1445
      %1593 = vmatprep.subr.bf16.mxu0 %v1444
      %1594 = vmatpush1.bf16.msra.mxu0 %v1443
      %1595 = vmatprep.subr.bf16.mxu0 %v1442
      %1596 = vmatpush1.bf16.msra.mxu0 %v1441
      %1597 = vmatprep.subr.bf16.mxu0 %v1440
      %1598 = vmatpush1.bf16.msra.mxu0 %v1439
      %1599 = vmatprep.subr.bf16.mxu0 %v1438
      %1600 = vmatpush1.bf16.msra.mxu0 %v1437
      %1601 = vmatprep.subr.bf16.mxu0 %v1436
      %1602 = vmatpush1.bf16.msra.mxu0 %v1435
      %1603 = vmatprep.subr.bf16.mxu0 %v1434
      %1604 = vmatpush1.bf16.msra.mxu0 %v1433
      %1605 = vmatprep.subr.bf16.mxu0 %v1432
      %1606 = vmatpush1.bf16.msra.mxu0 %v1431
      %1607 = vmatprep.subr.bf16.mxu0 %v1462
      %1608 = vmatpush2.bf16.msra.mxu0 %v1461
      %1609 = vmatprep.subr.bf16.mxu0 %v1460
      %1610 = vmatpush2.bf16.msra.mxu0 %v1459
      %1611 = vmatprep.subr.bf16.mxu0 %v1458
      %1612 = vmatpush2.bf16.msra.mxu0 %v1457
      %1613 = vmatprep.subr.bf16.mxu0 %v1456
      %1614 = vmatpush2.bf16.msra.mxu0 %v1455
      %1615 = vmatprep.subr.bf16.mxu0 %v1454
      %1616 = vmatpush2.bf16.msra.mxu0 %v1453
      %1617 = vmatprep.subr.bf16.mxu0 %v1452
      %1618 = vmatpush2.bf16.msra.mxu0 %v1451
      %1619 = vmatprep.subr.bf16.mxu0 %v1450
      %1620 = vmatpush2.bf16.msra.mxu0 %v1449
      %1621 = vmatprep.subr.bf16.mxu0 %v1448
      %1622 = vmatpush2.bf16.msra.mxu0 %v1447
      %1623 = vmatprep.mubr.bf16.mxu0 %v1060
      %1624 = vmatmul.mubr.bf16.gmra.mxu0 %v1059
      %v1625 = vpop.f32.mrf.mxu0
      %v1626 = vadd.f32 %v1184, %v1625
      %v1627 = vpop.f32.mrf.mxu0
      %v1628 = vadd.f32 %v1188, %v1627
      %v1629 = vpop.f32.mrf.mxu0
      %v1630 = vadd.f32 %v1184, %v1629
      %v1631 = vpop.f32.mrf.mxu0
      %v1632 = vadd.f32 %v1188, %v1631
      %1633 = vmatprep.mubr.bf16.mxu0 %v1065
      %1634 = vmatmul.mubr.bf16.gmra.mxu0 %v1064
      %v1635 = vpop.f32.mrf.mxu0
      %v1636 = vadd.f32 %v1184, %v1635
      %v1637 = vpop.f32.mrf.mxu0
      %v1638 = vadd.f32 %v1188, %v1637
      %v1639 = vpop.f32.mrf.mxu0
      %v1640 = vadd.f32 %v1184, %v1639
      %v1641 = vpop.f32.mrf.mxu0
      %v1642 = vadd.f32 %v1188, %v1641
      %1643 = vmatprep.mubr.bf16.mxu0 %v1070
      %1644 = vmatmul.mubr.bf16.gmra.mxu0 %v1069
      %v1645 = vpop.f32.mrf.mxu0
      %v1646 = vadd.f32 %v1184, %v1645
      %v1647 = vpop.f32.mrf.mxu0
      %v1648 = vadd.f32 %v1188, %v1647
      %v1649 = vpop.f32.mrf.mxu0
      %v1650 = vadd.f32 %v1184, %v1649
      %v1651 = vpop.f32.mrf.mxu0
      %v1652 = vadd.f32 %v1188, %v1651
      %1653 = vmatprep.mubr.bf16.mxu0 %v1075
      %1654 = vmatmul.mubr.bf16.gmra.mxu0 %v1074
      %v1655 = vpop.f32.mrf.mxu0
      %v1656 = vadd.f32 %v1184, %v1655
      %v1657 = vpop.f32.mrf.mxu0
      %v1658 = vadd.f32 %v1188, %v1657
      %v1659 = vpop.f32.mrf.mxu0
      %v1660 = vadd.f32 %v1184, %v1659
      %v1661 = vpop.f32.mrf.mxu0
      %v1662 = vadd.f32 %v1188, %v1661
      %1663 = vmatprep.mubr.bf16.mxu0 %v1080
      %1664 = vmatmul.mubr.bf16.gmra.mxu0 %v1079
      %v1665 = vpop.f32.mrf.mxu0
      %v1666 = vadd.f32 %v1184, %v1665
      %v1667 = vpop.f32.mrf.mxu0
      %v1668 = vadd.f32 %v1188, %v1667
      %v1669 = vpop.f32.mrf.mxu0
      %v1670 = vadd.f32 %v1184, %v1669
      %v1671 = vpop.f32.mrf.mxu0
      %v1672 = vadd.f32 %v1188, %v1671
      %1673 = vmatprep.mubr.bf16.mxu0 %v1085
      %1674 = vmatmul.mubr.bf16.gmra.mxu0 %v1084
      %v1675 = vpop.f32.mrf.mxu0
      %v1676 = vadd.f32 %v1184, %v1675
      %v1677 = vpop.f32.mrf.mxu0
      %v1678 = vadd.f32 %v1188, %v1677
      %v1679 = vpop.f32.mrf.mxu0
      %v1680 = vadd.f32 %v1184, %v1679
      %v1681 = vpop.f32.mrf.mxu0
      %v1682 = vadd.f32 %v1188, %v1681
      %1683 = vmatprep.mubr.bf16.mxu0 %v1090
      %1684 = vmatmul.mubr.bf16.gmra.mxu0 %v1089
      %v1685 = vpop.f32.mrf.mxu0
      %v1686 = vadd.f32 %v1184, %v1685
      %v1687 = vpop.f32.mrf.mxu0
      %v1688 = vadd.f32 %v1188, %v1687
      %v1689 = vpop.f32.mrf.mxu0
      %v1690 = vadd.f32 %v1184, %v1689
      %v1691 = vpop.f32.mrf.mxu0
      %v1692 = vadd.f32 %v1188, %v1691
      %1693 = vmatprep.mubr.bf16.mxu0 %v1095
      %1694 = vmatmul.mubr.bf16.gmra.mxu0 %v1094
      %v1695 = vpop.f32.mrf.mxu0
      %v1696 = vadd.f32 %v1184, %v1695
      %v1697 = vpop.f32.mrf.mxu0
      %v1698 = vadd.f32 %v1188, %v1697
      %v1699 = vpop.f32.mrf.mxu0
      %v1700 = vadd.f32 %v1184, %v1699
      %v1701 = vpop.f32.mrf.mxu0
      %v1702 = vadd.f32 %v1188, %v1701
      %1703 = vdwg.mxu0
      %1704 = vmatprep.subr.bf16.mxu0 %v1478
      %1705 = vmatpush1.bf16.msra.mxu0 %v1477
      %1706 = vmatprep.subr.bf16.mxu0 %v1476
      %1707 = vmatpush1.bf16.msra.mxu0 %v1475
      %1708 = vmatprep.subr.bf16.mxu0 %v1474
      %1709 = vmatpush1.bf16.msra.mxu0 %v1473
      %1710 = vmatprep.subr.bf16.mxu0 %v1472
      %1711 = vmatpush1.bf16.msra.mxu0 %v1471
      %1712 = vmatprep.subr.bf16.mxu0 %v1470
      %1713 = vmatpush1.bf16.msra.mxu0 %v1469
      %1714 = vmatprep.subr.bf16.mxu0 %v1468
      %1715 = vmatpush1.bf16.msra.mxu0 %v1467
      %1716 = vmatprep.subr.bf16.mxu0 %v1466
      %1717 = vmatpush1.bf16.msra.mxu0 %v1465
      %1718 = vmatprep.subr.bf16.mxu0 %v1464
      %1719 = vmatpush1.bf16.msra.mxu0 %v1463
      %1720 = vmatprep.subr.bf16.mxu0 %v1494
      %1721 = vmatpush2.bf16.msra.mxu0 %v1493
      %1722 = vmatprep.subr.bf16.mxu0 %v1492
      %1723 = vmatpush2.bf16.msra.mxu0 %v1491
      %1724 = vmatprep.subr.bf16.mxu0 %v1490
      %1725 = vmatpush2.bf16.msra.mxu0 %v1489
      %1726 = vmatprep.subr.bf16.mxu0 %v1488
      %1727 = vmatpush2.bf16.msra.mxu0 %v1487
      %1728 = vmatprep.subr.bf16.mxu0 %v1486
      %1729 = vmatpush2.bf16.msra.mxu0 %v1485
      %1730 = vmatprep.subr.bf16.mxu0 %v1484
      %1731 = vmatpush2.bf16.msra.mxu0 %v1483
      %1732 = vmatprep.subr.bf16.mxu0 %v1482
      %1733 = vmatpush2.bf16.msra.mxu0 %v1481
      %1734 = vmatprep.subr.bf16.mxu0 %v1480
      %1735 = vmatpush2.bf16.msra.mxu0 %v1479
      %1736 = vmatprep.mubr.bf16.mxu0 %v1062
      %1737 = vmatmul.mubr.bf16.gmra.mxu0 %v1061
      %v1738 = vpop.f32.mrf.mxu0
      %v1739 = vadd.f32 %v1626, %v1738
      %v1740 = vpop.f32.mrf.mxu0
      %v1741 = vadd.f32 %v1628, %v1740
      %v1742 = vpop.f32.mrf.mxu0
      %v1743 = vadd.f32 %v1630, %v1742
      %v1744 = vpop.f32.mrf.mxu0
      %v1745 = vadd.f32 %v1632, %v1744
      %1746 = vmatprep.mubr.bf16.mxu0 %v1067
      %1747 = vmatmul.mubr.bf16.gmra.mxu0 %v1066
      %v1748 = vpop.f32.mrf.mxu0
      %v1749 = vadd.f32 %v1636, %v1748
      %v1750 = vpop.f32.mrf.mxu0
      %v1751 = vadd.f32 %v1638, %v1750
      %v1752 = vpop.f32.mrf.mxu0
      %v1753 = vadd.f32 %v1640, %v1752
      %v1754 = vpop.f32.mrf.mxu0
      %v1755 = vadd.f32 %v1642, %v1754
      %1756 = vmatprep.mubr.bf16.mxu0 %v1072
      %1757 = vmatmul.mubr.bf16.gmra.mxu0 %v1071
      %v1758 = vpop.f32.mrf.mxu0
      %v1759 = vadd.f32 %v1646, %v1758
      %v1760 = vpop.f32.mrf.mxu0
      %v1761 = vadd.f32 %v1648, %v1760
      %v1762 = vpop.f32.mrf.mxu0
      %v1763 = vadd.f32 %v1650, %v1762
      %v1764 = vpop.f32.mrf.mxu0
      %v1765 = vadd.f32 %v1652, %v1764
      %1766 = vmatprep.mubr.bf16.mxu0 %v1077
      %1767 = vmatmul.mubr.bf16.gmra.mxu0 %v1076
      %v1768 = vpop.f32.mrf.mxu0
      %v1769 = vadd.f32 %v1656, %v1768
      %v1770 = vpop.f32.mrf.mxu0
      %v1771 = vadd.f32 %v1658, %v1770
      %v1772 = vpop.f32.mrf.mxu0
      %v1773 = vadd.f32 %v1660, %v1772
      %v1774 = vpop.f32.mrf.mxu0
      %v1775 = vadd.f32 %v1662, %v1774
      %1776 = vmatprep.mubr.bf16.mxu0 %v1082
      %1777 = vmatmul.mubr.bf16.gmra.mxu0 %v1081
      %v1778 = vpop.f32.mrf.mxu0
      %v1779 = vadd.f32 %v1666, %v1778
      %v1780 = vpop.f32.mrf.mxu0
      %v1781 = vadd.f32 %v1668, %v1780
      %v1782 = vpop.f32.mrf.mxu0
      %v1783 = vadd.f32 %v1670, %v1782
      %v1784 = vpop.f32.mrf.mxu0
      %v1785 = vadd.f32 %v1672, %v1784
      %1786 = vmatprep.mubr.bf16.mxu0 %v1087
      %1787 = vmatmul.mubr.bf16.gmra.mxu0 %v1086
      %v1788 = vpop.f32.mrf.mxu0
      %v1789 = vadd.f32 %v1676, %v1788
      %v1790 = vpop.f32.mrf.mxu0
      %v1791 = vadd.f32 %v1678, %v1790
      %v1792 = vpop.f32.mrf.mxu0
      %v1793 = vadd.f32 %v1680, %v1792
      %v1794 = vpop.f32.mrf.mxu0
      %v1795 = vadd.f32 %v1682, %v1794
      %1796 = vmatprep.mubr.bf16.mxu0 %v1092
      %1797 = vmatmul.mubr.bf16.gmra.mxu0 %v1091
      %v1798 = vpop.f32.mrf.mxu0
      %v1799 = vadd.f32 %v1686, %v1798
      %v1800 = vpop.f32.mrf.mxu0
      %v1801 = vadd.f32 %v1688, %v1800
      %v1802 = vpop.f32.mrf.mxu0
      %v1803 = vadd.f32 %v1690, %v1802
      %v1804 = vpop.f32.mrf.mxu0
      %v1805 = vadd.f32 %v1692, %v1804
      %1806 = vmatprep.mubr.bf16.mxu0 %v1097
      %1807 = vmatmul.mubr.bf16.gmra.mxu0 %v1096
      %v1808 = vpop.f32.mrf.mxu0
      %v1809 = vadd.f32 %v1696, %v1808
      %v1810 = vpop.f32.mrf.mxu0
      %v1811 = vadd.f32 %v1698, %v1810
      %v1812 = vpop.f32.mrf.mxu0
      %v1813 = vadd.f32 %v1700, %v1812
      %v1814 = vpop.f32.mrf.mxu0
      %v1815 = vadd.f32 %v1702, %v1814
      %1816 = vdwg.mxu0
      %1817 = vmatprep.subr.bf16.mxu0 %v1510
      %1818 = vmatpush1.bf16.msra.mxu0 %v1509
      %1819 = vmatprep.subr.bf16.mxu0 %v1508
      %1820 = vmatpush1.bf16.msra.mxu0 %v1507
      %1821 = vmatprep.subr.bf16.mxu0 %v1506
      %1822 = vmatpush1.bf16.msra.mxu0 %v1505
      %1823 = vmatprep.subr.bf16.mxu0 %v1504
      %1824 = vmatpush1.bf16.msra.mxu0 %v1503
      %1825 = vmatprep.subr.bf16.mxu0 %v1502
      %1826 = vmatpush1.bf16.msra.mxu0 %v1501
      %1827 = vmatprep.subr.bf16.mxu0 %v1500
      %1828 = vmatpush1.bf16.msra.mxu0 %v1499
      %1829 = vmatprep.subr.bf16.mxu0 %v1498
      %1830 = vmatpush1.bf16.msra.mxu0 %v1497
      %1831 = vmatprep.subr.bf16.mxu0 %v1496
      %1832 = vmatpush1.bf16.msra.mxu0 %v1495
      %1833 = vmatprep.subr.bf16.mxu0 0
      %1834 = vmatpush2.bf16.msra.mxu0 0
      %1835 = vmatprep.subr.bf16.mxu0 0
      %1836 = vmatpush2.bf16.msra.mxu0 0
      %1837 = vmatprep.subr.bf16.mxu0 0
      %1838 = vmatpush2.bf16.msra.mxu0 0
      %1839 = vmatprep.subr.bf16.mxu0 0
      %1840 = vmatpush2.bf16.msra.mxu0 0
      %1841 = vmatprep.subr.bf16.mxu0 0
      %1842 = vmatpush2.bf16.msra.mxu0 0
      %1843 = vmatprep.subr.bf16.mxu0 0
      %1844 = vmatpush2.bf16.msra.mxu0 0
      %1845 = vmatprep.subr.bf16.mxu0 0
      %1846 = vmatpush2.bf16.msra.mxu0 0
      %1847 = vmatprep.subr.bf16.mxu0 0
      %1848 = vmatpush2.bf16.msra.mxu0 0
      %1849 = vmatprep.mubr.bf16.mxu0 0
      %1850 = vmatmul.mubr.bf16.gmra.mxu0 %v1063
      %v1851 = vpop.f32.mrf.mxu0
      %v1852 = vadd.f32 %v1739, %v1851
      %v1853 = vpop.f32.mrf.mxu0
      %v1854 = vadd.f32 %v1741, %v1853
      %v1855 = vpop.f32.mrf.mxu0
      %v1856 = vadd.f32 %v1743, %v1855
      %v1857 = vpop.f32.mrf.mxu0
      %v1858 = vadd.f32 %v1745, %v1857
      %1859 = vmatprep.mubr.bf16.mxu0 0
      %1860 = vmatmul.mubr.bf16.gmra.mxu0 %v1068
      %v1861 = vpop.f32.mrf.mxu0
      %v1862 = vadd.f32 %v1749, %v1861
      %v1863 = vpop.f32.mrf.mxu0
      %v1864 = vadd.f32 %v1751, %v1863
      %v1865 = vpop.f32.mrf.mxu0
      %v1866 = vadd.f32 %v1753, %v1865
      %v1867 = vpop.f32.mrf.mxu0
      %v1868 = vadd.f32 %v1755, %v1867
      %1869 = vmatprep.mubr.bf16.mxu0 0
      %1870 = vmatmul.mubr.bf16.gmra.mxu0 %v1073
      %v1871 = vpop.f32.mrf.mxu0
      %v1872 = vadd.f32 %v1759, %v1871
      %v1873 = vpop.f32.mrf.mxu0
      %v1874 = vadd.f32 %v1761, %v1873
      %v1875 = vpop.f32.mrf.mxu0
      %v1876 = vadd.f32 %v1763, %v1875
      %v1877 = vpop.f32.mrf.mxu0
      %v1878 = vadd.f32 %v1765, %v1877
      %1879 = vmatprep.mubr.bf16.mxu0 0
      %1880 = vmatmul.mubr.bf16.gmra.mxu0 %v1078
      %v1881 = vpop.f32.mrf.mxu0
      %v1882 = vadd.f32 %v1769, %v1881
      %v1883 = vpop.f32.mrf.mxu0
      %v1884 = vadd.f32 %v1771, %v1883
      %v1885 = vpop.f32.mrf.mxu0
      %v1886 = vadd.f32 %v1773, %v1885
      %v1887 = vpop.f32.mrf.mxu0
      %v1888 = vadd.f32 %v1775, %v1887
      %1889 = vmatprep.mubr.bf16.mxu0 0
      %1890 = vmatmul.mubr.bf16.gmra.mxu0 %v1083
      %v1891 = vpop.f32.mrf.mxu0
      %v1892 = vadd.f32 %v1779, %v1891
      %v1893 = vpop.f32.mrf.mxu0
      %v1894 = vadd.f32 %v1781, %v1893
      %v1895 = vpop.f32.mrf.mxu0
      %v1896 = vadd.f32 %v1783, %v1895
      %v1897 = vpop.f32.mrf.mxu0
      %v1898 = vadd.f32 %v1785, %v1897
      %1899 = vmatprep.mubr.bf16.mxu0 0
      %1900 = vmatmul.mubr.bf16.gmra.mxu0 %v1088
      %v1901 = vpop.f32.mrf.mxu0
      %v1902 = vadd.f32 %v1789, %v1901
      %v1903 = vpop.f32.mrf.mxu0
      %v1904 = vadd.f32 %v1791, %v1903
      %v1905 = vpop.f32.mrf.mxu0
      %v1906 = vadd.f32 %v1793, %v1905
      %v1907 = vpop.f32.mrf.mxu0
      %v1908 = vadd.f32 %v1795, %v1907
      %1909 = vmatprep.mubr.bf16.mxu0 0
      %1910 = vmatmul.mubr.bf16.gmra.mxu0 %v1093
      %v1911 = vpop.f32.mrf.mxu0
      %v1912 = vadd.f32 %v1799, %v1911
      %v1913 = vpop.f32.mrf.mxu0
      %v1914 = vadd.f32 %v1801, %v1913
      %v1915 = vpop.f32.mrf.mxu0
      %v1916 = vadd.f32 %v1803, %v1915
      %v1917 = vpop.f32.mrf.mxu0
      %v1918 = vadd.f32 %v1805, %v1917
      %1919 = vmatprep.mubr.bf16.mxu0 0
      %1920 = vmatmul.mubr.bf16.gmra.mxu0 %v1098
      %v1921 = vpop.f32.mrf.mxu0
      %v1922 = vadd.f32 %v1809, %v1921
      %v1923 = vpop.f32.mrf.mxu0
      %v1924 = vadd.f32 %v1811, %v1923
      %v1925 = vpop.f32.mrf.mxu0
      %v1926 = vadd.f32 %v1813, %v1925
      %v1927 = vpop.f32.mrf.mxu0
      %v1928 = vadd.f32 %v1815, %v1927
      %1929 = vdwg.mxu0
      %v1930 = vmax.f32 %v1852, 0.0
      %v1931 = vmax.f32 %v1854, 0.0
      %v1932 = vmax.f32 %v1856, 0.0
      %v1933 = vmax.f32 %v1858, 0.0
      %v1934 = vmax.f32 %v1862, 0.0
      %v1935 = vmax.f32 %v1864, 0.0
      %v1936 = vmax.f32 %v1866, 0.0
      %v1937 = vmax.f32 %v1868, 0.0
      %v1938 = vmax.f32 %v1872, 0.0
      %v1939 = vmax.f32 %v1874, 0.0
      %v1940 = vmax.f32 %v1876, 0.0
      %v1941 = vmax.f32 %v1878, 0.0
      %v1942 = vmax.f32 %v1882, 0.0
      %v1943 = vmax.f32 %v1884, 0.0
      %v1944 = vmax.f32 %v1886, 0.0
      %v1945 = vmax.f32 %v1888, 0.0
      %v1946 = vmax.f32 %v1892, 0.0
      %v1947 = vmax.f32 %v1894, 0.0
      %v1948 = vmax.f32 %v1896, 0.0
      %v1949 = vmax.f32 %v1898, 0.0
      %v1950 = vmax.f32 %v1902, 0.0
      %v1951 = vmax.f32 %v1904, 0.0
      %v1952 = vmax.f32 %v1906, 0.0
      %v1953 = vmax.f32 %v1908, 0.0
      %v1954 = vmax.f32 %v1912, 0.0
      %v1955 = vmax.f32 %v1914, 0.0
      %v1956 = vmax.f32 %v1916, 0.0
      %v1957 = vmax.f32 %v1918, 0.0
      %v1958 = vmax.f32 %v1922, 0.0
      %v1959 = vmax.f32 %v1924, 0.0
      %v1960 = vmax.f32 %v1926, 0.0
      %v1961 = vmax.f32 %v1928, 0.0
      %v1962 = vlaneseq
      %v1963 = vshrl.u32 %v1962, 7
      %v1964 = vadd.s32 %v1963, 8
      %v1965 = vadd.s32 %v1963, 16
      %v1966 = vadd.s32 %v1963, 24
      %v1967 = vadd.s32 %v1963, 32
      %v1968 = vadd.s32 %v1963, 40
      %v1969 = vadd.s32 %v1963, 48
      %v1970 = vadd.s32 %v1963, 56
      %v1971 = vadd.s32 %v1963, 64
      %v1972 = vadd.s32 %v1963, 72
      %v1973 = vadd.s32 %v1963, 80
      %v1974 = vadd.s32 %v1963, 88
      %v1975 = vadd.s32 %v1963, 96
      %v1976 = vadd.s32 %v1963, 104
      %v1977 = vadd.s32 %v1963, 112
      %v1978 = vadd.s32 %v1963, 120
      %s1979 = smul.u32 %s20, 128
      %v1980 = vstv %s1979
      %v1981 = vadd.s32 %v1963, %v1980
      %v1982 = vadd.s32 %v1964, %v1980
      %v1983 = vadd.s32 %v1965, %v1980
      %v1984 = vadd.s32 %v1966, %v1980
      %v1985 = vadd.s32 %v1967, %v1980
      %v1986 = vadd.s32 %v1968, %v1980
      %v1987 = vadd.s32 %v1969, %v1980
      %v1988 = vadd.s32 %v1970, %v1980
      %v1989 = vadd.s32 %v1971, %v1980
      %v1990 = vadd.s32 %v1972, %v1980
      %v1991 = vadd.s32 %v1973, %v1980
      %v1992 = vadd.s32 %v1974, %v1980
      %v1993 = vadd.s32 %v1975, %v1980
      %v1994 = vadd.s32 %v1976, %v1980
      %v1995 = vadd.s32 %v1977, %v1980
      %v1996 = vadd.s32 %v1978, %v1980
      %vm1997 = vcmp.lt.s32.totalorder %v1981, 300
      %vm1998 = vcmp.lt.s32.totalorder %v1982, 300
      %vm1999 = vcmp.lt.s32.totalorder %v1983, 300
      %vm2000 = vcmp.lt.s32.totalorder %v1984, 300
      %vm2001 = vcmp.lt.s32.totalorder %v1985, 300
      %vm2002 = vcmp.lt.s32.totalorder %v1986, 300
      %vm2003 = vcmp.lt.s32.totalorder %v1987, 300
      %vm2004 = vcmp.lt.s32.totalorder %v1988, 300
      %vm2005 = vcmp.lt.s32.totalorder %v1989, 300
      %vm2006 = vcmp.lt.s32.totalorder %v1990, 300
      %vm2007 = vcmp.lt.s32.totalorder %v1991, 300
      %vm2008 = vcmp.lt.s32.totalorder %v1992, 300
      %vm2009 = vcmp.lt.s32.totalorder %v1993, 300
      %vm2010 = vcmp.lt.s32.totalorder %v1994, 300
      %vm2011 = vcmp.lt.s32.totalorder %v1995, 300
      %vm2012 = vcmp.lt.s32.totalorder %v1996, 300
      %v2013 = vsel %vm1997, 1, 0
      %v2014 = vsel %vm1998, 1, 0
      %v2015 = vsel %vm1999, 1, 0
      %v2016 = vsel %vm2000, 1, 0
      %v2017 = vsel %vm2001, 1, 0
      %v2018 = vsel %vm2002, 1, 0
      %v2019 = vsel %vm2003, 1, 0
      %v2020 = vsel %vm2004, 1, 0
      %v2021 = vsel %vm2005, 1, 0
      %v2022 = vsel %vm2006, 1, 0
      %v2023 = vsel %vm2007, 1, 0
      %v2024 = vsel %vm2008, 1, 0
      %v2025 = vsel %vm2009, 1, 0
      %v2026 = vsel %vm2010, 1, 0
      %v2027 = vsel %vm2011, 1, 0
      %v2028 = vsel %vm2012, 1, 0
      %vm2029 = vcmp.eq.s32.totalorder %v2013, 1
      %vm2030 = vcmp.eq.s32.totalorder %v2014, 1
      %vm2031 = vcmp.eq.s32.totalorder %v2015, 1
      %vm2032 = vcmp.eq.s32.totalorder %v2016, 1
      %vm2033 = vcmp.eq.s32.totalorder %v2017, 1
      %vm2034 = vcmp.eq.s32.totalorder %v2018, 1
      %vm2035 = vcmp.eq.s32.totalorder %v2019, 1
      %vm2036 = vcmp.eq.s32.totalorder %v2020, 1
      %vm2037 = vcmp.eq.s32.totalorder %v2021, 1
      %vm2038 = vcmp.eq.s32.totalorder %v2022, 1
      %vm2039 = vcmp.eq.s32.totalorder %v2023, 1
      %vm2040 = vcmp.eq.s32.totalorder %v2024, 1
      %vm2041 = vcmp.eq.s32.totalorder %v2025, 1
      %vm2042 = vcmp.eq.s32.totalorder %v2026, 1
      %vm2043 = vcmp.eq.s32.totalorder %v2027, 1
      %vm2044 = vcmp.eq.s32.totalorder %v2028, 1
      %v2045 = vsel %vm2029, %v1930, 0.0
      %v2046 = vsel %vm2029, %v1931, 0.0
      %v2047 = vsel %vm2030, %v1932, 0.0
      %v2048 = vsel %vm2030, %v1933, 0.0
      %v2049 = vsel %vm2031, %v1934, 0.0
      %v2050 = vsel %vm2031, %v1935, 0.0
      %v2051 = vsel %vm2032, %v1936, 0.0
      %v2052 = vsel %vm2032, %v1937, 0.0
      %v2053 = vsel %vm2033, %v1938, 0.0
      %v2054 = vsel %vm2033, %v1939, 0.0
      %v2055 = vsel %vm2034, %v1940, 0.0
      %v2056 = vsel %vm2034, %v1941, 0.0
      %v2057 = vsel %vm2035, %v1942, 0.0
      %v2058 = vsel %vm2035, %v1943, 0.0
      %v2059 = vsel %vm2036, %v1944, 0.0
      %v2060 = vsel %vm2036, %v1945, 0.0
      %v2061 = vsel %vm2037, %v1946, 0.0
      %v2062 = vsel %vm2037, %v1947, 0.0
      %v2063 = vsel %vm2038, %v1948, 0.0
      %v2064 = vsel %vm2038, %v1949, 0.0
      %v2065 = vsel %vm2039, %v1950, 0.0
      %v2066 = vsel %vm2039, %v1951, 0.0
      %v2067 = vsel %vm2040, %v1952, 0.0
      %v2068 = vsel %vm2040, %v1953, 0.0
      %v2069 = vsel %vm2041, %v1954, 0.0
      %v2070 = vsel %vm2041, %v1955, 0.0
      %v2071 = vsel %vm2042, %v1956, 0.0
      %v2072 = vsel %vm2042, %v1957, 0.0
      %v2073 = vsel %vm2043, %v1958, 0.0
      %v2074 = vsel %vm2043, %v1959, 0.0
      %v2075 = vsel %vm2044, %v1960, 0.0
      %v2076 = vsel %vm2044, %v1961, 0.0
      %v2077 = vld [vmem:[%s7] sm:$0x3]
      %v2078 = vadd.f32 %v2045, %v2047
      %v2079 = vadd.f32 %v2078, %v2049
      %v2080 = vadd.f32 %v2079, %v2051
      %v2081 = vadd.f32 %v2080, %v2053
      %v2082 = vadd.f32 %v2081, %v2055
      %v2083 = vadd.f32 %v2082, %v2057
      %v2084 = vadd.f32 %v2083, %v2059
      %v2085 = vadd.f32 %v2084, %v2061
      %v2086 = vadd.f32 %v2085, %v2063
      %v2087 = vadd.f32 %v2086, %v2065
      %v2088 = vadd.f32 %v2087, %v2067
      %v2089 = vadd.f32 %v2088, %v2069
      %v2090 = vadd.f32 %v2089, %v2071
      %v2091 = vadd.f32 %v2090, %v2073
      %v2092 = vadd.f32 %v2091, %v2075
      %v2093 = vrot.slane %v2092, 4
      %v2094 = vadd.f32 %v2092, %v2093
      %v2095 = vrot.slane %v2094, 2
      %v2096 = vadd.f32 %v2094, %v2095
      %v2097 = vrot.slane %v2096, 1
      %v2098 = vadd.f32 %v2096, %v2097
      %v2099 = vsel %vm417, %v2046, 0.0
      %v2100 = vsel %vm417, %v2048, 0.0
      %v2101 = vadd.f32 %v2099, %v2100
      %v2102 = vsel %vm417, %v2050, 0.0
      %v2103 = vadd.f32 %v2101, %v2102
      %v2104 = vsel %vm417, %v2052, 0.0
      %v2105 = vadd.f32 %v2103, %v2104
      %v2106 = vsel %vm417, %v2054, 0.0
      %v2107 = vadd.f32 %v2105, %v2106
      %v2108 = vsel %vm417, %v2056, 0.0
      %v2109 = vadd.f32 %v2107, %v2108
      %v2110 = vsel %vm417, %v2058, 0.0
      %v2111 = vadd.f32 %v2109, %v2110
      %v2112 = vsel %vm417, %v2060, 0.0
      %v2113 = vadd.f32 %v2111, %v2112
      %v2114 = vsel %vm417, %v2062, 0.0
      %v2115 = vadd.f32 %v2113, %v2114
      %v2116 = vsel %vm417, %v2064, 0.0
      %v2117 = vadd.f32 %v2115, %v2116
      %v2118 = vsel %vm417, %v2066, 0.0
      %v2119 = vadd.f32 %v2117, %v2118
      %v2120 = vsel %vm417, %v2068, 0.0
      %v2121 = vadd.f32 %v2119, %v2120
      %v2122 = vsel %vm417, %v2070, 0.0
      %v2123 = vadd.f32 %v2121, %v2122
      %v2124 = vsel %vm417, %v2072, 0.0
      %v2125 = vadd.f32 %v2123, %v2124
      %v2126 = vsel %vm417, %v2074, 0.0
      %v2127 = vadd.f32 %v2125, %v2126
      %v2128 = vsel %vm417, %v2076, 0.0
      %v2129 = vadd.f32 %v2127, %v2128
      %v2130 = vrot.slane %v2129, 4
      %v2131 = vadd.f32 %v2129, %v2130
      %v2132 = vrot.slane %v2131, 2
      %v2133 = vadd.f32 %v2131, %v2132
      %v2134 = vrot.slane %v2133, 1
      %v2135 = vadd.f32 %v2133, %v2134
      %v2138 = vcombine.low %v2098, %v2135
      %v2140 = vunpack.c.l.s4 1966171168
      %v2141 = vunpack.c.0.s8 %v2140
      %v2142 = vlaneseq
      %v2143 = vshrl.u32 %v2142, 7
      %v2144 = vsub.s32 %v2141, %v2143
      %v2145 = vrot.slane %v2138, %v2144
      %v2147 = vunpack.c.l.s4 1966171168
      %v2148 = vunpack.c.0.s8 %v2147
      %v2149 = vlaneseq
      %v2150 = vshrl.u32 %v2149, 7
      %v2151 = vsub.s32 %v2148, %v2150
      %v2152 = vrot.slane %v2145, %v2151
      %v2154 = vadd.f32 %v2077, %v2152
      %v2155 = vlaneseq
      %vm2156 = vcmp.ge.s32.totalorder %v2155, 0
      %vm2157 = vcmp.lt.s32.totalorder %v2155, 160
      %vm2158 = vmand %vm2156, %vm2157
      %2159 = vst.msk [vmem:[%s7] sm:$0x3] %vm2158, %v2154
      %v2160 = vld [vmem:[%s8] sm:$0x3]
      %v2161 = vmul.f32 %v2045, %v2045
      %v2162 = vmul.f32 %v2046, %v2046
      %v2163 = vmul.f32 %v2047, %v2047
      %v2164 = vmul.f32 %v2048, %v2048
      %v2165 = vmul.f32 %v2049, %v2049
      %v2166 = vmul.f32 %v2050, %v2050
      %v2167 = vmul.f32 %v2051, %v2051
      %v2168 = vmul.f32 %v2052, %v2052
      %v2169 = vmul.f32 %v2053, %v2053
      %v2170 = vmul.f32 %v2054, %v2054
      %v2171 = vmul.f32 %v2055, %v2055
      %v2172 = vmul.f32 %v2056, %v2056
      %v2173 = vmul.f32 %v2057, %v2057
      %v2174 = vmul.f32 %v2058, %v2058
      %v2175 = vmul.f32 %v2059, %v2059
      %v2176 = vmul.f32 %v2060, %v2060
      %v2177 = vmul.f32 %v2061, %v2061
      %v2178 = vmul.f32 %v2062, %v2062
      %v2179 = vmul.f32 %v2063, %v2063
      %v2180 = vmul.f32 %v2064, %v2064
      %v2181 = vmul.f32 %v2065, %v2065
      %v2182 = vmul.f32 %v2066, %v2066
      %v2183 = vmul.f32 %v2067, %v2067
      %v2184 = vmul.f32 %v2068, %v2068
      %v2185 = vmul.f32 %v2069, %v2069
      %v2186 = vmul.f32 %v2070, %v2070
      %v2187 = vmul.f32 %v2071, %v2071
      %v2188 = vmul.f32 %v2072, %v2072
      %v2189 = vmul.f32 %v2073, %v2073
      %v2190 = vmul.f32 %v2074, %v2074
      %v2191 = vmul.f32 %v2075, %v2075
      %v2192 = vmul.f32 %v2076, %v2076
      %v2193 = vadd.f32 %v2161, %v2163
      %v2194 = vadd.f32 %v2193, %v2165
      %v2195 = vadd.f32 %v2194, %v2167
      %v2196 = vadd.f32 %v2195, %v2169
      %v2197 = vadd.f32 %v2196, %v2171
      %v2198 = vadd.f32 %v2197, %v2173
      %v2199 = vadd.f32 %v2198, %v2175
      %v2200 = vadd.f32 %v2199, %v2177
      %v2201 = vadd.f32 %v2200, %v2179
      %v2202 = vadd.f32 %v2201, %v2181
      %v2203 = vadd.f32 %v2202, %v2183
      %v2204 = vadd.f32 %v2203, %v2185
      %v2205 = vadd.f32 %v2204, %v2187
      %v2206 = vadd.f32 %v2205, %v2189
      %v2207 = vadd.f32 %v2206, %v2191
      %v2208 = vrot.slane %v2207, 4
      %v2209 = vadd.f32 %v2207, %v2208
      %v2210 = vrot.slane %v2209, 2
      %v2211 = vadd.f32 %v2209, %v2210
      %v2212 = vrot.slane %v2211, 1
      %v2213 = vadd.f32 %v2211, %v2212
      %v2214 = vsel %vm417, %v2162, 0.0
      %v2215 = vsel %vm417, %v2164, 0.0
      %v2216 = vadd.f32 %v2214, %v2215
      %v2217 = vsel %vm417, %v2166, 0.0
      %v2218 = vadd.f32 %v2216, %v2217
      %v2219 = vsel %vm417, %v2168, 0.0
      %v2220 = vadd.f32 %v2218, %v2219
      %v2221 = vsel %vm417, %v2170, 0.0
      %v2222 = vadd.f32 %v2220, %v2221
      %v2223 = vsel %vm417, %v2172, 0.0
      %v2224 = vadd.f32 %v2222, %v2223
      %v2225 = vsel %vm417, %v2174, 0.0
      %v2226 = vadd.f32 %v2224, %v2225
      %v2227 = vsel %vm417, %v2176, 0.0
      %v2228 = vadd.f32 %v2226, %v2227
      %v2229 = vsel %vm417, %v2178, 0.0
      %v2230 = vadd.f32 %v2228, %v2229
      %v2231 = vsel %vm417, %v2180, 0.0
      %v2232 = vadd.f32 %v2230, %v2231
      %v2233 = vsel %vm417, %v2182, 0.0
      %v2234 = vadd.f32 %v2232, %v2233
      %v2235 = vsel %vm417, %v2184, 0.0
      %v2236 = vadd.f32 %v2234, %v2235
      %v2237 = vsel %vm417, %v2186, 0.0
      %v2238 = vadd.f32 %v2236, %v2237
      %v2239 = vsel %vm417, %v2188, 0.0
      %v2240 = vadd.f32 %v2238, %v2239
      %v2241 = vsel %vm417, %v2190, 0.0
      %v2242 = vadd.f32 %v2240, %v2241
      %v2243 = vsel %vm417, %v2192, 0.0
      %v2244 = vadd.f32 %v2242, %v2243
      %v2245 = vrot.slane %v2244, 4
      %v2246 = vadd.f32 %v2244, %v2245
      %v2247 = vrot.slane %v2246, 2
      %v2248 = vadd.f32 %v2246, %v2247
      %v2249 = vrot.slane %v2248, 1
      %v2250 = vadd.f32 %v2248, %v2249
      %v2253 = vcombine.low %v2213, %v2250
      %v2255 = vunpack.c.l.s4 1966171168
      %v2256 = vunpack.c.0.s8 %v2255
      %v2257 = vlaneseq
      %v2258 = vshrl.u32 %v2257, 7
      %v2259 = vsub.s32 %v2256, %v2258
      %v2260 = vrot.slane %v2253, %v2259
      %v2262 = vunpack.c.l.s4 1966171168
      %v2263 = vunpack.c.0.s8 %v2262
      %v2264 = vlaneseq
      %v2265 = vshrl.u32 %v2264, 7
      %v2266 = vsub.s32 %v2263, %v2265
      %v2267 = vrot.slane %v2260, %v2266
      %v2269 = vadd.f32 %v2160, %v2267
      %2270 = vst.msk [vmem:[%s8] sm:$0x3] %vm2158, %v2269
      // Predicated region
      $region53: #{pixel_classifier_ensemble_forward.4} parent=47 // pred_check
        %p2271 = pneg %p185
      $region54: #{pixel_classifier_ensemble_forward.4} parent=47 // pred_check_branch
        %2273 = sbr.rel (%p2271) target = $region56
      $region55: #{pixel_classifier_ensemble_forward.4} parent=47 // pred_region
        _
      $region56: #{pixel_classifier_ensemble_forward.4} parent=47 // pred_fallthru
        _
      // Predicated region
      $region57: #{pixel_classifier_ensemble_forward.4} parent=47 // pred_check
        %p2274 = pneg %p206
      $region58: #{pixel_classifier_ensemble_forward.4} parent=47 // pred_check_branch
        %2276 = sbr.rel (%p2274) target = $region60
      $region59: #{pixel_classifier_ensemble_forward.4} parent=47 // pred_region
        _
      $region60: #{pixel_classifier_ensemble_forward.4} parent=47 // pred_fallthru
        _
      // Predicated region
      $region61: #{pixel_classifier_ensemble_forward.4} parent=47 // pred_check
        %p2277 = pneg %p185
      $region62: #{pixel_classifier_ensemble_forward.4} parent=47 // pred_check_branch
        %2279 = sbr.rel (%p2277) target = $region64
      $region63: #{pixel_classifier_ensemble_forward.4} parent=47 // pred_region
        _
      $region64: #{pixel_classifier_ensemble_forward.4} parent=47 // pred_fallthru
        _
      // Predicated region
      $region65: #{pixel_classifier_ensemble_forward.4} parent=47 // pred_check
        %p2280 = pneg %p206
      $region66: #{pixel_classifier_ensemble_forward.4} parent=47 // pred_check_branch
        %2282 = sbr.rel (%p2280) target = $region68
      $region67: #{pixel_classifier_ensemble_forward.4} parent=47 // pred_region
        _
      $region68: #{pixel_classifier_ensemble_forward.4} parent=47 // pred_fallthru
        _
    $region48: #{pixel_classifier_ensemble_forward.4} parent=5 // pred_fallthru
      _
    %p2283 = scmp.le.s32.totalorder 2, %s15
    // Predicated region
    $region69: #{pixel_classifier_ensemble_forward.4} parent=5 // pred_check
      %p2284 = pneg %p2283
    $region70: #{pixel_classifier_ensemble_forward.4} parent=5 // pred_check_branch
      %2286 = sbr.rel (%p2284) target = $region72
    $region71: #{pixel_classifier_ensemble_forward.4} parent=5 // pred_region
      %s2287 = ssub.s32 %s15, 2
    $region72: #{pixel_classifier_ensemble_forward.4} parent=5 // pred_fallthru
      _
  $region6: #{pixel_classifier_ensemble_forward.4} parent=0 // loop_footer
    %s19 = sadd.s32 1, %s15
  $region7: #{pixel_classifier_ensemble_forward.4} parent=0 // loop_footer_branch
    %14 = sbr.rel target = $region3
  $region8: #{pixel_classifier_ensemble_forward.4} parent=0 // loop_exit
    _

// kernel: pixel_classifier_ensemble_forward.5
$region0: #{pixel_classifier_ensemble_forward.5}
  #allocation0 [shape = 'u32[]', space=smem, size = 0x4, offset = 0x4, fixed_abs, tag = 'smem constant byte address 0x4 - core index']
  #allocation1 [shape = 'u32[144,128]{1,0:T(1,128)}', space=vmem, size = 0x12000, scoped, tag = 'internal scratch']
  %s0 = inlined_call_operand.vmem [shape: f32[384,32], index: 0, kind: input, shape index: {}]
  %s1 = inlined_call_operand.vmem [shape: bf16[32,640], index: 1, kind: input, shape index: {}]
  %s2 = inlined_call_operand.vmem [shape: f32[1,640], index: 2, kind: input, shape index: {}]
  %s3 = inlined_call_operand.vmem [shape: f32[1,640], index: 3, kind: input, shape index: {}]
  %s4 = inlined_call_operand.vmem [shape: f32[1,640], index: 4, kind: input, shape index: {}]
  %s5 = inlined_call_operand.vmem [shape: bf16[640,160], index: 5, kind: input, shape index: {}]
  %s6 = inlined_call_operand.vmem [shape: f32[1,160], index: 6, kind: input, shape index: {}]
  %s7 = inlined_call_operand.vmem [shape: f32[1,160], index: 7, kind: input, shape index: {}]
  %s8 = inlined_call_operand.vmem [shape: f32[1,160], index: 8, kind: input, shape index: {}]
  %s9 = inlined_call_operand.vmem [shape: bf16[160,40], index: 9, kind: input, shape index: {}]
  %s10 = inlined_call_operand.vmem [shape: f32[1,40], index: 10, kind: input, shape index: {}]
  %s11 = inlined_call_operand.vmem [shape: f32[1,384], index: 11, kind: output, shape index: {}]
  %s12 = sld [smem:[#allocation0]]
  $region77: #{pixel_classifier_ensemble_forward.5} parent=0
    _
  %s14 = ssub.s32 1, %s12
  %s15 = scalar_select 0, %s14, %s12
  loop: start=0, step=1, limit=5
  $region2: #{pixel_classifier_ensemble_forward.5} parent=0 // loop_pre_header
    _
  $region3: #{pixel_classifier_ensemble_forward.5} parent=0 // loop_header
    %s17 = sphi 0, %s21
    %p18 = scmp.ge.s32.totalorder %s17, 5
    %s27 = sphi 0, %s29
    %s30 = sphi 0, %s27
    %s31 = sphi 0, %s30
    %s47 = sphi 0, %s31
    %s51 = sphi 0, %s51
    %s53 = sphi 0, %s51
    %s54 = sphi 0, %s53
    %s68 = sphi 0, %s54
    %s72 = sphi 0, %s72
    %s74 = sphi 0, %s72
    %s75 = sphi 0, %s74
    %s89 = sphi 0, %s75
    %s93 = sphi 0, %s93
    %s95 = sphi 0, %s93
    %s96 = sphi 0, %s95
    %s110 = sphi 0, %s96
    %s114 = sphi 0, %s114
    %s116 = sphi 0, %s114
    %s117 = sphi 0, %s116
    %s131 = sphi 0, %s117
    %s135 = sphi 0, %s135
    %s137 = sphi 0, %s135
    %s138 = sphi 0, %s137
    %s152 = sphi 0, %s138
    %s156 = sphi 0, %s156
    %s158 = sphi 0, %s156
    %s159 = sphi 0, %s158
    %s173 = sphi 0, %s159
    %s177 = sphi 0, %s177
    %s179 = sphi 0, %s177
    %s180 = sphi 0, %s179
    %s194 = sphi 0, %s180
    %s198 = sphi 0, %s198
    %s200 = sphi 0, %s198
    %s201 = sphi 0, %s200
    %s215 = sphi 0, %s201
    %s219 = sphi 0, %s219
    %s221 = sphi 0, %s219
    %s222 = sphi 0, %s221
    %s236 = sphi 0, %s222
    %s240 = sphi 0, %s240
    %s242 = sphi 0, %s240
    %s243 = sphi 0, %s242
    %s257 = sphi 0, %s243
    %s263 = sphi 0, %s265
    %s266 = sphi 0, %s263
    %s267 = sphi 0, %s266
    %s283 = sphi 0, %s267
  $region4: #{pixel_classifier_ensemble_forward.5} parent=0 // loop_header_branch
    %20 = sbr.rel (%p18) target = $region8
  $region5: #{pixel_classifier_ensemble_forward.5} parent=0 // loop_body
    %s22 = ssub.s32 %s17, 1
    %s23 = ssub.s32 %s17, 2
    %s24 = sadd.s32 %s17, 1
    %s25 = ssub.s32 %s17, %s24
    %p26 = scmp.eq.s32.totalorder %s25, 0
    %s28 = sadd.s32 %s27, 1
    %s29 = scalar_select %p26, %s27, %s28
    %p32 = pneg %p26
    %p33 = scmp.eq.s32.totalorder %s17, 2
    %p34 = por %p32, %p33
    %p35 = scmp.ne.s32.totalorder %s27, %s30
    %p36 = scmp.eq.s32.totalorder %s17, 0
    %p37 = por %p35, %p36
    %p38 = scmp.ne.s32.totalorder %s27, %s30
    %p39 = scmp.eq.s32.totalorder %s22, 2
    %p40 = por %p38, %p39
    %p41 = scmp.ne.s32.totalorder %s30, %s31
    %p42 = scmp.eq.s32.totalorder %s22, 0
    %p43 = por %p41, %p42
    %p44 = scmp.ne.s32.totalorder %s30, %s31
    %p45 = scmp.eq.s32.totalorder %s23, 2
    %p46 = por %p44, %p45
    %p48 = scmp.ne.s32.totalorder %s31, %s47
    %p49 = scmp.eq.s32.totalorder %s23, 0
    %p50 = por %p48, %p49
    %s52 = sadd.s32 %s51, 1
    %p55 = scmp.eq.s32.totalorder %s17, 2
    %p56 = scmp.ne.s32.totalorder %s51, %s53
    %p57 = scmp.eq.s32.totalorder %s17, 0
    %p58 = por %p56, %p57
    %p59 = scmp.ne.s32.totalorder %s51, %s53
    %p60 = scmp.eq.s32.totalorder %s22, 2
    %p61 = por %p59, %p60
    %p62 = scmp.ne.s32.totalorder %s53, %s54
    %p63 = scmp.eq.s32.totalorder %s22, 0
    %p64 = por %p62, %p63
    %p65 = scmp.ne.s32.totalorder %s53, %s54
    %p66 = scmp.eq.s32.totalorder %s23, 2
    %p67 = por %p65, %p66
    %p69 = scmp.ne.s32.totalorder %s54, %s68
    %p70 = scmp.eq.s32.totalorder %s23, 0
    %p71 = por %p69, %p70
    %s73 = sadd.s32 %s72, 1
    %p76 = scmp.eq.s32.totalorder %s17, 2
    %p77 = scmp.ne.s32.totalorder %s72, %s74
    %p78 = scmp.eq.s32.totalorder %s17, 0
    %p79 = por %p77, %p78
    %p80 = scmp.ne.s32.totalorder %s72, %s74
    %p81 = scmp.eq.s32.totalorder %s22, 2
    %p82 = por %p80, %p81
    %p83 = scmp.ne.s32.totalorder %s74, %s75
    %p84 = scmp.eq.s32.totalorder %s22, 0
    %p85 = por %p83, %p84
    %p86 = scmp.ne.s32.totalorder %s74, %s75
    %p87 = scmp.eq.s32.totalorder %s23, 2
    %p88 = por %p86, %p87
    %p90 = scmp.ne.s32.totalorder %s75, %s89
    %p91 = scmp.eq.s32.totalorder %s23, 0
    %p92 = por %p90, %p91
    %s94 = sadd.s32 %s93, 1
    %p97 = scmp.eq.s32.totalorder %s17, 2
    %p98 = scmp.ne.s32.totalorder %s93, %s95
    %p99 = scmp.eq.s32.totalorder %s17, 0
    %p100 = por %p98, %p99
    %p101 = scmp.ne.s32.totalorder %s93, %s95
    %p102 = scmp.eq.s32.totalorder %s22, 2
    %p103 = por %p101, %p102
    %p104 = scmp.ne.s32.totalorder %s95, %s96
    %p105 = scmp.eq.s32.totalorder %s22, 0
    %p106 = por %p104, %p105
    %p107 = scmp.ne.s32.totalorder %s95, %s96
    %p108 = scmp.eq.s32.totalorder %s23, 2
    %p109 = por %p107, %p108
    %p111 = scmp.ne.s32.totalorder %s96, %s110
    %p112 = scmp.eq.s32.totalorder %s23, 0
    %p113 = por %p111, %p112
    %s115 = sadd.s32 %s114, 1
    %p118 = scmp.eq.s32.totalorder %s17, 2
    %p119 = scmp.ne.s32.totalorder %s114, %s116
    %p120 = scmp.eq.s32.totalorder %s17, 0
    %p121 = por %p119, %p120
    %p122 = scmp.ne.s32.totalorder %s114, %s116
    %p123 = scmp.eq.s32.totalorder %s22, 2
    %p124 = por %p122, %p123
    %p125 = scmp.ne.s32.totalorder %s116, %s117
    %p126 = scmp.eq.s32.totalorder %s22, 0
    %p127 = por %p125, %p126
    %p128 = scmp.ne.s32.totalorder %s116, %s117
    %p129 = scmp.eq.s32.totalorder %s23, 2
    %p130 = por %p128, %p129
    %p132 = scmp.ne.s32.totalorder %s117, %s131
    %p133 = scmp.eq.s32.totalorder %s23, 0
    %p134 = por %p132, %p133
    %s136 = sadd.s32 %s135, 1
    %p139 = scmp.eq.s32.totalorder %s17, 2
    %p140 = scmp.ne.s32.totalorder %s135, %s137
    %p141 = scmp.eq.s32.totalorder %s17, 0
    %p142 = por %p140, %p141
    %p143 = scmp.ne.s32.totalorder %s135, %s137
    %p144 = scmp.eq.s32.totalorder %s22, 2
    %p145 = por %p143, %p144
    %p146 = scmp.ne.s32.totalorder %s137, %s138
    %p147 = scmp.eq.s32.totalorder %s22, 0
    %p148 = por %p146, %p147
    %p149 = scmp.ne.s32.totalorder %s137, %s138
    %p150 = scmp.eq.s32.totalorder %s23, 2
    %p151 = por %p149, %p150
    %p153 = scmp.ne.s32.totalorder %s138, %s152
    %p154 = scmp.eq.s32.totalorder %s23, 0
    %p155 = por %p153, %p154
    %s157 = sadd.s32 %s156, 1
    %p160 = scmp.eq.s32.totalorder %s17, 2
    %p161 = scmp.ne.s32.totalorder %s156, %s158
    %p162 = scmp.eq.s32.totalorder %s17, 0
    %p163 = por %p161, %p162
    %p164 = scmp.ne.s32.totalorder %s156, %s158
    %p165 = scmp.eq.s32.totalorder %s22, 2
    %p166 = por %p164, %p165
    %p167 = scmp.ne.s32.totalorder %s158, %s159
    %p168 = scmp.eq.s32.totalorder %s22, 0
    %p169 = por %p167, %p168
    %p170 = scmp.ne.s32.totalorder %s158, %s159
    %p171 = scmp.eq.s32.totalorder %s23, 2
    %p172 = por %p170, %p171
    %p174 = scmp.ne.s32.totalorder %s159, %s173
    %p175 = scmp.eq.s32.totalorder %s23, 0
    %p176 = por %p174, %p175
    %s178 = sadd.s32 %s177, 1
    %p181 = scmp.eq.s32.totalorder %s17, 2
    %p182 = scmp.ne.s32.totalorder %s177, %s179
    %p183 = scmp.eq.s32.totalorder %s17, 0
    %p184 = por %p182, %p183
    %p185 = scmp.ne.s32.totalorder %s177, %s179
    %p186 = scmp.eq.s32.totalorder %s22, 2
    %p187 = por %p185, %p186
    %p188 = scmp.ne.s32.totalorder %s179, %s180
    %p189 = scmp.eq.s32.totalorder %s22, 0
    %p190 = por %p188, %p189
    %p191 = scmp.ne.s32.totalorder %s179, %s180
    %p192 = scmp.eq.s32.totalorder %s23, 2
    %p193 = por %p191, %p192
    %p195 = scmp.ne.s32.totalorder %s180, %s194
    %p196 = scmp.eq.s32.totalorder %s23, 0
    %p197 = por %p195, %p196
    %s199 = sadd.s32 %s198, 1
    %p202 = scmp.eq.s32.totalorder %s17, 2
    %p203 = scmp.ne.s32.totalorder %s198, %s200
    %p204 = scmp.eq.s32.totalorder %s17, 0
    %p205 = por %p203, %p204
    %p206 = scmp.ne.s32.totalorder %s198, %s200
    %p207 = scmp.eq.s32.totalorder %s22, 2
    %p208 = por %p206, %p207
    %p209 = scmp.ne.s32.totalorder %s200, %s201
    %p210 = scmp.eq.s32.totalorder %s22, 0
    %p211 = por %p209, %p210
    %p212 = scmp.ne.s32.totalorder %s200, %s201
    %p213 = scmp.eq.s32.totalorder %s23, 2
    %p214 = por %p212, %p213
    %p216 = scmp.ne.s32.totalorder %s201, %s215
    %p217 = scmp.eq.s32.totalorder %s23, 0
    %p218 = por %p216, %p217
    %s220 = sadd.s32 %s219, 1
    %p223 = scmp.eq.s32.totalorder %s17, 2
    %p224 = scmp.ne.s32.totalorder %s219, %s221
    %p225 = scmp.eq.s32.totalorder %s17, 0
    %p226 = por %p224, %p225
    %p227 = scmp.ne.s32.totalorder %s219, %s221
    %p228 = scmp.eq.s32.totalorder %s22, 2
    %p229 = por %p227, %p228
    %p230 = scmp.ne.s32.totalorder %s221, %s222
    %p231 = scmp.eq.s32.totalorder %s22, 0
    %p232 = por %p230, %p231
    %p233 = scmp.ne.s32.totalorder %s221, %s222
    %p234 = scmp.eq.s32.totalorder %s23, 2
    %p235 = por %p233, %p234
    %p237 = scmp.ne.s32.totalorder %s222, %s236
    %p238 = scmp.eq.s32.totalorder %s23, 0
    %p239 = por %p237, %p238
    %s241 = sadd.s32 %s240, 1
    %p244 = scmp.eq.s32.totalorder %s17, 2
    %p245 = scmp.ne.s32.totalorder %s240, %s242
    %p246 = scmp.eq.s32.totalorder %s17, 0
    %p247 = por %p245, %p246
    %p248 = scmp.ne.s32.totalorder %s240, %s242
    %p249 = scmp.eq.s32.totalorder %s22, 2
    %p250 = por %p248, %p249
    %p251 = scmp.ne.s32.totalorder %s242, %s243
    %p252 = scmp.eq.s32.totalorder %s22, 0
    %p253 = por %p251, %p252
    %p254 = scmp.ne.s32.totalorder %s242, %s243
    %p255 = scmp.eq.s32.totalorder %s23, 2
    %p256 = por %p254, %p255
    %p258 = scmp.ne.s32.totalorder %s243, %s257
    %p259 = scmp.eq.s32.totalorder %s23, 0
    %p260 = por %p258, %p259
    %s261 = ssub.s32 %s17, %s24
    %p262 = scmp.eq.s32.totalorder %s261, 0
    %s264 = sadd.s32 %s263, 1
    %s265 = scalar_select %p262, %s263, %s264
    %p268 = pneg %p262
    %p269 = scmp.eq.s32.totalorder %s17, 2
    %p270 = por %p268, %p269
    %p271 = scmp.ne.s32.totalorder %s263, %s266
    %p272 = scmp.eq.s32.totalorder %s17, 0
    %p273 = por %p271, %p272
    %p274 = scmp.ne.s32.totalorder %s263, %s266
    %p275 = scmp.eq.s32.totalorder %s22, 2
    %p276 = por %p274, %p275
    %p277 = scmp.ne.s32.totalorder %s266, %s267
    %p278 = scmp.eq.s32.totalorder %s22, 0
    %p279 = por %p277, %p278
    %p280 = scmp.ne.s32.totalorder %s266, %s267
    %p281 = scmp.eq.s32.totalorder %s23, 2
    %p282 = por %p280, %p281
    %p284 = scmp.ne.s32.totalorder %s267, %s283
    %p285 = scmp.eq.s32.totalorder %s23, 0
    %p286 = por %p284, %p285
    %p287 = scmp.le.s32.totalorder 1, %s17
    %p288 = scmp.lt.s32.totalorder %s17, 4
    %p289 = pnand %p287, %p288
    %p290 = pneg %p289
    // Predicated region
    $region9: #{pixel_classifier_ensemble_forward.5} parent=5 // pred_check
      _
    $region10: #{pixel_classifier_ensemble_forward.5} parent=5 // pred_check_branch
      %292 = sbr.rel (%p289) target = $region12
    $region11: #{pixel_classifier_ensemble_forward.5} parent=5 // pred_region
      %s293 = ssub.s32 %s17, 1
      // Predicated region
      $region13: #{pixel_classifier_ensemble_forward.5} parent=11 // pred_check
        %p294 = pneg %p64
      $region14: #{pixel_classifier_ensemble_forward.5} parent=11 // pred_check_branch
        %296 = sbr.rel (%p294) target = $region16
      $region15: #{pixel_classifier_ensemble_forward.5} parent=11 // pred_region
        _
      $region16: #{pixel_classifier_ensemble_forward.5} parent=11 // pred_fallthru
        _
      // Predicated region
      $region17: #{pixel_classifier_ensemble_forward.5} parent=11 // pred_check
        %p297 = pneg %p85
      $region18: #{pixel_classifier_ensemble_forward.5} parent=11 // pred_check_branch
        %299 = sbr.rel (%p297) target = $region20
      $region19: #{pixel_classifier_ensemble_forward.5} parent=11 // pred_region
        _
      $region20: #{pixel_classifier_ensemble_forward.5} parent=11 // pred_fallthru
        _
      // Predicated region
      $region21: #{pixel_classifier_ensemble_forward.5} parent=11 // pred_check
        %p300 = pneg %p106
      $region22: #{pixel_classifier_ensemble_forward.5} parent=11 // pred_check_branch
        %302 = sbr.rel (%p300) target = $region24
      $region23: #{pixel_classifier_ensemble_forward.5} parent=11 // pred_region
        _
      $region24: #{pixel_classifier_ensemble_forward.5} parent=11 // pred_fallthru
        _
      // Predicated region
      $region25: #{pixel_classifier_ensemble_forward.5} parent=11 // pred_check
        %p303 = pneg %p127
      $region26: #{pixel_classifier_ensemble_forward.5} parent=11 // pred_check_branch
        %305 = sbr.rel (%p303) target = $region28
      $region27: #{pixel_classifier_ensemble_forward.5} parent=11 // pred_region
        _
      $region28: #{pixel_classifier_ensemble_forward.5} parent=11 // pred_fallthru
        _
      // Predicated region
      $region29: #{pixel_classifier_ensemble_forward.5} parent=11 // pred_check
        %p306 = pneg %p148
      $region30: #{pixel_classifier_ensemble_forward.5} parent=11 // pred_check_branch
        %308 = sbr.rel (%p306) target = $region32
      $region31: #{pixel_classifier_ensemble_forward.5} parent=11 // pred_region
        _
      $region32: #{pixel_classifier_ensemble_forward.5} parent=11 // pred_fallthru
        _
      // Predicated region
      $region33: #{pixel_classifier_ensemble_forward.5} parent=11 // pred_check
        %p309 = pneg %p169
      $region34: #{pixel_classifier_ensemble_forward.5} parent=11 // pred_check_branch
        %311 = sbr.rel (%p309) target = $region36
      $region35: #{pixel_classifier_ensemble_forward.5} parent=11 // pred_region
        _
      $region36: #{pixel_classifier_ensemble_forward.5} parent=11 // pred_fallthru
        _
      // Predicated region
      $region37: #{pixel_classifier_ensemble_forward.5} parent=11 // pred_check
        %p312 = pneg %p190
      $region38: #{pixel_classifier_ensemble_forward.5} parent=11 // pred_check_branch
        %314 = sbr.rel (%p312) target = $region40
      $region39: #{pixel_classifier_ensemble_forward.5} parent=11 // pred_region
        _
      $region40: #{pixel_classifier_ensemble_forward.5} parent=11 // pred_fallthru
        _
      // Predicated region
      $region41: #{pixel_classifier_ensemble_forward.5} parent=11 // pred_check
        %p315 = pneg %p211
      $region42: #{pixel_classifier_ensemble_forward.5} parent=11 // pred_check_branch
        %317 = sbr.rel (%p315) target = $region44
      $region43: #{pixel_classifier_ensemble_forward.5} parent=11 // pred_region
        _
      $region44: #{pixel_classifier_ensemble_forward.5} parent=11 // pred_fallthru
        _
      // Predicated region
      $region45: #{pixel_classifier_ensemble_forward.5} parent=11 // pred_check
        %p318 = pneg %p232
      $region46: #{pixel_classifier_ensemble_forward.5} parent=11 // pred_check_branch
        %320 = sbr.rel (%p318) target = $region48
      $region47: #{pixel_classifier_ensemble_forward.5} parent=11 // pred_region
        _
      $region48: #{pixel_classifier_ensemble_forward.5} parent=11 // pred_fallthru
        _
      // Predicated region
      $region49: #{pixel_classifier_ensemble_forward.5} parent=11 // pred_check
        %p321 = pneg %p253
      $region50: #{pixel_classifier_ensemble_forward.5} parent=11 // pred_check_branch
        %323 = sbr.rel (%p321) target = $region52
      $region51: #{pixel_classifier_ensemble_forward.5} parent=11 // pred_region
        _
      $region52: #{pixel_classifier_ensemble_forward.5} parent=11 // pred_fallthru
        _
    $region12: #{pixel_classifier_ensemble_forward.5} parent=5 // pred_fallthru
      _
    %p324 = scmp.lt.s32.totalorder %s17, 3
    // Predicated region
    $region53: #{pixel_classifier_ensemble_forward.5} parent=5 // pred_check
      %p325 = pneg %p324
    $region54: #{pixel_classifier_ensemble_forward.5} parent=5 // pred_check_branch
      %327 = sbr.rel (%p325) target = $region56
    $region55: #{pixel_classifier_ensemble_forward.5} parent=5 // pred_region
      // Predicated region
      $region57: #{pixel_classifier_ensemble_forward.5} parent=55 // pred_check
        %p328 = pneg %p37
      $region58: #{pixel_classifier_ensemble_forward.5} parent=55 // pred_check_branch
        %330 = sbr.rel (%p328) target = $region60
      $region59: #{pixel_classifier_ensemble_forward.5} parent=55 // pred_region
        %s331 = smul.u32 16, %s17
        %p332 = scmp.lt.s32.totalorder %s331, 47
        %s333 = scalar_select %p332, %s331, 47
        %s334 = smul.addr %s333, 8
        %s335 = scalar_lea.vmem %s0, %s334
        %s336 = smul.u32 16, %s17
      $region60: #{pixel_classifier_ensemble_forward.5} parent=55 // pred_fallthru
        _
    $region56: #{pixel_classifier_ensemble_forward.5} parent=5 // pred_fallthru
      _
    %p337 = scmp.le.s32.totalorder 1, %s17
    %p338 = scmp.lt.s32.totalorder %s17, 4
    %p339 = pnand %p337, %p338
    %p340 = pneg %p339
    // Predicated region
    $region61: #{pixel_classifier_ensemble_forward.5} parent=5 // pred_check
      _
    $region62: #{pixel_classifier_ensemble_forward.5} parent=5 // pred_check_branch
      %342 = sbr.rel (%p339) target = $region64
    $region63: #{pixel_classifier_ensemble_forward.5} parent=5 // pred_region
      %s343 = ssub.s32 %s17, 1
      %s344 = smul.u32 16, %s22
      %p345 = scmp.lt.s32.totalorder %s344, 47
      %s346 = scalar_select %p345, %s344, 47
      %s347 = smul.addr %s346, 8
      %s348 = scalar_lea.vmem %s0, %s347
      %p349 = pneg %p43
      %p350 = pneg %p40
      %p351 = pneg %p64
      %p352 = pneg %p61
      %p353 = pneg %p85
      %p354 = pneg %p82
      %p355 = pneg %p106
      %p356 = pneg %p103
      %p357 = pneg %p127
      %p358 = pneg %p124
      %p359 = pneg %p148
      %p360 = pneg %p145
      %p361 = pneg %p169
      %p362 = pneg %p166
      %p363 = pneg %p190
      %p364 = pneg %p187
      %p365 = pneg %p211
      %p366 = pneg %p208
      %p367 = pneg %p232
      %p368 = pneg %p229
      %p369 = pneg %p253
      %p370 = pneg %p250
      %p371 = pneg %p279
      %p372 = pneg %p276
      %p373 = scmp.lt.s32.totalorder %s22, 2
      %s374 = scalar_select %p373, %s22, 2
      %s375 = scalar_lea.vmem %s11, %s374
      %s376 = smul.u32 16, %s22
      %p377 = scmp.lt.s32.totalorder %s376, 47
      %s378 = scalar_select %p377, %s376, 47
      %s379 = smul.addr %s378, 8
      %s380 = scalar_lea.vmem %s0, %s379
      %s381 = smul.u32 16, %s22
      %p382 = scmp.lt.s32.totalorder %s22, 2
      %s383 = scalar_select %p382, %s22, 2
      %s384 = scalar_lea.vmem %s11, %s383
      %v386 = vld [vmem:[%s380] sm:$0xff]
      %v387 = vld [vmem:[%s380 + $0x8] sm:$0xff]
      %v388 = vld [vmem:[%s380 + $0x10] sm:$0xff]
      %v389 = vld [vmem:[%s380 + $0x18] sm:$0xff]
      %v390 = vld [vmem:[%s380 + $0x20] sm:$0xff]
      %v391 = vld [vmem:[%s380 + $0x28] sm:$0xff]
      %v392 = vld [vmem:[%s380 + $0x30] sm:$0xff]
      %v393 = vld [vmem:[%s380 + $0x38] sm:$0xff]
      %v394 = vld [vmem:[%s380 + $0x40] sm:$0xff]
      %v395 = vld [vmem:[%s380 + $0x48] sm:$0xff]
      %v396 = vld [vmem:[%s380 + $0x50] sm:$0xff]
      %v397 = vld [vmem:[%s380 + $0x58] sm:$0xff]
      %v398 = vld [vmem:[%s380 + $0x60] sm:$0xff]
      %v399 = vld [vmem:[%s380 + $0x68] sm:$0xff]
      %v400 = vld [vmem:[%s380 + $0x70] sm:$0xff]
      %v401 = vld [vmem:[%s380 + $0x78] sm:$0xff]
      %v402 = vpack.c.bf16 %v387, %v386
      %v403 = vpack.c.bf16 %v389, %v388
      %v404 = vpack.c.bf16 %v391, %v390
      %v405 = vpack.c.bf16 %v393, %v392
      %v406 = vpack.c.bf16 %v395, %v394
      %v407 = vpack.c.bf16 %v397, %v396
      %v408 = vpack.c.bf16 %v399, %v398
      %v409 = vpack.c.bf16 %v401, %v400
      %v410 = vld [vmem:[%s1] sm:$0xff]
      %v411 = vld [vmem:[%s1 + $0x8] sm:$0xff]
      %v412 = vld [vmem:[%s1 + $0x10] sm:$0xf]
      %v413 = vld [vmem:[%s1 + $0x14] sm:$0xff]
      %v414 = vld [vmem:[%s1 + $0x1c] sm:$0xff]
      %v415 = vld [vmem:[%s1 + $0x24] sm:$0xf]
      %v416 = vld [vmem:[%s1 + $0x28] sm:$0xff]
      %v417 = vld [vmem:[%s1 + $0x30] sm:$0xff]
      %v418 = vld [vmem:[%s1 + $0x38] sm:$0xf]
      %v419 = vld [vmem:[%s1 + $0x3c] sm:$0xff]
      %v420 = vld [vmem:[%s1 + $0x44] sm:$0xff]
      %v421 = vld [vmem:[%s1 + $0x4c] sm:$0xf]
      %v422 = vld [vmem:[%s2] sm:$0x1f]
      %v424 = vlaneseq
      %v425 = vshrl.u32 %v424, 7
      %v426 = vsub.s32 0, %v425
      %v427 = vrot.slane %v422, %v426
      %v428 = vlaneseq
      %v429 = vshrl.u32 %v428, 7
      %v430 = vsub.s32 1, %v429
      %v431 = vrot.slane %v422, %v430
      %v432 = vlaneseq
      %v433 = vshrl.u32 %v432, 7
      %v434 = vsub.s32 2, %v433
      %v435 = vrot.slane %v422, %v434
      %v436 = vlaneseq
      %v437 = vshrl.u32 %v436, 7
      %v438 = vsub.s32 3, %v437
      %v439 = vrot.slane %v422, %v438
      %v440 = vlaneseq
      %v441 = vshrl.u32 %v440, 7
      %v442 = vsub.s32 4, %v441
      %v443 = vrot.slane %v422, %v442
      %v461 = vunpack.c.l.b16 %v410
      %v462 = vunpack.c.h.b16 %v410
      %v463 = vunpack.c.l.b16 %v411
      %v464 = vunpack.c.h.b16 %v411
      %v465 = vunpack.c.l.b16 %v412
      %v466 = vunpack.c.l.b16 %v413
      %v467 = vunpack.c.h.b16 %v413
      %v468 = vunpack.c.l.b16 %v414
      %v469 = vunpack.c.h.b16 %v414
      %v470 = vunpack.c.l.b16 %v415
      %v471 = vunpack.c.l.b16 %v416
      %v472 = vunpack.c.h.b16 %v416
      %v473 = vunpack.c.l.b16 %v417
      %v474 = vunpack.c.h.b16 %v417
      %v475 = vunpack.c.l.b16 %v418
      %v476 = vunpack.c.l.b16 %v419
      %v477 = vunpack.c.h.b16 %v419
      %v478 = vunpack.c.l.b16 %v420
      %v479 = vunpack.c.h.b16 %v420
      %v480 = vunpack.c.l.b16 %v421
      %v481 = vpack.c.b16 %v466, %v461
      %v482 = vpack.c.b16 %v467, %v462
      %v483 = vpack.c.b16 %v468, %v463
      %v484 = vpack.c.b16 %v469, %v464
      %v485 = vpack.c.b16 %v470, %v465
      %v486 = vpack.c.b16 %v476, %v471
      %v487 = vpack.c.b16 %v477, %v472
      %v488 = vpack.c.b16 %v478, %v473
      %v489 = vpack.c.b16 %v479, %v474
      %v490 = vpack.c.b16 %v480, %v475
      %vm501 = vcmask 261120
      %v503 = vsel %vm501, %v402, 0
      %v506 = vsel %vm501, %v403, 0
      %v509 = vsel %vm501, %v404, 0
      %v512 = vsel %vm501, %v405, 0
      %v515 = vsel %vm501, %v406, 0
      %v518 = vsel %vm501, %v407, 0
      %v521 = vsel %vm501, %v408, 0
      %v524 = vsel %vm501, %v409, 0
      %526 = vmatprep.subr.bf16.mxu0 0
      %527 = vmatpush1.bf16.msra.mxu0 0
      %528 = vmatprep.subr.bf16.mxu0 0
      %529 = vmatpush1.bf16.msra.mxu0 0
      %530 = vmatprep.subr.bf16.mxu0 0
      %531 = vmatpush1.bf16.msra.mxu0 0
      %532 = vmatprep.subr.bf16.mxu0 0
      %533 = vmatpush1.bf16.msra.mxu0 0
      %534 = vmatprep.subr.bf16.mxu0 0
      %535 = vmatpush1.bf16.msra.mxu0 0
      %536 = vmatprep.subr.bf16.mxu0 0
      %537 = vmatpush1.bf16.msra.mxu0 0
      %538 = vmatprep.subr.bf16.mxu0 %v487
      %539 = vmatpush1.bf16.msra.mxu0 %v486
      %540 = vmatprep.subr.bf16.mxu0 %v482
      %541 = vmatpush1.bf16.msra.mxu0 %v481
      %542 = vmatprep.subr.bf16.mxu0 0
      %543 = vmatpush2.bf16.msra.mxu0 0
      %544 = vmatprep.subr.bf16.mxu0 0
      %545 = vmatpush2.bf16.msra.mxu0 0
      %546 = vmatprep.subr.bf16.mxu0 0
      %547 = vmatpush2.bf16.msra.mxu0 0
      %548 = vmatprep.subr.bf16.mxu0 0
      %549 = vmatpush2.bf16.msra.mxu0 0
      %550 = vmatprep.subr.bf16.mxu0 0
      %551 = vmatpush2.bf16.msra.mxu0 0
      %552 = vmatprep.subr.bf16.mxu0 0
      %553 = vmatpush2.bf16.msra.mxu0 0
      %554 = vmatprep.subr.bf16.mxu0 0
      %555 = vmatpush2.bf16.msra.mxu0 0
      %556 = vmatprep.subr.bf16.mxu0 0
      %557 = vmatpush2.bf16.msra.mxu0 0
      %558 = vmatprep.mubr.bf16.mxu0 0
      %559 = vmatmul.mubr.bf16.gmra.mxu0 %v503
      %v560 = vpop.f32.mrf.mxu0
      %v561 = vadd.f32 %v427, %v560
      %v562 = vpop.f32.mrf.mxu0
      %v563 = vadd.f32 %v431, %v562
      %v564 = vpop.f32.mrf.mxu0
      %v565 = vadd.f32 %v427, %v564
      %v566 = vpop.f32.mrf.mxu0
      %v567 = vadd.f32 %v431, %v566
      %568 = vmatprep.mubr.bf16.mxu0 0
      %569 = vmatmul.mubr.bf16.gmra.mxu0 %v506
      %v570 = vpop.f32.mrf.mxu0
      %v571 = vadd.f32 %v427, %v570
      %v572 = vpop.f32.mrf.mxu0
      %v573 = vadd.f32 %v431, %v572
      %v574 = vpop.f32.mrf.mxu0
      %v575 = vadd.f32 %v427, %v574
      %v576 = vpop.f32.mrf.mxu0
      %v577 = vadd.f32 %v431, %v576
      %578 = vmatprep.mubr.bf16.mxu0 0
      %579 = vmatmul.mubr.bf16.gmra.mxu0 %v509
      %v580 = vpop.f32.mrf.mxu0
      %v581 = vadd.f32 %v427, %v580
      %v582 = vpop.f32.mrf.mxu0
      %v583 = vadd.f32 %v431, %v582
      %v584 = vpop.f32.mrf.mxu0
      %v585 = vadd.f32 %v427, %v584
      %v586 = vpop.f32.mrf.mxu0
      %v587 = vadd.f32 %v431, %v586
      %588 = vmatprep.mubr.bf16.mxu0 0
      %589 = vmatmul.mubr.bf16.gmra.mxu0 %v512
      %v590 = vpop.f32.mrf.mxu0
      %v591 = vadd.f32 %v427, %v590
      %v592 = vpop.f32.mrf.mxu0
      %v593 = vadd.f32 %v431, %v592
      %v594 = vpop.f32.mrf.mxu0
      %v595 = vadd.f32 %v427, %v594
      %v596 = vpop.f32.mrf.mxu0
      %v597 = vadd.f32 %v431, %v596
      %598 = vmatprep.mubr.bf16.mxu0 0
      %599 = vmatmul.mubr.bf16.gmra.mxu0 %v515
      %v600 = vpop.f32.mrf.mxu0
      %v601 = vadd.f32 %v427, %v600
      %v602 = vpop.f32.mrf.mxu0
      %v603 = vadd.f32 %v431, %v602
      %v604 = vpop.f32.mrf.mxu0
      %v605 = vadd.f32 %v427, %v604
      %v606 = vpop.f32.mrf.mxu0
      %v607 = vadd.f32 %v431, %v606
      %608 = vmatprep.mubr.bf16.mxu0 0
      %609 = vmatmul.mubr.bf16.gmra.mxu0 %v518
      %v610 = vpop.f32.mrf.mxu0
      %v611 = vadd.f32 %v427, %v610
      %v612 = vpop.f32.mrf.mxu0
      %v613 = vadd.f32 %v431, %v612
      %v614 = vpop.f32.mrf.mxu0
      %v615 = vadd.f32 %v427, %v614
      %v616 = vpop.f32.mrf.mxu0
      %v617 = vadd.f32 %v431, %v616
      %618 = vmatprep.mubr.bf16.mxu0 0
      %619 = vmatmul.mubr.bf16.gmra.mxu0 %v521
      %v620 = vpop.f32.mrf.mxu0
      %v621 = vadd.f32 %v427, %v620
      %v622 = vpop.f32.mrf.mxu0
      %v623 = vadd.f32 %v431, %v622
      %v624 = vpop.f32.mrf.mxu0
      %v625 = vadd.f32 %v427, %v624
      %v626 = vpop.f32.mrf.mxu0
      %v627 = vadd.f32 %v431, %v626
      %628 = vmatprep.mubr.bf16.mxu0 0
      %629 = vmatmul.mubr.bf16.gmra.mxu0 %v524
      %v630 = vpop.f32.mrf.mxu0
      %v631 = vadd.f32 %v427, %v630
      %v632 = vpop.f32.mrf.mxu0
      %v633 = vadd.f32 %v431, %v632
      %v634 = vpop.f32.mrf.mxu0
      %v635 = vadd.f32 %v427, %v634
      %v636 = vpop.f32.mrf.mxu0
      %v637 = vadd.f32 %v431, %v636
      %638 = vdwg.mxu0
      %639 = vmatprep.subr.bf16.mxu0 0
      %640 = vmatpush1.bf16.msra.mxu0 0
      %641 = vmatprep.subr.bf16.mxu0 0
      %642 = vmatpush1.bf16.msra.mxu0 0
      %643 = vmatprep.subr.bf16.mxu0 0
      %644 = vmatpush1.bf16.msra.mxu0 0
      %645 = vmatprep.subr.bf16.mxu0 0
      %646 = vmatpush1.bf16.msra.mxu0 0
      %647 = vmatprep.subr.bf16.mxu0 0
      %648 = vmatpush1.bf16.msra.mxu0 0
      %649 = vmatprep.subr.bf16.mxu0 0
      %650 = vmatpush1.bf16.msra.mxu0 0
      %651 = vmatprep.subr.bf16.mxu0 %v489
      %652 = vmatpush1.bf16.msra.mxu0 %v488
      %653 = vmatprep.subr.bf16.mxu0 %v484
      %654 = vmatpush1.bf16.msra.mxu0 %v483
      %655 = vmatprep.subr.bf16.mxu0 0
      %656 = vmatpush2.bf16.msra.mxu0 0
      %657 = vmatprep.subr.bf16.mxu0 0
      %658 = vmatpush2.bf16.msra.mxu0 0
      %659 = vmatprep.subr.bf16.mxu0 0
      %660 = vmatpush2.bf16.msra.mxu0 0
      %661 = vmatprep.subr.bf16.mxu0 0
      %662 = vmatpush2.bf16.msra.mxu0 0
      %663 = vmatprep.subr.bf16.mxu0 0
      %664 = vmatpush2.bf16.msra.mxu0 0
      %665 = vmatprep.subr.bf16.mxu0 0
      %666 = vmatpush2.bf16.msra.mxu0 0
      %667 = vmatprep.subr.bf16.mxu0 0
      %668 = vmatpush2.bf16.msra.mxu0 0
      %669 = vmatprep.subr.bf16.mxu0 0
      %670 = vmatpush2.bf16.msra.mxu0 0
      %671 = vmatprep.mubr.bf16.mxu0 0
      %672 = vmatmul.mubr.bf16.gmra.mxu0 %v503
      %v673 = vpop.f32.mrf.mxu0
      %v674 = vadd.f32 %v435, %v673
      %v675 = vpop.f32.mrf.mxu0
      %v676 = vadd.f32 %v439, %v675
      %v677 = vpop.f32.mrf.mxu0
      %v678 = vadd.f32 %v435, %v677
      %v679 = vpop.f32.mrf.mxu0
      %v680 = vadd.f32 %v439, %v679
      %681 = vmatprep.mubr.bf16.mxu0 0
      %682 = vmatmul.mubr.bf16.gmra.mxu0 %v506
      %v683 = vpop.f32.mrf.mxu0
      %v684 = vadd.f32 %v435, %v683
      %v685 = vpop.f32.mrf.mxu0
      %v686 = vadd.f32 %v439, %v685
      %v687 = vpop.f32.mrf.mxu0
      %v688 = vadd.f32 %v435, %v687
      %v689 = vpop.f32.mrf.mxu0
      %v690 = vadd.f32 %v439, %v689
      %691 = vmatprep.mubr.bf16.mxu0 0
      %692 = vmatmul.mubr.bf16.gmra.mxu0 %v509
      %v693 = vpop.f32.mrf.mxu0
      %v694 = vadd.f32 %v435, %v693
      %v695 = vpop.f32.mrf.mxu0
      %v696 = vadd.f32 %v439, %v695
      %v697 = vpop.f32.mrf.mxu0
      %v698 = vadd.f32 %v435, %v697
      %v699 = vpop.f32.mrf.mxu0
      %v700 = vadd.f32 %v439, %v699
      %701 = vmatprep.mubr.bf16.mxu0 0
      %702 = vmatmul.mubr.bf16.gmra.mxu0 %v512
      %v703 = vpop.f32.mrf.mxu0
      %v704 = vadd.f32 %v435, %v703
      %v705 = vpop.f32.mrf.mxu0
      %v706 = vadd.f32 %v439, %v705
      %v707 = vpop.f32.mrf.mxu0
      %v708 = vadd.f32 %v435, %v707
      %v709 = vpop.f32.mrf.mxu0
      %v710 = vadd.f32 %v439, %v709
      %711 = vmatprep.mubr.bf16.mxu0 0
      %712 = vmatmul.mubr.bf16.gmra.mxu0 %v515
      %v713 = vpop.f32.mrf.mxu0
      %v714 = vadd.f32 %v435, %v713
      %v715 = vpop.f32.mrf.mxu0
      %v716 = vadd.f32 %v439, %v715
      %v717 = vpop.f32.mrf.mxu0
      %v718 = vadd.f32 %v435, %v717
      %v719 = vpop.f32.mrf.mxu0
      %v720 = vadd.f32 %v439, %v719
      %721 = vmatprep.mubr.bf16.mxu0 0
      %722 = vmatmul.mubr.bf16.gmra.mxu0 %v518
      %v723 = vpop.f32.mrf.mxu0
      %v724 = vadd.f32 %v435, %v723
      %v725 = vpop.f32.mrf.mxu0
      %v726 = vadd.f32 %v439, %v725
      %v727 = vpop.f32.mrf.mxu0
      %v728 = vadd.f32 %v435, %v727
      %v729 = vpop.f32.mrf.mxu0
      %v730 = vadd.f32 %v439, %v729
      %731 = vmatprep.mubr.bf16.mxu0 0
      %732 = vmatmul.mubr.bf16.gmra.mxu0 %v521
      %v733 = vpop.f32.mrf.mxu0
      %v734 = vadd.f32 %v435, %v733
      %v735 = vpop.f32.mrf.mxu0
      %v736 = vadd.f32 %v439, %v735
      %v737 = vpop.f32.mrf.mxu0
      %v738 = vadd.f32 %v435, %v737
      %v739 = vpop.f32.mrf.mxu0
      %v740 = vadd.f32 %v439, %v739
      %741 = vmatprep.mubr.bf16.mxu0 0
      %742 = vmatmul.mubr.bf16.gmra.mxu0 %v524
      %v743 = vpop.f32.mrf.mxu0
      %v744 = vadd.f32 %v435, %v743
      %v745 = vpop.f32.mrf.mxu0
      %v746 = vadd.f32 %v439, %v745
      %v747 = vpop.f32.mrf.mxu0
      %v748 = vadd.f32 %v435, %v747
      %v749 = vpop.f32.mrf.mxu0
      %v750 = vadd.f32 %v439, %v749
      %751 = vdwg.mxu0
      %752 = vmatprep.subr.bf16.mxu0 0
      %753 = vmatpush1.bf16.msra.mxu0 0
      %754 = vmatprep.subr.bf16.mxu0 0
      %755 = vmatpush1.bf16.msra.mxu0 0
      %756 = vmatprep.subr.bf16.mxu0 0
      %757 = vmatpush1.bf16.msra.mxu0 0
      %758 = vmatprep.subr.bf16.mxu0 0
      %759 = vmatpush1.bf16.msra.mxu0 0
      %760 = vmatprep.subr.bf16.mxu0 0
      %761 = vmatpush1.bf16.msra.mxu0 0
      %762 = vmatprep.subr.bf16.mxu0 0
      %763 = vmatpush1.bf16.msra.mxu0 0
      %764 = vmatprep.subr.bf16.mxu0 0
      %765 = vmatpush1.bf16.msra.mxu0 %v490
      %766 = vmatprep.subr.bf16.mxu0 0
      %767 = vmatpush1.bf16.msra.mxu0 %v485
      %768 = vmatprep.subr.bf16.mxu0 0
      %769 = vmatpush2.bf16.msra.mxu0 0
      %770 = vmatprep.subr.bf16.mxu0 0
      %771 = vmatpush2.bf16.msra.mxu0 0
      %772 = vmatprep.subr.bf16.mxu0 0
      %773 = vmatpush2.bf16.msra.mxu0 0
      %774 = vmatprep.subr.bf16.mxu0 0
      %775 = vmatpush2.bf16.msra.mxu0 0
      %776 = vmatprep.subr.bf16.mxu0 0
      %777 = vmatpush2.bf16.msra.mxu0 0
      %778 = vmatprep.subr.bf16.mxu0 0
      %779 = vmatpush2.bf16.msra.mxu0 0
      %780 = vmatprep.subr.bf16.mxu0 0
      %781 = vmatpush2.bf16.msra.mxu0 0
      %782 = vmatprep.subr.bf16.mxu0 0
      %783 = vmatpush2.bf16.msra.mxu0 0
      %784 = vmatprep.mubr.bf16.mxu0 0
      %785 = vmatmul.mubr.bf16.gmra.mxu0 %v503
      %v786 = vpop.f32.mrf.mxu0
      %v787 = vadd.f32 %v443, %v786
      %v788 = vpop.f32.mrf.mxu0
      %v789 = vpop.f32.mrf.mxu0
      %v790 = vadd.f32 %v443, %v789
      %v791 = vpop.f32.mrf.mxu0
      %792 = vmatprep.mubr.bf16.mxu0 0
      %793 = vmatmul.mubr.bf16.gmra.mxu0 %v506
      %v794 = vpop.f32.mrf.mxu0
      %v795 = vadd.f32 %v443, %v794
      %v796 = vpop.f32.mrf.mxu0
      %v797 = vpop.f32.mrf.mxu0
      %v798 = vadd.f32 %v443, %v797
      %v799 = vpop.f32.mrf.mxu0
      %800 = vmatprep.mubr.bf16.mxu0 0
      %801 = vmatmul.mubr.bf16.gmra.mxu0 %v509
      %v802 = vpop.f32.mrf.mxu0
      %v803 = vadd.f32 %v443, %v802
      %v804 = vpop.f32.mrf.mxu0
      %v805 = vpop.f32.mrf.mxu0
      %v806 = vadd.f32 %v443, %v805
      %v807 = vpop.f32.mrf.mxu0
      %808 = vmatprep.mubr.bf16.mxu0 0
      %809 = vmatmul.mubr.bf16.gmra.mxu0 %v512
      %v810 = vpop.f32.mrf.mxu0
      %v811 = vadd.f32 %v443, %v810
      %v812 = vpop.f32.mrf.mxu0
      %v813 = vpop.f32.mrf.mxu0
      %v814 = vadd.f32 %v443, %v813
      %v815 = vpop.f32.mrf.mxu0
      %816 = vmatprep.mubr.bf16.mxu0 0
      %817 = vmatmul.mubr.bf16.gmra.mxu0 %v515
      %v818 = vpop.f32.mrf.mxu0
      %v819 = vadd.f32 %v443, %v818
      %v820 = vpop.f32.mrf.mxu0
      %v821 = vpop.f32.mrf.mxu0
      %v822 = vadd.f32 %v443, %v821
      %v823 = vpop.f32.mrf.mxu0
      %824 = vmatprep.mubr.bf16.mxu0 0
      %825 = vmatmul.mubr.bf16.gmra.mxu0 %v518
      %v826 = vpop.f32.mrf.mxu0
      %v827 = vadd.f32 %v443, %v826
      %v828 = vpop.f32.mrf.mxu0
      %v829 = vpop.f32.mrf.mxu0
      %v830 = vadd.f32 %v443, %v829
      %v831 = vpop.f32.mrf.mxu0
      %832 = vmatprep.mubr.bf16.mxu0 0
      %833 = vmatmul.mubr.bf16.gmra.mxu0 %v521
      %v834 = vpop.f32.mrf.mxu0
      %v835 = vadd.f32 %v443, %v834
      %v836 = vpop.f32.mrf.mxu0
      %v837 = vpop.f32.mrf.mxu0
      %v838 = vadd.f32 %v443, %v837
      %v839 = vpop.f32.mrf.mxu0
      %840 = vmatprep.mubr.bf16.mxu0 0
      %841 = vmatmul.mubr.bf16.gmra.mxu0 %v524
      %v842 = vpop.f32.mrf.mxu0
      %v843 = vadd.f32 %v443, %v842
      %v844 = vpop.f32.mrf.mxu0
      %v845 = vpop.f32.mrf.mxu0
      %v846 = vadd.f32 %v443, %v845
      %v847 = vpop.f32.mrf.mxu0
      %848 = vdwg.mxu0
      %v849 = vmax.f32 %v561, 0.0
      %v850 = vmax.f32 %v563, 0.0
      %v851 = vmax.f32 %v674, 0.0
      %v852 = vmax.f32 %v676, 0.0
      %v853 = vmax.f32 %v787, 0.0
      %v854 = vmax.f32 %v565, 0.0
      %v855 = vmax.f32 %v567, 0.0
      %v856 = vmax.f32 %v678, 0.0
      %v857 = vmax.f32 %v680, 0.0
      %v858 = vmax.f32 %v790, 0.0
      %v859 = vmax.f32 %v571, 0.0
      %v860 = vmax.f32 %v573, 0.0
      %v861 = vmax.f32 %v684, 0.0
      %v862 = vmax.f32 %v686, 0.0
      %v863 = vmax.f32 %v795, 0.0
      %v864 = vmax.f32 %v575, 0.0
      %v865 = vmax.f32 %v577, 0.0
      %v866 = vmax.f32 %v688, 0.0
      %v867 = vmax.f32 %v690, 0.0
      %v868 = vmax.f32 %v798, 0.0
      %v869 = vmax.f32 %v581, 0.0
      %v870 = vmax.f32 %v583, 0.0
      %v871 = vmax.f32 %v694, 0.0
      %v872 = vmax.f32 %v696, 0.0
      %v873 = vmax.f32 %v803, 0.0
      %v874 = vmax.f32 %v585, 0.0
      %v875 = vmax.f32 %v587, 0.0
      %v876 = vmax.f32 %v698, 0.0
      %v877 = vmax.f32 %v700, 0.0
      %v878 = vmax.f32 %v806, 0.0
      %v879 = vmax.f32 %v591, 0.0
      %v880 = vmax.f32 %v593, 0.0
      %v881 = vmax.f32 %v704, 0.0
      %v882 = vmax.f32 %v706, 0.0
      %v883 = vmax.f32 %v811, 0.0
      %v884 = vmax.f32 %v595, 0.0
      %v885 = vmax.f32 %v597, 0.0
      %v886 = vmax.f32 %v708, 0.0
      %v887 = vmax.f32 %v710, 0.0
      %v888 = vmax.f32 %v814, 0.0
      %v889 = vmax.f32 %v601, 0.0
      %v890 = vmax.f32 %v603, 0.0
      %v891 = vmax.f32 %v714, 0.0
      %v892 = vmax.f32 %v716, 0.0
      %v893 = vmax.f32 %v819, 0.0
      %v894 = vmax.f32 %v605, 0.0
      %v895 = vmax.f32 %v607, 0.0
      %v896 = vmax.f32 %v718, 0.0
      %v897 = vmax.f32 %v720, 0.0
      %v898 = vmax.f32 %v822, 0.0
      %v899 = vmax.f32 %v611, 0.0
      %v900 = vmax.f32 %v613, 0.0
      %v901 = vmax.f32 %v724, 0.0
      %v902 = vmax.f32 %v726, 0.0
      %v903 = vmax.f32 %v827, 0.0
      %v904 = vmax.f32 %v615, 0.0
      %v905 = vmax.f32 %v617, 0.0
      %v906 = vmax.f32 %v728, 0.0
      %v907 = vmax.f32 %v730, 0.0
      %v908 = vmax.f32 %v830, 0.0
      %v909 = vmax.f32 %v621, 0.0
      %v910 = vmax.f32 %v623, 0.0
      %v911 = vmax.f32 %v734, 0.0
      %v912 = vmax.f32 %v736, 0.0
      %v913 = vmax.f32 %v835, 0.0
      %v914 = vmax.f32 %v625, 0.0
      %v915 = vmax.f32 %v627, 0.0
      %v916 = vmax.f32 %v738, 0.0
      %v917 = vmax.f32 %v740, 0.0
      %v918 = vmax.f32 %v838, 0.0
      %v919 = vmax.f32 %v631, 0.0
      %v920 = vmax.f32 %v633, 0.0
      %v921 = vmax.f32 %v744, 0.0
      %v922 = vmax.f32 %v746, 0.0
      %v923 = vmax.f32 %v843, 0.0
      %v924 = vmax.f32 %v635, 0.0
      %v925 = vmax.f32 %v637, 0.0
      %v926 = vmax.f32 %v748, 0.0
      %v927 = vmax.f32 %v750, 0.0
      %v928 = vmax.f32 %v846, 0.0
      %v929 = vld [vmem:[%s3] sm:$0x1f]
      %v931 = vlaneseq
      %v932 = vshrl.u32 %v931, 7
      %v933 = vsub.s32 0, %v932
      %v934 = vrot.slane %v929, %v933
      %v935 = vlaneseq
      %v936 = vshrl.u32 %v935, 7
      %v937 = vsub.s32 1, %v936
      %v938 = vrot.slane %v929, %v937
      %v939 = vlaneseq
      %v940 = vshrl.u32 %v939, 7
      %v941 = vsub.s32 2, %v940
      %v942 = vrot.slane %v929, %v941
      %v943 = vlaneseq
      %v944 = vshrl.u32 %v943, 7
      %v945 = vsub.s32 3, %v944
      %v946 = vrot.slane %v929, %v945
      %v947 = vlaneseq
      %v948 = vshrl.u32 %v947, 7
      %v949 = vsub.s32 4, %v948
      %v950 = vrot.slane %v929, %v949
      %v956 = vmul.f32 %v849, %v934
      %v957 = vmul.f32 %v850, %v938
      %v958 = vmul.f32 %v851, %v942
      %v959 = vmul.f32 %v852, %v946
      %v960 = vmul.f32 %v853, %v950
      %v961 = vmul.f32 %v854, %v934
      %v962 = vmul.f32 %v855, %v938
      %v963 = vmul.f32 %v856, %v942
      %v964 = vmul.f32 %v857, %v946
      %v965 = vmul.f32 %v858, %v950
      %v966 = vmul.f32 %v859, %v934
      %v967 = vmul.f32 %v860, %v938
      %v968 = vmul.f32 %v861, %v942
      %v969 = vmul.f32 %v862, %v946
      %v970 = vmul.f32 %v863, %v950
      %v971 = vmul.f32 %v864, %v934
      %v972 = vmul.f32 %v865, %v938
      %v973 = vmul.f32 %v866, %v942
      %v974 = vmul.f32 %v867, %v946
      %v975 = vmul.f32 %v868, %v950
      %v976 = vmul.f32 %v869, %v934
      %v977 = vmul.f32 %v870, %v938
      %v978 = vmul.f32 %v871, %v942
      %v979 = vmul.f32 %v872, %v946
      %v980 = vmul.f32 %v873, %v950
      %v981 = vmul.f32 %v874, %v934
      %v982 = vmul.f32 %v875, %v938
      %v983 = vmul.f32 %v876, %v942
      %v984 = vmul.f32 %v877, %v946
      %v985 = vmul.f32 %v878, %v950
      %v986 = vmul.f32 %v879, %v934
      %v987 = vmul.f32 %v880, %v938
      %v988 = vmul.f32 %v881, %v942
      %v989 = vmul.f32 %v882, %v946
      %v990 = vmul.f32 %v883, %v950
      %v991 = vmul.f32 %v884, %v934
      %v992 = vmul.f32 %v885, %v938
      %v993 = vmul.f32 %v886, %v942
      %v994 = vmul.f32 %v887, %v946
      %v995 = vmul.f32 %v888, %v950
      %v996 = vmul.f32 %v889, %v934
      %v997 = vmul.f32 %v890, %v938
      %v998 = vmul.f32 %v891, %v942
      %v999 = vmul.f32 %v892, %v946
      %v1000 = vmul.f32 %v893, %v950
      %v1001 = vmul.f32 %v894, %v934
      %v1002 = vmul.f32 %v895, %v938
      %v1003 = vmul.f32 %v896, %v942
      %v1004 = vmul.f32 %v897, %v946
      %v1005 = vmul.f32 %v898, %v950
      %v1006 = vmul.f32 %v899, %v934
      %v1007 = vmul.f32 %v900, %v938
      %v1008 = vmul.f32 %v901, %v942
      %v1009 = vmul.f32 %v902, %v946
      %v1010 = vmul.f32 %v903, %v950
      %v1011 = vmul.f32 %v904, %v934
      %v1012 = vmul.f32 %v905, %v938
      %v1013 = vmul.f32 %v906, %v942
      %v1014 = vmul.f32 %v907, %v946
      %v1015 = vmul.f32 %v908, %v950
      %v1016 = vmul.f32 %v909, %v934
      %v1017 = vmul.f32 %v910, %v938
      %v1018 = vmul.f32 %v911, %v942
      %v1019 = vmul.f32 %v912, %v946
      %v1020 = vmul.f32 %v913, %v950
      %v1021 = vmul.f32 %v914, %v934
      %v1022 = vmul.f32 %v915, %v938
      %v1023 = vmul.f32 %v916, %v942
      %v1024 = vmul.f32 %v917, %v946
      %v1025 = vmul.f32 %v918, %v950
      %v1026 = vmul.f32 %v919, %v934
      %v1027 = vmul.f32 %v920, %v938
      %v1028 = vmul.f32 %v921, %v942
      %v1029 = vmul.f32 %v922, %v946
      %v1030 = vmul.f32 %v923, %v950
      %v1031 = vmul.f32 %v924, %v934
      %v1032 = vmul.f32 %v925, %v938
      %v1033 = vmul.f32 %v926, %v942
      %v1034 = vmul.f32 %v927, %v946
      %v1035 = vmul.f32 %v928, %v950
      %v1036 = vld [vmem:[%s4] sm:$0x1f]
      %v1038 = vlaneseq
      %v1039 = vshrl.u32 %v1038, 7
      %v1040 = vsub.s32 0, %v1039
      %v1041 = vrot.slane %v1036, %v1040
      %v1042 = vlaneseq
      %v1043 = vshrl.u32 %v1042, 7
      %v1044 = vsub.s32 1, %v1043
      %v1045 = vrot.slane %v1036, %v1044
      %v1046 = vlaneseq
      %v1047 = vshrl.u32 %v1046, 7
      %v1048 = vsub.s32 2, %v1047
      %v1049 = vrot.slane %v1036, %v1048
      %v1050 = vlaneseq
      %v1051 = vshrl.u32 %v1050, 7
      %v1052 = vsub.s32 3, %v1051
      %v1053 = vrot.slane %v1036, %v1052
      %v1054 = vlaneseq
      %v1055 = vshrl.u32 %v1054, 7
      %v1056 = vsub.s32 4, %v1055
      %v1057 = vrot.slane %v1036, %v1056
      %v1063 = vadd.f32 %v956, %v1041
      %v1064 = vadd.f32 %v957, %v1045
      %v1065 = vadd.f32 %v958, %v1049
      %v1066 = vadd.f32 %v959, %v1053
      %v1067 = vadd.f32 %v960, %v1057
      %v1068 = vadd.f32 %v961, %v1041
      %v1069 = vadd.f32 %v962, %v1045
      %v1070 = vadd.f32 %v963, %v1049
      %v1071 = vadd.f32 %v964, %v1053
      %v1072 = vadd.f32 %v965, %v1057
      %v1073 = vadd.f32 %v966, %v1041
      %v1074 = vadd.f32 %v967, %v1045
      %v1075 = vadd.f32 %v968, %v1049
      %v1076 = vadd.f32 %v969, %v1053
      %v1077 = vadd.f32 %v970, %v1057
      %v1078 = vadd.f32 %v971, %v1041
      %v1079 = vadd.f32 %v972, %v1045
      %v1080 = vadd.f32 %v973, %v1049
      %v1081 = vadd.f32 %v974, %v1053
      %v1082 = vadd.f32 %v975, %v1057
      %v1083 = vadd.f32 %v976, %v1041
      %v1084 = vadd.f32 %v977, %v1045
      %v1085 = vadd.f32 %v978, %v1049
      %v1086 = vadd.f32 %v979, %v1053
      %v1087 = vadd.f32 %v980, %v1057
      %v1088 = vadd.f32 %v981, %v1041
      %v1089 = vadd.f32 %v982, %v1045
      %v1090 = vadd.f32 %v983, %v1049
      %v1091 = vadd.f32 %v984, %v1053
      %v1092 = vadd.f32 %v985, %v1057
      %v1093 = vadd.f32 %v986, %v1041
      %v1094 = vadd.f32 %v987, %v1045
      %v1095 = vadd.f32 %v988, %v1049
      %v1096 = vadd.f32 %v989, %v1053
      %v1097 = vadd.f32 %v990, %v1057
      %v1098 = vadd.f32 %v991, %v1041
      %v1099 = vadd.f32 %v992, %v1045
      %v1100 = vadd.f32 %v993, %v1049
      %v1101 = vadd.f32 %v994, %v1053
      %v1102 = vadd.f32 %v995, %v1057
      %v1103 = vadd.f32 %v996, %v1041
      %v1104 = vadd.f32 %v997, %v1045
      %v1105 = vadd.f32 %v998, %v1049
      %v1106 = vadd.f32 %v999, %v1053
      %v1107 = vadd.f32 %v1000, %v1057
      %v1108 = vadd.f32 %v1001, %v1041
      %v1109 = vadd.f32 %v1002, %v1045
      %v1110 = vadd.f32 %v1003, %v1049
      %v1111 = vadd.f32 %v1004, %v1053
      %v1112 = vadd.f32 %v1005, %v1057
      %v1113 = vadd.f32 %v1006, %v1041
      %v1114 = vadd.f32 %v1007, %v1045
      %v1115 = vadd.f32 %v1008, %v1049
      %v1116 = vadd.f32 %v1009, %v1053
      %v1117 = vadd.f32 %v1010, %v1057
      %v1118 = vadd.f32 %v1011, %v1041
      %v1119 = vadd.f32 %v1012, %v1045
      %v1120 = vadd.f32 %v1013, %v1049
      %v1121 = vadd.f32 %v1014, %v1053
      %v1122 = vadd.f32 %v1015, %v1057
      %v1123 = vadd.f32 %v1016, %v1041
      %v1124 = vadd.f32 %v1017, %v1045
      %v1125 = vadd.f32 %v1018, %v1049
      %v1126 = vadd.f32 %v1019, %v1053
      %v1127 = vadd.f32 %v1020, %v1057
      %v1128 = vadd.f32 %v1021, %v1041
      %v1129 = vadd.f32 %v1022, %v1045
      %v1130 = vadd.f32 %v1023, %v1049
      %v1131 = vadd.f32 %v1024, %v1053
      %v1132 = vadd.f32 %v1025, %v1057
      %v1133 = vadd.f32 %v1026, %v1041
      %v1134 = vadd.f32 %v1027, %v1045
      %v1135 = vadd.f32 %v1028, %v1049
      %v1136 = vadd.f32 %v1029, %v1053
      %v1137 = vadd.f32 %v1030, %v1057
      %v1138 = vadd.f32 %v1031, %v1041
      %v1139 = vadd.f32 %v1032, %v1045
      %v1140 = vadd.f32 %v1033, %v1049
      %v1141 = vadd.f32 %v1034, %v1053
      %v1142 = vadd.f32 %v1035, %v1057
      %v1143 = vpack.c.bf16 %v1068, %v1063
      %v1144 = vpack.c.bf16 %v1069, %v1064
      %v1145 = vpack.c.bf16 %v1070, %v1065
      %v1146 = vpack.c.bf16 %v1071, %v1066
      %v1147 = vpack.c.bf16 %v1072, %v1067
      %v1148 = vpack.c.bf16 %v1078, %v1073
      %v1149 = vpack.c.bf16 %v1079, %v1074
      %v1150 = vpack.c.bf16 %v1080, %v1075
      %v1151 = vpack.c.bf16 %v1081, %v1076
      %v1152 = vpack.c.bf16 %v1082, %v1077
      %v1153 = vpack.c.bf16 %v1088, %v1083
      %v1154 = vpack.c.bf16 %v1089, %v1084
      %v1155 = vpack.c.bf16 %v1090, %v1085
      %v1156 = vpack.c.bf16 %v1091, %v1086
      %v1157 = vpack.c.bf16 %v1092, %v1087
      %v1158 = vpack.c.bf16 %v1098, %v1093
      %v1159 = vpack.c.bf16 %v1099, %v1094
      %v1160 = vpack.c.bf16 %v1100, %v1095
      %v1161 = vpack.c.bf16 %v1101, %v1096
      %v1162 = vpack.c.bf16 %v1102, %v1097
      %v1163 = vpack.c.bf16 %v1108, %v1103
      %v1164 = vpack.c.bf16 %v1109, %v1104
      %v1165 = vpack.c.bf16 %v1110, %v1105
      %v1166 = vpack.c.bf16 %v1111, %v1106
      %v1167 = vpack.c.bf16 %v1112, %v1107
      %v1168 = vpack.c.bf16 %v1118, %v1113
      %v1169 = vpack.c.bf16 %v1119, %v1114
      %v1170 = vpack.c.bf16 %v1120, %v1115
      %v1171 = vpack.c.bf16 %v1121, %v1116
      %v1172 = vpack.c.bf16 %v1122, %v1117
      %v1173 = vpack.c.bf16 %v1128, %v1123
      %v1174 = vpack.c.bf16 %v1129, %v1124
      %v1175 = vpack.c.bf16 %v1130, %v1125
      %v1176 = vpack.c.bf16 %v1131, %v1126
      %v1177 = vpack.c.bf16 %v1132, %v1127
      %v1178 = vpack.c.bf16 %v1138, %v1133
      %v1179 = vpack.c.bf16 %v1139, %v1134
      %v1180 = vpack.c.bf16 %v1140, %v1135
      %v1181 = vpack.c.bf16 %v1141, %v1136
      %v1182 = vpack.c.bf16 %v1142, %v1137
      %v1183 = vld [vmem:[%s5] sm:$0xff]
      %v1184 = vld [vmem:[%s5 + $0x8] sm:$0xff]
      %v1185 = vld [vmem:[%s5 + $0x10] sm:$0xff]
      %v1186 = vld [vmem:[%s5 + $0x18] sm:$0xff]
      %v1187 = vld [vmem:[%s5 + $0x20] sm:$0xff]
      %v1188 = vld [vmem:[%s5 + $0x28] sm:$0xff]
      %v1189 = vld [vmem:[%s5 + $0x30] sm:$0xff]
      %v1190 = vld [vmem:[%s5 + $0x38] sm:$0xff]
      %v1191 = vld [vmem:[%s5 + $0x40] sm:$0xff]
      %v1192 = vld [vmem:[%s5 + $0x48] sm:$0xff]
      %v1193 = vld [vmem:[%s5 + $0x50] sm:$0xff]
      %v1194 = vld [vmem:[%s5 + $0x58] sm:$0xff]
      %v1195 = vld [vmem:[%s5 + $0x60] sm:$0xff]
      %v1196 = vld [vmem:[%s5 + $0x68] sm:$0xff]
      %v1197 = vld [vmem:[%s5 + $0x70] sm:$0xff]
      %v1198 = vld [vmem:[%s5 + $0x78] sm:$0xff]
      %v1199 = vld [vmem:[%s5 + $0x80] sm:$0xff]
      %v1200 = vld [vmem:[%s5 + $0x88] sm:$0xff]
      %v1201 = vld [vmem:[%s5 + $0x90] sm:$0xff]
      %v1202 = vld [vmem:[%s5 + $0x98] sm:$0xff]
      %v1203 = vld [vmem:[%s5 + $0xa0] sm:$0xff]
      %v1204 = vld [vmem:[%s5 + $0xa8] sm:$0xff]
      %v1205 = vld [vmem:[%s5 + $0xb0] sm:$0xff]
      %v1206 = vld [vmem:[%s5 + $0xb8] sm:$0xff]
      %v1207 = vld [vmem:[%s5 + $0xc0] sm:$0xff]
      %v1208 = vld [vmem:[%s5 + $0xc8] sm:$0xff]
      %v1209 = vld [vmem:[%s5 + $0xd0] sm:$0xff]
      %v1210 = vld [vmem:[%s5 + $0xd8] sm:$0xff]
      %v1211 = vld [vmem:[%s5 + $0xe0] sm:$0xff]
      %v1212 = vld [vmem:[%s5 + $0xe8] sm:$0xff]
      %v1213 = vld [vmem:[%s5 + $0xf0] sm:$0xff]
      %v1214 = vld [vmem:[%s5 + $0xf8] sm:$0xff]
      %v1215 = vld [vmem:[%s5 + $0x100] sm:$0xff]
      %v1216 = vld [vmem:[%s5 + $0x108] sm:$0xff]
      %v1217 = vld [vmem:[%s5 + $0x110] sm:$0xff]
      %v1218 = vld [vmem:[%s5 + $0x118] sm:$0xff]
      %v1219 = vld [vmem:[%s5 + $0x120] sm:$0xff]
      %v1220 = vld [vmem:[%s5 + $0x128] sm:$0xff]
      %v1221 = vld [vmem:[%s5 + $0x130] sm:$0xff]
      %v1222 = vld [vmem:[%s5 + $0x138] sm:$0xff]
      %v1223 = vld [vmem:[%s5 + $0x140] sm:$0xff]
      %v1224 = vld [vmem:[%s5 + $0x148] sm:$0xff]
      %v1225 = vld [vmem:[%s5 + $0x150] sm:$0xff]
      %v1226 = vld [vmem:[%s5 + $0x158] sm:$0xff]
      %v1227 = vld [vmem:[%s5 + $0x160] sm:$0xff]
      %v1228 = vld [vmem:[%s5 + $0x168] sm:$0xff]
      %v1229 = vld [vmem:[%s5 + $0x170] sm:$0xff]
      %v1230 = vld [vmem:[%s5 + $0x178] sm:$0xff]
      %v1231 = vld [vmem:[%s5 + $0x180] sm:$0xff]
      %v1232 = vld [vmem:[%s5 + $0x188] sm:$0xff]
      %v1233 = vld [vmem:[%s5 + $0x190] sm:$0xff]
      %v1234 = vld [vmem:[%s5 + $0x198] sm:$0xff]
      %v1235 = vld [vmem:[%s5 + $0x1a0] sm:$0xff]
      %v1236 = vld [vmem:[%s5 + $0x1a8] sm:$0xff]
      %v1237 = vld [vmem:[%s5 + $0x1b0] sm:$0xff]
      %v1238 = vld [vmem:[%s5 + $0x1b8] sm:$0xff]
      %v1239 = vld [vmem:[%s5 + $0x1c0] sm:$0xff]
      %v1240 = vld [vmem:[%s5 + $0x1c8] sm:$0xff]
      %v1241 = vld [vmem:[%s5 + $0x1d0] sm:$0xff]
      %v1242 = vld [vmem:[%s5 + $0x1d8] sm:$0xff]
      %v1243 = vld [vmem:[%s5 + $0x1e0] sm:$0xff]
      %v1244 = vld [vmem:[%s5 + $0x1e8] sm:$0xff]
      %v1245 = vld [vmem:[%s5 + $0x1f0] sm:$0xff]
      %v1246 = vld [vmem:[%s5 + $0x1f8] sm:$0xff]
      %v1247 = vld [vmem:[%s5 + $0x200] sm:$0xff]
      %v1248 = vld [vmem:[%s5 + $0x208] sm:$0xff]
      %v1249 = vld [vmem:[%s5 + $0x210] sm:$0xff]
      %v1250 = vld [vmem:[%s5 + $0x218] sm:$0xff]
      %v1251 = vld [vmem:[%s5 + $0x220] sm:$0xff]
      %v1252 = vld [vmem:[%s5 + $0x228] sm:$0xff]
      %v1253 = vld [vmem:[%s5 + $0x230] sm:$0xff]
      %v1254 = vld [vmem:[%s5 + $0x238] sm:$0xff]
      %v1255 = vld [vmem:[%s5 + $0x240] sm:$0xff]
      %v1256 = vld [vmem:[%s5 + $0x248] sm:$0xff]
      %v1257 = vld [vmem:[%s5 + $0x250] sm:$0xff]
      %v1258 = vld [vmem:[%s5 + $0x258] sm:$0xff]
      %v1259 = vld [vmem:[%s5 + $0x260] sm:$0xff]
      %v1260 = vld [vmem:[%s5 + $0x268] sm:$0xff]
      %v1261 = vld [vmem:[%s5 + $0x270] sm:$0xff]
      %v1262 = vld [vmem:[%s5 + $0x278] sm:$0xff]
      %v1263 = vld [vmem:[%s6] sm:$0x3]
      %v1265 = vlaneseq
      %v1266 = vshrl.u32 %v1265, 7
      %v1267 = vsub.s32 0, %v1266
      %v1268 = vrot.slane %v1263, %v1267
      %v1269 = vlaneseq
      %v1270 = vshrl.u32 %v1269, 7
      %v1271 = vsub.s32 1, %v1270
      %v1272 = vrot.slane %v1263, %v1271
      %v1355 = vunpack.c.l.b16 %v1183
      %v1356 = vunpack.c.h.b16 %v1183
      %v1357 = vunpack.c.l.b16 %v1184
      %v1358 = vunpack.c.h.b16 %v1184
      %v1359 = vunpack.c.l.b16 %v1185
      %v1360 = vunpack.c.h.b16 %v1185
      %v1361 = vunpack.c.l.b16 %v1186
      %v1362 = vunpack.c.h.b16 %v1186
      %v1363 = vunpack.c.l.b16 %v1187
      %v1364 = vunpack.c.h.b16 %v1187
      %v1365 = vunpack.c.l.b16 %v1188
      %v1366 = vunpack.c.h.b16 %v1188
      %v1367 = vunpack.c.l.b16 %v1189
      %v1368 = vunpack.c.h.b16 %v1189
      %v1369 = vunpack.c.l.b16 %v1190
      %v1370 = vunpack.c.h.b16 %v1190
      %v1371 = vunpack.c.l.b16 %v1191
      %v1372 = vunpack.c.h.b16 %v1191
      %v1373 = vunpack.c.l.b16 %v1192
      %v1374 = vunpack.c.h.b16 %v1192
      %v1375 = vunpack.c.l.b16 %v1193
      %v1376 = vunpack.c.h.b16 %v1193
      %v1377 = vunpack.c.l.b16 %v1194
      %v1378 = vunpack.c.h.b16 %v1194
      %v1379 = vunpack.c.l.b16 %v1195
      %v1380 = vunpack.c.h.b16 %v1195
      %v1381 = vunpack.c.l.b16 %v1196
      %v1382 = vunpack.c.h.b16 %v1196
      %v1383 = vunpack.c.l.b16 %v1197
      %v1384 = vunpack.c.h.b16 %v1197
      %v1385 = vunpack.c.l.b16 %v1198
      %v1386 = vunpack.c.h.b16 %v1198
      %v1387 = vunpack.c.l.b16 %v1199
      %v1388 = vunpack.c.h.b16 %v1199
      %v1389 = vunpack.c.l.b16 %v1200
      %v1390 = vunpack.c.h.b16 %v1200
      %v1391 = vunpack.c.l.b16 %v1201
      %v1392 = vunpack.c.h.b16 %v1201
      %v1393 = vunpack.c.l.b16 %v1202
      %v1394 = vunpack.c.h.b16 %v1202
      %v1395 = vunpack.c.l.b16 %v1203
      %v1396 = vunpack.c.h.b16 %v1203
      %v1397 = vunpack.c.l.b16 %v1204
      %v1398 = vunpack.c.h.b16 %v1204
      %v1399 = vunpack.c.l.b16 %v1205
      %v1400 = vunpack.c.h.b16 %v1205
      %v1401 = vunpack.c.l.b16 %v1206
      %v1402 = vunpack.c.h.b16 %v1206
      %v1403 = vunpack.c.l.b16 %v1207
      %v1404 = vunpack.c.h.b16 %v1207
      %v1405 = vunpack.c.l.b16 %v1208
      %v1406 = vunpack.c.h.b16 %v1208
      %v1407 = vunpack.c.l.b16 %v1209
      %v1408 = vunpack.c.h.b16 %v1209
      %v1409 = vunpack.c.l.b16 %v1210
      %v1410 = vunpack.c.h.b16 %v1210
      %v1411 = vunpack.c.l.b16 %v1211
      %v1412 = vunpack.c.h.b16 %v1211
      %v1413 = vunpack.c.l.b16 %v1212
      %v1414 = vunpack.c.h.b16 %v1212
      %v1415 = vunpack.c.l.b16 %v1213
      %v1416 = vunpack.c.h.b16 %v1213
      %v1417 = vunpack.c.l.b16 %v1214
      %v1418 = vunpack.c.h.b16 %v1214
      %v1419 = vunpack.c.l.b16 %v1215
      %v1420 = vunpack.c.h.b16 %v1215
      %v1421 = vunpack.c.l.b16 %v1216
      %v1422 = vunpack.c.h.b16 %v1216
      %v1423 = vunpack.c.l.b16 %v1217
      %v1424 = vunpack.c.h.b16 %v1217
      %v1425 = vunpack.c.l.b16 %v1218
      %v1426 = vunpack.c.h.b16 %v1218
      %v1427 = vunpack.c.l.b16 %v1219
      %v1428 = vunpack.c.h.b16 %v1219
      %v1429 = vunpack.c.l.b16 %v1220
      %v1430 = vunpack.c.h.b16 %v1220
      %v1431 = vunpack.c.l.b16 %v1221
      %v1432 = vunpack.c.h.b16 %v1221
      %v1433 = vunpack.c.l.b16 %v1222
      %v1434 = vunpack.c.h.b16 %v1222
      %v1435 = vunpack.c.l.b16 %v1223
      %v1436 = vunpack.c.h.b16 %v1223
      %v1437 = vunpack.c.l.b16 %v1224
      %v1438 = vunpack.c.h.b16 %v1224
      %v1439 = vunpack.c.l.b16 %v1225
      %v1440 = vunpack.c.h.b16 %v1225
      %v1441 = vunpack.c.l.b16 %v1226
      %v1442 = vunpack.c.h.b16 %v1226
      %v1443 = vunpack.c.l.b16 %v1227
      %v1444 = vunpack.c.h.b16 %v1227
      %v1445 = vunpack.c.l.b16 %v1228
      %v1446 = vunpack.c.h.b16 %v1228
      %v1447 = vunpack.c.l.b16 %v1229
      %v1448 = vunpack.c.h.b16 %v1229
      %v1449 = vunpack.c.l.b16 %v1230
      %v1450 = vunpack.c.h.b16 %v1230
      %v1451 = vunpack.c.l.b16 %v1231
      %v1452 = vunpack.c.h.b16 %v1231
      %v1453 = vunpack.c.l.b16 %v1232
      %v1454 = vunpack.c.h.b16 %v1232
      %v1455 = vunpack.c.l.b16 %v1233
      %v1456 = vunpack.c.h.b16 %v1233
      %v1457 = vunpack.c.l.b16 %v1234
      %v1458 = vunpack.c.h.b16 %v1234
      %v1459 = vunpack.c.l.b16 %v1235
      %v1460 = vunpack.c.h.b16 %v1235
      %v1461 = vunpack.c.l.b16 %v1236
      %v1462 = vunpack.c.h.b16 %v1236
      %v1463 = vunpack.c.l.b16 %v1237
      %v1464 = vunpack.c.h.b16 %v1237
      %v1465 = vunpack.c.l.b16 %v1238
      %v1466 = vunpack.c.h.b16 %v1238
      %v1467 = vunpack.c.l.b16 %v1239
      %v1468 = vunpack.c.h.b16 %v1239
      %v1469 = vunpack.c.l.b16 %v1240
      %v1470 = vunpack.c.h.b16 %v1240
      %v1471 = vunpack.c.l.b16 %v1241
      %v1472 = vunpack.c.h.b16 %v1241
      %v1473 = vunpack.c.l.b16 %v1242
      %v1474 = vunpack.c.h.b16 %v1242
      %v1475 = vunpack.c.l.b16 %v1243
      %v1476 = vunpack.c.h.b16 %v1243
      %v1477 = vunpack.c.l.b16 %v1244
      %v1478 = vunpack.c.h.b16 %v1244
      %v1479 = vunpack.c.l.b16 %v1245
      %v1480 = vunpack.c.h.b16 %v1245
      %v1481 = vunpack.c.l.b16 %v1246
      %v1482 = vunpack.c.h.b16 %v1246
      %v1483 = vunpack.c.l.b16 %v1247
      %v1484 = vunpack.c.h.b16 %v1247
      %v1485 = vunpack.c.l.b16 %v1248
      %v1486 = vunpack.c.h.b16 %v1248
      %v1487 = vunpack.c.l.b16 %v1249
      %v1488 = vunpack.c.h.b16 %v1249
      %v1489 = vunpack.c.l.b16 %v1250
      %v1490 = vunpack.c.h.b16 %v1250
      %v1491 = vunpack.c.l.b16 %v1251
      %v1492 = vunpack.c.h.b16 %v1251
      %v1493 = vunpack.c.l.b16 %v1252
      %v1494 = vunpack.c.h.b16 %v1252
      %v1495 = vunpack.c.l.b16 %v1253
      %v1496 = vunpack.c.h.b16 %v1253
      %v1497 = vunpack.c.l.b16 %v1254
      %v1498 = vunpack.c.h.b16 %v1254
      %v1499 = vunpack.c.l.b16 %v1255
      %v1500 = vunpack.c.h.b16 %v1255
      %v1501 = vunpack.c.l.b16 %v1256
      %v1502 = vunpack.c.h.b16 %v1256
      %v1503 = vunpack.c.l.b16 %v1257
      %v1504 = vunpack.c.h.b16 %v1257
      %v1505 = vunpack.c.l.b16 %v1258
      %v1506 = vunpack.c.h.b16 %v1258
      %v1507 = vunpack.c.l.b16 %v1259
      %v1508 = vunpack.c.h.b16 %v1259
      %v1509 = vunpack.c.l.b16 %v1260
      %v1510 = vunpack.c.h.b16 %v1260
      %v1511 = vunpack.c.l.b16 %v1261
      %v1512 = vunpack.c.h.b16 %v1261
      %v1513 = vunpack.c.l.b16 %v1262
      %v1514 = vunpack.c.h.b16 %v1262
      %v1515 = vpack.c.b16 %v1357, %v1355
      %v1516 = vpack.c.b16 %v1358, %v1356
      %v1517 = vpack.c.b16 %v1361, %v1359
      %v1518 = vpack.c.b16 %v1362, %v1360
      %v1519 = vpack.c.b16 %v1365, %v1363
      %v1520 = vpack.c.b16 %v1366, %v1364
      %v1521 = vpack.c.b16 %v1369, %v1367
      %v1522 = vpack.c.b16 %v1370, %v1368
      %v1523 = vpack.c.b16 %v1373, %v1371
      %v1524 = vpack.c.b16 %v1374, %v1372
      %v1525 = vpack.c.b16 %v1377, %v1375
      %v1526 = vpack.c.b16 %v1378, %v1376
      %v1527 = vpack.c.b16 %v1381, %v1379
      %v1528 = vpack.c.b16 %v1382, %v1380
      %v1529 = vpack.c.b16 %v1385, %v1383
      %v1530 = vpack.c.b16 %v1386, %v1384
      %v1531 = vpack.c.b16 %v1389, %v1387
      %v1532 = vpack.c.b16 %v1390, %v1388
      %v1533 = vpack.c.b16 %v1393, %v1391
      %v1534 = vpack.c.b16 %v1394, %v1392
      %v1535 = vpack.c.b16 %v1397, %v1395
      %v1536 = vpack.c.b16 %v1398, %v1396
      %v1537 = vpack.c.b16 %v1401, %v1399
      %v1538 = vpack.c.b16 %v1402, %v1400
      %v1539 = vpack.c.b16 %v1405, %v1403
      %v1540 = vpack.c.b16 %v1406, %v1404
      %v1541 = vpack.c.b16 %v1409, %v1407
      %v1542 = vpack.c.b16 %v1410, %v1408
      %v1543 = vpack.c.b16 %v1413, %v1411
      %v1544 = vpack.c.b16 %v1414, %v1412
      %v1545 = vpack.c.b16 %v1417, %v1415
      %v1546 = vpack.c.b16 %v1418, %v1416
      %v1547 = vpack.c.b16 %v1421, %v1419
      %v1548 = vpack.c.b16 %v1422, %v1420
      %v1549 = vpack.c.b16 %v1425, %v1423
      %v1550 = vpack.c.b16 %v1426, %v1424
      %v1551 = vpack.c.b16 %v1429, %v1427
      %v1552 = vpack.c.b16 %v1430, %v1428
      %v1553 = vpack.c.b16 %v1433, %v1431
      %v1554 = vpack.c.b16 %v1434, %v1432
      %v1555 = vpack.c.b16 %v1437, %v1435
      %v1556 = vpack.c.b16 %v1438, %v1436
      %v1557 = vpack.c.b16 %v1441, %v1439
      %v1558 = vpack.c.b16 %v1442, %v1440
      %v1559 = vpack.c.b16 %v1445, %v1443
      %v1560 = vpack.c.b16 %v1446, %v1444
      %v1561 = vpack.c.b16 %v1449, %v1447
      %v1562 = vpack.c.b16 %v1450, %v1448
      %v1563 = vpack.c.b16 %v1453, %v1451
      %v1564 = vpack.c.b16 %v1454, %v1452
      %v1565 = vpack.c.b16 %v1457, %v1455
      %v1566 = vpack.c.b16 %v1458, %v1456
      %v1567 = vpack.c.b16 %v1461, %v1459
      %v1568 = vpack.c.b16 %v1462, %v1460
      %v1569 = vpack.c.b16 %v1465, %v1463
      %v1570 = vpack.c.b16 %v1466, %v1464
      %v1571 = vpack.c.b16 %v1469, %v1467
      %v1572 = vpack.c.b16 %v1470, %v1468
      %v1573 = vpack.c.b16 %v1473, %v1471
      %v1574 = vpack.c.b16 %v1474, %v1472
      %v1575 = vpack.c.b16 %v1477, %v1475
      %v1576 = vpack.c.b16 %v1478, %v1476
      %v1577 = vpack.c.b16 %v1481, %v1479
      %v1578 = vpack.c.b16 %v1482, %v1480
      %v1579 = vpack.c.b16 %v1485, %v1483
      %v1580 = vpack.c.b16 %v1486, %v1484
      %v1581 = vpack.c.b16 %v1489, %v1487
      %v1582 = vpack.c.b16 %v1490, %v1488
      %v1583 = vpack.c.b16 %v1493, %v1491
      %v1584 = vpack.c.b16 %v1494, %v1492
      %v1585 = vpack.c.b16 %v1497, %v1495
      %v1586 = vpack.c.b16 %v1498, %v1496
      %v1587 = vpack.c.b16 %v1501, %v1499
      %v1588 = vpack.c.b16 %v1502, %v1500
      %v1589 = vpack.c.b16 %v1505, %v1503
      %v1590 = vpack.c.b16 %v1506, %v1504
      %v1591 = vpack.c.b16 %v1509, %v1507
      %v1592 = vpack.c.b16 %v1510, %v1508
      %v1593 = vpack.c.b16 %v1513, %v1511
      %v1594 = vpack.c.b16 %v1514, %v1512
      %1675 = vmatprep.subr.bf16.mxu0 %v1530
      %1676 = vmatpush1.bf16.msra.mxu0 %v1529
      %1677 = vmatprep.subr.bf16.mxu0 %v1528
      %1678 = vmatpush1.bf16.msra.mxu0 %v1527
      %1679 = vmatprep.subr.bf16.mxu0 %v1526
      %1680 = vmatpush1.bf16.msra.mxu0 %v1525
      %1681 = vmatprep.subr.bf16.mxu0 %v1524
      %1682 = vmatpush1.bf16.msra.mxu0 %v1523
      %1683 = vmatprep.subr.bf16.mxu0 %v1522
      %1684 = vmatpush1.bf16.msra.mxu0 %v1521
      %1685 = vmatprep.subr.bf16.mxu0 %v1520
      %1686 = vmatpush1.bf16.msra.mxu0 %v1519
      %1687 = vmatprep.subr.bf16.mxu0 %v1518
      %1688 = vmatpush1.bf16.msra.mxu0 %v1517
      %1689 = vmatprep.subr.bf16.mxu0 %v1516
      %1690 = vmatpush1.bf16.msra.mxu0 %v1515
      %1691 = vmatprep.subr.bf16.mxu0 %v1546
      %1692 = vmatpush2.bf16.msra.mxu0 %v1545
      %1693 = vmatprep.subr.bf16.mxu0 %v1544
      %1694 = vmatpush2.bf16.msra.mxu0 %v1543
      %1695 = vmatprep.subr.bf16.mxu0 %v1542
      %1696 = vmatpush2.bf16.msra.mxu0 %v1541
      %1697 = vmatprep.subr.bf16.mxu0 %v1540
      %1698 = vmatpush2.bf16.msra.mxu0 %v1539
      %1699 = vmatprep.subr.bf16.mxu0 %v1538
      %1700 = vmatpush2.bf16.msra.mxu0 %v1537
      %1701 = vmatprep.subr.bf16.mxu0 %v1536
      %1702 = vmatpush2.bf16.msra.mxu0 %v1535
      %1703 = vmatprep.subr.bf16.mxu0 %v1534
      %1704 = vmatpush2.bf16.msra.mxu0 %v1533
      %1705 = vmatprep.subr.bf16.mxu0 %v1532
      %1706 = vmatpush2.bf16.msra.mxu0 %v1531
      %1707 = vmatprep.mubr.bf16.mxu0 %v1144
      %1708 = vmatmul.mubr.bf16.gmra.mxu0 %v1143
      %v1709 = vpop.f32.mrf.mxu0
      %v1710 = vadd.f32 %v1268, %v1709
      %v1711 = vpop.f32.mrf.mxu0
      %v1712 = vadd.f32 %v1272, %v1711
      %v1713 = vpop.f32.mrf.mxu0
      %v1714 = vadd.f32 %v1268, %v1713
      %v1715 = vpop.f32.mrf.mxu0
      %v1716 = vadd.f32 %v1272, %v1715
      %1717 = vmatprep.mubr.bf16.mxu0 %v1149
      %1718 = vmatmul.mubr.bf16.gmra.mxu0 %v1148
      %v1719 = vpop.f32.mrf.mxu0
      %v1720 = vadd.f32 %v1268, %v1719
      %v1721 = vpop.f32.mrf.mxu0
      %v1722 = vadd.f32 %v1272, %v1721
      %v1723 = vpop.f32.mrf.mxu0
      %v1724 = vadd.f32 %v1268, %v1723
      %v1725 = vpop.f32.mrf.mxu0
      %v1726 = vadd.f32 %v1272, %v1725
      %1727 = vmatprep.mubr.bf16.mxu0 %v1154
      %1728 = vmatmul.mubr.bf16.gmra.mxu0 %v1153
      %v1729 = vpop.f32.mrf.mxu0
      %v1730 = vadd.f32 %v1268, %v1729
      %v1731 = vpop.f32.mrf.mxu0
      %v1732 = vadd.f32 %v1272, %v1731
      %v1733 = vpop.f32.mrf.mxu0
      %v1734 = vadd.f32 %v1268, %v1733
      %v1735 = vpop.f32.mrf.mxu0
      %v1736 = vadd.f32 %v1272, %v1735
      %1737 = vmatprep.mubr.bf16.mxu0 %v1159
      %1738 = vmatmul.mubr.bf16.gmra.mxu0 %v1158
      %v1739 = vpop.f32.mrf.mxu0
      %v1740 = vadd.f32 %v1268, %v1739
      %v1741 = vpop.f32.mrf.mxu0
      %v1742 = vadd.f32 %v1272, %v1741
      %v1743 = vpop.f32.mrf.mxu0
      %v1744 = vadd.f32 %v1268, %v1743
      %v1745 = vpop.f32.mrf.mxu0
      %v1746 = vadd.f32 %v1272, %v1745
      %1747 = vmatprep.mubr.bf16.mxu0 %v1164
      %1748 = vmatmul.mubr.bf16.gmra.mxu0 %v1163
      %v1749 = vpop.f32.mrf.mxu0
      %v1750 = vadd.f32 %v1268, %v1749
      %v1751 = vpop.f32.mrf.mxu0
      %v1752 = vadd.f32 %v1272, %v1751
      %v1753 = vpop.f32.mrf.mxu0
      %v1754 = vadd.f32 %v1268, %v1753
      %v1755 = vpop.f32.mrf.mxu0
      %v1756 = vadd.f32 %v1272, %v1755
      %1757 = vmatprep.mubr.bf16.mxu0 %v1169
      %1758 = vmatmul.mubr.bf16.gmra.mxu0 %v1168
      %v1759 = vpop.f32.mrf.mxu0
      %v1760 = vadd.f32 %v1268, %v1759
      %v1761 = vpop.f32.mrf.mxu0
      %v1762 = vadd.f32 %v1272, %v1761
      %v1763 = vpop.f32.mrf.mxu0
      %v1764 = vadd.f32 %v1268, %v1763
      %v1765 = vpop.f32.mrf.mxu0
      %v1766 = vadd.f32 %v1272, %v1765
      %1767 = vmatprep.mubr.bf16.mxu0 %v1174
      %1768 = vmatmul.mubr.bf16.gmra.mxu0 %v1173
      %v1769 = vpop.f32.mrf.mxu0
      %v1770 = vadd.f32 %v1268, %v1769
      %v1771 = vpop.f32.mrf.mxu0
      %v1772 = vadd.f32 %v1272, %v1771
      %v1773 = vpop.f32.mrf.mxu0
      %v1774 = vadd.f32 %v1268, %v1773
      %v1775 = vpop.f32.mrf.mxu0
      %v1776 = vadd.f32 %v1272, %v1775
      %1777 = vmatprep.mubr.bf16.mxu0 %v1179
      %1778 = vmatmul.mubr.bf16.gmra.mxu0 %v1178
      %v1779 = vpop.f32.mrf.mxu0
      %v1780 = vadd.f32 %v1268, %v1779
      %v1781 = vpop.f32.mrf.mxu0
      %v1782 = vadd.f32 %v1272, %v1781
      %v1783 = vpop.f32.mrf.mxu0
      %v1784 = vadd.f32 %v1268, %v1783
      %v1785 = vpop.f32.mrf.mxu0
      %v1786 = vadd.f32 %v1272, %v1785
      %1787 = vdwg.mxu0
      %1788 = vmatprep.subr.bf16.mxu0 %v1562
      %1789 = vmatpush1.bf16.msra.mxu0 %v1561
      %1790 = vmatprep.subr.bf16.mxu0 %v1560
      %1791 = vmatpush1.bf16.msra.mxu0 %v1559
      %1792 = vmatprep.subr.bf16.mxu0 %v1558
      %1793 = vmatpush1.bf16.msra.mxu0 %v1557
      %1794 = vmatprep.subr.bf16.mxu0 %v1556
      %1795 = vmatpush1.bf16.msra.mxu0 %v1555
      %1796 = vmatprep.subr.bf16.mxu0 %v1554
      %1797 = vmatpush1.bf16.msra.mxu0 %v1553
      %1798 = vmatprep.subr.bf16.mxu0 %v1552
      %1799 = vmatpush1.bf16.msra.mxu0 %v1551
      %1800 = vmatprep.subr.bf16.mxu0 %v1550
      %1801 = vmatpush1.bf16.msra.mxu0 %v1549
      %1802 = vmatprep.subr.bf16.mxu0 %v1548
      %1803 = vmatpush1.bf16.msra.mxu0 %v1547
      %1804 = vmatprep.subr.bf16.mxu0 %v1578
      %1805 = vmatpush2.bf16.msra.mxu0 %v1577
      %1806 = vmatprep.subr.bf16.mxu0 %v1576
      %1807 = vmatpush2.bf16.msra.mxu0 %v1575
      %1808 = vmatprep.subr.bf16.mxu0 %v1574
      %1809 = vmatpush2.bf16.msra.mxu0 %v1573
      %1810 = vmatprep.subr.bf16.mxu0 %v1572
      %1811 = vmatpush2.bf16.msra.mxu0 %v1571
      %1812 = vmatprep.subr.bf16.mxu0 %v1570
      %1813 = vmatpush2.bf16.msra.mxu0 %v1569
      %1814 = vmatprep.subr.bf16.mxu0 %v1568
      %1815 = vmatpush2.bf16.msra.mxu0 %v1567
      %1816 = vmatprep.subr.bf16.mxu0 %v1566
      %1817 = vmatpush2.bf16.msra.mxu0 %v1565
      %1818 = vmatprep.subr.bf16.mxu0 %v1564
      %1819 = vmatpush2.bf16.msra.mxu0 %v1563
      %1820 = vmatprep.mubr.bf16.mxu0 %v1146
      %1821 = vmatmul.mubr.bf16.gmra.mxu0 %v1145
      %v1822 = vpop.f32.mrf.mxu0
      %v1823 = vadd.f32 %v1710, %v1822
      %v1824 = vpop.f32.mrf.mxu0
      %v1825 = vadd.f32 %v1712, %v1824
      %v1826 = vpop.f32.mrf.mxu0
      %v1827 = vadd.f32 %v1714, %v1826
      %v1828 = vpop.f32.mrf.mxu0
      %v1829 = vadd.f32 %v1716, %v1828
      %1830 = vmatprep.mubr.bf16.mxu0 %v1151
      %1831 = vmatmul.mubr.bf16.gmra.mxu0 %v1150
      %v1832 = vpop.f32.mrf.mxu0
      %v1833 = vadd.f32 %v1720, %v1832
      %v1834 = vpop.f32.mrf.mxu0
      %v1835 = vadd.f32 %v1722, %v1834
      %v1836 = vpop.f32.mrf.mxu0
      %v1837 = vadd.f32 %v1724, %v1836
      %v1838 = vpop.f32.mrf.mxu0
      %v1839 = vadd.f32 %v1726, %v1838
      %1840 = vmatprep.mubr.bf16.mxu0 %v1156
      %1841 = vmatmul.mubr.bf16.gmra.mxu0 %v1155
      %v1842 = vpop.f32.mrf.mxu0
      %v1843 = vadd.f32 %v1730, %v1842
      %v1844 = vpop.f32.mrf.mxu0
      %v1845 = vadd.f32 %v1732, %v1844
      %v1846 = vpop.f32.mrf.mxu0
      %v1847 = vadd.f32 %v1734, %v1846
      %v1848 = vpop.f32.mrf.mxu0
      %v1849 = vadd.f32 %v1736, %v1848
      %1850 = vmatprep.mubr.bf16.mxu0 %v1161
      %1851 = vmatmul.mubr.bf16.gmra.mxu0 %v1160
      %v1852 = vpop.f32.mrf.mxu0
      %v1853 = vadd.f32 %v1740, %v1852
      %v1854 = vpop.f32.mrf.mxu0
      %v1855 = vadd.f32 %v1742, %v1854
      %v1856 = vpop.f32.mrf.mxu0
      %v1857 = vadd.f32 %v1744, %v1856
      %v1858 = vpop.f32.mrf.mxu0
      %v1859 = vadd.f32 %v1746, %v1858
      %1860 = vmatprep.mubr.bf16.mxu0 %v1166
      %1861 = vmatmul.mubr.bf16.gmra.mxu0 %v1165
      %v1862 = vpop.f32.mrf.mxu0
      %v1863 = vadd.f32 %v1750, %v1862
      %v1864 = vpop.f32.mrf.mxu0
      %v1865 = vadd.f32 %v1752, %v1864
      %v1866 = vpop.f32.mrf.mxu0
      %v1867 = vadd.f32 %v1754, %v1866
      %v1868 = vpop.f32.mrf.mxu0
      %v1869 = vadd.f32 %v1756, %v1868
      %1870 = vmatprep.mubr.bf16.mxu0 %v1171
      %1871 = vmatmul.mubr.bf16.gmra.mxu0 %v1170
      %v1872 = vpop.f32.mrf.mxu0
      %v1873 = vadd.f32 %v1760, %v1872
      %v1874 = vpop.f32.mrf.mxu0
      %v1875 = vadd.f32 %v1762, %v1874
      %v1876 = vpop.f32.mrf.mxu0
      %v1877 = vadd.f32 %v1764, %v1876
      %v1878 = vpop.f32.mrf.mxu0
      %v1879 = vadd.f32 %v1766, %v1878
      %1880 = vmatprep.mubr.bf16.mxu0 %v1176
      %1881 = vmatmul.mubr.bf16.gmra.mxu0 %v1175
      %v1882 = vpop.f32.mrf.mxu0
      %v1883 = vadd.f32 %v1770, %v1882
      %v1884 = vpop.f32.mrf.mxu0
      %v1885 = vadd.f32 %v1772, %v1884
      %v1886 = vpop.f32.mrf.mxu0
      %v1887 = vadd.f32 %v1774, %v1886
      %v1888 = vpop.f32.mrf.mxu0
      %v1889 = vadd.f32 %v1776, %v1888
      %1890 = vmatprep.mubr.bf16.mxu0 %v1181
      %1891 = vmatmul.mubr.bf16.gmra.mxu0 %v1180
      %v1892 = vpop.f32.mrf.mxu0
      %v1893 = vadd.f32 %v1780, %v1892
      %v1894 = vpop.f32.mrf.mxu0
      %v1895 = vadd.f32 %v1782, %v1894
      %v1896 = vpop.f32.mrf.mxu0
      %v1897 = vadd.f32 %v1784, %v1896
      %v1898 = vpop.f32.mrf.mxu0
      %v1899 = vadd.f32 %v1786, %v1898
      %1900 = vdwg.mxu0
      %1901 = vmatprep.subr.bf16.mxu0 %v1594
      %1902 = vmatpush1.bf16.msra.mxu0 %v1593
      %1903 = vmatprep.subr.bf16.mxu0 %v1592
      %1904 = vmatpush1.bf16.msra.mxu0 %v1591
      %1905 = vmatprep.subr.bf16.mxu0 %v1590
      %1906 = vmatpush1.bf16.msra.mxu0 %v1589
      %1907 = vmatprep.subr.bf16.mxu0 %v1588
      %1908 = vmatpush1.bf16.msra.mxu0 %v1587
      %1909 = vmatprep.subr.bf16.mxu0 %v1586
      %1910 = vmatpush1.bf16.msra.mxu0 %v1585
      %1911 = vmatprep.subr.bf16.mxu0 %v1584
      %1912 = vmatpush1.bf16.msra.mxu0 %v1583
      %1913 = vmatprep.subr.bf16.mxu0 %v1582
      %1914 = vmatpush1.bf16.msra.mxu0 %v1581
      %1915 = vmatprep.subr.bf16.mxu0 %v1580
      %1916 = vmatpush1.bf16.msra.mxu0 %v1579
      %1917 = vmatprep.subr.bf16.mxu0 0
      %1918 = vmatpush2.bf16.msra.mxu0 0
      %1919 = vmatprep.subr.bf16.mxu0 0
      %1920 = vmatpush2.bf16.msra.mxu0 0
      %1921 = vmatprep.subr.bf16.mxu0 0
      %1922 = vmatpush2.bf16.msra.mxu0 0
      %1923 = vmatprep.subr.bf16.mxu0 0
      %1924 = vmatpush2.bf16.msra.mxu0 0
      %1925 = vmatprep.subr.bf16.mxu0 0
      %1926 = vmatpush2.bf16.msra.mxu0 0
      %1927 = vmatprep.subr.bf16.mxu0 0
      %1928 = vmatpush2.bf16.msra.mxu0 0
      %1929 = vmatprep.subr.bf16.mxu0 0
      %1930 = vmatpush2.bf16.msra.mxu0 0
      %1931 = vmatprep.subr.bf16.mxu0 0
      %1932 = vmatpush2.bf16.msra.mxu0 0
      %1933 = vmatprep.mubr.bf16.mxu0 0
      %1934 = vmatmul.mubr.bf16.gmra.mxu0 %v1147
      %v1935 = vpop.f32.mrf.mxu0
      %v1936 = vadd.f32 %v1823, %v1935
      %v1937 = vpop.f32.mrf.mxu0
      %v1938 = vadd.f32 %v1825, %v1937
      %v1939 = vpop.f32.mrf.mxu0
      %v1940 = vadd.f32 %v1827, %v1939
      %v1941 = vpop.f32.mrf.mxu0
      %v1942 = vadd.f32 %v1829, %v1941
      %1943 = vmatprep.mubr.bf16.mxu0 0
      %1944 = vmatmul.mubr.bf16.gmra.mxu0 %v1152
      %v1945 = vpop.f32.mrf.mxu0
      %v1946 = vadd.f32 %v1833, %v1945
      %v1947 = vpop.f32.mrf.mxu0
      %v1948 = vadd.f32 %v1835, %v1947
      %v1949 = vpop.f32.mrf.mxu0
      %v1950 = vadd.f32 %v1837, %v1949
      %v1951 = vpop.f32.mrf.mxu0
      %v1952 = vadd.f32 %v1839, %v1951
      %1953 = vmatprep.mubr.bf16.mxu0 0
      %1954 = vmatmul.mubr.bf16.gmra.mxu0 %v1157
      %v1955 = vpop.f32.mrf.mxu0
      %v1956 = vadd.f32 %v1843, %v1955
      %v1957 = vpop.f32.mrf.mxu0
      %v1958 = vadd.f32 %v1845, %v1957
      %v1959 = vpop.f32.mrf.mxu0
      %v1960 = vadd.f32 %v1847, %v1959
      %v1961 = vpop.f32.mrf.mxu0
      %v1962 = vadd.f32 %v1849, %v1961
      %1963 = vmatprep.mubr.bf16.mxu0 0
      %1964 = vmatmul.mubr.bf16.gmra.mxu0 %v1162
      %v1965 = vpop.f32.mrf.mxu0
      %v1966 = vadd.f32 %v1853, %v1965
      %v1967 = vpop.f32.mrf.mxu0
      %v1968 = vadd.f32 %v1855, %v1967
      %v1969 = vpop.f32.mrf.mxu0
      %v1970 = vadd.f32 %v1857, %v1969
      %v1971 = vpop.f32.mrf.mxu0
      %v1972 = vadd.f32 %v1859, %v1971
      %1973 = vmatprep.mubr.bf16.mxu0 0
      %1974 = vmatmul.mubr.bf16.gmra.mxu0 %v1167
      %v1975 = vpop.f32.mrf.mxu0
      %v1976 = vadd.f32 %v1863, %v1975
      %v1977 = vpop.f32.mrf.mxu0
      %v1978 = vadd.f32 %v1865, %v1977
      %v1979 = vpop.f32.mrf.mxu0
      %v1980 = vadd.f32 %v1867, %v1979
      %v1981 = vpop.f32.mrf.mxu0
      %v1982 = vadd.f32 %v1869, %v1981
      %1983 = vmatprep.mubr.bf16.mxu0 0
      %1984 = vmatmul.mubr.bf16.gmra.mxu0 %v1172
      %v1985 = vpop.f32.mrf.mxu0
      %v1986 = vadd.f32 %v1873, %v1985
      %v1987 = vpop.f32.mrf.mxu0
      %v1988 = vadd.f32 %v1875, %v1987
      %v1989 = vpop.f32.mrf.mxu0
      %v1990 = vadd.f32 %v1877, %v1989
      %v1991 = vpop.f32.mrf.mxu0
      %v1992 = vadd.f32 %v1879, %v1991
      %1993 = vmatprep.mubr.bf16.mxu0 0
      %1994 = vmatmul.mubr.bf16.gmra.mxu0 %v1177
      %v1995 = vpop.f32.mrf.mxu0
      %v1996 = vadd.f32 %v1883, %v1995
      %v1997 = vpop.f32.mrf.mxu0
      %v1998 = vadd.f32 %v1885, %v1997
      %v1999 = vpop.f32.mrf.mxu0
      %v2000 = vadd.f32 %v1887, %v1999
      %v2001 = vpop.f32.mrf.mxu0
      %v2002 = vadd.f32 %v1889, %v2001
      %2003 = vmatprep.mubr.bf16.mxu0 0
      %2004 = vmatmul.mubr.bf16.gmra.mxu0 %v1182
      %v2005 = vpop.f32.mrf.mxu0
      %v2006 = vadd.f32 %v1893, %v2005
      %v2007 = vpop.f32.mrf.mxu0
      %v2008 = vadd.f32 %v1895, %v2007
      %v2009 = vpop.f32.mrf.mxu0
      %v2010 = vadd.f32 %v1897, %v2009
      %v2011 = vpop.f32.mrf.mxu0
      %v2012 = vadd.f32 %v1899, %v2011
      %2013 = vdwg.mxu0
      %v2014 = vmax.f32 %v1936, 0.0
      %v2015 = vmax.f32 %v1938, 0.0
      %v2016 = vmax.f32 %v1940, 0.0
      %v2017 = vmax.f32 %v1942, 0.0
      %v2018 = vmax.f32 %v1946, 0.0
      %v2019 = vmax.f32 %v1948, 0.0
      %v2020 = vmax.f32 %v1950, 0.0
      %v2021 = vmax.f32 %v1952, 0.0
      %v2022 = vmax.f32 %v1956, 0.0
      %v2023 = vmax.f32 %v1958, 0.0
      %v2024 = vmax.f32 %v1960, 0.0
      %v2025 = vmax.f32 %v1962, 0.0
      %v2026 = vmax.f32 %v1966, 0.0
      %v2027 = vmax.f32 %v1968, 0.0
      %v2028 = vmax.f32 %v1970, 0.0
      %v2029 = vmax.f32 %v1972, 0.0
      %v2030 = vmax.f32 %v1976, 0.0
      %v2031 = vmax.f32 %v1978, 0.0
      %v2032 = vmax.f32 %v1980, 0.0
      %v2033 = vmax.f32 %v1982, 0.0
      %v2034 = vmax.f32 %v1986, 0.0
      %v2035 = vmax.f32 %v1988, 0.0
      %v2036 = vmax.f32 %v1990, 0.0
      %v2037 = vmax.f32 %v1992, 0.0
      %v2038 = vmax.f32 %v1996, 0.0
      %v2039 = vmax.f32 %v1998, 0.0
      %v2040 = vmax.f32 %v2000, 0.0
      %v2041 = vmax.f32 %v2002, 0.0
      %v2042 = vmax.f32 %v2006, 0.0
      %v2043 = vmax.f32 %v2008, 0.0
      %v2044 = vmax.f32 %v2010, 0.0
      %v2045 = vmax.f32 %v2012, 0.0
      %v2046 = vld [vmem:[%s7] sm:$0x3]
      %v2048 = vlaneseq
      %v2049 = vshrl.u32 %v2048, 7
      %v2050 = vsub.s32 0, %v2049
      %v2051 = vrot.slane %v2046, %v2050
      %v2052 = vlaneseq
      %v2053 = vshrl.u32 %v2052, 7
      %v2054 = vsub.s32 1, %v2053
      %v2055 = vrot.slane %v2046, %v2054
      %v2058 = vmul.f32 %v2014, %v2051
      %v2059 = vmul.f32 %v2015, %v2055
      %v2060 = vmul.f32 %v2016, %v2051
      %v2061 = vmul.f32 %v2017, %v2055
      %v2062 = vmul.f32 %v2018, %v2051
      %v2063 = vmul.f32 %v2019, %v2055
      %v2064 = vmul.f32 %v2020, %v2051
      %v2065 = vmul.f32 %v2021, %v2055
      %v2066 = vmul.f32 %v2022, %v2051
      %v2067 = vmul.f32 %v2023, %v2055
      %v2068 = vmul.f32 %v2024, %v2051
      %v2069 = vmul.f32 %v2025, %v2055
      %v2070 = vmul.f32 %v2026, %v2051
      %v2071 = vmul.f32 %v2027, %v2055
      %v2072 = vmul.f32 %v2028, %v2051
      %v2073 = vmul.f32 %v2029, %v2055
      %v2074 = vmul.f32 %v2030, %v2051
      %v2075 = vmul.f32 %v2031, %v2055
      %v2076 = vmul.f32 %v2032, %v2051
      %v2077 = vmul.f32 %v2033, %v2055
      %v2078 = vmul.f32 %v2034, %v2051
      %v2079 = vmul.f32 %v2035, %v2055
      %v2080 = vmul.f32 %v2036, %v2051
      %v2081 = vmul.f32 %v2037, %v2055
      %v2082 = vmul.f32 %v2038, %v2051
      %v2083 = vmul.f32 %v2039, %v2055
      %v2084 = vmul.f32 %v2040, %v2051
      %v2085 = vmul.f32 %v2041, %v2055
      %v2086 = vmul.f32 %v2042, %v2051
      %v2087 = vmul.f32 %v2043, %v2055
      %v2088 = vmul.f32 %v2044, %v2051
      %v2089 = vmul.f32 %v2045, %v2055
      %v2090 = vld [vmem:[%s8] sm:$0x3]
      %v2092 = vlaneseq
      %v2093 = vshrl.u32 %v2092, 7
      %v2094 = vsub.s32 0, %v2093
      %v2095 = vrot.slane %v2090, %v2094
      %v2096 = vlaneseq
      %v2097 = vshrl.u32 %v2096, 7
      %v2098 = vsub.s32 1, %v2097
      %v2099 = vrot.slane %v2090, %v2098
      %v2102 = vadd.f32 %v2058, %v2095
      %v2103 = vadd.f32 %v2059, %v2099
      %v2104 = vadd.f32 %v2060, %v2095
      %v2105 = vadd.f32 %v2061, %v2099
      %v2106 = vadd.f32 %v2062, %v2095
      %v2107 = vadd.f32 %v2063, %v2099
      %v2108 = vadd.f32 %v2064, %v2095
      %v2109 = vadd.f32 %v2065, %v2099
      %v2110 = vadd.f32 %v2066, %v2095
      %v2111 = vadd.f32 %v2067, %v2099
      %v2112 = vadd.f32 %v2068, %v2095
      %v2113 = vadd.f32 %v2069, %v2099
      %v2114 = vadd.f32 %v2070, %v2095
      %v2115 = vadd.f32 %v2071, %v2099
      %v2116 = vadd.f32 %v2072, %v2095
      %v2117 = vadd.f32 %v2073, %v2099
      %v2118 = vadd.f32 %v2074, %v2095
      %v2119 = vadd.f32 %v2075, %v2099
      %v2120 = vadd.f32 %v2076, %v2095
      %v2121 = vadd.f32 %v2077, %v2099
      %v2122 = vadd.f32 %v2078, %v2095
      %v2123 = vadd.f32 %v2079, %v2099
      %v2124 = vadd.f32 %v2080, %v2095
      %v2125 = vadd.f32 %v2081, %v2099
      %v2126 = vadd.f32 %v2082, %v2095
      %v2127 = vadd.f32 %v2083, %v2099
      %v2128 = vadd.f32 %v2084, %v2095
      %v2129 = vadd.f32 %v2085, %v2099
      %v2130 = vadd.f32 %v2086, %v2095
      %v2131 = vadd.f32 %v2087, %v2099
      %v2132 = vadd.f32 %v2088, %v2095
      %v2133 = vadd.f32 %v2089, %v2099
      %v2134 = vpack.c.bf16 %v2104, %v2102
      %v2135 = vpack.c.bf16 %v2105, %v2103
      %v2136 = vpack.c.bf16 %v2108, %v2106
      %v2137 = vpack.c.bf16 %v2109, %v2107
      %v2138 = vpack.c.bf16 %v2112, %v2110
      %v2139 = vpack.c.bf16 %v2113, %v2111
      %v2140 = vpack.c.bf16 %v2116, %v2114
      %v2141 = vpack.c.bf16 %v2117, %v2115
      %v2142 = vpack.c.bf16 %v2120, %v2118
      %v2143 = vpack.c.bf16 %v2121, %v2119
      %v2144 = vpack.c.bf16 %v2124, %v2122
      %v2145 = vpack.c.bf16 %v2125, %v2123
      %v2146 = vpack.c.bf16 %v2128, %v2126
      %v2147 = vpack.c.bf16 %v2129, %v2127
      %v2148 = vpack.c.bf16 %v2132, %v2130
      %v2149 = vpack.c.bf16 %v2133, %v2131
      %v2150 = vld [vmem:[%s9] sm:$0xf]
      %v2151 = vld [vmem:[%s9 + $0x4] sm:$0xf]
      %v2152 = vld [vmem:[%s9 + $0x8] sm:$0xf]
      %v2153 = vld [vmem:[%s9 + $0xc] sm:$0xf]
      %v2154 = vld [vmem:[%s9 + $0x10] sm:$0xf]
      %v2155 = vld [vmem:[%s9 + $0x14] sm:$0xf]
      %v2156 = vld [vmem:[%s9 + $0x18] sm:$0xf]
      %v2157 = vld [vmem:[%s9 + $0x1c] sm:$0xf]
      %v2158 = vld [vmem:[%s9 + $0x20] sm:$0xf]
      %v2159 = vld [vmem:[%s9 + $0x24] sm:$0xf]
      %v2160 = vld [vmem:[%s9 + $0x28] sm:$0xf]
      %v2161 = vld [vmem:[%s9 + $0x2c] sm:$0xf]
      %v2162 = vld [vmem:[%s9 + $0x30] sm:$0xf]
      %v2163 = vld [vmem:[%s9 + $0x34] sm:$0xf]
      %v2164 = vld [vmem:[%s9 + $0x38] sm:$0xf]
      %v2165 = vld [vmem:[%s9 + $0x3c] sm:$0xf]
      %v2166 = vld [vmem:[%s9 + $0x40] sm:$0xf]
      %v2167 = vld [vmem:[%s9 + $0x44] sm:$0xf]
      %v2168 = vld [vmem:[%s9 + $0x48] sm:$0xf]
      %v2169 = vld [vmem:[%s9 + $0x4c] sm:$0xf]
      %v2170 = vld [vmem:[%s10] sm:$0x1]
      %v2172 = vlaneseq
      %v2173 = vshrl.u32 %v2172, 7
      %v2174 = vsub.s32 0, %v2173
      %v2175 = vrot.slane %v2170, %v2174
      %v2197 = vunpack.c.l.b16 %v2150
      %v2198 = vunpack.c.l.b16 %v2151
      %v2199 = vunpack.c.l.b16 %v2152
      %v2200 = vunpack.c.l.b16 %v2153
      %v2201 = vunpack.c.l.b16 %v2154
      %v2202 = vunpack.c.l.b16 %v2155
      %v2203 = vunpack.c.l.b16 %v2156
      %v2204 = vunpack.c.l.b16 %v2157
      %v2205 = vunpack.c.l.b16 %v2158
      %v2206 = vunpack.c.l.b16 %v2159
      %v2207 = vunpack.c.l.b16 %v2160
      %v2208 = vunpack.c.l.b16 %v2161
      %v2209 = vunpack.c.l.b16 %v2162
      %v2210 = vunpack.c.l.b16 %v2163
      %v2211 = vunpack.c.l.b16 %v2164
      %v2212 = vunpack.c.l.b16 %v2165
      %v2213 = vunpack.c.l.b16 %v2166
      %v2214 = vunpack.c.l.b16 %v2167
      %v2215 = vunpack.c.l.b16 %v2168
      %v2216 = vunpack.c.l.b16 %v2169
      %v2217 = vpack.c.b16 %v2198, %v2197
      %v2218 = vpack.c.b16 %v2200, %v2199
      %v2219 = vpack.c.b16 %v2202, %v2201
      %v2220 = vpack.c.b16 %v2204, %v2203
      %v2221 = vpack.c.b16 %v2206, %v2205
      %v2222 = vpack.c.b16 %v2208, %v2207
      %v2223 = vpack.c.b16 %v2210, %v2209
      %v2224 = vpack.c.b16 %v2212, %v2211
      %v2225 = vpack.c.b16 %v2214, %v2213
      %v2226 = vpack.c.b16 %v2216, %v2215
      %v2238 = vsel %vm501, %v2135, 0
      %v2241 = vsel %vm501, %v2137, 0
      %v2244 = vsel %vm501, %v2139, 0
      %v2247 = vsel %vm501, %v2141, 0
      %v2250 = vsel %vm501, %v2143, 0
      %v2253 = vsel %vm501, %v2145, 0
      %v2256 = vsel %vm501, %v2147, 0
      %v2259 = vsel %vm501, %v2149, 0
      %2261 = vmatprep.subr.bf16.mxu0 0
      %2262 = vmatpush1.bf16.msra.mxu0 %v2224
      %2263 = vmatprep.subr.bf16.mxu0 0
      %2264 = vmatpush1.bf16.msra.mxu0 %v2223
      %2265 = vmatprep.subr.bf16.mxu0 0
      %2266 = vmatpush1.bf16.msra.mxu0 %v2222
      %2267 = vmatprep.subr.bf16.mxu0 0
      %2268 = vmatpush1.bf16.msra.mxu0 %v2221
      %2269 = vmatprep.subr.bf16.mxu0 0
      %2270 = vmatpush1.bf16.msra.mxu0 %v2220
      %2271 = vmatprep.subr.bf16.mxu0 0
      %2272 = vmatpush1.bf16.msra.mxu0 %v2219
      %2273 = vmatprep.subr.bf16.mxu0 0
      %2274 = vmatpush1.bf16.msra.mxu0 %v2218
      %2275 = vmatprep.subr.bf16.mxu0 0
      %2276 = vmatpush1.bf16.msra.mxu0 %v2217
      %2277 = vmatprep.subr.bf16.mxu0 0
      %2278 = vmatpush2.bf16.msra.mxu0 0
      %2279 = vmatprep.subr.bf16.mxu0 0
      %2280 = vmatpush2.bf16.msra.mxu0 0
      %2281 = vmatprep.subr.bf16.mxu0 0
      %2282 = vmatpush2.bf16.msra.mxu0 0
      %2283 = vmatprep.subr.bf16.mxu0 0
      %2284 = vmatpush2.bf16.msra.mxu0 0
      %2285 = vmatprep.subr.bf16.mxu0 0
      %2286 = vmatpush2.bf16.msra.mxu0 0
      %2287 = vmatprep.subr.bf16.mxu0 0
      %2288 = vmatpush2.bf16.msra.mxu0 0
      %2289 = vmatprep.subr.bf16.mxu0 0
      %2290 = vmatpush2.bf16.msra.mxu0 %v2226
      %2291 = vmatprep.subr.bf16.mxu0 0
      %2292 = vmatpush2.bf16.msra.mxu0 %v2225
      %2293 = vmatprep.mubr.bf16.mxu0 %v2238
      %2294 = vmatmul.mubr.bf16.gmra.mxu0 %v2134
      %v2295 = vpop.f32.mrf.mxu0
      %v2296 = vadd.f32 %v2175, %v2295
      %v2297 = vpop.f32.mrf.mxu0
      %v2298 = vpop.f32.mrf.mxu0
      %v2299 = vadd.f32 %v2175, %v2298
      %v2300 = vpop.f32.mrf.mxu0
      %2301 = vmatprep.mubr.bf16.mxu0 %v2241
      %2302 = vmatmul.mubr.bf16.gmra.mxu0 %v2136
      %v2303 = vpop.f32.mrf.mxu0
      %v2304 = vadd.f32 %v2175, %v2303
      %v2305 = vpop.f32.mrf.mxu0
      %v2306 = vpop.f32.mrf.mxu0
      %v2307 = vadd.f32 %v2175, %v2306
      %v2308 = vpop.f32.mrf.mxu0
      %2309 = vmatprep.mubr.bf16.mxu0 %v2244
      %2310 = vmatmul.mubr.bf16.gmra.mxu0 %v2138
      %v2311 = vpop.f32.mrf.mxu0
      %v2312 = vadd.f32 %v2175, %v2311
      %v2313 = vpop.f32.mrf.mxu0
      %v2314 = vpop.f32.mrf.mxu0
      %v2315 = vadd.f32 %v2175, %v2314
      %v2316 = vpop.f32.mrf.mxu0
      %2317 = vmatprep.mubr.bf16.mxu0 %v2247
      %2318 = vmatmul.mubr.bf16.gmra.mxu0 %v2140
      %v2319 = vpop.f32.mrf.mxu0
      %v2320 = vadd.f32 %v2175, %v2319
      %v2321 = vpop.f32.mrf.mxu0
      %v2322 = vpop.f32.mrf.mxu0
      %v2323 = vadd.f32 %v2175, %v2322
      %v2324 = vpop.f32.mrf.mxu0
      %2325 = vmatprep.mubr.bf16.mxu0 %v2250
      %2326 = vmatmul.mubr.bf16.gmra.mxu0 %v2142
      %v2327 = vpop.f32.mrf.mxu0
      %v2328 = vadd.f32 %v2175, %v2327
      %v2329 = vpop.f32.mrf.mxu0
      %v2330 = vpop.f32.mrf.mxu0
      %v2331 = vadd.f32 %v2175, %v2330
      %v2332 = vpop.f32.mrf.mxu0
      %2333 = vmatprep.mubr.bf16.mxu0 %v2253
      %2334 = vmatmul.mubr.bf16.gmra.mxu0 %v2144
      %v2335 = vpop.f32.mrf.mxu0
      %v2336 = vadd.f32 %v2175, %v2335
      %v2337 = vpop.f32.mrf.mxu0
      %v2338 = vpop.f32.mrf.mxu0
      %v2339 = vadd.f32 %v2175, %v2338
      %v2340 = vpop.f32.mrf.mxu0
      %2341 = vmatprep.mubr.bf16.mxu0 %v2256
      %2342 = vmatmul.mubr.bf16.gmra.mxu0 %v2146
      %v2343 = vpop.f32.mrf.mxu0
      %v2344 = vadd.f32 %v2175, %v2343
      %v2345 = vpop.f32.mrf.mxu0
      %v2346 = vpop.f32.mrf.mxu0
      %v2347 = vadd.f32 %v2175, %v2346
      %v2348 = vpop.f32.mrf.mxu0
      %2349 = vmatprep.mubr.bf16.mxu0 %v2259
      %2350 = vmatmul.mubr.bf16.gmra.mxu0 %v2148
      %v2351 = vpop.f32.mrf.mxu0
      %v2352 = vadd.f32 %v2175, %v2351
      %v2353 = vpop.f32.mrf.mxu0
      %v2354 = vpop.f32.mrf.mxu0
      %v2355 = vadd.f32 %v2175, %v2354
      %v2356 = vpop.f32.mrf.mxu0
      %2357 = vdwg.mxu0
      %vm2358 = vcmask 64512
      %v2359 = vsel %vm2358, %v2296, -inf
      %2360 = vmax.xlane.f32.xlu0 %v2359
      %v2361 = vpop.xlane.xlu0 %2360
      %v2362 = vsel %vm2358, %v2299, -inf
      %2363 = vmax.xlane.f32.xlu0 %v2362
      %v2364 = vpop.xlane.xlu0 %2363
      %v2365 = vsel %vm2358, %v2304, -inf
      %2366 = vmax.xlane.f32.xlu0 %v2365
      %v2367 = vpop.xlane.xlu0 %2366
      %v2368 = vsel %vm2358, %v2307, -inf
      %2369 = vmax.xlane.f32.xlu0 %v2368
      %v2370 = vpop.xlane.xlu0 %2369
      %v2371 = vsel %vm2358, %v2312, -inf
      %2372 = vmax.xlane.f32.xlu0 %v2371
      %v2373 = vpop.xlane.xlu0 %2372
      %v2374 = vsel %vm2358, %v2315, -inf
      %2375 = vmax.xlane.f32.xlu0 %v2374
      %v2376 = vpop.xlane.xlu0 %2375
      %v2377 = vsel %vm2358, %v2320, -inf
      %2378 = vmax.xlane.f32.xlu0 %v2377
      %v2379 = vpop.xlane.xlu0 %2378
      %v2380 = vsel %vm2358, %v2323, -inf
      %2381 = vmax.xlane.f32.xlu0 %v2380
      %v2382 = vpop.xlane.xlu0 %2381
      %v2383 = vsel %vm2358, %v2328, -inf
      %2384 = vmax.xlane.f32.xlu0 %v2383
      %v2385 = vpop.xlane.xlu0 %2384
      %v2386 = vsel %vm2358, %v2331, -inf
      %2387 = vmax.xlane.f32.xlu0 %v2386
      %v2388 = vpop.xlane.xlu0 %2387
      %v2389 = vsel %vm2358, %v2336, -inf
      %2390 = vmax.xlane.f32.xlu0 %v2389
      %v2391 = vpop.xlane.xlu0 %2390
      %v2392 = vsel %vm2358, %v2339, -inf
      %2393 = vmax.xlane.f32.xlu0 %v2392
      %v2394 = vpop.xlane.xlu0 %2393
      %v2395 = vsel %vm2358, %v2344, -inf
      %2396 = vmax.xlane.f32.xlu0 %v2395
      %v2397 = vpop.xlane.xlu0 %2396
      %v2398 = vsel %vm2358, %v2347, -inf
      %2399 = vmax.xlane.f32.xlu0 %v2398
      %v2400 = vpop.xlane.xlu0 %2399
      %v2401 = vsel %vm2358, %v2352, -inf
      %2402 = vmax.xlane.f32.xlu0 %v2401
      %v2403 = vpop.xlane.xlu0 %2402
      %v2404 = vsel %vm2358, %v2355, -inf
      %2405 = vmax.xlane.f32.xlu0 %v2404
      %v2406 = vpop.xlane.xlu0 %2405
      %v2407 = vlaneseq
      %v2408 = vand.u32 %v2407, 127
      %vm2409 = vcmp.ge.f32.partialorder %v2296, %v2361
      %vm2410 = vcmp.ge.f32.partialorder %v2299, %v2364
      %vm2411 = vcmp.ge.f32.partialorder %v2304, %v2367
      %vm2412 = vcmp.ge.f32.partialorder %v2307, %v2370
      %vm2413 = vcmp.ge.f32.partialorder %v2312, %v2373
      %vm2414 = vcmp.ge.f32.partialorder %v2315, %v2376
      %vm2415 = vcmp.ge.f32.partialorder %v2320, %v2379
      %vm2416 = vcmp.ge.f32.partialorder %v2323, %v2382
      %vm2417 = vcmp.ge.f32.partialorder %v2328, %v2385
      %vm2418 = vcmp.ge.f32.partialorder %v2331, %v2388
      %vm2419 = vcmp.ge.f32.partialorder %v2336, %v2391
      %vm2420 = vcmp.ge.f32.partialorder %v2339, %v2394
      %vm2421 = vcmp.ge.f32.partialorder %v2344, %v2397
      %vm2422 = vcmp.ge.f32.partialorder %v2347, %v2400
      %vm2423 = vcmp.ge.f32.partialorder %v2352, %v2403
      %vm2424 = vcmp.ge.f32.partialorder %v2355, %v2406
      %v2425 = vsel %vm2409, %v2408, 8
      %v2426 = vsel %vm2410, %v2408, 8
      %v2427 = vsel %vm2411, %v2408, 8
      %v2428 = vsel %vm2412, %v2408, 8
      %v2429 = vsel %vm2413, %v2408, 8
      %v2430 = vsel %vm2414, %v2408, 8
      %v2431 = vsel %vm2415, %v2408, 8
      %v2432 = vsel %vm2416, %v2408, 8
      %v2433 = vsel %vm2417, %v2408, 8
      %v2434 = vsel %vm2418, %v2408, 8
      %v2435 = vsel %vm2419, %v2408, 8
      %v2436 = vsel %vm2420, %v2408, 8
      %v2437 = vsel %vm2421, %v2408, 8
      %v2438 = vsel %vm2422, %v2408, 8
      %v2439 = vsel %vm2423, %v2408, 8
      %v2440 = vsel %vm2424, %v2408, 8
      %v2441 = vsel %vm2358, %v2425, 2147483647
      %v2442 = vand.u32 %v2441, 65535
      %v2443 = vshra.s32 %v2441, 16
      %v2444 = vcvt.s32.f32 %v2442
      %v2445 = vcvt.s32.f32 %v2443
      %2446 = vmin.xlane.f32.xlu0 %v2445
      %v2447 = vpop.xlane.xlu0 %2446
      %vm2448 = vcmp.eq.f32.partialorder %v2445, %v2447
      %v2449 = vsel %vm2448, %v2444, inf
      %2450 = vmin.xlane.f32.xlu0 %v2449
      %v2451 = vpop.xlane.xlu0 %2450
      %v2452 = vcvt.f32.s32 %v2451
      %v2453 = vcvt.f32.s32 %v2447
      %v2454 = vshll.u32 %v2453, 16
      %v2455 = vadd.s32 %v2454, %v2452
      %v2456 = vsel %vm2358, %v2426, 2147483647
      %v2457 = vand.u32 %v2456, 65535
      %v2458 = vshra.s32 %v2456, 16
      %v2459 = vcvt.s32.f32 %v2457
      %v2460 = vcvt.s32.f32 %v2458
      %2461 = vmin.xlane.f32.xlu0 %v2460
      %v2462 = vpop.xlane.xlu0 %2461
      %vm2463 = vcmp.eq.f32.partialorder %v2460, %v2462
      %v2464 = vsel %vm2463, %v2459, inf
      %2465 = vmin.xlane.f32.xlu0 %v2464
      %v2466 = vpop.xlane.xlu0 %2465
      %v2467 = vcvt.f32.s32 %v2466
      %v2468 = vcvt.f32.s32 %v2462
      %v2469 = vshll.u32 %v2468, 16
      %v2470 = vadd.s32 %v2469, %v2467
      %v2471 = vsel %vm2358, %v2427, 2147483647
      %v2472 = vand.u32 %v2471, 65535
      %v2473 = vshra.s32 %v2471, 16
      %v2474 = vcvt.s32.f32 %v2472
      %v2475 = vcvt.s32.f32 %v2473
      %2476 = vmin.xlane.f32.xlu0 %v2475
      %v2477 = vpop.xlane.xlu0 %2476
      %vm2478 = vcmp.eq.f32.partialorder %v2475, %v2477
      %v2479 = vsel %vm2478, %v2474, inf
      %2480 = vmin.xlane.f32.xlu0 %v2479
      %v2481 = vpop.xlane.xlu0 %2480
      %v2482 = vcvt.f32.s32 %v2481
      %v2483 = vcvt.f32.s32 %v2477
      %v2484 = vshll.u32 %v2483, 16
      %v2485 = vadd.s32 %v2484, %v2482
      %v2486 = vsel %vm2358, %v2428, 2147483647
      %v2487 = vand.u32 %v2486, 65535
      %v2488 = vshra.s32 %v2486, 16
      %v2489 = vcvt.s32.f32 %v2487
      %v2490 = vcvt.s32.f32 %v2488
      %2491 = vmin.xlane.f32.xlu0 %v2490
      %v2492 = vpop.xlane.xlu0 %2491
      %vm2493 = vcmp.eq.f32.partialorder %v2490, %v2492
      %v2494 = vsel %vm2493, %v2489, inf
      %2495 = vmin.xlane.f32.xlu0 %v2494
      %v2496 = vpop.xlane.xlu0 %2495
      %v2497 = vcvt.f32.s32 %v2496
      %v2498 = vcvt.f32.s32 %v2492
      %v2499 = vshll.u32 %v2498, 16
      %v2500 = vadd.s32 %v2499, %v2497
      %v2501 = vsel %vm2358, %v2429, 2147483647
      %v2502 = vand.u32 %v2501, 65535
      %v2503 = vshra.s32 %v2501, 16
      %v2504 = vcvt.s32.f32 %v2502
      %v2505 = vcvt.s32.f32 %v2503
      %2506 = vmin.xlane.f32.xlu0 %v2505
      %v2507 = vpop.xlane.xlu0 %2506
      %vm2508 = vcmp.eq.f32.partialorder %v2505, %v2507
      %v2509 = vsel %vm2508, %v2504, inf
      %2510 = vmin.xlane.f32.xlu0 %v2509
      %v2511 = vpop.xlane.xlu0 %2510
      %v2512 = vcvt.f32.s32 %v2511
      %v2513 = vcvt.f32.s32 %v2507
      %v2514 = vshll.u32 %v2513, 16
      %v2515 = vadd.s32 %v2514, %v2512
      %v2516 = vsel %vm2358, %v2430, 2147483647
      %v2517 = vand.u32 %v2516, 65535
      %v2518 = vshra.s32 %v2516, 16
      %v2519 = vcvt.s32.f32 %v2517
      %v2520 = vcvt.s32.f32 %v2518
      %2521 = vmin.xlane.f32.xlu0 %v2520
      %v2522 = vpop.xlane.xlu0 %2521
      %vm2523 = vcmp.eq.f32.partialorder %v2520, %v2522
      %v2524 = vsel %vm2523, %v2519, inf
      %2525 = vmin.xlane.f32.xlu0 %v2524
      %v2526 = vpop.xlane.xlu0 %2525
      %v2527 = vcvt.f32.s32 %v2526
      %v2528 = vcvt.f32.s32 %v2522
      %v2529 = vshll.u32 %v2528, 16
      %v2530 = vadd.s32 %v2529, %v2527
      %v2531 = vsel %vm2358, %v2431, 2147483647
      %v2532 = vand.u32 %v2531, 65535
      %v2533 = vshra.s32 %v2531, 16
      %v2534 = vcvt.s32.f32 %v2532
      %v2535 = vcvt.s32.f32 %v2533
      %2536 = vmin.xlane.f32.xlu0 %v2535
      %v2537 = vpop.xlane.xlu0 %2536
      %vm2538 = vcmp.eq.f32.partialorder %v2535, %v2537
      %v2539 = vsel %vm2538, %v2534, inf
      %2540 = vmin.xlane.f32.xlu0 %v2539
      %v2541 = vpop.xlane.xlu0 %2540
      %v2542 = vcvt.f32.s32 %v2541
      %v2543 = vcvt.f32.s32 %v2537
      %v2544 = vshll.u32 %v2543, 16
      %v2545 = vadd.s32 %v2544, %v2542
      %v2546 = vsel %vm2358, %v2432, 2147483647
      %v2547 = vand.u32 %v2546, 65535
      %v2548 = vshra.s32 %v2546, 16
      %v2549 = vcvt.s32.f32 %v2547
      %v2550 = vcvt.s32.f32 %v2548
      %2551 = vmin.xlane.f32.xlu0 %v2550
      %v2552 = vpop.xlane.xlu0 %2551
      %vm2553 = vcmp.eq.f32.partialorder %v2550, %v2552
      %v2554 = vsel %vm2553, %v2549, inf
      %2555 = vmin.xlane.f32.xlu0 %v2554
      %v2556 = vpop.xlane.xlu0 %2555
      %v2557 = vcvt.f32.s32 %v2556
      %v2558 = vcvt.f32.s32 %v2552
      %v2559 = vshll.u32 %v2558, 16
      %v2560 = vadd.s32 %v2559, %v2557
      %v2561 = vsel %vm2358, %v2433, 2147483647
      %v2562 = vand.u32 %v2561, 65535
      %v2563 = vshra.s32 %v2561, 16
      %v2564 = vcvt.s32.f32 %v2562
      %v2565 = vcvt.s32.f32 %v2563
      %2566 = vmin.xlane.f32.xlu0 %v2565
      %v2567 = vpop.xlane.xlu0 %2566
      %vm2568 = vcmp.eq.f32.partialorder %v2565, %v2567
      %v2569 = vsel %vm2568, %v2564, inf
      %2570 = vmin.xlane.f32.xlu0 %v2569
      %v2571 = vpop.xlane.xlu0 %2570
      %v2572 = vcvt.f32.s32 %v2571
      %v2573 = vcvt.f32.s32 %v2567
      %v2574 = vshll.u32 %v2573, 16
      %v2575 = vadd.s32 %v2574, %v2572
      %v2576 = vsel %vm2358, %v2434, 2147483647
      %v2577 = vand.u32 %v2576, 65535
      %v2578 = vshra.s32 %v2576, 16
      %v2579 = vcvt.s32.f32 %v2577
      %v2580 = vcvt.s32.f32 %v2578
      %2581 = vmin.xlane.f32.xlu0 %v2580
      %v2582 = vpop.xlane.xlu0 %2581
      %vm2583 = vcmp.eq.f32.partialorder %v2580, %v2582
      %v2584 = vsel %vm2583, %v2579, inf
      %2585 = vmin.xlane.f32.xlu0 %v2584
      %v2586 = vpop.xlane.xlu0 %2585
      %v2587 = vcvt.f32.s32 %v2586
      %v2588 = vcvt.f32.s32 %v2582
      %v2589 = vshll.u32 %v2588, 16
      %v2590 = vadd.s32 %v2589, %v2587
      %v2591 = vsel %vm2358, %v2435, 2147483647
      %v2592 = vand.u32 %v2591, 65535
      %v2593 = vshra.s32 %v2591, 16
      %v2594 = vcvt.s32.f32 %v2592
      %v2595 = vcvt.s32.f32 %v2593
      %2596 = vmin.xlane.f32.xlu0 %v2595
      %v2597 = vpop.xlane.xlu0 %2596
      %vm2598 = vcmp.eq.f32.partialorder %v2595, %v2597
      %v2599 = vsel %vm2598, %v2594, inf
      %2600 = vmin.xlane.f32.xlu0 %v2599
      %v2601 = vpop.xlane.xlu0 %2600
      %v2602 = vcvt.f32.s32 %v2601
      %v2603 = vcvt.f32.s32 %v2597
      %v2604 = vshll.u32 %v2603, 16
      %v2605 = vadd.s32 %v2604, %v2602
      %v2606 = vsel %vm2358, %v2436, 2147483647
      %v2607 = vand.u32 %v2606, 65535
      %v2608 = vshra.s32 %v2606, 16
      %v2609 = vcvt.s32.f32 %v2607
      %v2610 = vcvt.s32.f32 %v2608
      %2611 = vmin.xlane.f32.xlu0 %v2610
      %v2612 = vpop.xlane.xlu0 %2611
      %vm2613 = vcmp.eq.f32.partialorder %v2610, %v2612
      %v2614 = vsel %vm2613, %v2609, inf
      %2615 = vmin.xlane.f32.xlu0 %v2614
      %v2616 = vpop.xlane.xlu0 %2615
      %v2617 = vcvt.f32.s32 %v2616
      %v2618 = vcvt.f32.s32 %v2612
      %v2619 = vshll.u32 %v2618, 16
      %v2620 = vadd.s32 %v2619, %v2617
      %v2621 = vsel %vm2358, %v2437, 2147483647
      %v2622 = vand.u32 %v2621, 65535
      %v2623 = vshra.s32 %v2621, 16
      %v2624 = vcvt.s32.f32 %v2622
      %v2625 = vcvt.s32.f32 %v2623
      %2626 = vmin.xlane.f32.xlu0 %v2625
      %v2627 = vpop.xlane.xlu0 %2626
      %vm2628 = vcmp.eq.f32.partialorder %v2625, %v2627
      %v2629 = vsel %vm2628, %v2624, inf
      %2630 = vmin.xlane.f32.xlu0 %v2629
      %v2631 = vpop.xlane.xlu0 %2630
      %v2632 = vcvt.f32.s32 %v2631
      %v2633 = vcvt.f32.s32 %v2627
      %v2634 = vshll.u32 %v2633, 16
      %v2635 = vadd.s32 %v2634, %v2632
      %v2636 = vsel %vm2358, %v2438, 2147483647
      %v2637 = vand.u32 %v2636, 65535
      %v2638 = vshra.s32 %v2636, 16
      %v2639 = vcvt.s32.f32 %v2637
      %v2640 = vcvt.s32.f32 %v2638
      %2641 = vmin.xlane.f32.xlu0 %v2640
      %v2642 = vpop.xlane.xlu0 %2641
      %vm2643 = vcmp.eq.f32.partialorder %v2640, %v2642
      %v2644 = vsel %vm2643, %v2639, inf
      %2645 = vmin.xlane.f32.xlu0 %v2644
      %v2646 = vpop.xlane.xlu0 %2645
      %v2647 = vcvt.f32.s32 %v2646
      %v2648 = vcvt.f32.s32 %v2642
      %v2649 = vshll.u32 %v2648, 16
      %v2650 = vadd.s32 %v2649, %v2647
      %v2651 = vsel %vm2358, %v2439, 2147483647
      %v2652 = vand.u32 %v2651, 65535
      %v2653 = vshra.s32 %v2651, 16
      %v2654 = vcvt.s32.f32 %v2652
      %v2655 = vcvt.s32.f32 %v2653
      %2656 = vmin.xlane.f32.xlu0 %v2655
      %v2657 = vpop.xlane.xlu0 %2656
      %vm2658 = vcmp.eq.f32.partialorder %v2655, %v2657
      %v2659 = vsel %vm2658, %v2654, inf
      %2660 = vmin.xlane.f32.xlu0 %v2659
      %v2661 = vpop.xlane.xlu0 %2660
      %v2662 = vcvt.f32.s32 %v2661
      %v2663 = vcvt.f32.s32 %v2657
      %v2664 = vshll.u32 %v2663, 16
      %v2665 = vadd.s32 %v2664, %v2662
      %v2666 = vsel %vm2358, %v2440, 2147483647
      %v2667 = vand.u32 %v2666, 65535
      %v2668 = vshra.s32 %v2666, 16
      %v2669 = vcvt.s32.f32 %v2667
      %v2670 = vcvt.s32.f32 %v2668
      %2671 = vmin.xlane.f32.xlu0 %v2670
      %v2672 = vpop.xlane.xlu0 %2671
      %vm2673 = vcmp.eq.f32.partialorder %v2670, %v2672
      %v2674 = vsel %vm2673, %v2669, inf
      %2675 = vmin.xlane.f32.xlu0 %v2674
      %v2676 = vpop.xlane.xlu0 %2675
      %v2677 = vcvt.f32.s32 %v2676
      %v2678 = vcvt.f32.s32 %v2672
      %v2679 = vshll.u32 %v2678, 16
      %v2680 = vadd.s32 %v2679, %v2677
      %vm2681 = vcmask 130112
      %v2682 = vsel %vm2681, %v2296, -inf
      %2683 = vmax.xlane.f32.xlu0 %v2682
      %v2684 = vpop.xlane.xlu0 %2683
      %v2685 = vsel %vm2681, %v2299, -inf
      %2686 = vmax.xlane.f32.xlu0 %v2685
      %v2687 = vpop.xlane.xlu0 %2686
      %v2688 = vsel %vm2681, %v2304, -inf
      %2689 = vmax.xlane.f32.xlu0 %v2688
      %v2690 = vpop.xlane.xlu0 %2689
      %v2691 = vsel %vm2681, %v2307, -inf
      %2692 = vmax.xlane.f32.xlu0 %v2691
      %v2693 = vpop.xlane.xlu0 %2692
      %v2694 = vsel %vm2681, %v2312, -inf
      %2695 = vmax.xlane.f32.xlu0 %v2694
      %v2696 = vpop.xlane.xlu0 %2695
      %v2697 = vsel %vm2681, %v2315, -inf
      %2698 = vmax.xlane.f32.xlu0 %v2697
      %v2699 = vpop.xlane.xlu0 %2698
      %v2700 = vsel %vm2681, %v2320, -inf
      %2701 = vmax.xlane.f32.xlu0 %v2700
      %v2702 = vpop.xlane.xlu0 %2701
      %v2703 = vsel %vm2681, %v2323, -inf
      %2704 = vmax.xlane.f32.xlu0 %v2703
      %v2705 = vpop.xlane.xlu0 %2704
      %v2706 = vsel %vm2681, %v2328, -inf
      %2707 = vmax.xlane.f32.xlu0 %v2706
      %v2708 = vpop.xlane.xlu0 %2707
      %v2709 = vsel %vm2681, %v2331, -inf
      %2710 = vmax.xlane.f32.xlu0 %v2709
      %v2711 = vpop.xlane.xlu0 %2710
      %v2712 = vsel %vm2681, %v2336, -inf
      %2713 = vmax.xlane.f32.xlu0 %v2712
      %v2714 = vpop.xlane.xlu0 %2713
      %v2715 = vsel %vm2681, %v2339, -inf
      %2716 = vmax.xlane.f32.xlu0 %v2715
      %v2717 = vpop.xlane.xlu0 %2716
      %v2718 = vsel %vm2681, %v2344, -inf
      %2719 = vmax.xlane.f32.xlu0 %v2718
      %v2720 = vpop.xlane.xlu0 %2719
      %v2721 = vsel %vm2681, %v2347, -inf
      %2722 = vmax.xlane.f32.xlu0 %v2721
      %v2723 = vpop.xlane.xlu0 %2722
      %v2724 = vsel %vm2681, %v2352, -inf
      %2725 = vmax.xlane.f32.xlu0 %v2724
      %v2726 = vpop.xlane.xlu0 %2725
      %v2727 = vsel %vm2681, %v2355, -inf
      %2728 = vmax.xlane.f32.xlu0 %v2727
      %v2729 = vpop.xlane.xlu0 %2728
      %vm2730 = vcmp.ge.f32.partialorder %v2296, %v2684
      %vm2731 = vcmp.ge.f32.partialorder %v2299, %v2687
      %vm2732 = vcmp.ge.f32.partialorder %v2304, %v2690
      %vm2733 = vcmp.ge.f32.partialorder %v2307, %v2693
      %vm2734 = vcmp.ge.f32.partialorder %v2312, %v2696
      %vm2735 = vcmp.ge.f32.partialorder %v2315, %v2699
      %vm2736 = vcmp.ge.f32.partialorder %v2320, %v2702
      %vm2737 = vcmp.ge.f32.partialorder %v2323, %v2705
      %vm2738 = vcmp.ge.f32.partialorder %v2328, %v2708
      %vm2739 = vcmp.ge.f32.partialorder %v2331, %v2711
      %vm2740 = vcmp.ge.f32.partialorder %v2336, %v2714
      %vm2741 = vcmp.ge.f32.partialorder %v2339, %v2717
      %vm2742 = vcmp.ge.f32.partialorder %v2344, %v2720
      %vm2743 = vcmp.ge.f32.partialorder %v2347, %v2723
      %vm2744 = vcmp.ge.f32.partialorder %v2352, %v2726
      %vm2745 = vcmp.ge.f32.partialorder %v2355, %v2729
      %2746 = vrot.lane.b32.xlu0 %v2408, 8
      %v2747 = vpop.permute.xlu0 %2746
      %v2748 = vsel %vm2730, %v2747, 8
      %v2749 = vsel %vm2731, %v2747, 8
      %v2750 = vsel %vm2732, %v2747, 8
      %v2751 = vsel %vm2733, %v2747, 8
      %v2752 = vsel %vm2734, %v2747, 8
      %v2753 = vsel %vm2735, %v2747, 8
      %v2754 = vsel %vm2736, %v2747, 8
      %v2755 = vsel %vm2737, %v2747, 8
      %v2756 = vsel %vm2738, %v2747, 8
      %v2757 = vsel %vm2739, %v2747, 8
      %v2758 = vsel %vm2740, %v2747, 8
      %v2759 = vsel %vm2741, %v2747, 8
      %v2760 = vsel %vm2742, %v2747, 8
      %v2761 = vsel %vm2743, %v2747, 8
      %v2762 = vsel %vm2744, %v2747, 8
      %v2763 = vsel %vm2745, %v2747, 8
      %v2764 = vsel %vm2681, %v2748, 2147483647
      %v2765 = vand.u32 %v2764, 65535
      %v2766 = vshra.s32 %v2764, 16
      %v2767 = vcvt.s32.f32 %v2765
      %v2768 = vcvt.s32.f32 %v2766
      %2769 = vmin.xlane.f32.xlu0 %v2768
      %v2770 = vpop.xlane.xlu0 %2769
      %vm2771 = vcmp.eq.f32.partialorder %v2768, %v2770
      %v2772 = vsel %vm2771, %v2767, inf
      %2773 = vmin.xlane.f32.xlu0 %v2772
      %v2774 = vpop.xlane.xlu0 %2773
      %v2775 = vcvt.f32.s32 %v2774
      %v2776 = vcvt.f32.s32 %v2770
      %v2777 = vshll.u32 %v2776, 16
      %v2778 = vadd.s32 %v2777, %v2775
      %v2779 = vsel %vm2681, %v2749, 2147483647
      %v2780 = vand.u32 %v2779, 65535
      %v2781 = vshra.s32 %v2779, 16
      %v2782 = vcvt.s32.f32 %v2780
      %v2783 = vcvt.s32.f32 %v2781
      %2784 = vmin.xlane.f32.xlu0 %v2783
      %v2785 = vpop.xlane.xlu0 %2784
      %vm2786 = vcmp.eq.f32.partialorder %v2783, %v2785
      %v2787 = vsel %vm2786, %v2782, inf
      %2788 = vmin.xlane.f32.xlu0 %v2787
      %v2789 = vpop.xlane.xlu0 %2788
      %v2790 = vcvt.f32.s32 %v2789
      %v2791 = vcvt.f32.s32 %v2785
      %v2792 = vshll.u32 %v2791, 16
      %v2793 = vadd.s32 %v2792, %v2790
      %v2794 = vsel %vm2681, %v2750, 2147483647
      %v2795 = vand.u32 %v2794, 65535
      %v2796 = vshra.s32 %v2794, 16
      %v2797 = vcvt.s32.f32 %v2795
      %v2798 = vcvt.s32.f32 %v2796
      %2799 = vmin.xlane.f32.xlu0 %v2798
      %v2800 = vpop.xlane.xlu0 %2799
      %vm2801 = vcmp.eq.f32.partialorder %v2798, %v2800
      %v2802 = vsel %vm2801, %v2797, inf
      %2803 = vmin.xlane.f32.xlu0 %v2802
      %v2804 = vpop.xlane.xlu0 %2803
      %v2805 = vcvt.f32.s32 %v2804
      %v2806 = vcvt.f32.s32 %v2800
      %v2807 = vshll.u32 %v2806, 16
      %v2808 = vadd.s32 %v2807, %v2805
      %v2809 = vsel %vm2681, %v2751, 2147483647
      %v2810 = vand.u32 %v2809, 65535
      %v2811 = vshra.s32 %v2809, 16
      %v2812 = vcvt.s32.f32 %v2810
      %v2813 = vcvt.s32.f32 %v2811
      %2814 = vmin.xlane.f32.xlu0 %v2813
      %v2815 = vpop.xlane.xlu0 %2814
      %vm2816 = vcmp.eq.f32.partialorder %v2813, %v2815
      %v2817 = vsel %vm2816, %v2812, inf
      %2818 = vmin.xlane.f32.xlu0 %v2817
      %v2819 = vpop.xlane.xlu0 %2818
      %v2820 = vcvt.f32.s32 %v2819
      %v2821 = vcvt.f32.s32 %v2815
      %v2822 = vshll.u32 %v2821, 16
      %v2823 = vadd.s32 %v2822, %v2820
      %v2824 = vsel %vm2681, %v2752, 2147483647
      %v2825 = vand.u32 %v2824, 65535
      %v2826 = vshra.s32 %v2824, 16
      %v2827 = vcvt.s32.f32 %v2825
      %v2828 = vcvt.s32.f32 %v2826
      %2829 = vmin.xlane.f32.xlu0 %v2828
      %v2830 = vpop.xlane.xlu0 %2829
      %vm2831 = vcmp.eq.f32.partialorder %v2828, %v2830
      %v2832 = vsel %vm2831, %v2827, inf
      %2833 = vmin.xlane.f32.xlu0 %v2832
      %v2834 = vpop.xlane.xlu0 %2833
      %v2835 = vcvt.f32.s32 %v2834
      %v2836 = vcvt.f32.s32 %v2830
      %v2837 = vshll.u32 %v2836, 16
      %v2838 = vadd.s32 %v2837, %v2835
      %v2839 = vsel %vm2681, %v2753, 2147483647
      %v2840 = vand.u32 %v2839, 65535
      %v2841 = vshra.s32 %v2839, 16
      %v2842 = vcvt.s32.f32 %v2840
      %v2843 = vcvt.s32.f32 %v2841
      %2844 = vmin.xlane.f32.xlu0 %v2843
      %v2845 = vpop.xlane.xlu0 %2844
      %vm2846 = vcmp.eq.f32.partialorder %v2843, %v2845
      %v2847 = vsel %vm2846, %v2842, inf
      %2848 = vmin.xlane.f32.xlu0 %v2847
      %v2849 = vpop.xlane.xlu0 %2848
      %v2850 = vcvt.f32.s32 %v2849
      %v2851 = vcvt.f32.s32 %v2845
      %v2852 = vshll.u32 %v2851, 16
      %v2853 = vadd.s32 %v2852, %v2850
      %v2854 = vsel %vm2681, %v2754, 2147483647
      %v2855 = vand.u32 %v2854, 65535
      %v2856 = vshra.s32 %v2854, 16
      %v2857 = vcvt.s32.f32 %v2855
      %v2858 = vcvt.s32.f32 %v2856
      %2859 = vmin.xlane.f32.xlu0 %v2858
      %v2860 = vpop.xlane.xlu0 %2859
      %vm2861 = vcmp.eq.f32.partialorder %v2858, %v2860
      %v2862 = vsel %vm2861, %v2857, inf
      %2863 = vmin.xlane.f32.xlu0 %v2862
      %v2864 = vpop.xlane.xlu0 %2863
      %v2865 = vcvt.f32.s32 %v2864
      %v2866 = vcvt.f32.s32 %v2860
      %v2867 = vshll.u32 %v2866, 16
      %v2868 = vadd.s32 %v2867, %v2865
      %v2869 = vsel %vm2681, %v2755, 2147483647
      %v2870 = vand.u32 %v2869, 65535
      %v2871 = vshra.s32 %v2869, 16
      %v2872 = vcvt.s32.f32 %v2870
      %v2873 = vcvt.s32.f32 %v2871
      %2874 = vmin.xlane.f32.xlu0 %v2873
      %v2875 = vpop.xlane.xlu0 %2874
      %vm2876 = vcmp.eq.f32.partialorder %v2873, %v2875
      %v2877 = vsel %vm2876, %v2872, inf
      %2878 = vmin.xlane.f32.xlu0 %v2877
      %v2879 = vpop.xlane.xlu0 %2878
      %v2880 = vcvt.f32.s32 %v2879
      %v2881 = vcvt.f32.s32 %v2875
      %v2882 = vshll.u32 %v2881, 16
      %v2883 = vadd.s32 %v2882, %v2880
      %v2884 = vsel %vm2681, %v2756, 2147483647
      %v2885 = vand.u32 %v2884, 65535
      %v2886 = vshra.s32 %v2884, 16
      %v2887 = vcvt.s32.f32 %v2885
      %v2888 = vcvt.s32.f32 %v2886
      %2889 = vmin.xlane.f32.xlu0 %v2888
      %v2890 = vpop.xlane.xlu0 %2889
      %vm2891 = vcmp.eq.f32.partialorder %v2888, %v2890
      %v2892 = vsel %vm2891, %v2887, inf
      %2893 = vmin.xlane.f32.xlu0 %v2892
      %v2894 = vpop.xlane.xlu0 %2893
      %v2895 = vcvt.f32.s32 %v2894
      %v2896 = vcvt.f32.s32 %v2890
      %v2897 = vshll.u32 %v2896, 16
      %v2898 = vadd.s32 %v2897, %v2895
      %v2899 = vsel %vm2681, %v2757, 2147483647
      %v2900 = vand.u32 %v2899, 65535
      %v2901 = vshra.s32 %v2899, 16
      %v2902 = vcvt.s32.f32 %v2900
      %v2903 = vcvt.s32.f32 %v2901
      %2904 = vmin.xlane.f32.xlu0 %v2903
      %v2905 = vpop.xlane.xlu0 %2904
      %vm2906 = vcmp.eq.f32.partialorder %v2903, %v2905
      %v2907 = vsel %vm2906, %v2902, inf
      %2908 = vmin.xlane.f32.xlu0 %v2907
      %v2909 = vpop.xlane.xlu0 %2908
      %v2910 = vcvt.f32.s32 %v2909
      %v2911 = vcvt.f32.s32 %v2905
      %v2912 = vshll.u32 %v2911, 16
      %v2913 = vadd.s32 %v2912, %v2910
      %v2914 = vsel %vm2681, %v2758, 2147483647
      %v2915 = vand.u32 %v2914, 65535
      %v2916 = vshra.s32 %v2914, 16
      %v2917 = vcvt.s32.f32 %v2915
      %v2918 = vcvt.s32.f32 %v2916
      %2919 = vmin.xlane.f32.xlu0 %v2918
      %v2920 = vpop.xlane.xlu0 %2919
      %vm2921 = vcmp.eq.f32.partialorder %v2918, %v2920
      %v2922 = vsel %vm2921, %v2917, inf
      %2923 = vmin.xlane.f32.xlu0 %v2922
      %v2924 = vpop.xlane.xlu0 %2923
      %v2925 = vcvt.f32.s32 %v2924
      %v2926 = vcvt.f32.s32 %v2920
      %v2927 = vshll.u32 %v2926, 16
      %v2928 = vadd.s32 %v2927, %v2925
      %v2929 = vsel %vm2681, %v2759, 2147483647
      %v2930 = vand.u32 %v2929, 65535
      %v2931 = vshra.s32 %v2929, 16
      %v2932 = vcvt.s32.f32 %v2930
      %v2933 = vcvt.s32.f32 %v2931
      %2934 = vmin.xlane.f32.xlu0 %v2933
      %v2935 = vpop.xlane.xlu0 %2934
      %vm2936 = vcmp.eq.f32.partialorder %v2933, %v2935
      %v2937 = vsel %vm2936, %v2932, inf
      %2938 = vmin.xlane.f32.xlu0 %v2937
      %v2939 = vpop.xlane.xlu0 %2938
      %v2940 = vcvt.f32.s32 %v2939
      %v2941 = vcvt.f32.s32 %v2935
      %v2942 = vshll.u32 %v2941, 16
      %v2943 = vadd.s32 %v2942, %v2940
      %v2944 = vsel %vm2681, %v2760, 2147483647
      %v2945 = vand.u32 %v2944, 65535
      %v2946 = vshra.s32 %v2944, 16
      %v2947 = vcvt.s32.f32 %v2945
      %v2948 = vcvt.s32.f32 %v2946
      %2949 = vmin.xlane.f32.xlu0 %v2948
      %v2950 = vpop.xlane.xlu0 %2949
      %vm2951 = vcmp.eq.f32.partialorder %v2948, %v2950
      %v2952 = vsel %vm2951, %v2947, inf
      %2953 = vmin.xlane.f32.xlu0 %v2952
      %v2954 = vpop.xlane.xlu0 %2953
      %v2955 = vcvt.f32.s32 %v2954
      %v2956 = vcvt.f32.s32 %v2950
      %v2957 = vshll.u32 %v2956, 16
      %v2958 = vadd.s32 %v2957, %v2955
      %v2959 = vsel %vm2681, %v2761, 2147483647
      %v2960 = vand.u32 %v2959, 65535
      %v2961 = vshra.s32 %v2959, 16
      %v2962 = vcvt.s32.f32 %v2960
      %v2963 = vcvt.s32.f32 %v2961
      %2964 = vmin.xlane.f32.xlu0 %v2963
      %v2965 = vpop.xlane.xlu0 %2964
      %vm2966 = vcmp.eq.f32.partialorder %v2963, %v2965
      %v2967 = vsel %vm2966, %v2962, inf
      %2968 = vmin.xlane.f32.xlu0 %v2967
      %v2969 = vpop.xlane.xlu0 %2968
      %v2970 = vcvt.f32.s32 %v2969
      %v2971 = vcvt.f32.s32 %v2965
      %v2972 = vshll.u32 %v2971, 16
      %v2973 = vadd.s32 %v2972, %v2970
      %v2974 = vsel %vm2681, %v2762, 2147483647
      %v2975 = vand.u32 %v2974, 65535
      %v2976 = vshra.s32 %v2974, 16
      %v2977 = vcvt.s32.f32 %v2975
      %v2978 = vcvt.s32.f32 %v2976
      %2979 = vmin.xlane.f32.xlu0 %v2978
      %v2980 = vpop.xlane.xlu0 %2979
      %vm2981 = vcmp.eq.f32.partialorder %v2978, %v2980
      %v2982 = vsel %vm2981, %v2977, inf
      %2983 = vmin.xlane.f32.xlu0 %v2982
      %v2984 = vpop.xlane.xlu0 %2983
      %v2985 = vcvt.f32.s32 %v2984
      %v2986 = vcvt.f32.s32 %v2980
      %v2987 = vshll.u32 %v2986, 16
      %v2988 = vadd.s32 %v2987, %v2985
      %v2989 = vsel %vm2681, %v2763, 2147483647
      %v2990 = vand.u32 %v2989, 65535
      %v2991 = vshra.s32 %v2989, 16
      %v2992 = vcvt.s32.f32 %v2990
      %v2993 = vcvt.s32.f32 %v2991
      %2994 = vmin.xlane.f32.xlu0 %v2993
      %v2995 = vpop.xlane.xlu0 %2994
      %vm2996 = vcmp.eq.f32.partialorder %v2993, %v2995
      %v2997 = vsel %vm2996, %v2992, inf
      %2998 = vmin.xlane.f32.xlu0 %v2997
      %v2999 = vpop.xlane.xlu0 %2998
      %v3000 = vcvt.f32.s32 %v2999
      %v3001 = vcvt.f32.s32 %v2995
      %v3002 = vshll.u32 %v3001, 16
      %v3003 = vadd.s32 %v3002, %v3000
      %vm3004 = vcmask 195712
      %v3005 = vsel %vm3004, %v2296, -inf
      %3006 = vmax.xlane.f32.xlu0 %v3005
      %v3007 = vpop.xlane.xlu0 %3006
      %v3008 = vsel %vm3004, %v2299, -inf
      %3009 = vmax.xlane.f32.xlu0 %v3008
      %v3010 = vpop.xlane.xlu0 %3009
      %v3011 = vsel %vm3004, %v2304, -inf
      %3012 = vmax.xlane.f32.xlu0 %v3011
      %v3013 = vpop.xlane.xlu0 %3012
      %v3014 = vsel %vm3004, %v2307, -inf
      %3015 = vmax.xlane.f32.xlu0 %v3014
      %v3016 = vpop.xlane.xlu0 %3015
      %v3017 = vsel %vm3004, %v2312, -inf
      %3018 = vmax.xlane.f32.xlu0 %v3017
      %v3019 = vpop.xlane.xlu0 %3018
      %v3020 = vsel %vm3004, %v2315, -inf
      %3021 = vmax.xlane.f32.xlu0 %v3020
      %v3022 = vpop.xlane.xlu0 %3021
      %v3023 = vsel %vm3004, %v2320, -inf
      %3024 = vmax.xlane.f32.xlu0 %v3023
      %v3025 = vpop.xlane.xlu0 %3024
      %v3026 = vsel %vm3004, %v2323, -inf
      %3027 = vmax.xlane.f32.xlu0 %v3026
      %v3028 = vpop.xlane.xlu0 %3027
      %v3029 = vsel %vm3004, %v2328, -inf
      %3030 = vmax.xlane.f32.xlu0 %v3029
      %v3031 = vpop.xlane.xlu0 %3030
      %v3032 = vsel %vm3004, %v2331, -inf
      %3033 = vmax.xlane.f32.xlu0 %v3032
      %v3034 = vpop.xlane.xlu0 %3033
      %v3035 = vsel %vm3004, %v2336, -inf
      %3036 = vmax.xlane.f32.xlu0 %v3035
      %v3037 = vpop.xlane.xlu0 %3036
      %v3038 = vsel %vm3004, %v2339, -inf
      %3039 = vmax.xlane.f32.xlu0 %v3038
      %v3040 = vpop.xlane.xlu0 %3039
      %v3041 = vsel %vm3004, %v2344, -inf
      %3042 = vmax.xlane.f32.xlu0 %v3041
      %v3043 = vpop.xlane.xlu0 %3042
      %v3044 = vsel %vm3004, %v2347, -inf
      %3045 = vmax.xlane.f32.xlu0 %v3044
      %v3046 = vpop.xlane.xlu0 %3045
      %v3047 = vsel %vm3004, %v2352, -inf
      %3048 = vmax.xlane.f32.xlu0 %v3047
      %v3049 = vpop.xlane.xlu0 %3048
      %v3050 = vsel %vm3004, %v2355, -inf
      %3051 = vmax.xlane.f32.xlu0 %v3050
      %v3052 = vpop.xlane.xlu0 %3051
      %vm3053 = vcmp.ge.f32.partialorder %v2296, %v3007
      %vm3054 = vcmp.ge.f32.partialorder %v2299, %v3010
      %vm3055 = vcmp.ge.f32.partialorder %v2304, %v3013
      %vm3056 = vcmp.ge.f32.partialorder %v2307, %v3016
      %vm3057 = vcmp.ge.f32.partialorder %v2312, %v3019
      %vm3058 = vcmp.ge.f32.partialorder %v2315, %v3022
      %vm3059 = vcmp.ge.f32.partialorder %v2320, %v3025
      %vm3060 = vcmp.ge.f32.partialorder %v2323, %v3028
      %vm3061 = vcmp.ge.f32.partialorder %v2328, %v3031
      %vm3062 = vcmp.ge.f32.partialorder %v2331, %v3034
      %vm3063 = vcmp.ge.f32.partialorder %v2336, %v3037
      %vm3064 = vcmp.ge.f32.partialorder %v2339, %v3040
      %vm3065 = vcmp.ge.f32.partialorder %v2344, %v3043
      %vm3066 = vcmp.ge.f32.partialorder %v2347, %v3046
      %vm3067 = vcmp.ge.f32.partialorder %v2352, %v3049
      %vm3068 = vcmp.ge.f32.partialorder %v2355, %v3052
      %3069 = vrot.lane.b32.xlu0 %v2408, 16
      %v3070 = vpop.permute.xlu0 %3069
      %v3071 = vsel %vm3053, %v3070, 8
      %v3072 = vsel %vm3054, %v3070, 8
      %v3073 = vsel %vm3055, %v3070, 8
      %v3074 = vsel %vm3056, %v3070, 8
      %v3075 = vsel %vm3057, %v3070, 8
      %v3076 = vsel %vm3058, %v3070, 8
      %v3077 = vsel %vm3059, %v3070, 8
      %v3078 = vsel %vm3060, %v3070, 8
      %v3079 = vsel %vm3061, %v3070, 8
      %v3080 = vsel %vm3062, %v3070, 8
      %v3081 = vsel %vm3063, %v3070, 8
      %v3082 = vsel %vm3064, %v3070, 8
      %v3083 = vsel %vm3065, %v3070, 8
      %v3084 = vsel %vm3066, %v3070, 8
      %v3085 = vsel %vm3067, %v3070, 8
      %v3086 = vsel %vm3068, %v3070, 8
      %v3087 = vsel %vm3004, %v3071, 2147483647
      %v3088 = vand.u32 %v3087, 65535
      %v3089 = vshra.s32 %v3087, 16
      %v3090 = vcvt.s32.f32 %v3088
      %v3091 = vcvt.s32.f32 %v3089
      %3092 = vmin.xlane.f32.xlu0 %v3091
      %v3093 = vpop.xlane.xlu0 %3092
      %vm3094 = vcmp.eq.f32.partialorder %v3091, %v3093
      %v3095 = vsel %vm3094, %v3090, inf
      %3096 = vmin.xlane.f32.xlu0 %v3095
      %v3097 = vpop.xlane.xlu0 %3096
      %v3098 = vcvt.f32.s32 %v3097
      %v3099 = vcvt.f32.s32 %v3093
      %v3100 = vshll.u32 %v3099, 16
      %v3101 = vadd.s32 %v3100, %v3098
      %v3102 = vsel %vm3004, %v3072, 2147483647
      %v3103 = vand.u32 %v3102, 65535
      %v3104 = vshra.s32 %v3102, 16
      %v3105 = vcvt.s32.f32 %v3103
      %v3106 = vcvt.s32.f32 %v3104
      %3107 = vmin.xlane.f32.xlu0 %v3106
      %v3108 = vpop.xlane.xlu0 %3107
      %vm3109 = vcmp.eq.f32.partialorder %v3106, %v3108
      %v3110 = vsel %vm3109, %v3105, inf
      %3111 = vmin.xlane.f32.xlu0 %v3110
      %v3112 = vpop.xlane.xlu0 %3111
      %v3113 = vcvt.f32.s32 %v3112
      %v3114 = vcvt.f32.s32 %v3108
      %v3115 = vshll.u32 %v3114, 16
      %v3116 = vadd.s32 %v3115, %v3113
      %v3117 = vsel %vm3004, %v3073, 2147483647
      %v3118 = vand.u32 %v3117, 65535
      %v3119 = vshra.s32 %v3117, 16
      %v3120 = vcvt.s32.f32 %v3118
      %v3121 = vcvt.s32.f32 %v3119
      %3122 = vmin.xlane.f32.xlu0 %v3121
      %v3123 = vpop.xlane.xlu0 %3122
      %vm3124 = vcmp.eq.f32.partialorder %v3121, %v3123
      %v3125 = vsel %vm3124, %v3120, inf
      %3126 = vmin.xlane.f32.xlu0 %v3125
      %v3127 = vpop.xlane.xlu0 %3126
      %v3128 = vcvt.f32.s32 %v3127
      %v3129 = vcvt.f32.s32 %v3123
      %v3130 = vshll.u32 %v3129, 16
      %v3131 = vadd.s32 %v3130, %v3128
      %v3132 = vsel %vm3004, %v3074, 2147483647
      %v3133 = vand.u32 %v3132, 65535
      %v3134 = vshra.s32 %v3132, 16
      %v3135 = vcvt.s32.f32 %v3133
      %v3136 = vcvt.s32.f32 %v3134
      %3137 = vmin.xlane.f32.xlu0 %v3136
      %v3138 = vpop.xlane.xlu0 %3137
      %vm3139 = vcmp.eq.f32.partialorder %v3136, %v3138
      %v3140 = vsel %vm3139, %v3135, inf
      %3141 = vmin.xlane.f32.xlu0 %v3140
      %v3142 = vpop.xlane.xlu0 %3141
      %v3143 = vcvt.f32.s32 %v3142
      %v3144 = vcvt.f32.s32 %v3138
      %v3145 = vshll.u32 %v3144, 16
      %v3146 = vadd.s32 %v3145, %v3143
      %v3147 = vsel %vm3004, %v3075, 2147483647
      %v3148 = vand.u32 %v3147, 65535
      %v3149 = vshra.s32 %v3147, 16
      %v3150 = vcvt.s32.f32 %v3148
      %v3151 = vcvt.s32.f32 %v3149
      %3152 = vmin.xlane.f32.xlu0 %v3151
      %v3153 = vpop.xlane.xlu0 %3152
      %vm3154 = vcmp.eq.f32.partialorder %v3151, %v3153
      %v3155 = vsel %vm3154, %v3150, inf
      %3156 = vmin.xlane.f32.xlu0 %v3155
      %v3157 = vpop.xlane.xlu0 %3156
      %v3158 = vcvt.f32.s32 %v3157
      %v3159 = vcvt.f32.s32 %v3153
      %v3160 = vshll.u32 %v3159, 16
      %v3161 = vadd.s32 %v3160, %v3158
      %v3162 = vsel %vm3004, %v3076, 2147483647
      %v3163 = vand.u32 %v3162, 65535
      %v3164 = vshra.s32 %v3162, 16
      %v3165 = vcvt.s32.f32 %v3163
      %v3166 = vcvt.s32.f32 %v3164
      %3167 = vmin.xlane.f32.xlu0 %v3166
      %v3168 = vpop.xlane.xlu0 %3167
      %vm3169 = vcmp.eq.f32.partialorder %v3166, %v3168
      %v3170 = vsel %vm3169, %v3165, inf
      %3171 = vmin.xlane.f32.xlu0 %v3170
      %v3172 = vpop.xlane.xlu0 %3171
      %v3173 = vcvt.f32.s32 %v3172
      %v3174 = vcvt.f32.s32 %v3168
      %v3175 = vshll.u32 %v3174, 16
      %v3176 = vadd.s32 %v3175, %v3173
      %v3177 = vsel %vm3004, %v3077, 2147483647
      %v3178 = vand.u32 %v3177, 65535
      %v3179 = vshra.s32 %v3177, 16
      %v3180 = vcvt.s32.f32 %v3178
      %v3181 = vcvt.s32.f32 %v3179
      %3182 = vmin.xlane.f32.xlu0 %v3181
      %v3183 = vpop.xlane.xlu0 %3182
      %vm3184 = vcmp.eq.f32.partialorder %v3181, %v3183
      %v3185 = vsel %vm3184, %v3180, inf
      %3186 = vmin.xlane.f32.xlu0 %v3185
      %v3187 = vpop.xlane.xlu0 %3186
      %v3188 = vcvt.f32.s32 %v3187
      %v3189 = vcvt.f32.s32 %v3183
      %v3190 = vshll.u32 %v3189, 16
      %v3191 = vadd.s32 %v3190, %v3188
      %v3192 = vsel %vm3004, %v3078, 2147483647
      %v3193 = vand.u32 %v3192, 65535
      %v3194 = vshra.s32 %v3192, 16
      %v3195 = vcvt.s32.f32 %v3193
      %v3196 = vcvt.s32.f32 %v3194
      %3197 = vmin.xlane.f32.xlu0 %v3196
      %v3198 = vpop.xlane.xlu0 %3197
      %vm3199 = vcmp.eq.f32.partialorder %v3196, %v3198
      %v3200 = vsel %vm3199, %v3195, inf
      %3201 = vmin.xlane.f32.xlu0 %v3200
      %v3202 = vpop.xlane.xlu0 %3201
      %v3203 = vcvt.f32.s32 %v3202
      %v3204 = vcvt.f32.s32 %v3198
      %v3205 = vshll.u32 %v3204, 16
      %v3206 = vadd.s32 %v3205, %v3203
      %v3207 = vsel %vm3004, %v3079, 2147483647
      %v3208 = vand.u32 %v3207, 65535
      %v3209 = vshra.s32 %v3207, 16
      %v3210 = vcvt.s32.f32 %v3208
      %v3211 = vcvt.s32.f32 %v3209
      %3212 = vmin.xlane.f32.xlu0 %v3211
      %v3213 = vpop.xlane.xlu0 %3212
      %vm3214 = vcmp.eq.f32.partialorder %v3211, %v3213
      %v3215 = vsel %vm3214, %v3210, inf
      %3216 = vmin.xlane.f32.xlu0 %v3215
      %v3217 = vpop.xlane.xlu0 %3216
      %v3218 = vcvt.f32.s32 %v3217
      %v3219 = vcvt.f32.s32 %v3213
      %v3220 = vshll.u32 %v3219, 16
      %v3221 = vadd.s32 %v3220, %v3218
      %v3222 = vsel %vm3004, %v3080, 2147483647
      %v3223 = vand.u32 %v3222, 65535
      %v3224 = vshra.s32 %v3222, 16
      %v3225 = vcvt.s32.f32 %v3223
      %v3226 = vcvt.s32.f32 %v3224
      %3227 = vmin.xlane.f32.xlu0 %v3226
      %v3228 = vpop.xlane.xlu0 %3227
      %vm3229 = vcmp.eq.f32.partialorder %v3226, %v3228
      %v3230 = vsel %vm3229, %v3225, inf
      %3231 = vmin.xlane.f32.xlu0 %v3230
      %v3232 = vpop.xlane.xlu0 %3231
      %v3233 = vcvt.f32.s32 %v3232
      %v3234 = vcvt.f32.s32 %v3228
      %v3235 = vshll.u32 %v3234, 16
      %v3236 = vadd.s32 %v3235, %v3233
      %v3237 = vsel %vm3004, %v3081, 2147483647
      %v3238 = vand.u32 %v3237, 65535
      %v3239 = vshra.s32 %v3237, 16
      %v3240 = vcvt.s32.f32 %v3238
      %v3241 = vcvt.s32.f32 %v3239
      %3242 = vmin.xlane.f32.xlu0 %v3241
      %v3243 = vpop.xlane.xlu0 %3242
      %vm3244 = vcmp.eq.f32.partialorder %v3241, %v3243
      %v3245 = vsel %vm3244, %v3240, inf
      %3246 = vmin.xlane.f32.xlu0 %v3245
      %v3247 = vpop.xlane.xlu0 %3246
      %v3248 = vcvt.f32.s32 %v3247
      %v3249 = vcvt.f32.s32 %v3243
      %v3250 = vshll.u32 %v3249, 16
      %v3251 = vadd.s32 %v3250, %v3248
      %v3252 = vsel %vm3004, %v3082, 2147483647
      %v3253 = vand.u32 %v3252, 65535
      %v3254 = vshra.s32 %v3252, 16
      %v3255 = vcvt.s32.f32 %v3253
      %v3256 = vcvt.s32.f32 %v3254
      %3257 = vmin.xlane.f32.xlu0 %v3256
      %v3258 = vpop.xlane.xlu0 %3257
      %vm3259 = vcmp.eq.f32.partialorder %v3256, %v3258
      %v3260 = vsel %vm3259, %v3255, inf
      %3261 = vmin.xlane.f32.xlu0 %v3260
      %v3262 = vpop.xlane.xlu0 %3261
      %v3263 = vcvt.f32.s32 %v3262
      %v3264 = vcvt.f32.s32 %v3258
      %v3265 = vshll.u32 %v3264, 16
      %v3266 = vadd.s32 %v3265, %v3263
      %v3267 = vsel %vm3004, %v3083, 2147483647
      %v3268 = vand.u32 %v3267, 65535
      %v3269 = vshra.s32 %v3267, 16
      %v3270 = vcvt.s32.f32 %v3268
      %v3271 = vcvt.s32.f32 %v3269
      %3272 = vmin.xlane.f32.xlu0 %v3271
      %v3273 = vpop.xlane.xlu0 %3272
      %vm3274 = vcmp.eq.f32.partialorder %v3271, %v3273
      %v3275 = vsel %vm3274, %v3270, inf
      %3276 = vmin.xlane.f32.xlu0 %v3275
      %v3277 = vpop.xlane.xlu0 %3276
      %v3278 = vcvt.f32.s32 %v3277
      %v3279 = vcvt.f32.s32 %v3273
      %v3280 = vshll.u32 %v3279, 16
      %v3281 = vadd.s32 %v3280, %v3278
      %v3282 = vsel %vm3004, %v3084, 2147483647
      %v3283 = vand.u32 %v3282, 65535
      %v3284 = vshra.s32 %v3282, 16
      %v3285 = vcvt.s32.f32 %v3283
      %v3286 = vcvt.s32.f32 %v3284
      %3287 = vmin.xlane.f32.xlu0 %v3286
      %v3288 = vpop.xlane.xlu0 %3287
      %vm3289 = vcmp.eq.f32.partialorder %v3286, %v3288
      %v3290 = vsel %vm3289, %v3285, inf
      %3291 = vmin.xlane.f32.xlu0 %v3290
      %v3292 = vpop.xlane.xlu0 %3291
      %v3293 = vcvt.f32.s32 %v3292
      %v3294 = vcvt.f32.s32 %v3288
      %v3295 = vshll.u32 %v3294, 16
      %v3296 = vadd.s32 %v3295, %v3293
      %v3297 = vsel %vm3004, %v3085, 2147483647
      %v3298 = vand.u32 %v3297, 65535
      %v3299 = vshra.s32 %v3297, 16
      %v3300 = vcvt.s32.f32 %v3298
      %v3301 = vcvt.s32.f32 %v3299
      %3302 = vmin.xlane.f32.xlu0 %v3301
      %v3303 = vpop.xlane.xlu0 %3302
      %vm3304 = vcmp.eq.f32.partialorder %v3301, %v3303
      %v3305 = vsel %vm3304, %v3300, inf
      %3306 = vmin.xlane.f32.xlu0 %v3305
      %v3307 = vpop.xlane.xlu0 %3306
      %v3308 = vcvt.f32.s32 %v3307
      %v3309 = vcvt.f32.s32 %v3303
      %v3310 = vshll.u32 %v3309, 16
      %v3311 = vadd.s32 %v3310, %v3308
      %v3312 = vsel %vm3004, %v3086, 2147483647
      %v3313 = vand.u32 %v3312, 65535
      %v3314 = vshra.s32 %v3312, 16
      %v3315 = vcvt.s32.f32 %v3313
      %v3316 = vcvt.s32.f32 %v3314
      %3317 = vmin.xlane.f32.xlu0 %v3316
      %v3318 = vpop.xlane.xlu0 %3317
      %vm3319 = vcmp.eq.f32.partialorder %v3316, %v3318
      %v3320 = vsel %vm3319, %v3315, inf
      %3321 = vmin.xlane.f32.xlu0 %v3320
      %v3322 = vpop.xlane.xlu0 %3321
      %v3323 = vcvt.f32.s32 %v3322
      %v3324 = vcvt.f32.s32 %v3318
      %v3325 = vshll.u32 %v3324, 16
      %v3326 = vadd.s32 %v3325, %v3323
      %vm3327 = vcmask 261312
      %v3328 = vsel %vm3327, %v2296, -inf
      %3329 = vmax.xlane.f32.xlu0 %v3328
      %v3330 = vpop.xlane.xlu0 %3329
      %v3331 = vsel %vm3327, %v2299, -inf
      %3332 = vmax.xlane.f32.xlu0 %v3331
      %v3333 = vpop.xlane.xlu0 %3332
      %v3334 = vsel %vm3327, %v2304, -inf
      %3335 = vmax.xlane.f32.xlu0 %v3334
      %v3336 = vpop.xlane.xlu0 %3335
      %v3337 = vsel %vm3327, %v2307, -inf
      %3338 = vmax.xlane.f32.xlu0 %v3337
      %v3339 = vpop.xlane.xlu0 %3338
      %v3340 = vsel %vm3327, %v2312, -inf
      %3341 = vmax.xlane.f32.xlu0 %v3340
      %v3342 = vpop.xlane.xlu0 %3341
      %v3343 = vsel %vm3327, %v2315, -inf
      %3344 = vmax.xlane.f32.xlu0 %v3343
      %v3345 = vpop.xlane.xlu0 %3344
      %v3346 = vsel %vm3327, %v2320, -inf
      %3347 = vmax.xlane.f32.xlu0 %v3346
      %v3348 = vpop.xlane.xlu0 %3347
      %v3349 = vsel %vm3327, %v2323, -inf
      %3350 = vmax.xlane.f32.xlu0 %v3349
      %v3351 = vpop.xlane.xlu0 %3350
      %v3352 = vsel %vm3327, %v2328, -inf
      %3353 = vmax.xlane.f32.xlu0 %v3352
      %v3354 = vpop.xlane.xlu0 %3353
      %v3355 = vsel %vm3327, %v2331, -inf
      %3356 = vmax.xlane.f32.xlu0 %v3355
      %v3357 = vpop.xlane.xlu0 %3356
      %v3358 = vsel %vm3327, %v2336, -inf
      %3359 = vmax.xlane.f32.xlu0 %v3358
      %v3360 = vpop.xlane.xlu0 %3359
      %v3361 = vsel %vm3327, %v2339, -inf
      %3362 = vmax.xlane.f32.xlu0 %v3361
      %v3363 = vpop.xlane.xlu0 %3362
      %v3364 = vsel %vm3327, %v2344, -inf
      %3365 = vmax.xlane.f32.xlu0 %v3364
      %v3366 = vpop.xlane.xlu0 %3365
      %v3367 = vsel %vm3327, %v2347, -inf
      %3368 = vmax.xlane.f32.xlu0 %v3367
      %v3369 = vpop.xlane.xlu0 %3368
      %v3370 = vsel %vm3327, %v2352, -inf
      %3371 = vmax.xlane.f32.xlu0 %v3370
      %v3372 = vpop.xlane.xlu0 %3371
      %v3373 = vsel %vm3327, %v2355, -inf
      %3374 = vmax.xlane.f32.xlu0 %v3373
      %v3375 = vpop.xlane.xlu0 %3374
      %vm3376 = vcmp.ge.f32.partialorder %v2296, %v3330
      %vm3377 = vcmp.ge.f32.partialorder %v2299, %v3333
      %vm3378 = vcmp.ge.f32.partialorder %v2304, %v3336
      %vm3379 = vcmp.ge.f32.partialorder %v2307, %v3339
      %vm3380 = vcmp.ge.f32.partialorder %v2312, %v3342
      %vm3381 = vcmp.ge.f32.partialorder %v2315, %v3345
      %vm3382 = vcmp.ge.f32.partialorder %v2320, %v3348
      %vm3383 = vcmp.ge.f32.partialorder %v2323, %v3351
      %vm3384 = vcmp.ge.f32.partialorder %v2328, %v3354
      %vm3385 = vcmp.ge.f32.partialorder %v2331, %v3357
      %vm3386 = vcmp.ge.f32.partialorder %v2336, %v3360
      %vm3387 = vcmp.ge.f32.partialorder %v2339, %v3363
      %vm3388 = vcmp.ge.f32.partialorder %v2344, %v3366
      %vm3389 = vcmp.ge.f32.partialorder %v2347, %v3369
      %vm3390 = vcmp.ge.f32.partialorder %v2352, %v3372
      %vm3391 = vcmp.ge.f32.partialorder %v2355, %v3375
      %3392 = vrot.lane.b32.xlu0 %v2408, 24
      %v3393 = vpop.permute.xlu0 %3392
      %v3394 = vsel %vm3376, %v3393, 8
      %v3395 = vsel %vm3377, %v3393, 8
      %v3396 = vsel %vm3378, %v3393, 8
      %v3397 = vsel %vm3379, %v3393, 8
      %v3398 = vsel %vm3380, %v3393, 8
      %v3399 = vsel %vm3381, %v3393, 8
      %v3400 = vsel %vm3382, %v3393, 8
      %v3401 = vsel %vm3383, %v3393, 8
      %v3402 = vsel %vm3384, %v3393, 8
      %v3403 = vsel %vm3385, %v3393, 8
      %v3404 = vsel %vm3386, %v3393, 8
      %v3405 = vsel %vm3387, %v3393, 8
      %v3406 = vsel %vm3388, %v3393, 8
      %v3407 = vsel %vm3389, %v3393, 8
      %v3408 = vsel %vm3390, %v3393, 8
      %v3409 = vsel %vm3391, %v3393, 8
      %v3410 = vsel %vm3327, %v3394, 2147483647
      %v3411 = vand.u32 %v3410, 65535
      %v3412 = vshra.s32 %v3410, 16
      %v3413 = vcvt.s32.f32 %v3411
      %v3414 = vcvt.s32.f32 %v3412
      %3415 = vmin.xlane.f32.xlu0 %v3414
      %v3416 = vpop.xlane.xlu0 %3415
      %vm3417 = vcmp.eq.f32.partialorder %v3414, %v3416
      %v3418 = vsel %vm3417, %v3413, inf
      %3419 = vmin.xlane.f32.xlu0 %v3418
      %v3420 = vpop.xlane.xlu0 %3419
      %v3421 = vcvt.f32.s32 %v3420
      %v3422 = vcvt.f32.s32 %v3416
      %v3423 = vshll.u32 %v3422, 16
      %v3424 = vadd.s32 %v3423, %v3421
      %v3425 = vsel %vm3327, %v3395, 2147483647
      %v3426 = vand.u32 %v3425, 65535
      %v3427 = vshra.s32 %v3425, 16
      %v3428 = vcvt.s32.f32 %v3426
      %v3429 = vcvt.s32.f32 %v3427
      %3430 = vmin.xlane.f32.xlu0 %v3429
      %v3431 = vpop.xlane.xlu0 %3430
      %vm3432 = vcmp.eq.f32.partialorder %v3429, %v3431
      %v3433 = vsel %vm3432, %v3428, inf
      %3434 = vmin.xlane.f32.xlu0 %v3433
      %v3435 = vpop.xlane.xlu0 %3434
      %v3436 = vcvt.f32.s32 %v3435
      %v3437 = vcvt.f32.s32 %v3431
      %v3438 = vshll.u32 %v3437, 16
      %v3439 = vadd.s32 %v3438, %v3436
      %v3440 = vsel %vm3327, %v3396, 2147483647
      %v3441 = vand.u32 %v3440, 65535
      %v3442 = vshra.s32 %v3440, 16
      %v3443 = vcvt.s32.f32 %v3441
      %v3444 = vcvt.s32.f32 %v3442
      %3445 = vmin.xlane.f32.xlu0 %v3444
      %v3446 = vpop.xlane.xlu0 %3445
      %vm3447 = vcmp.eq.f32.partialorder %v3444, %v3446
      %v3448 = vsel %vm3447, %v3443, inf
      %3449 = vmin.xlane.f32.xlu0 %v3448
      %v3450 = vpop.xlane.xlu0 %3449
      %v3451 = vcvt.f32.s32 %v3450
      %v3452 = vcvt.f32.s32 %v3446
      %v3453 = vshll.u32 %v3452, 16
      %v3454 = vadd.s32 %v3453, %v3451
      %v3455 = vsel %vm3327, %v3397, 2147483647
      %v3456 = vand.u32 %v3455, 65535
      %v3457 = vshra.s32 %v3455, 16
      %v3458 = vcvt.s32.f32 %v3456
      %v3459 = vcvt.s32.f32 %v3457
      %3460 = vmin.xlane.f32.xlu0 %v3459
      %v3461 = vpop.xlane.xlu0 %3460
      %vm3462 = vcmp.eq.f32.partialorder %v3459, %v3461
      %v3463 = vsel %vm3462, %v3458, inf
      %3464 = vmin.xlane.f32.xlu0 %v3463
      %v3465 = vpop.xlane.xlu0 %3464
      %v3466 = vcvt.f32.s32 %v3465
      %v3467 = vcvt.f32.s32 %v3461
      %v3468 = vshll.u32 %v3467, 16
      %v3469 = vadd.s32 %v3468, %v3466
      %v3470 = vsel %vm3327, %v3398, 2147483647
      %v3471 = vand.u32 %v3470, 65535
      %v3472 = vshra.s32 %v3470, 16
      %v3473 = vcvt.s32.f32 %v3471
      %v3474 = vcvt.s32.f32 %v3472
      %3475 = vmin.xlane.f32.xlu0 %v3474
      %v3476 = vpop.xlane.xlu0 %3475
      %vm3477 = vcmp.eq.f32.partialorder %v3474, %v3476
      %v3478 = vsel %vm3477, %v3473, inf
      %3479 = vmin.xlane.f32.xlu0 %v3478
      %v3480 = vpop.xlane.xlu0 %3479
      %v3481 = vcvt.f32.s32 %v3480
      %v3482 = vcvt.f32.s32 %v3476
      %v3483 = vshll.u32 %v3482, 16
      %v3484 = vadd.s32 %v3483, %v3481
      %v3485 = vsel %vm3327, %v3399, 2147483647
      %v3486 = vand.u32 %v3485, 65535
      %v3487 = vshra.s32 %v3485, 16
      %v3488 = vcvt.s32.f32 %v3486
      %v3489 = vcvt.s32.f32 %v3487
      %3490 = vmin.xlane.f32.xlu0 %v3489
      %v3491 = vpop.xlane.xlu0 %3490
      %vm3492 = vcmp.eq.f32.partialorder %v3489, %v3491
      %v3493 = vsel %vm3492, %v3488, inf
      %3494 = vmin.xlane.f32.xlu0 %v3493
      %v3495 = vpop.xlane.xlu0 %3494
      %v3496 = vcvt.f32.s32 %v3495
      %v3497 = vcvt.f32.s32 %v3491
      %v3498 = vshll.u32 %v3497, 16
      %v3499 = vadd.s32 %v3498, %v3496
      %v3500 = vsel %vm3327, %v3400, 2147483647
      %v3501 = vand.u32 %v3500, 65535
      %v3502 = vshra.s32 %v3500, 16
      %v3503 = vcvt.s32.f32 %v3501
      %v3504 = vcvt.s32.f32 %v3502
      %3505 = vmin.xlane.f32.xlu0 %v3504
      %v3506 = vpop.xlane.xlu0 %3505
      %vm3507 = vcmp.eq.f32.partialorder %v3504, %v3506
      %v3508 = vsel %vm3507, %v3503, inf
      %3509 = vmin.xlane.f32.xlu0 %v3508
      %v3510 = vpop.xlane.xlu0 %3509
      %v3511 = vcvt.f32.s32 %v3510
      %v3512 = vcvt.f32.s32 %v3506
      %v3513 = vshll.u32 %v3512, 16
      %v3514 = vadd.s32 %v3513, %v3511
      %v3515 = vsel %vm3327, %v3401, 2147483647
      %v3516 = vand.u32 %v3515, 65535
      %v3517 = vshra.s32 %v3515, 16
      %v3518 = vcvt.s32.f32 %v3516
      %v3519 = vcvt.s32.f32 %v3517
      %3520 = vmin.xlane.f32.xlu0 %v3519
      %v3521 = vpop.xlane.xlu0 %3520
      %vm3522 = vcmp.eq.f32.partialorder %v3519, %v3521
      %v3523 = vsel %vm3522, %v3518, inf
      %3524 = vmin.xlane.f32.xlu0 %v3523
      %v3525 = vpop.xlane.xlu0 %3524
      %v3526 = vcvt.f32.s32 %v3525
      %v3527 = vcvt.f32.s32 %v3521
      %v3528 = vshll.u32 %v3527, 16
      %v3529 = vadd.s32 %v3528, %v3526
      %v3530 = vsel %vm3327, %v3402, 2147483647
      %v3531 = vand.u32 %v3530, 65535
      %v3532 = vshra.s32 %v3530, 16
      %v3533 = vcvt.s32.f32 %v3531
      %v3534 = vcvt.s32.f32 %v3532
      %3535 = vmin.xlane.f32.xlu0 %v3534
      %v3536 = vpop.xlane.xlu0 %3535
      %vm3537 = vcmp.eq.f32.partialorder %v3534, %v3536
      %v3538 = vsel %vm3537, %v3533, inf
      %3539 = vmin.xlane.f32.xlu0 %v3538
      %v3540 = vpop.xlane.xlu0 %3539
      %v3541 = vcvt.f32.s32 %v3540
      %v3542 = vcvt.f32.s32 %v3536
      %v3543 = vshll.u32 %v3542, 16
      %v3544 = vadd.s32 %v3543, %v3541
      %v3545 = vsel %vm3327, %v3403, 2147483647
      %v3546 = vand.u32 %v3545, 65535
      %v3547 = vshra.s32 %v3545, 16
      %v3548 = vcvt.s32.f32 %v3546
      %v3549 = vcvt.s32.f32 %v3547
      %3550 = vmin.xlane.f32.xlu0 %v3549
      %v3551 = vpop.xlane.xlu0 %3550
      %vm3552 = vcmp.eq.f32.partialorder %v3549, %v3551
      %v3553 = vsel %vm3552, %v3548, inf
      %3554 = vmin.xlane.f32.xlu0 %v3553
      %v3555 = vpop.xlane.xlu0 %3554
      %v3556 = vcvt.f32.s32 %v3555
      %v3557 = vcvt.f32.s32 %v3551
      %v3558 = vshll.u32 %v3557, 16
      %v3559 = vadd.s32 %v3558, %v3556
      %v3560 = vsel %vm3327, %v3404, 2147483647
      %v3561 = vand.u32 %v3560, 65535
      %v3562 = vshra.s32 %v3560, 16
      %v3563 = vcvt.s32.f32 %v3561
      %v3564 = vcvt.s32.f32 %v3562
      %3565 = vmin.xlane.f32.xlu0 %v3564
      %v3566 = vpop.xlane.xlu0 %3565
      %vm3567 = vcmp.eq.f32.partialorder %v3564, %v3566
      %v3568 = vsel %vm3567, %v3563, inf
      %3569 = vmin.xlane.f32.xlu0 %v3568
      %v3570 = vpop.xlane.xlu0 %3569
      %v3571 = vcvt.f32.s32 %v3570
      %v3572 = vcvt.f32.s32 %v3566
      %v3573 = vshll.u32 %v3572, 16
      %v3574 = vadd.s32 %v3573, %v3571
      %v3575 = vsel %vm3327, %v3405, 2147483647
      %v3576 = vand.u32 %v3575, 65535
      %v3577 = vshra.s32 %v3575, 16
      %v3578 = vcvt.s32.f32 %v3576
      %v3579 = vcvt.s32.f32 %v3577
      %3580 = vmin.xlane.f32.xlu0 %v3579
      %v3581 = vpop.xlane.xlu0 %3580
      %vm3582 = vcmp.eq.f32.partialorder %v3579, %v3581
      %v3583 = vsel %vm3582, %v3578, inf
      %3584 = vmin.xlane.f32.xlu0 %v3583
      %v3585 = vpop.xlane.xlu0 %3584
      %v3586 = vcvt.f32.s32 %v3585
      %v3587 = vcvt.f32.s32 %v3581
      %v3588 = vshll.u32 %v3587, 16
      %v3589 = vadd.s32 %v3588, %v3586
      %v3590 = vsel %vm3327, %v3406, 2147483647
      %v3591 = vand.u32 %v3590, 65535
      %v3592 = vshra.s32 %v3590, 16
      %v3593 = vcvt.s32.f32 %v3591
      %v3594 = vcvt.s32.f32 %v3592
      %3595 = vmin.xlane.f32.xlu0 %v3594
      %v3596 = vpop.xlane.xlu0 %3595
      %vm3597 = vcmp.eq.f32.partialorder %v3594, %v3596
      %v3598 = vsel %vm3597, %v3593, inf
      %3599 = vmin.xlane.f32.xlu0 %v3598
      %v3600 = vpop.xlane.xlu0 %3599
      %v3601 = vcvt.f32.s32 %v3600
      %v3602 = vcvt.f32.s32 %v3596
      %v3603 = vshll.u32 %v3602, 16
      %v3604 = vadd.s32 %v3603, %v3601
      %v3605 = vsel %vm3327, %v3407, 2147483647
      %v3606 = vand.u32 %v3605, 65535
      %v3607 = vshra.s32 %v3605, 16
      %v3608 = vcvt.s32.f32 %v3606
      %v3609 = vcvt.s32.f32 %v3607
      %3610 = vmin.xlane.f32.xlu0 %v3609
      %v3611 = vpop.xlane.xlu0 %3610
      %vm3612 = vcmp.eq.f32.partialorder %v3609, %v3611
      %v3613 = vsel %vm3612, %v3608, inf
      %3614 = vmin.xlane.f32.xlu0 %v3613
      %v3615 = vpop.xlane.xlu0 %3614
      %v3616 = vcvt.f32.s32 %v3615
      %v3617 = vcvt.f32.s32 %v3611
      %v3618 = vshll.u32 %v3617, 16
      %v3619 = vadd.s32 %v3618, %v3616
      %v3620 = vsel %vm3327, %v3408, 2147483647
      %v3621 = vand.u32 %v3620, 65535
      %v3622 = vshra.s32 %v3620, 16
      %v3623 = vcvt.s32.f32 %v3621
      %v3624 = vcvt.s32.f32 %v3622
      %3625 = vmin.xlane.f32.xlu0 %v3624
      %v3626 = vpop.xlane.xlu0 %3625
      %vm3627 = vcmp.eq.f32.partialorder %v3624, %v3626
      %v3628 = vsel %vm3627, %v3623, inf
      %3629 = vmin.xlane.f32.xlu0 %v3628
      %v3630 = vpop.xlane.xlu0 %3629
      %v3631 = vcvt.f32.s32 %v3630
      %v3632 = vcvt.f32.s32 %v3626
      %v3633 = vshll.u32 %v3632, 16
      %v3634 = vadd.s32 %v3633, %v3631
      %v3635 = vsel %vm3327, %v3409, 2147483647
      %v3636 = vand.u32 %v3635, 65535
      %v3637 = vshra.s32 %v3635, 16
      %v3638 = vcvt.s32.f32 %v3636
      %v3639 = vcvt.s32.f32 %v3637
      %3640 = vmin.xlane.f32.xlu0 %v3639
      %v3641 = vpop.xlane.xlu0 %3640
      %vm3642 = vcmp.eq.f32.partialorder %v3639, %v3641
      %v3643 = vsel %vm3642, %v3638, inf
      %3644 = vmin.xlane.f32.xlu0 %v3643
      %v3645 = vpop.xlane.xlu0 %3644
      %v3646 = vcvt.f32.s32 %v3645
      %v3647 = vcvt.f32.s32 %v3641
      %v3648 = vshll.u32 %v3647, 16
      %v3649 = vadd.s32 %v3648, %v3646
      %vm3650 = vcmask 326912
      %v3651 = vsel %vm3650, %v2296, -inf
      %3652 = vmax.xlane.f32.xlu0 %v3651
      %v3653 = vpop.xlane.xlu0 %3652
      %v3654 = vsel %vm3650, %v2299, -inf
      %3655 = vmax.xlane.f32.xlu0 %v3654
      %v3656 = vpop.xlane.xlu0 %3655
      %v3657 = vsel %vm3650, %v2304, -inf
      %3658 = vmax.xlane.f32.xlu0 %v3657
      %v3659 = vpop.xlane.xlu0 %3658
      %v3660 = vsel %vm3650, %v2307, -inf
      %3661 = vmax.xlane.f32.xlu0 %v3660
      %v3662 = vpop.xlane.xlu0 %3661
      %v3663 = vsel %vm3650, %v2312, -inf
      %3664 = vmax.xlane.f32.xlu0 %v3663
      %v3665 = vpop.xlane.xlu0 %3664
      %v3666 = vsel %vm3650, %v2315, -inf
      %3667 = vmax.xlane.f32.xlu0 %v3666
      %v3668 = vpop.xlane.xlu0 %3667
      %v3669 = vsel %vm3650, %v2320, -inf
      %3670 = vmax.xlane.f32.xlu0 %v3669
      %v3671 = vpop.xlane.xlu0 %3670
      %v3672 = vsel %vm3650, %v2323, -inf
      %3673 = vmax.xlane.f32.xlu0 %v3672
      %v3674 = vpop.xlane.xlu0 %3673
      %v3675 = vsel %vm3650, %v2328, -inf
      %3676 = vmax.xlane.f32.xlu0 %v3675
      %v3677 = vpop.xlane.xlu0 %3676
      %v3678 = vsel %vm3650, %v2331, -inf
      %3679 = vmax.xlane.f32.xlu0 %v3678
      %v3680 = vpop.xlane.xlu0 %3679
      %v3681 = vsel %vm3650, %v2336, -inf
      %3682 = vmax.xlane.f32.xlu0 %v3681
      %v3683 = vpop.xlane.xlu0 %3682
      %v3684 = vsel %vm3650, %v2339, -inf
      %3685 = vmax.xlane.f32.xlu0 %v3684
      %v3686 = vpop.xlane.xlu0 %3685
      %v3687 = vsel %vm3650, %v2344, -inf
      %3688 = vmax.xlane.f32.xlu0 %v3687
      %v3689 = vpop.xlane.xlu0 %3688
      %v3690 = vsel %vm3650, %v2347, -inf
      %3691 = vmax.xlane.f32.xlu0 %v3690
      %v3692 = vpop.xlane.xlu0 %3691
      %v3693 = vsel %vm3650, %v2352, -inf
      %3694 = vmax.xlane.f32.xlu0 %v3693
      %v3695 = vpop.xlane.xlu0 %3694
      %v3696 = vsel %vm3650, %v2355, -inf
      %3697 = vmax.xlane.f32.xlu0 %v3696
      %v3698 = vpop.xlane.xlu0 %3697
      %vm3699 = vcmp.ge.f32.partialorder %v2296, %v3653
      %vm3700 = vcmp.ge.f32.partialorder %v2299, %v3656
      %vm3701 = vcmp.ge.f32.partialorder %v2304, %v3659
      %vm3702 = vcmp.ge.f32.partialorder %v2307, %v3662
      %vm3703 = vcmp.ge.f32.partialorder %v2312, %v3665
      %vm3704 = vcmp.ge.f32.partialorder %v2315, %v3668
      %vm3705 = vcmp.ge.f32.partialorder %v2320, %v3671
      %vm3706 = vcmp.ge.f32.partialorder %v2323, %v3674
      %vm3707 = vcmp.ge.f32.partialorder %v2328, %v3677
      %vm3708 = vcmp.ge.f32.partialorder %v2331, %v3680
      %vm3709 = vcmp.ge.f32.partialorder %v2336, %v3683
      %vm3710 = vcmp.ge.f32.partialorder %v2339, %v3686
      %vm3711 = vcmp.ge.f32.partialorder %v2344, %v3689
      %vm3712 = vcmp.ge.f32.partialorder %v2347, %v3692
      %vm3713 = vcmp.ge.f32.partialorder %v2352, %v3695
      %vm3714 = vcmp.ge.f32.partialorder %v2355, %v3698
      %3715 = vrot.lane.b32.xlu0 %v2408, 32
      %v3716 = vpop.permute.xlu0 %3715
      %v3717 = vsel %vm3699, %v3716, 8
      %v3718 = vsel %vm3700, %v3716, 8
      %v3719 = vsel %vm3701, %v3716, 8
      %v3720 = vsel %vm3702, %v3716, 8
      %v3721 = vsel %vm3703, %v3716, 8
      %v3722 = vsel %vm3704, %v3716, 8
      %v3723 = vsel %vm3705, %v3716, 8
      %v3724 = vsel %vm3706, %v3716, 8
      %v3725 = vsel %vm3707, %v3716, 8
      %v3726 = vsel %vm3708, %v3716, 8
      %v3727 = vsel %vm3709, %v3716, 8
      %v3728 = vsel %vm3710, %v3716, 8
      %v3729 = vsel %vm3711, %v3716, 8
      %v3730 = vsel %vm3712, %v3716, 8
      %v3731 = vsel %vm3713, %v3716, 8
      %v3732 = vsel %vm3714, %v3716, 8
      %v3733 = vsel %vm3650, %v3717, 2147483647
      %v3734 = vand.u32 %v3733, 65535
      %v3735 = vshra.s32 %v3733, 16
      %v3736 = vcvt.s32.f32 %v3734
      %v3737 = vcvt.s32.f32 %v3735
      %3738 = vmin.xlane.f32.xlu0 %v3737
      %v3739 = vpop.xlane.xlu0 %3738
      %vm3740 = vcmp.eq.f32.partialorder %v3737, %v3739
      %v3741 = vsel %vm3740, %v3736, inf
      %3742 = vmin.xlane.f32.xlu0 %v3741
      %v3743 = vpop.xlane.xlu0 %3742
      %v3744 = vcvt.f32.s32 %v3743
      %v3745 = vcvt.f32.s32 %v3739
      %v3746 = vshll.u32 %v3745, 16
      %v3747 = vadd.s32 %v3746, %v3744
      %v3748 = vsel %vm3650, %v3718, 2147483647
      %v3749 = vand.u32 %v3748, 65535
      %v3750 = vshra.s32 %v3748, 16
      %v3751 = vcvt.s32.f32 %v3749
      %v3752 = vcvt.s32.f32 %v3750
      %3753 = vmin.xlane.f32.xlu0 %v3752
      %v3754 = vpop.xlane.xlu0 %3753
      %vm3755 = vcmp.eq.f32.partialorder %v3752, %v3754
      %v3756 = vsel %vm3755, %v3751, inf
      %3757 = vmin.xlane.f32.xlu0 %v3756
      %v3758 = vpop.xlane.xlu0 %3757
      %v3759 = vcvt.f32.s32 %v3758
      %v3760 = vcvt.f32.s32 %v3754
      %v3761 = vshll.u32 %v3760, 16
      %v3762 = vadd.s32 %v3761, %v3759
      %v3763 = vsel %vm3650, %v3719, 2147483647
      %v3764 = vand.u32 %v3763, 65535
      %v3765 = vshra.s32 %v3763, 16
      %v3766 = vcvt.s32.f32 %v3764
      %v3767 = vcvt.s32.f32 %v3765
      %3768 = vmin.xlane.f32.xlu0 %v3767
      %v3769 = vpop.xlane.xlu0 %3768
      %vm3770 = vcmp.eq.f32.partialorder %v3767, %v3769
      %v3771 = vsel %vm3770, %v3766, inf
      %3772 = vmin.xlane.f32.xlu0 %v3771
      %v3773 = vpop.xlane.xlu0 %3772
      %v3774 = vcvt.f32.s32 %v3773
      %v3775 = vcvt.f32.s32 %v3769
      %v3776 = vshll.u32 %v3775, 16
      %v3777 = vadd.s32 %v3776, %v3774
      %v3778 = vsel %vm3650, %v3720, 2147483647
      %v3779 = vand.u32 %v3778, 65535
      %v3780 = vshra.s32 %v3778, 16
      %v3781 = vcvt.s32.f32 %v3779
      %v3782 = vcvt.s32.f32 %v3780
      %3783 = vmin.xlane.f32.xlu0 %v3782
      %v3784 = vpop.xlane.xlu0 %3783
      %vm3785 = vcmp.eq.f32.partialorder %v3782, %v3784
      %v3786 = vsel %vm3785, %v3781, inf
      %3787 = vmin.xlane.f32.xlu0 %v3786
      %v3788 = vpop.xlane.xlu0 %3787
      %v3789 = vcvt.f32.s32 %v3788
      %v3790 = vcvt.f32.s32 %v3784
      %v3791 = vshll.u32 %v3790, 16
      %v3792 = vadd.s32 %v3791, %v3789
      %v3793 = vsel %vm3650, %v3721, 2147483647
      %v3794 = vand.u32 %v3793, 65535
      %v3795 = vshra.s32 %v3793, 16
      %v3796 = vcvt.s32.f32 %v3794
      %v3797 = vcvt.s32.f32 %v3795
      %3798 = vmin.xlane.f32.xlu0 %v3797
      %v3799 = vpop.xlane.xlu0 %3798
      %vm3800 = vcmp.eq.f32.partialorder %v3797, %v3799
      %v3801 = vsel %vm3800, %v3796, inf
      %3802 = vmin.xlane.f32.xlu0 %v3801
      %v3803 = vpop.xlane.xlu0 %3802
      %v3804 = vcvt.f32.s32 %v3803
      %v3805 = vcvt.f32.s32 %v3799
      %v3806 = vshll.u32 %v3805, 16
      %v3807 = vadd.s32 %v3806, %v3804
      %v3808 = vsel %vm3650, %v3722, 2147483647
      %v3809 = vand.u32 %v3808, 65535
      %v3810 = vshra.s32 %v3808, 16
      %v3811 = vcvt.s32.f32 %v3809
      %v3812 = vcvt.s32.f32 %v3810
      %3813 = vmin.xlane.f32.xlu0 %v3812
      %v3814 = vpop.xlane.xlu0 %3813
      %vm3815 = vcmp.eq.f32.partialorder %v3812, %v3814
      %v3816 = vsel %vm3815, %v3811, inf
      %3817 = vmin.xlane.f32.xlu0 %v3816
      %v3818 = vpop.xlane.xlu0 %3817
      %v3819 = vcvt.f32.s32 %v3818
      %v3820 = vcvt.f32.s32 %v3814
      %v3821 = vshll.u32 %v3820, 16
      %v3822 = vadd.s32 %v3821, %v3819
      %v3823 = vsel %vm3650, %v3723, 2147483647
      %v3824 = vand.u32 %v3823, 65535
      %v3825 = vshra.s32 %v3823, 16
      %v3826 = vcvt.s32.f32 %v3824
      %v3827 = vcvt.s32.f32 %v3825
      %3828 = vmin.xlane.f32.xlu0 %v3827
      %v3829 = vpop.xlane.xlu0 %3828
      %vm3830 = vcmp.eq.f32.partialorder %v3827, %v3829
      %v3831 = vsel %vm3830, %v3826, inf
      %3832 = vmin.xlane.f32.xlu0 %v3831
      %v3833 = vpop.xlane.xlu0 %3832
      %v3834 = vcvt.f32.s32 %v3833
      %v3835 = vcvt.f32.s32 %v3829
      %v3836 = vshll.u32 %v3835, 16
      %v3837 = vadd.s32 %v3836, %v3834
      %v3838 = vsel %vm3650, %v3724, 2147483647
      %v3839 = vand.u32 %v3838, 65535
      %v3840 = vshra.s32 %v3838, 16
      %v3841 = vcvt.s32.f32 %v3839
      %v3842 = vcvt.s32.f32 %v3840
      %3843 = vmin.xlane.f32.xlu0 %v3842
      %v3844 = vpop.xlane.xlu0 %3843
      %vm3845 = vcmp.eq.f32.partialorder %v3842, %v3844
      %v3846 = vsel %vm3845, %v3841, inf
      %3847 = vmin.xlane.f32.xlu0 %v3846
      %v3848 = vpop.xlane.xlu0 %3847
      %v3849 = vcvt.f32.s32 %v3848
      %v3850 = vcvt.f32.s32 %v3844
      %v3851 = vshll.u32 %v3850, 16
      %v3852 = vadd.s32 %v3851, %v3849
      %v3853 = vsel %vm3650, %v3725, 2147483647
      %v3854 = vand.u32 %v3853, 65535
      %v3855 = vshra.s32 %v3853, 16
      %v3856 = vcvt.s32.f32 %v3854
      %v3857 = vcvt.s32.f32 %v3855
      %3858 = vmin.xlane.f32.xlu0 %v3857
      %v3859 = vpop.xlane.xlu0 %3858
      %vm3860 = vcmp.eq.f32.partialorder %v3857, %v3859
      %v3861 = vsel %vm3860, %v3856, inf
      %3862 = vmin.xlane.f32.xlu0 %v3861
      %v3863 = vpop.xlane.xlu0 %3862
      %v3864 = vcvt.f32.s32 %v3863
      %v3865 = vcvt.f32.s32 %v3859
      %v3866 = vshll.u32 %v3865, 16
      %v3867 = vadd.s32 %v3866, %v3864
      %v3868 = vsel %vm3650, %v3726, 2147483647
      %v3869 = vand.u32 %v3868, 65535
      %v3870 = vshra.s32 %v3868, 16
      %v3871 = vcvt.s32.f32 %v3869
      %v3872 = vcvt.s32.f32 %v3870
      %3873 = vmin.xlane.f32.xlu0 %v3872
      %v3874 = vpop.xlane.xlu0 %3873
      %vm3875 = vcmp.eq.f32.partialorder %v3872, %v3874
      %v3876 = vsel %vm3875, %v3871, inf
      %3877 = vmin.xlane.f32.xlu0 %v3876
      %v3878 = vpop.xlane.xlu0 %3877
      %v3879 = vcvt.f32.s32 %v3878
      %v3880 = vcvt.f32.s32 %v3874
      %v3881 = vshll.u32 %v3880, 16
      %v3882 = vadd.s32 %v3881, %v3879
      %v3883 = vsel %vm3650, %v3727, 2147483647
      %v3884 = vand.u32 %v3883, 65535
      %v3885 = vshra.s32 %v3883, 16
      %v3886 = vcvt.s32.f32 %v3884
      %v3887 = vcvt.s32.f32 %v3885
      %3888 = vmin.xlane.f32.xlu0 %v3887
      %v3889 = vpop.xlane.xlu0 %3888
      %vm3890 = vcmp.eq.f32.partialorder %v3887, %v3889
      %v3891 = vsel %vm3890, %v3886, inf
      %3892 = vmin.xlane.f32.xlu0 %v3891
      %v3893 = vpop.xlane.xlu0 %3892
      %v3894 = vcvt.f32.s32 %v3893
      %v3895 = vcvt.f32.s32 %v3889
      %v3896 = vshll.u32 %v3895, 16
      %v3897 = vadd.s32 %v3896, %v3894
      %v3898 = vsel %vm3650, %v3728, 2147483647
      %v3899 = vand.u32 %v3898, 65535
      %v3900 = vshra.s32 %v3898, 16
      %v3901 = vcvt.s32.f32 %v3899
      %v3902 = vcvt.s32.f32 %v3900
      %3903 = vmin.xlane.f32.xlu0 %v3902
      %v3904 = vpop.xlane.xlu0 %3903
      %vm3905 = vcmp.eq.f32.partialorder %v3902, %v3904
      %v3906 = vsel %vm3905, %v3901, inf
      %3907 = vmin.xlane.f32.xlu0 %v3906
      %v3908 = vpop.xlane.xlu0 %3907
      %v3909 = vcvt.f32.s32 %v3908
      %v3910 = vcvt.f32.s32 %v3904
      %v3911 = vshll.u32 %v3910, 16
      %v3912 = vadd.s32 %v3911, %v3909
      %v3913 = vsel %vm3650, %v3729, 2147483647
      %v3914 = vand.u32 %v3913, 65535
      %v3915 = vshra.s32 %v3913, 16
      %v3916 = vcvt.s32.f32 %v3914
      %v3917 = vcvt.s32.f32 %v3915
      %3918 = vmin.xlane.f32.xlu0 %v3917
      %v3919 = vpop.xlane.xlu0 %3918
      %vm3920 = vcmp.eq.f32.partialorder %v3917, %v3919
      %v3921 = vsel %vm3920, %v3916, inf
      %3922 = vmin.xlane.f32.xlu0 %v3921
      %v3923 = vpop.xlane.xlu0 %3922
      %v3924 = vcvt.f32.s32 %v3923
      %v3925 = vcvt.f32.s32 %v3919
      %v3926 = vshll.u32 %v3925, 16
      %v3927 = vadd.s32 %v3926, %v3924
      %v3928 = vsel %vm3650, %v3730, 2147483647
      %v3929 = vand.u32 %v3928, 65535
      %v3930 = vshra.s32 %v3928, 16
      %v3931 = vcvt.s32.f32 %v3929
      %v3932 = vcvt.s32.f32 %v3930
      %3933 = vmin.xlane.f32.xlu0 %v3932
      %v3934 = vpop.xlane.xlu0 %3933
      %vm3935 = vcmp.eq.f32.partialorder %v3932, %v3934
      %v3936 = vsel %vm3935, %v3931, inf
      %3937 = vmin.xlane.f32.xlu0 %v3936
      %v3938 = vpop.xlane.xlu0 %3937
      %v3939 = vcvt.f32.s32 %v3938
      %v3940 = vcvt.f32.s32 %v3934
      %v3941 = vshll.u32 %v3940, 16
      %v3942 = vadd.s32 %v3941, %v3939
      %v3943 = vsel %vm3650, %v3731, 2147483647
      %v3944 = vand.u32 %v3943, 65535
      %v3945 = vshra.s32 %v3943, 16
      %v3946 = vcvt.s32.f32 %v3944
      %v3947 = vcvt.s32.f32 %v3945
      %3948 = vmin.xlane.f32.xlu0 %v3947
      %v3949 = vpop.xlane.xlu0 %3948
      %vm3950 = vcmp.eq.f32.partialorder %v3947, %v3949
      %v3951 = vsel %vm3950, %v3946, inf
      %3952 = vmin.xlane.f32.xlu0 %v3951
      %v3953 = vpop.xlane.xlu0 %3952
      %v3954 = vcvt.f32.s32 %v3953
      %v3955 = vcvt.f32.s32 %v3949
      %v3956 = vshll.u32 %v3955, 16
      %v3957 = vadd.s32 %v3956, %v3954
      %v3958 = vsel %vm3650, %v3732, 2147483647
      %v3959 = vand.u32 %v3958, 65535
      %v3960 = vshra.s32 %v3958, 16
      %v3961 = vcvt.s32.f32 %v3959
      %v3962 = vcvt.s32.f32 %v3960
      %3963 = vmin.xlane.f32.xlu0 %v3962
      %v3964 = vpop.xlane.xlu0 %3963
      %vm3965 = vcmp.eq.f32.partialorder %v3962, %v3964
      %v3966 = vsel %vm3965, %v3961, inf
      %3967 = vmin.xlane.f32.xlu0 %v3966
      %v3968 = vpop.xlane.xlu0 %3967
      %v3969 = vcvt.f32.s32 %v3968
      %v3970 = vcvt.f32.s32 %v3964
      %v3971 = vshll.u32 %v3970, 16
      %v3972 = vadd.s32 %v3971, %v3969
      %vm3973 = vcmp.eq.s32.totalorder %v2778, %v2455
      %vm3974 = vcmp.eq.s32.totalorder %v2793, %v2470
      %vm3975 = vcmp.eq.s32.totalorder %v2808, %v2485
      %vm3976 = vcmp.eq.s32.totalorder %v2823, %v2500
      %vm3977 = vcmp.eq.s32.totalorder %v2838, %v2515
      %vm3978 = vcmp.eq.s32.totalorder %v2853, %v2530
      %vm3979 = vcmp.eq.s32.totalorder %v2868, %v2545
      %vm3980 = vcmp.eq.s32.totalorder %v2883, %v2560
      %vm3981 = vcmp.eq.s32.totalorder %v2898, %v2575
      %vm3982 = vcmp.eq.s32.totalorder %v2913, %v2590
      %vm3983 = vcmp.eq.s32.totalorder %v2928, %v2605
      %vm3984 = vcmp.eq.s32.totalorder %v2943, %v2620
      %vm3985 = vcmp.eq.s32.totalorder %v2958, %v2635
      %vm3986 = vcmp.eq.s32.totalorder %v2973, %v2650
      %vm3987 = vcmp.eq.s32.totalorder %v2988, %v2665
      %vm3988 = vcmp.eq.s32.totalorder %v3003, %v2680
      %v3989 = vsel %vm3973, 1, 0
      %v3990 = vsel %vm3974, 1, 0
      %v3991 = vsel %vm3975, 1, 0
      %v3992 = vsel %vm3976, 1, 0
      %v3993 = vsel %vm3977, 1, 0
      %v3994 = vsel %vm3978, 1, 0
      %v3995 = vsel %vm3979, 1, 0
      %v3996 = vsel %vm3980, 1, 0
      %v3997 = vsel %vm3981, 1, 0
      %v3998 = vsel %vm3982, 1, 0
      %v3999 = vsel %vm3983, 1, 0
      %v4000 = vsel %vm3984, 1, 0
      %v4001 = vsel %vm3985, 1, 0
      %v4002 = vsel %vm3986, 1, 0
      %v4003 = vsel %vm3987, 1, 0
      %v4004 = vsel %vm3988, 1, 0
      %v4005 = vadd.s32 %v3989, 1
      %v4006 = vadd.s32 %v3990, 1
      %v4007 = vadd.s32 %v3991, 1
      %v4008 = vadd.s32 %v3992, 1
      %v4009 = vadd.s32 %v3993, 1
      %v4010 = vadd.s32 %v3994, 1
      %v4011 = vadd.s32 %v3995, 1
      %v4012 = vadd.s32 %v3996, 1
      %v4013 = vadd.s32 %v3997, 1
      %v4014 = vadd.s32 %v3998, 1
      %v4015 = vadd.s32 %v3999, 1
      %v4016 = vadd.s32 %v4000, 1
      %v4017 = vadd.s32 %v4001, 1
      %v4018 = vadd.s32 %v4002, 1
      %v4019 = vadd.s32 %v4003, 1
      %v4020 = vadd.s32 %v4004, 1
      %vm4021 = vcmp.eq.s32.totalorder %v3101, %v2455
      %vm4022 = vcmp.eq.s32.totalorder %v3116, %v2470
      %vm4023 = vcmp.eq.s32.totalorder %v3131, %v2485
      %vm4024 = vcmp.eq.s32.totalorder %v3146, %v2500
      %vm4025 = vcmp.eq.s32.totalorder %v3161, %v2515
      %vm4026 = vcmp.eq.s32.totalorder %v3176, %v2530
      %vm4027 = vcmp.eq.s32.totalorder %v3191, %v2545
      %vm4028 = vcmp.eq.s32.totalorder %v3206, %v2560
      %vm4029 = vcmp.eq.s32.totalorder %v3221, %v2575
      %vm4030 = vcmp.eq.s32.totalorder %v3236, %v2590
      %vm4031 = vcmp.eq.s32.totalorder %v3251, %v2605
      %vm4032 = vcmp.eq.s32.totalorder %v3266, %v2620
      %vm4033 = vcmp.eq.s32.totalorder %v3281, %v2635
      %vm4034 = vcmp.eq.s32.totalorder %v3296, %v2650
      %vm4035 = vcmp.eq.s32.totalorder %v3311, %v2665
      %vm4036 = vcmp.eq.s32.totalorder %v3326, %v2680
      %v4037 = vsel %vm4021, 1, 0
      %v4038 = vsel %vm4022, 1, 0
      %v4039 = vsel %vm4023, 1, 0
      %v4040 = vsel %vm4024, 1, 0
      %v4041 = vsel %vm4025, 1, 0
      %v4042 = vsel %vm4026, 1, 0
      %v4043 = vsel %vm4027, 1, 0
      %v4044 = vsel %vm4028, 1, 0
      %v4045 = vsel %vm4029, 1, 0
      %v4046 = vsel %vm4030, 1, 0
      %v4047 = vsel %vm4031, 1, 0
      %v4048 = vsel %vm4032, 1, 0
      %v4049 = vsel %vm4033, 1, 0
      %v4050 = vsel %vm4034, 1, 0
      %v4051 = vsel %vm4035, 1, 0
      %v4052 = vsel %vm4036, 1, 0
      %v4053 = vadd.s32 %v4005, %v4037
      %v4054 = vadd.s32 %v4006, %v4038
      %v4055 = vadd.s32 %v4007, %v4039
      %v4056 = vadd.s32 %v4008, %v4040
      %v4057 = vadd.s32 %v4009, %v4041
      %v4058 = vadd.s32 %v4010, %v4042
      %v4059 = vadd.s32 %v4011, %v4043
      %v4060 = vadd.s32 %v4012, %v4044
      %v4061 = vadd.s32 %v4013, %v4045
      %v4062 = vadd.s32 %v4014, %v4046
      %v4063 = vadd.s32 %v4015, %v4047
      %v4064 = vadd.s32 %v4016, %v4048
      %v4065 = vadd.s32 %v4017, %v4049
      %v4066 = vadd.s32 %v4018, %v4050
      %v4067 = vadd.s32 %v4019, %v4051
      %v4068 = vadd.s32 %v4020, %v4052
      %vm4069 = vcmp.eq.s32.totalorder %v3424, %v2455
      %vm4070 = vcmp.eq.s32.totalorder %v3439, %v2470
      %vm4071 = vcmp.eq.s32.totalorder %v3454, %v2485
      %vm4072 = vcmp.eq.s32.totalorder %v3469, %v2500
      %vm4073 = vcmp.eq.s32.totalorder %v3484, %v2515
      %vm4074 = vcmp.eq.s32.totalorder %v3499, %v2530
      %vm4075 = vcmp.eq.s32.totalorder %v3514, %v2545
      %vm4076 = vcmp.eq.s32.totalorder %v3529, %v2560
      %vm4077 = vcmp.eq.s32.totalorder %v3544, %v2575
      %vm4078 = vcmp.eq.s32.totalorder %v3559, %v2590
      %vm4079 = vcmp.eq.s32.totalorder %v3574, %v2605
      %vm4080 = vcmp.eq.s32.totalorder %v3589, %v2620
      %vm4081 = vcmp.eq.s32.totalorder %v3604, %v2635
      %vm4082 = vcmp.eq.s32.totalorder %v3619, %v2650
      %vm4083 = vcmp.eq.s32.totalorder %v3634, %v2665
      %vm4084 = vcmp.eq.s32.totalorder %v3649, %v2680
      %v4085 = vsel %vm4069, 1, 0
      %v4086 = vsel %vm4070, 1, 0
      %v4087 = vsel %vm4071, 1, 0
      %v4088 = vsel %vm4072, 1, 0
      %v4089 = vsel %vm4073, 1, 0
      %v4090 = vsel %vm4074, 1, 0
      %v4091 = vsel %vm4075, 1, 0
      %v4092 = vsel %vm4076, 1, 0
      %v4093 = vsel %vm4077, 1, 0
      %v4094 = vsel %vm4078, 1, 0
      %v4095 = vsel %vm4079, 1, 0
      %v4096 = vsel %vm4080, 1, 0
      %v4097 = vsel %vm4081, 1, 0
      %v4098 = vsel %vm4082, 1, 0
      %v4099 = vsel %vm4083, 1, 0
      %v4100 = vsel %vm4084, 1, 0
      %v4101 = vadd.s32 %v4053, %v4085
      %v4102 = vadd.s32 %v4054, %v4086
      %v4103 = vadd.s32 %v4055, %v4087
      %v4104 = vadd.s32 %v4056, %v4088
      %v4105 = vadd.s32 %v4057, %v4089
      %v4106 = vadd.s32 %v4058, %v4090
      %v4107 = vadd.s32 %v4059, %v4091
      %v4108 = vadd.s32 %v4060, %v4092
      %v4109 = vadd.s32 %v4061, %v4093
      %v4110 = vadd.s32 %v4062, %v4094
      %v4111 = vadd.s32 %v4063, %v4095
      %v4112 = vadd.s32 %v4064, %v4096
      %v4113 = vadd.s32 %v4065, %v4097
      %v4114 = vadd.s32 %v4066, %v4098
      %v4115 = vadd.s32 %v4067, %v4099
      %v4116 = vadd.s32 %v4068, %v4100
      %vm4117 = vcmp.eq.s32.totalorder %v3747, %v2455
      %vm4118 = vcmp.eq.s32.totalorder %v3762, %v2470
      %vm4119 = vcmp.eq.s32.totalorder %v3777, %v2485
      %vm4120 = vcmp.eq.s32.totalorder %v3792, %v2500
      %vm4121 = vcmp.eq.s32.totalorder %v3807, %v2515
      %vm4122 = vcmp.eq.s32.totalorder %v3822, %v2530
      %vm4123 = vcmp.eq.s32.totalorder %v3837, %v2545
      %vm4124 = vcmp.eq.s32.totalorder %v3852, %v2560
      %vm4125 = vcmp.eq.s32.totalorder %v3867, %v2575
      %vm4126 = vcmp.eq.s32.totalorder %v3882, %v2590
      %vm4127 = vcmp.eq.s32.totalorder %v3897, %v2605
      %vm4128 = vcmp.eq.s32.totalorder %v3912, %v2620
      %vm4129 = vcmp.eq.s32.totalorder %v3927, %v2635
      %vm4130 = vcmp.eq.s32.totalorder %v3942, %v2650
      %vm4131 = vcmp.eq.s32.totalorder %v3957, %v2665
      %vm4132 = vcmp.eq.s32.totalorder %v3972, %v2680
      %v4133 = vsel %vm4117, 1, 0
      %v4134 = vsel %vm4118, 1, 0
      %v4135 = vsel %vm4119, 1, 0
      %v4136 = vsel %vm4120, 1, 0
      %v4137 = vsel %vm4121, 1, 0
      %v4138 = vsel %vm4122, 1, 0
      %v4139 = vsel %vm4123, 1, 0
      %v4140 = vsel %vm4124, 1, 0
      %v4141 = vsel %vm4125, 1, 0
      %v4142 = vsel %vm4126, 1, 0
      %v4143 = vsel %vm4127, 1, 0
      %v4144 = vsel %vm4128, 1, 0
      %v4145 = vsel %vm4129, 1, 0
      %v4146 = vsel %vm4130, 1, 0
      %v4147 = vsel %vm4131, 1, 0
      %v4148 = vsel %vm4132, 1, 0
      %v4149 = vadd.s32 %v4101, %v4133
      %v4150 = vadd.s32 %v4102, %v4134
      %v4151 = vadd.s32 %v4103, %v4135
      %v4152 = vadd.s32 %v4104, %v4136
      %v4153 = vadd.s32 %v4105, %v4137
      %v4154 = vadd.s32 %v4106, %v4138
      %v4155 = vadd.s32 %v4107, %v4139
      %v4156 = vadd.s32 %v4108, %v4140
      %v4157 = vadd.s32 %v4109, %v4141
      %v4158 = vadd.s32 %v4110, %v4142
      %v4159 = vadd.s32 %v4111, %v4143
      %v4160 = vadd.s32 %v4112, %v4144
      %v4161 = vadd.s32 %v4113, %v4145
      %v4162 = vadd.s32 %v4114, %v4146
      %v4163 = vadd.s32 %v4115, %v4147
      %v4164 = vadd.s32 %v4116, %v4148
      %vm4165 = vcmp.eq.s32.totalorder %v2455, %v2778
      %vm4166 = vcmp.eq.s32.totalorder %v2470, %v2793
      %vm4167 = vcmp.eq.s32.totalorder %v2485, %v2808
      %vm4168 = vcmp.eq.s32.totalorder %v2500, %v2823
      %vm4169 = vcmp.eq.s32.totalorder %v2515, %v2838
      %vm4170 = vcmp.eq.s32.totalorder %v2530, %v2853
      %vm4171 = vcmp.eq.s32.totalorder %v2545, %v2868
      %vm4172 = vcmp.eq.s32.totalorder %v2560, %v2883
      %vm4173 = vcmp.eq.s32.totalorder %v2575, %v2898
      %vm4174 = vcmp.eq.s32.totalorder %v2590, %v2913
      %vm4175 = vcmp.eq.s32.totalorder %v2605, %v2928
      %vm4176 = vcmp.eq.s32.totalorder %v2620, %v2943
      %vm4177 = vcmp.eq.s32.totalorder %v2635, %v2958
      %vm4178 = vcmp.eq.s32.totalorder %v2650, %v2973
      %vm4179 = vcmp.eq.s32.totalorder %v2665, %v2988
      %vm4180 = vcmp.eq.s32.totalorder %v2680, %v3003
      %v4181 = vsel %vm4165, 1, 0
      %v4182 = vsel %vm4166, 1, 0
      %v4183 = vsel %vm4167, 1, 0
      %v4184 = vsel %vm4168, 1, 0
      %v4185 = vsel %vm4169, 1, 0
      %v4186 = vsel %vm4170, 1, 0
      %v4187 = vsel %vm4171, 1, 0
      %v4188 = vsel %vm4172, 1, 0
      %v4189 = vsel %vm4173, 1, 0
      %v4190 = vsel %vm4174, 1, 0
      %v4191 = vsel %vm4175, 1, 0
      %v4192 = vsel %vm4176, 1, 0
      %v4193 = vsel %vm4177, 1, 0
      %v4194 = vsel %vm4178, 1, 0
      %v4195 = vsel %vm4179, 1, 0
      %v4196 = vsel %vm4180, 1, 0
      %v4197 = vadd.s32 %v4181, 1
      %v4198 = vadd.s32 %v4182, 1
      %v4199 = vadd.s32 %v4183, 1
      %v4200 = vadd.s32 %v4184, 1
      %v4201 = vadd.s32 %v4185, 1
      %v4202 = vadd.s32 %v4186, 1
      %v4203 = vadd.s32 %v4187, 1
      %v4204 = vadd.s32 %v4188, 1
      %v4205 = vadd.s32 %v4189, 1
      %v4206 = vadd.s32 %v4190, 1
      %v4207 = vadd.s32 %v4191, 1
      %v4208 = vadd.s32 %v4192, 1
      %v4209 = vadd.s32 %v4193, 1
      %v4210 = vadd.s32 %v4194, 1
      %v4211 = vadd.s32 %v4195, 1
      %v4212 = vadd.s32 %v4196, 1
      %vm4213 = vcmp.eq.s32.totalorder %v3101, %v2778
      %vm4214 = vcmp.eq.s32.totalorder %v3116, %v2793
      %vm4215 = vcmp.eq.s32.totalorder %v3131, %v2808
      %vm4216 = vcmp.eq.s32.totalorder %v3146, %v2823
      %vm4217 = vcmp.eq.s32.totalorder %v3161, %v2838
      %vm4218 = vcmp.eq.s32.totalorder %v3176, %v2853
      %vm4219 = vcmp.eq.s32.totalorder %v3191, %v2868
      %vm4220 = vcmp.eq.s32.totalorder %v3206, %v2883
      %vm4221 = vcmp.eq.s32.totalorder %v3221, %v2898
      %vm4222 = vcmp.eq.s32.totalorder %v3236, %v2913
      %vm4223 = vcmp.eq.s32.totalorder %v3251, %v2928
      %vm4224 = vcmp.eq.s32.totalorder %v3266, %v2943
      %vm4225 = vcmp.eq.s32.totalorder %v3281, %v2958
      %vm4226 = vcmp.eq.s32.totalorder %v3296, %v2973
      %vm4227 = vcmp.eq.s32.totalorder %v3311, %v2988
      %vm4228 = vcmp.eq.s32.totalorder %v3326, %v3003
      %v4229 = vsel %vm4213, 1, 0
      %v4230 = vsel %vm4214, 1, 0
      %v4231 = vsel %vm4215, 1, 0
      %v4232 = vsel %vm4216, 1, 0
      %v4233 = vsel %vm4217, 1, 0
      %v4234 = vsel %vm4218, 1, 0
      %v4235 = vsel %vm4219, 1, 0
      %v4236 = vsel %vm4220, 1, 0
      %v4237 = vsel %vm4221, 1, 0
      %v4238 = vsel %vm4222, 1, 0
      %v4239 = vsel %vm4223, 1, 0
      %v4240 = vsel %vm4224, 1, 0
      %v4241 = vsel %vm4225, 1, 0
      %v4242 = vsel %vm4226, 1, 0
      %v4243 = vsel %vm4227, 1, 0
      %v4244 = vsel %vm4228, 1, 0
      %v4245 = vadd.s32 %v4197, %v4229
      %v4246 = vadd.s32 %v4198, %v4230
      %v4247 = vadd.s32 %v4199, %v4231
      %v4248 = vadd.s32 %v4200, %v4232
      %v4249 = vadd.s32 %v4201, %v4233
      %v4250 = vadd.s32 %v4202, %v4234
      %v4251 = vadd.s32 %v4203, %v4235
      %v4252 = vadd.s32 %v4204, %v4236
      %v4253 = vadd.s32 %v4205, %v4237
      %v4254 = vadd.s32 %v4206, %v4238
      %v4255 = vadd.s32 %v4207, %v4239
      %v4256 = vadd.s32 %v4208, %v4240
      %v4257 = vadd.s32 %v4209, %v4241
      %v4258 = vadd.s32 %v4210, %v4242
      %v4259 = vadd.s32 %v4211, %v4243
      %v4260 = vadd.s32 %v4212, %v4244
      %vm4261 = vcmp.eq.s32.totalorder %v3424, %v2778
      %vm4262 = vcmp.eq.s32.totalorder %v3439, %v2793
      %vm4263 = vcmp.eq.s32.totalorder %v3454, %v2808
      %vm4264 = vcmp.eq.s32.totalorder %v3469, %v2823
      %vm4265 = vcmp.eq.s32.totalorder %v3484, %v2838
      %vm4266 = vcmp.eq.s32.totalorder %v3499, %v2853
      %vm4267 = vcmp.eq.s32.totalorder %v3514, %v2868
      %vm4268 = vcmp.eq.s32.totalorder %v3529, %v2883
      %vm4269 = vcmp.eq.s32.totalorder %v3544, %v2898
      %vm4270 = vcmp.eq.s32.totalorder %v3559, %v2913
      %vm4271 = vcmp.eq.s32.totalorder %v3574, %v2928
      %vm4272 = vcmp.eq.s32.totalorder %v3589, %v2943
      %vm4273 = vcmp.eq.s32.totalorder %v3604, %v2958
      %vm4274 = vcmp.eq.s32.totalorder %v3619, %v2973
      %vm4275 = vcmp.eq.s32.totalorder %v3634, %v2988
      %vm4276 = vcmp.eq.s32.totalorder %v3649, %v3003
      %v4277 = vsel %vm4261, 1, 0
      %v4278 = vsel %vm4262, 1, 0
      %v4279 = vsel %vm4263, 1, 0
      %v4280 = vsel %vm4264, 1, 0
      %v4281 = vsel %vm4265, 1, 0
      %v4282 = vsel %vm4266, 1, 0
      %v4283 = vsel %vm4267, 1, 0
      %v4284 = vsel %vm4268, 1, 0
      %v4285 = vsel %vm4269, 1, 0
      %v4286 = vsel %vm4270, 1, 0
      %v4287 = vsel %vm4271, 1, 0
      %v4288 = vsel %vm4272, 1, 0
      %v4289 = vsel %vm4273, 1, 0
      %v4290 = vsel %vm4274, 1, 0
      %v4291 = vsel %vm4275, 1, 0
      %v4292 = vsel %vm4276, 1, 0
      %v4293 = vadd.s32 %v4245, %v4277
      %v4294 = vadd.s32 %v4246, %v4278
      %v4295 = vadd.s32 %v4247, %v4279
      %v4296 = vadd.s32 %v4248, %v4280
      %v4297 = vadd.s32 %v4249, %v4281
      %v4298 = vadd.s32 %v4250, %v4282
      %v4299 = vadd.s32 %v4251, %v4283
      %v4300 = vadd.s32 %v4252, %v4284
      %v4301 = vadd.s32 %v4253, %v4285
      %v4302 = vadd.s32 %v4254, %v4286
      %v4303 = vadd.s32 %v4255, %v4287
      %v4304 = vadd.s32 %v4256, %v4288
      %v4305 = vadd.s32 %v4257, %v4289
      %v4306 = vadd.s32 %v4258, %v4290
      %v4307 = vadd.s32 %v4259, %v4291
      %v4308 = vadd.s32 %v4260, %v4292
      %vm4309 = vcmp.eq.s32.totalorder %v3747, %v2778
      %vm4310 = vcmp.eq.s32.totalorder %v3762, %v2793
      %vm4311 = vcmp.eq.s32.totalorder %v3777, %v2808
      %vm4312 = vcmp.eq.s32.totalorder %v3792, %v2823
      %vm4313 = vcmp.eq.s32.totalorder %v3807, %v2838
      %vm4314 = vcmp.eq.s32.totalorder %v3822, %v2853
      %vm4315 = vcmp.eq.s32.totalorder %v3837, %v2868
      %vm4316 = vcmp.eq.s32.totalorder %v3852, %v2883
      %vm4317 = vcmp.eq.s32.totalorder %v3867, %v2898
      %vm4318 = vcmp.eq.s32.totalorder %v3882, %v2913
      %vm4319 = vcmp.eq.s32.totalorder %v3897, %v2928
      %vm4320 = vcmp.eq.s32.totalorder %v3912, %v2943
      %vm4321 = vcmp.eq.s32.totalorder %v3927, %v2958
      %vm4322 = vcmp.eq.s32.totalorder %v3942, %v2973
      %vm4323 = vcmp.eq.s32.totalorder %v3957, %v2988
      %vm4324 = vcmp.eq.s32.totalorder %v3972, %v3003
      %v4325 = vsel %vm4309, 1, 0
      %v4326 = vsel %vm4310, 1, 0
      %v4327 = vsel %vm4311, 1, 0
      %v4328 = vsel %vm4312, 1, 0
      %v4329 = vsel %vm4313, 1, 0
      %v4330 = vsel %vm4314, 1, 0
      %v4331 = vsel %vm4315, 1, 0
      %v4332 = vsel %vm4316, 1, 0
      %v4333 = vsel %vm4317, 1, 0
      %v4334 = vsel %vm4318, 1, 0
      %v4335 = vsel %vm4319, 1, 0
      %v4336 = vsel %vm4320, 1, 0
      %v4337 = vsel %vm4321, 1, 0
      %v4338 = vsel %vm4322, 1, 0
      %v4339 = vsel %vm4323, 1, 0
      %v4340 = vsel %vm4324, 1, 0
      %v4341 = vadd.s32 %v4293, %v4325
      %v4342 = vadd.s32 %v4294, %v4326
      %v4343 = vadd.s32 %v4295, %v4327
      %v4344 = vadd.s32 %v4296, %v4328
      %v4345 = vadd.s32 %v4297, %v4329
      %v4346 = vadd.s32 %v4298, %v4330
      %v4347 = vadd.s32 %v4299, %v4331
      %v4348 = vadd.s32 %v4300, %v4332
      %v4349 = vadd.s32 %v4301, %v4333
      %v4350 = vadd.s32 %v4302, %v4334
      %v4351 = vadd.s32 %v4303, %v4335
      %v4352 = vadd.s32 %v4304, %v4336
      %v4353 = vadd.s32 %v4305, %v4337
      %v4354 = vadd.s32 %v4306, %v4338
      %v4355 = vadd.s32 %v4307, %v4339
      %v4356 = vadd.s32 %v4308, %v4340
      %vm4357 = vcmp.eq.s32.totalorder %v2455, %v3101
      %vm4358 = vcmp.eq.s32.totalorder %v2470, %v3116
      %vm4359 = vcmp.eq.s32.totalorder %v2485, %v3131
      %vm4360 = vcmp.eq.s32.totalorder %v2500, %v3146
      %vm4361 = vcmp.eq.s32.totalorder %v2515, %v3161
      %vm4362 = vcmp.eq.s32.totalorder %v2530, %v3176
      %vm4363 = vcmp.eq.s32.totalorder %v2545, %v3191
      %vm4364 = vcmp.eq.s32.totalorder %v2560, %v3206
      %vm4365 = vcmp.eq.s32.totalorder %v2575, %v3221
      %vm4366 = vcmp.eq.s32.totalorder %v2590, %v3236
      %vm4367 = vcmp.eq.s32.totalorder %v2605, %v3251
      %vm4368 = vcmp.eq.s32.totalorder %v2620, %v3266
      %vm4369 = vcmp.eq.s32.totalorder %v2635, %v3281
      %vm4370 = vcmp.eq.s32.totalorder %v2650, %v3296
      %vm4371 = vcmp.eq.s32.totalorder %v2665, %v3311
      %vm4372 = vcmp.eq.s32.totalorder %v2680, %v3326
      %v4373 = vsel %vm4357, 1, 0
      %v4374 = vsel %vm4358, 1, 0
      %v4375 = vsel %vm4359, 1, 0
      %v4376 = vsel %vm4360, 1, 0
      %v4377 = vsel %vm4361, 1, 0
      %v4378 = vsel %vm4362, 1, 0
      %v4379 = vsel %vm4363, 1, 0
      %v4380 = vsel %vm4364, 1, 0
      %v4381 = vsel %vm4365, 1, 0
      %v4382 = vsel %vm4366, 1, 0
      %v4383 = vsel %vm4367, 1, 0
      %v4384 = vsel %vm4368, 1, 0
      %v4385 = vsel %vm4369, 1, 0
      %v4386 = vsel %vm4370, 1, 0
      %v4387 = vsel %vm4371, 1, 0
      %v4388 = vsel %vm4372, 1, 0
      %vm4389 = vcmp.eq.s32.totalorder %v2778, %v3101
      %vm4390 = vcmp.eq.s32.totalorder %v2793, %v3116
      %vm4391 = vcmp.eq.s32.totalorder %v2808, %v3131
      %vm4392 = vcmp.eq.s32.totalorder %v2823, %v3146
      %vm4393 = vcmp.eq.s32.totalorder %v2838, %v3161
      %vm4394 = vcmp.eq.s32.totalorder %v2853, %v3176
      %vm4395 = vcmp.eq.s32.totalorder %v2868, %v3191
      %vm4396 = vcmp.eq.s32.totalorder %v2883, %v3206
      %vm4397 = vcmp.eq.s32.totalorder %v2898, %v3221
      %vm4398 = vcmp.eq.s32.totalorder %v2913, %v3236
      %vm4399 = vcmp.eq.s32.totalorder %v2928, %v3251
      %vm4400 = vcmp.eq.s32.totalorder %v2943, %v3266
      %vm4401 = vcmp.eq.s32.totalorder %v2958, %v3281
      %vm4402 = vcmp.eq.s32.totalorder %v2973, %v3296
      %vm4403 = vcmp.eq.s32.totalorder %v2988, %v3311
      %vm4404 = vcmp.eq.s32.totalorder %v3003, %v3326
      %v4405 = vsel %vm4389, 1, 0
      %v4406 = vsel %vm4390, 1, 0
      %v4407 = vsel %vm4391, 1, 0
      %v4408 = vsel %vm4392, 1, 0
      %v4409 = vsel %vm4393, 1, 0
      %v4410 = vsel %vm4394, 1, 0
      %v4411 = vsel %vm4395, 1, 0
      %v4412 = vsel %vm4396, 1, 0
      %v4413 = vsel %vm4397, 1, 0
      %v4414 = vsel %vm4398, 1, 0
      %v4415 = vsel %vm4399, 1, 0
      %v4416 = vsel %vm4400, 1, 0
      %v4417 = vsel %vm4401, 1, 0
      %v4418 = vsel %vm4402, 1, 0
      %v4419 = vsel %vm4403, 1, 0
      %v4420 = vsel %vm4404, 1, 0
      %v4421 = vadd.s32 %v4373, %v4405
      %v4422 = vadd.s32 %v4374, %v4406
      %v4423 = vadd.s32 %v4375, %v4407
      %v4424 = vadd.s32 %v4376, %v4408
      %v4425 = vadd.s32 %v4377, %v4409
      %v4426 = vadd.s32 %v4378, %v4410
      %v4427 = vadd.s32 %v4379, %v4411
      %v4428 = vadd.s32 %v4380, %v4412
      %v4429 = vadd.s32 %v4381, %v4413
      %v4430 = vadd.s32 %v4382, %v4414
      %v4431 = vadd.s32 %v4383, %v4415
      %v4432 = vadd.s32 %v4384, %v4416
      %v4433 = vadd.s32 %v4385, %v4417
      %v4434 = vadd.s32 %v4386, %v4418
      %v4435 = vadd.s32 %v4387, %v4419
      %v4436 = vadd.s32 %v4388, %v4420
      %v4437 = vadd.s32 %v4421, 1
      %v4438 = vadd.s32 %v4422, 1
      %v4439 = vadd.s32 %v4423, 1
      %v4440 = vadd.s32 %v4424, 1
      %v4441 = vadd.s32 %v4425, 1
      %v4442 = vadd.s32 %v4426, 1
      %v4443 = vadd.s32 %v4427, 1
      %v4444 = vadd.s32 %v4428, 1
      %v4445 = vadd.s32 %v4429, 1
      %v4446 = vadd.s32 %v4430, 1
      %v4447 = vadd.s32 %v4431, 1
      %v4448 = vadd.s32 %v4432, 1
      %v4449 = vadd.s32 %v4433, 1
      %v4450 = vadd.s32 %v4434, 1
      %v4451 = vadd.s32 %v4435, 1
      %v4452 = vadd.s32 %v4436, 1
      %vm4453 = vcmp.eq.s32.totalorder %v3424, %v3101
      %vm4454 = vcmp.eq.s32.totalorder %v3439, %v3116
      %vm4455 = vcmp.eq.s32.totalorder %v3454, %v3131
      %vm4456 = vcmp.eq.s32.totalorder %v3469, %v3146
      %vm4457 = vcmp.eq.s32.totalorder %v3484, %v3161
      %vm4458 = vcmp.eq.s32.totalorder %v3499, %v3176
      %vm4459 = vcmp.eq.s32.totalorder %v3514, %v3191
      %vm4460 = vcmp.eq.s32.totalorder %v3529, %v3206
      %vm4461 = vcmp.eq.s32.totalorder %v3544, %v3221
      %vm4462 = vcmp.eq.s32.totalorder %v3559, %v3236
      %vm4463 = vcmp.eq.s32.totalorder %v3574, %v3251
      %vm4464 = vcmp.eq.s32.totalorder %v3589, %v3266
      %vm4465 = vcmp.eq.s32.totalorder %v3604, %v3281
      %vm4466 = vcmp.eq.s32.totalorder %v3619, %v3296
      %vm4467 = vcmp.eq.s32.totalorder %v3634, %v3311
      %vm4468 = vcmp.eq.s32.totalorder %v3649, %v3326
      %v4469 = vsel %vm4453, 1, 0
      %v4470 = vsel %vm4454, 1, 0
      %v4471 = vsel %vm4455, 1, 0
      %v4472 = vsel %vm4456, 1, 0
      %v4473 = vsel %vm4457, 1, 0
      %v4474 = vsel %vm4458, 1, 0
      %v4475 = vsel %vm4459, 1, 0
      %v4476 = vsel %vm4460, 1, 0
      %v4477 = vsel %vm4461, 1, 0
      %v4478 = vsel %vm4462, 1, 0
      %v4479 = vsel %vm4463, 1, 0
      %v4480 = vsel %vm4464, 1, 0
      %v4481 = vsel %vm4465, 1, 0
      %v4482 = vsel %vm4466, 1, 0
      %v4483 = vsel %vm4467, 1, 0
      %v4484 = vsel %vm4468, 1, 0
      %v4485 = vadd.s32 %v4437, %v4469
      %v4486 = vadd.s32 %v4438, %v4470
      %v4487 = vadd.s32 %v4439, %v4471
      %v4488 = vadd.s32 %v4440, %v4472
      %v4489 = vadd.s32 %v4441, %v4473
      %v4490 = vadd.s32 %v4442, %v4474
      %v4491 = vadd.s32 %v4443, %v4475
      %v4492 = vadd.s32 %v4444, %v4476
      %v4493 = vadd.s32 %v4445, %v4477
      %v4494 = vadd.s32 %v4446, %v4478
      %v4495 = vadd.s32 %v4447, %v4479
      %v4496 = vadd.s32 %v4448, %v4480
      %v4497 = vadd.s32 %v4449, %v4481
      %v4498 = vadd.s32 %v4450, %v4482
      %v4499 = vadd.s32 %v4451, %v4483
      %v4500 = vadd.s32 %v4452, %v4484
      %vm4501 = vcmp.eq.s32.totalorder %v3747, %v3101
      %vm4502 = vcmp.eq.s32.totalorder %v3762, %v3116
      %vm4503 = vcmp.eq.s32.totalorder %v3777, %v3131
      %vm4504 = vcmp.eq.s32.totalorder %v3792, %v3146
      %vm4505 = vcmp.eq.s32.totalorder %v3807, %v3161
      %vm4506 = vcmp.eq.s32.totalorder %v3822, %v3176
      %vm4507 = vcmp.eq.s32.totalorder %v3837, %v3191
      %vm4508 = vcmp.eq.s32.totalorder %v3852, %v3206
      %vm4509 = vcmp.eq.s32.totalorder %v3867, %v3221
      %vm4510 = vcmp.eq.s32.totalorder %v3882, %v3236
      %vm4511 = vcmp.eq.s32.totalorder %v3897, %v3251
      %vm4512 = vcmp.eq.s32.totalorder %v3912, %v3266
      %vm4513 = vcmp.eq.s32.totalorder %v3927, %v3281
      %vm4514 = vcmp.eq.s32.totalorder %v3942, %v3296
      %vm4515 = vcmp.eq.s32.totalorder %v3957, %v3311
      %vm4516 = vcmp.eq.s32.totalorder %v3972, %v3326
      %v4517 = vsel %vm4501, 1, 0
      %v4518 = vsel %vm4502, 1, 0
      %v4519 = vsel %vm4503, 1, 0
      %v4520 = vsel %vm4504, 1, 0
      %v4521 = vsel %vm4505, 1, 0
      %v4522 = vsel %vm4506, 1, 0
      %v4523 = vsel %vm4507, 1, 0
      %v4524 = vsel %vm4508, 1, 0
      %v4525 = vsel %vm4509, 1, 0
      %v4526 = vsel %vm4510, 1, 0
      %v4527 = vsel %vm4511, 1, 0
      %v4528 = vsel %vm4512, 1, 0
      %v4529 = vsel %vm4513, 1, 0
      %v4530 = vsel %vm4514, 1, 0
      %v4531 = vsel %vm4515, 1, 0
      %v4532 = vsel %vm4516, 1, 0
      %v4533 = vadd.s32 %v4485, %v4517
      %v4534 = vadd.s32 %v4486, %v4518
      %v4535 = vadd.s32 %v4487, %v4519
      %v4536 = vadd.s32 %v4488, %v4520
      %v4537 = vadd.s32 %v4489, %v4521
      %v4538 = vadd.s32 %v4490, %v4522
      %v4539 = vadd.s32 %v4491, %v4523
      %v4540 = vadd.s32 %v4492, %v4524
      %v4541 = vadd.s32 %v4493, %v4525
      %v4542 = vadd.s32 %v4494, %v4526
      %v4543 = vadd.s32 %v4495, %v4527
      %v4544 = vadd.s32 %v4496, %v4528
      %v4545 = vadd.s32 %v4497, %v4529
      %v4546 = vadd.s32 %v4498, %v4530
      %v4547 = vadd.s32 %v4499, %v4531
      %v4548 = vadd.s32 %v4500, %v4532
      %vm4549 = vcmp.eq.s32.totalorder %v2455, %v3424
      %vm4550 = vcmp.eq.s32.totalorder %v2470, %v3439
      %vm4551 = vcmp.eq.s32.totalorder %v2485, %v3454
      %vm4552 = vcmp.eq.s32.totalorder %v2500, %v3469
      %vm4553 = vcmp.eq.s32.totalorder %v2515, %v3484
      %vm4554 = vcmp.eq.s32.totalorder %v2530, %v3499
      %vm4555 = vcmp.eq.s32.totalorder %v2545, %v3514
      %vm4556 = vcmp.eq.s32.totalorder %v2560, %v3529
      %vm4557 = vcmp.eq.s32.totalorder %v2575, %v3544
      %vm4558 = vcmp.eq.s32.totalorder %v2590, %v3559
      %vm4559 = vcmp.eq.s32.totalorder %v2605, %v3574
      %vm4560 = vcmp.eq.s32.totalorder %v2620, %v3589
      %vm4561 = vcmp.eq.s32.totalorder %v2635, %v3604
      %vm4562 = vcmp.eq.s32.totalorder %v2650, %v3619
      %vm4563 = vcmp.eq.s32.totalorder %v2665, %v3634
      %vm4564 = vcmp.eq.s32.totalorder %v2680, %v3649
      %v4565 = vsel %vm4549, 1, 0
      %v4566 = vsel %vm4550, 1, 0
      %v4567 = vsel %vm4551, 1, 0
      %v4568 = vsel %vm4552, 1, 0
      %v4569 = vsel %vm4553, 1, 0
      %v4570 = vsel %vm4554, 1, 0
      %v4571 = vsel %vm4555, 1, 0
      %v4572 = vsel %vm4556, 1, 0
      %v4573 = vsel %vm4557, 1, 0
      %v4574 = vsel %vm4558, 1, 0
      %v4575 = vsel %vm4559, 1, 0
      %v4576 = vsel %vm4560, 1, 0
      %v4577 = vsel %vm4561, 1, 0
      %v4578 = vsel %vm4562, 1, 0
      %v4579 = vsel %vm4563, 1, 0
      %v4580 = vsel %vm4564, 1, 0
      %vm4581 = vcmp.eq.s32.totalorder %v2778, %v3424
      %vm4582 = vcmp.eq.s32.totalorder %v2793, %v3439
      %vm4583 = vcmp.eq.s32.totalorder %v2808, %v3454
      %vm4584 = vcmp.eq.s32.totalorder %v2823, %v3469
      %vm4585 = vcmp.eq.s32.totalorder %v2838, %v3484
      %vm4586 = vcmp.eq.s32.totalorder %v2853, %v3499
      %vm4587 = vcmp.eq.s32.totalorder %v2868, %v3514
      %vm4588 = vcmp.eq.s32.totalorder %v2883, %v3529
      %vm4589 = vcmp.eq.s32.totalorder %v2898, %v3544
      %vm4590 = vcmp.eq.s32.totalorder %v2913, %v3559
      %vm4591 = vcmp.eq.s32.totalorder %v2928, %v3574
      %vm4592 = vcmp.eq.s32.totalorder %v2943, %v3589
      %vm4593 = vcmp.eq.s32.totalorder %v2958, %v3604
      %vm4594 = vcmp.eq.s32.totalorder %v2973, %v3619
      %vm4595 = vcmp.eq.s32.totalorder %v2988, %v3634
      %vm4596 = vcmp.eq.s32.totalorder %v3003, %v3649
      %v4597 = vsel %vm4581, 1, 0
      %v4598 = vsel %vm4582, 1, 0
      %v4599 = vsel %vm4583, 1, 0
      %v4600 = vsel %vm4584, 1, 0
      %v4601 = vsel %vm4585, 1, 0
      %v4602 = vsel %vm4586, 1, 0
      %v4603 = vsel %vm4587, 1, 0
      %v4604 = vsel %vm4588, 1, 0
      %v4605 = vsel %vm4589, 1, 0
      %v4606 = vsel %vm4590, 1, 0
      %v4607 = vsel %vm4591, 1, 0
      %v4608 = vsel %vm4592, 1, 0
      %v4609 = vsel %vm4593, 1, 0
      %v4610 = vsel %vm4594, 1, 0
      %v4611 = vsel %vm4595, 1, 0
      %v4612 = vsel %vm4596, 1, 0
      %v4613 = vadd.s32 %v4565, %v4597
      %v4614 = vadd.s32 %v4566, %v4598
      %v4615 = vadd.s32 %v4567, %v4599
      %v4616 = vadd.s32 %v4568, %v4600
      %v4617 = vadd.s32 %v4569, %v4601
      %v4618 = vadd.s32 %v4570, %v4602
      %v4619 = vadd.s32 %v4571, %v4603
      %v4620 = vadd.s32 %v4572, %v4604
      %v4621 = vadd.s32 %v4573, %v4605
      %v4622 = vadd.s32 %v4574, %v4606
      %v4623 = vadd.s32 %v4575, %v4607
      %v4624 = vadd.s32 %v4576, %v4608
      %v4625 = vadd.s32 %v4577, %v4609
      %v4626 = vadd.s32 %v4578, %v4610
      %v4627 = vadd.s32 %v4579, %v4611
      %v4628 = vadd.s32 %v4580, %v4612
      %vm4629 = vcmp.eq.s32.totalorder %v3101, %v3424
      %vm4630 = vcmp.eq.s32.totalorder %v3116, %v3439
      %vm4631 = vcmp.eq.s32.totalorder %v3131, %v3454
      %vm4632 = vcmp.eq.s32.totalorder %v3146, %v3469
      %vm4633 = vcmp.eq.s32.totalorder %v3161, %v3484
      %vm4634 = vcmp.eq.s32.totalorder %v3176, %v3499
      %vm4635 = vcmp.eq.s32.totalorder %v3191, %v3514
      %vm4636 = vcmp.eq.s32.totalorder %v3206, %v3529
      %vm4637 = vcmp.eq.s32.totalorder %v3221, %v3544
      %vm4638 = vcmp.eq.s32.totalorder %v3236, %v3559
      %vm4639 = vcmp.eq.s32.totalorder %v3251, %v3574
      %vm4640 = vcmp.eq.s32.totalorder %v3266, %v3589
      %vm4641 = vcmp.eq.s32.totalorder %v3281, %v3604
      %vm4642 = vcmp.eq.s32.totalorder %v3296, %v3619
      %vm4643 = vcmp.eq.s32.totalorder %v3311, %v3634
      %vm4644 = vcmp.eq.s32.totalorder %v3326, %v3649
      %v4645 = vsel %vm4629, 1, 0
      %v4646 = vsel %vm4630, 1, 0
      %v4647 = vsel %vm4631, 1, 0
      %v4648 = vsel %vm4632, 1, 0
      %v4649 = vsel %vm4633, 1, 0
      %v4650 = vsel %vm4634, 1, 0
      %v4651 = vsel %vm4635, 1, 0
      %v4652 = vsel %vm4636, 1, 0
      %v4653 = vsel %vm4637, 1, 0
      %v4654 = vsel %vm4638, 1, 0
      %v4655 = vsel %vm4639, 1, 0
      %v4656 = vsel %vm4640, 1, 0
      %v4657 = vsel %vm4641, 1, 0
      %v4658 = vsel %vm4642, 1, 0
      %v4659 = vsel %vm4643, 1, 0
      %v4660 = vsel %vm4644, 1, 0
      %v4661 = vadd.s32 %v4613, %v4645
      %v4662 = vadd.s32 %v4614, %v4646
      %v4663 = vadd.s32 %v4615, %v4647
      %v4664 = vadd.s32 %v4616, %v4648
      %v4665 = vadd.s32 %v4617, %v4649
      %v4666 = vadd.s32 %v4618, %v4650
      %v4667 = vadd.s32 %v4619, %v4651
      %v4668 = vadd.s32 %v4620, %v4652
      %v4669 = vadd.s32 %v4621, %v4653
      %v4670 = vadd.s32 %v4622, %v4654
      %v4671 = vadd.s32 %v4623, %v4655
      %v4672 = vadd.s32 %v4624, %v4656
      %v4673 = vadd.s32 %v4625, %v4657
      %v4674 = vadd.s32 %v4626, %v4658
      %v4675 = vadd.s32 %v4627, %v4659
      %v4676 = vadd.s32 %v4628, %v4660
      %v4677 = vadd.s32 %v4661, 1
      %v4678 = vadd.s32 %v4662, 1
      %v4679 = vadd.s32 %v4663, 1
      %v4680 = vadd.s32 %v4664, 1
      %v4681 = vadd.s32 %v4665, 1
      %v4682 = vadd.s32 %v4666, 1
      %v4683 = vadd.s32 %v4667, 1
      %v4684 = vadd.s32 %v4668, 1
      %v4685 = vadd.s32 %v4669, 1
      %v4686 = vadd.s32 %v4670, 1
      %v4687 = vadd.s32 %v4671, 1
      %v4688 = vadd.s32 %v4672, 1
      %v4689 = vadd.s32 %v4673, 1
      %v4690 = vadd.s32 %v4674, 1
      %v4691 = vadd.s32 %v4675, 1
      %v4692 = vadd.s32 %v4676, 1
      %vm4693 = vcmp.eq.s32.totalorder %v3747, %v3424
      %vm4694 = vcmp.eq.s32.totalorder %v3762, %v3439
      %vm4695 = vcmp.eq.s32.totalorder %v3777, %v3454
      %vm4696 = vcmp.eq.s32.totalorder %v3792, %v3469
      %vm4697 = vcmp.eq.s32.totalorder %v3807, %v3484
      %vm4698 = vcmp.eq.s32.totalorder %v3822, %v3499
      %vm4699 = vcmp.eq.s32.totalorder %v3837, %v3514
      %vm4700 = vcmp.eq.s32.totalorder %v3852, %v3529
      %vm4701 = vcmp.eq.s32.totalorder %v3867, %v3544
      %vm4702 = vcmp.eq.s32.totalorder %v3882, %v3559
      %vm4703 = vcmp.eq.s32.totalorder %v3897, %v3574
      %vm4704 = vcmp.eq.s32.totalorder %v3912, %v3589
      %vm4705 = vcmp.eq.s32.totalorder %v3927, %v3604
      %vm4706 = vcmp.eq.s32.totalorder %v3942, %v3619
      %vm4707 = vcmp.eq.s32.totalorder %v3957, %v3634
      %vm4708 = vcmp.eq.s32.totalorder %v3972, %v3649
      %v4709 = vsel %vm4693, 1, 0
      %v4710 = vsel %vm4694, 1, 0
      %v4711 = vsel %vm4695, 1, 0
      %v4712 = vsel %vm4696, 1, 0
      %v4713 = vsel %vm4697, 1, 0
      %v4714 = vsel %vm4698, 1, 0
      %v4715 = vsel %vm4699, 1, 0
      %v4716 = vsel %vm4700, 1, 0
      %v4717 = vsel %vm4701, 1, 0
      %v4718 = vsel %vm4702, 1, 0
      %v4719 = vsel %vm4703, 1, 0
      %v4720 = vsel %vm4704, 1, 0
      %v4721 = vsel %vm4705, 1, 0
      %v4722 = vsel %vm4706, 1, 0
      %v4723 = vsel %vm4707, 1, 0
      %v4724 = vsel %vm4708, 1, 0
      %v4725 = vadd.s32 %v4677, %v4709
      %v4726 = vadd.s32 %v4678, %v4710
      %v4727 = vadd.s32 %v4679, %v4711
      %v4728 = vadd.s32 %v4680, %v4712
      %v4729 = vadd.s32 %v4681, %v4713
      %v4730 = vadd.s32 %v4682, %v4714
      %v4731 = vadd.s32 %v4683, %v4715
      %v4732 = vadd.s32 %v4684, %v4716
      %v4733 = vadd.s32 %v4685, %v4717
      %v4734 = vadd.s32 %v4686, %v4718
      %v4735 = vadd.s32 %v4687, %v4719
      %v4736 = vadd.s32 %v4688, %v4720
      %v4737 = vadd.s32 %v4689, %v4721
      %v4738 = vadd.s32 %v4690, %v4722
      %v4739 = vadd.s32 %v4691, %v4723
      %v4740 = vadd.s32 %v4692, %v4724
      %vm4741 = vcmp.eq.s32.totalorder %v2455, %v3747
      %vm4742 = vcmp.eq.s32.totalorder %v2470, %v3762
      %vm4743 = vcmp.eq.s32.totalorder %v2485, %v3777
      %vm4744 = vcmp.eq.s32.totalorder %v2500, %v3792
      %vm4745 = vcmp.eq.s32.totalorder %v2515, %v3807
      %vm4746 = vcmp.eq.s32.totalorder %v2530, %v3822
      %vm4747 = vcmp.eq.s32.totalorder %v2545, %v3837
      %vm4748 = vcmp.eq.s32.totalorder %v2560, %v3852
      %vm4749 = vcmp.eq.s32.totalorder %v2575, %v3867
      %vm4750 = vcmp.eq.s32.totalorder %v2590, %v3882
      %vm4751 = vcmp.eq.s32.totalorder %v2605, %v3897
      %vm4752 = vcmp.eq.s32.totalorder %v2620, %v3912
      %vm4753 = vcmp.eq.s32.totalorder %v2635, %v3927
      %vm4754 = vcmp.eq.s32.totalorder %v2650, %v3942
      %vm4755 = vcmp.eq.s32.totalorder %v2665, %v3957
      %vm4756 = vcmp.eq.s32.totalorder %v2680, %v3972
      %v4757 = vsel %vm4741, 1, 0
      %v4758 = vsel %vm4742, 1, 0
      %v4759 = vsel %vm4743, 1, 0
      %v4760 = vsel %vm4744, 1, 0
      %v4761 = vsel %vm4745, 1, 0
      %v4762 = vsel %vm4746, 1, 0
      %v4763 = vsel %vm4747, 1, 0
      %v4764 = vsel %vm4748, 1, 0
      %v4765 = vsel %vm4749, 1, 0
      %v4766 = vsel %vm4750, 1, 0
      %v4767 = vsel %vm4751, 1, 0
      %v4768 = vsel %vm4752, 1, 0
      %v4769 = vsel %vm4753, 1, 0
      %v4770 = vsel %vm4754, 1, 0
      %v4771 = vsel %vm4755, 1, 0
      %v4772 = vsel %vm4756, 1, 0
      %vm4773 = vcmp.eq.s32.totalorder %v2778, %v3747
      %vm4774 = vcmp.eq.s32.totalorder %v2793, %v3762
      %vm4775 = vcmp.eq.s32.totalorder %v2808, %v3777
      %vm4776 = vcmp.eq.s32.totalorder %v2823, %v3792
      %vm4777 = vcmp.eq.s32.totalorder %v2838, %v3807
      %vm4778 = vcmp.eq.s32.totalorder %v2853, %v3822
      %vm4779 = vcmp.eq.s32.totalorder %v2868, %v3837
      %vm4780 = vcmp.eq.s32.totalorder %v2883, %v3852
      %vm4781 = vcmp.eq.s32.totalorder %v2898, %v3867
      %vm4782 = vcmp.eq.s32.totalorder %v2913, %v3882
      %vm4783 = vcmp.eq.s32.totalorder %v2928, %v3897
      %vm4784 = vcmp.eq.s32.totalorder %v2943, %v3912
      %vm4785 = vcmp.eq.s32.totalorder %v2958, %v3927
      %vm4786 = vcmp.eq.s32.totalorder %v2973, %v3942
      %vm4787 = vcmp.eq.s32.totalorder %v2988, %v3957
      %vm4788 = vcmp.eq.s32.totalorder %v3003, %v3972
      %v4789 = vsel %vm4773, 1, 0
      %v4790 = vsel %vm4774, 1, 0
      %v4791 = vsel %vm4775, 1, 0
      %v4792 = vsel %vm4776, 1, 0
      %v4793 = vsel %vm4777, 1, 0
      %v4794 = vsel %vm4778, 1, 0
      %v4795 = vsel %vm4779, 1, 0
      %v4796 = vsel %vm4780, 1, 0
      %v4797 = vsel %vm4781, 1, 0
      %v4798 = vsel %vm4782, 1, 0
      %v4799 = vsel %vm4783, 1, 0
      %v4800 = vsel %vm4784, 1, 0
      %v4801 = vsel %vm4785, 1, 0
      %v4802 = vsel %vm4786, 1, 0
      %v4803 = vsel %vm4787, 1, 0
      %v4804 = vsel %vm4788, 1, 0
      %v4805 = vadd.s32 %v4757, %v4789
      %v4806 = vadd.s32 %v4758, %v4790
      %v4807 = vadd.s32 %v4759, %v4791
      %v4808 = vadd.s32 %v4760, %v4792
      %v4809 = vadd.s32 %v4761, %v4793
      %v4810 = vadd.s32 %v4762, %v4794
      %v4811 = vadd.s32 %v4763, %v4795
      %v4812 = vadd.s32 %v4764, %v4796
      %v4813 = vadd.s32 %v4765, %v4797
      %v4814 = vadd.s32 %v4766, %v4798
      %v4815 = vadd.s32 %v4767, %v4799
      %v4816 = vadd.s32 %v4768, %v4800
      %v4817 = vadd.s32 %v4769, %v4801
      %v4818 = vadd.s32 %v4770, %v4802
      %v4819 = vadd.s32 %v4771, %v4803
      %v4820 = vadd.s32 %v4772, %v4804
      %vm4821 = vcmp.eq.s32.totalorder %v3101, %v3747
      %vm4822 = vcmp.eq.s32.totalorder %v3116, %v3762
      %vm4823 = vcmp.eq.s32.totalorder %v3131, %v3777
      %vm4824 = vcmp.eq.s32.totalorder %v3146, %v3792
      %vm4825 = vcmp.eq.s32.totalorder %v3161, %v3807
      %vm4826 = vcmp.eq.s32.totalorder %v3176, %v3822
      %vm4827 = vcmp.eq.s32.totalorder %v3191, %v3837
      %vm4828 = vcmp.eq.s32.totalorder %v3206, %v3852
      %vm4829 = vcmp.eq.s32.totalorder %v3221, %v3867
      %vm4830 = vcmp.eq.s32.totalorder %v3236, %v3882
      %vm4831 = vcmp.eq.s32.totalorder %v3251, %v3897
      %vm4832 = vcmp.eq.s32.totalorder %v3266, %v3912
      %vm4833 = vcmp.eq.s32.totalorder %v3281, %v3927
      %vm4834 = vcmp.eq.s32.totalorder %v3296, %v3942
      %vm4835 = vcmp.eq.s32.totalorder %v3311, %v3957
      %vm4836 = vcmp.eq.s32.totalorder %v3326, %v3972
      %v4837 = vsel %vm4821, 1, 0
      %v4838 = vsel %vm4822, 1, 0
      %v4839 = vsel %vm4823, 1, 0
      %v4840 = vsel %vm4824, 1, 0
      %v4841 = vsel %vm4825, 1, 0
      %v4842 = vsel %vm4826, 1, 0
      %v4843 = vsel %vm4827, 1, 0
      %v4844 = vsel %vm4828, 1, 0
      %v4845 = vsel %vm4829, 1, 0
      %v4846 = vsel %vm4830, 1, 0
      %v4847 = vsel %vm4831, 1, 0
      %v4848 = vsel %vm4832, 1, 0
      %v4849 = vsel %vm4833, 1, 0
      %v4850 = vsel %vm4834, 1, 0
      %v4851 = vsel %vm4835, 1, 0
      %v4852 = vsel %vm4836, 1, 0
      %v4853 = vadd.s32 %v4805, %v4837
      %v4854 = vadd.s32 %v4806, %v4838
      %v4855 = vadd.s32 %v4807, %v4839
      %v4856 = vadd.s32 %v4808, %v4840
      %v4857 = vadd.s32 %v4809, %v4841
      %v4858 = vadd.s32 %v4810, %v4842
      %v4859 = vadd.s32 %v4811, %v4843
      %v4860 = vadd.s32 %v4812, %v4844
      %v4861 = vadd.s32 %v4813, %v4845
      %v4862 = vadd.s32 %v4814, %v4846
      %v4863 = vadd.s32 %v4815, %v4847
      %v4864 = vadd.s32 %v4816, %v4848
      %v4865 = vadd.s32 %v4817, %v4849
      %v4866 = vadd.s32 %v4818, %v4850
      %v4867 = vadd.s32 %v4819, %v4851
      %v4868 = vadd.s32 %v4820, %v4852
      %vm4869 = vcmp.eq.s32.totalorder %v3424, %v3747
      %vm4870 = vcmp.eq.s32.totalorder %v3439, %v3762
      %vm4871 = vcmp.eq.s32.totalorder %v3454, %v3777
      %vm4872 = vcmp.eq.s32.totalorder %v3469, %v3792
      %vm4873 = vcmp.eq.s32.totalorder %v3484, %v3807
      %vm4874 = vcmp.eq.s32.totalorder %v3499, %v3822
      %vm4875 = vcmp.eq.s32.totalorder %v3514, %v3837
      %vm4876 = vcmp.eq.s32.totalorder %v3529, %v3852
      %vm4877 = vcmp.eq.s32.totalorder %v3544, %v3867
      %vm4878 = vcmp.eq.s32.totalorder %v3559, %v3882
      %vm4879 = vcmp.eq.s32.totalorder %v3574, %v3897
      %vm4880 = vcmp.eq.s32.totalorder %v3589, %v3912
      %vm4881 = vcmp.eq.s32.totalorder %v3604, %v3927
      %vm4882 = vcmp.eq.s32.totalorder %v3619, %v3942
      %vm4883 = vcmp.eq.s32.totalorder %v3634, %v3957
      %vm4884 = vcmp.eq.s32.totalorder %v3649, %v3972
      %v4885 = vsel %vm4869, 1, 0
      %v4886 = vsel %vm4870, 1, 0
      %v4887 = vsel %vm4871, 1, 0
      %v4888 = vsel %vm4872, 1, 0
      %v4889 = vsel %vm4873, 1, 0
      %v4890 = vsel %vm4874, 1, 0
      %v4891 = vsel %vm4875, 1, 0
      %v4892 = vsel %vm4876, 1, 0
      %v4893 = vsel %vm4877, 1, 0
      %v4894 = vsel %vm4878, 1, 0
      %v4895 = vsel %vm4879, 1, 0
      %v4896 = vsel %vm4880, 1, 0
      %v4897 = vsel %vm4881, 1, 0
      %v4898 = vsel %vm4882, 1, 0
      %v4899 = vsel %vm4883, 1, 0
      %v4900 = vsel %vm4884, 1, 0
      %v4901 = vadd.s32 %v4853, %v4885
      %v4902 = vadd.s32 %v4854, %v4886
      %v4903 = vadd.s32 %v4855, %v4887
      %v4904 = vadd.s32 %v4856, %v4888
      %v4905 = vadd.s32 %v4857, %v4889
      %v4906 = vadd.s32 %v4858, %v4890
      %v4907 = vadd.s32 %v4859, %v4891
      %v4908 = vadd.s32 %v4860, %v4892
      %v4909 = vadd.s32 %v4861, %v4893
      %v4910 = vadd.s32 %v4862, %v4894
      %v4911 = vadd.s32 %v4863, %v4895
      %v4912 = vadd.s32 %v4864, %v4896
      %v4913 = vadd.s32 %v4865, %v4897
      %v4914 = vadd.s32 %v4866, %v4898
      %v4915 = vadd.s32 %v4867, %v4899
      %v4916 = vadd.s32 %v4868, %v4900
      %v4917 = vadd.s32 %v4901, 1
      %v4918 = vadd.s32 %v4902, 1
      %v4919 = vadd.s32 %v4903, 1
      %v4920 = vadd.s32 %v4904, 1
      %v4921 = vadd.s32 %v4905, 1
      %v4922 = vadd.s32 %v4906, 1
      %v4923 = vadd.s32 %v4907, 1
      %v4924 = vadd.s32 %v4908, 1
      %v4925 = vadd.s32 %v4909, 1
      %v4926 = vadd.s32 %v4910, 1
      %v4927 = vadd.s32 %v4911, 1
      %v4928 = vadd.s32 %v4912, 1
      %v4929 = vadd.s32 %v4913, 1
      %v4930 = vadd.s32 %v4914, 1
      %v4931 = vadd.s32 %v4915, 1
      %v4932 = vadd.s32 %v4916, 1
      %vm4933 = vcmp.gt.s32.totalorder %v4149, %v4341
      %v4934 = vsel %vm4933, %v4149, %v4341
      %vm4935 = vcmp.gt.s32.totalorder %v4150, %v4342
      %v4936 = vsel %vm4935, %v4150, %v4342
      %vm4937 = vcmp.gt.s32.totalorder %v4151, %v4343
      %v4938 = vsel %vm4937, %v4151, %v4343
      %vm4939 = vcmp.gt.s32.totalorder %v4152, %v4344
      %v4940 = vsel %vm4939, %v4152, %v4344
      %vm4941 = vcmp.gt.s32.totalorder %v4153, %v4345
      %v4942 = vsel %vm4941, %v4153, %v4345
      %vm4943 = vcmp.gt.s32.totalorder %v4154, %v4346
      %v4944 = vsel %vm4943, %v4154, %v4346
      %vm4945 = vcmp.gt.s32.totalorder %v4155, %v4347
      %v4946 = vsel %vm4945, %v4155, %v4347
      %vm4947 = vcmp.gt.s32.totalorder %v4156, %v4348
      %v4948 = vsel %vm4947, %v4156, %v4348
      %vm4949 = vcmp.gt.s32.totalorder %v4157, %v4349
      %v4950 = vsel %vm4949, %v4157, %v4349
      %vm4951 = vcmp.gt.s32.totalorder %v4158, %v4350
      %v4952 = vsel %vm4951, %v4158, %v4350
      %vm4953 = vcmp.gt.s32.totalorder %v4159, %v4351
      %v4954 = vsel %vm4953, %v4159, %v4351
      %vm4955 = vcmp.gt.s32.totalorder %v4160, %v4352
      %v4956 = vsel %vm4955, %v4160, %v4352
      %vm4957 = vcmp.gt.s32.totalorder %v4161, %v4353
      %v4958 = vsel %vm4957, %v4161, %v4353
      %vm4959 = vcmp.gt.s32.totalorder %v4162, %v4354
      %v4960 = vsel %vm4959, %v4162, %v4354
      %vm4961 = vcmp.gt.s32.totalorder %v4163, %v4355
      %v4962 = vsel %vm4961, %v4163, %v4355
      %vm4963 = vcmp.gt.s32.totalorder %v4164, %v4356
      %v4964 = vsel %vm4963, %v4164, %v4356
      %vm4965 = vcmp.gt.s32.totalorder %v4934, %v4533
      %v4966 = vsel %vm4965, %v4934, %v4533
      %vm4967 = vcmp.gt.s32.totalorder %v4936, %v4534
      %v4968 = vsel %vm4967, %v4936, %v4534
      %vm4969 = vcmp.gt.s32.totalorder %v4938, %v4535
      %v4970 = vsel %vm4969, %v4938, %v4535
      %vm4971 = vcmp.gt.s32.totalorder %v4940, %v4536
      %v4972 = vsel %vm4971, %v4940, %v4536
      %vm4973 = vcmp.gt.s32.totalorder %v4942, %v4537
      %v4974 = vsel %vm4973, %v4942, %v4537
      %vm4975 = vcmp.gt.s32.totalorder %v4944, %v4538
      %v4976 = vsel %vm4975, %v4944, %v4538
      %vm4977 = vcmp.gt.s32.totalorder %v4946, %v4539
      %v4978 = vsel %vm4977, %v4946, %v4539
      %vm4979 = vcmp.gt.s32.totalorder %v4948, %v4540
      %v4980 = vsel %vm4979, %v4948, %v4540
      %vm4981 = vcmp.gt.s32.totalorder %v4950, %v4541
      %v4982 = vsel %vm4981, %v4950, %v4541
      %vm4983 = vcmp.gt.s32.totalorder %v4952, %v4542
      %v4984 = vsel %vm4983, %v4952, %v4542
      %vm4985 = vcmp.gt.s32.totalorder %v4954, %v4543
      %v4986 = vsel %vm4985, %v4954, %v4543
      %vm4987 = vcmp.gt.s32.totalorder %v4956, %v4544
      %v4988 = vsel %vm4987, %v4956, %v4544
      %vm4989 = vcmp.gt.s32.totalorder %v4958, %v4545
      %v4990 = vsel %vm4989, %v4958, %v4545
      %vm4991 = vcmp.gt.s32.totalorder %v4960, %v4546
      %v4992 = vsel %vm4991, %v4960, %v4546
      %vm4993 = vcmp.gt.s32.totalorder %v4962, %v4547
      %v4994 = vsel %vm4993, %v4962, %v4547
      %vm4995 = vcmp.gt.s32.totalorder %v4964, %v4548
      %v4996 = vsel %vm4995, %v4964, %v4548
      %vm4997 = vcmp.gt.s32.totalorder %v4966, %v4725
      %v4998 = vsel %vm4997, %v4966, %v4725
      %vm4999 = vcmp.gt.s32.totalorder %v4968, %v4726
      %v5000 = vsel %vm4999, %v4968, %v4726
      %vm5001 = vcmp.gt.s32.totalorder %v4970, %v4727
      %v5002 = vsel %vm5001, %v4970, %v4727
      %vm5003 = vcmp.gt.s32.totalorder %v4972, %v4728
      %v5004 = vsel %vm5003, %v4972, %v4728
      %vm5005 = vcmp.gt.s32.totalorder %v4974, %v4729
      %v5006 = vsel %vm5005, %v4974, %v4729
      %vm5007 = vcmp.gt.s32.totalorder %v4976, %v4730
      %v5008 = vsel %vm5007, %v4976, %v4730
      %vm5009 = vcmp.gt.s32.totalorder %v4978, %v4731
      %v5010 = vsel %vm5009, %v4978, %v4731
      %vm5011 = vcmp.gt.s32.totalorder %v4980, %v4732
      %v5012 = vsel %vm5011, %v4980, %v4732
      %vm5013 = vcmp.gt.s32.totalorder %v4982, %v4733
      %v5014 = vsel %vm5013, %v4982, %v4733
      %vm5015 = vcmp.gt.s32.totalorder %v4984, %v4734
      %v5016 = vsel %vm5015, %v4984, %v4734
      %vm5017 = vcmp.gt.s32.totalorder %v4986, %v4735
      %v5018 = vsel %vm5017, %v4986, %v4735
      %vm5019 = vcmp.gt.s32.totalorder %v4988, %v4736
      %v5020 = vsel %vm5019, %v4988, %v4736
      %vm5021 = vcmp.gt.s32.totalorder %v4990, %v4737
      %v5022 = vsel %vm5021, %v4990, %v4737
      %vm5023 = vcmp.gt.s32.totalorder %v4992, %v4738
      %v5024 = vsel %vm5023, %v4992, %v4738
      %vm5025 = vcmp.gt.s32.totalorder %v4994, %v4739
      %v5026 = vsel %vm5025, %v4994, %v4739
      %vm5027 = vcmp.gt.s32.totalorder %v4996, %v4740
      %v5028 = vsel %vm5027, %v4996, %v4740
      %vm5029 = vcmp.gt.s32.totalorder %v4998, %v4917
      %v5030 = vsel %vm5029, %v4998, %v4917
      %vm5031 = vcmp.gt.s32.totalorder %v5000, %v4918
      %v5032 = vsel %vm5031, %v5000, %v4918
      %vm5033 = vcmp.gt.s32.totalorder %v5002, %v4919
      %v5034 = vsel %vm5033, %v5002, %v4919
      %vm5035 = vcmp.gt.s32.totalorder %v5004, %v4920
      %v5036 = vsel %vm5035, %v5004, %v4920
      %vm5037 = vcmp.gt.s32.totalorder %v5006, %v4921
      %v5038 = vsel %vm5037, %v5006, %v4921
      %vm5039 = vcmp.gt.s32.totalorder %v5008, %v4922
      %v5040 = vsel %vm5039, %v5008, %v4922
      %vm5041 = vcmp.gt.s32.totalorder %v5010, %v4923
      %v5042 = vsel %vm5041, %v5010, %v4923
      %vm5043 = vcmp.gt.s32.totalorder %v5012, %v4924
      %v5044 = vsel %vm5043, %v5012, %v4924
      %vm5045 = vcmp.gt.s32.totalorder %v5014, %v4925
      %v5046 = vsel %vm5045, %v5014, %v4925
      %vm5047 = vcmp.gt.s32.totalorder %v5016, %v4926
      %v5048 = vsel %vm5047, %v5016, %v4926
      %vm5049 = vcmp.gt.s32.totalorder %v5018, %v4927
      %v5050 = vsel %vm5049, %v5018, %v4927
      %vm5051 = vcmp.gt.s32.totalorder %v5020, %v4928
      %v5052 = vsel %vm5051, %v5020, %v4928
      %vm5053 = vcmp.gt.s32.totalorder %v5022, %v4929
      %v5054 = vsel %vm5053, %v5022, %v4929
      %vm5055 = vcmp.gt.s32.totalorder %v5024, %v4930
      %v5056 = vsel %vm5055, %v5024, %v4930
      %vm5057 = vcmp.gt.s32.totalorder %v5026, %v4931
      %v5058 = vsel %vm5057, %v5026, %v4931
      %vm5059 = vcmp.gt.s32.totalorder %v5028, %v4932
      %v5060 = vsel %vm5059, %v5028, %v4932
      %vm5061 = vcmp.eq.s32.totalorder %v4725, %v5030
      %vm5062 = vcmp.eq.s32.totalorder %v4726, %v5032
      %vm5063 = vcmp.eq.s32.totalorder %v4727, %v5034
      %vm5064 = vcmp.eq.s32.totalorder %v4728, %v5036
      %vm5065 = vcmp.eq.s32.totalorder %v4729, %v5038
      %vm5066 = vcmp.eq.s32.totalorder %v4730, %v5040
      %vm5067 = vcmp.eq.s32.totalorder %v4731, %v5042
      %vm5068 = vcmp.eq.s32.totalorder %v4732, %v5044
      %vm5069 = vcmp.eq.s32.totalorder %v4733, %v5046
      %vm5070 = vcmp.eq.s32.totalorder %v4734, %v5048
      %vm5071 = vcmp.eq.s32.totalorder %v4735, %v5050
      %vm5072 = vcmp.eq.s32.totalorder %v4736, %v5052
      %vm5073 = vcmp.eq.s32.totalorder %v4737, %v5054
      %vm5074 = vcmp.eq.s32.totalorder %v4738, %v5056
      %vm5075 = vcmp.eq.s32.totalorder %v4739, %v5058
      %vm5076 = vcmp.eq.s32.totalorder %v4740, %v5060
      %v5077 = vsel %vm5061, %v3424, %v3747
      %v5078 = vsel %vm5062, %v3439, %v3762
      %v5079 = vsel %vm5063, %v3454, %v3777
      %v5080 = vsel %vm5064, %v3469, %v3792
      %v5081 = vsel %vm5065, %v3484, %v3807
      %v5082 = vsel %vm5066, %v3499, %v3822
      %v5083 = vsel %vm5067, %v3514, %v3837
      %v5084 = vsel %vm5068, %v3529, %v3852
      %v5085 = vsel %vm5069, %v3544, %v3867
      %v5086 = vsel %vm5070, %v3559, %v3882
      %v5087 = vsel %vm5071, %v3574, %v3897
      %v5088 = vsel %vm5072, %v3589, %v3912
      %v5089 = vsel %vm5073, %v3604, %v3927
      %v5090 = vsel %vm5074, %v3619, %v3942
      %v5091 = vsel %vm5075, %v3634, %v3957
      %v5092 = vsel %vm5076, %v3649, %v3972
      %vm5093 = vcmp.eq.s32.totalorder %v4533, %v5030
      %vm5094 = vcmp.eq.s32.totalorder %v4534, %v5032
      %vm5095 = vcmp.eq.s32.totalorder %v4535, %v5034
      %vm5096 = vcmp.eq.s32.totalorder %v4536, %v5036
      %vm5097 = vcmp.eq.s32.totalorder %v4537, %v5038
      %vm5098 = vcmp.eq.s32.totalorder %v4538, %v5040
      %vm5099 = vcmp.eq.s32.totalorder %v4539, %v5042
      %vm5100 = vcmp.eq.s32.totalorder %v4540, %v5044
      %vm5101 = vcmp.eq.s32.totalorder %v4541, %v5046
      %vm5102 = vcmp.eq.s32.totalorder %v4542, %v5048
      %vm5103 = vcmp.eq.s32.totalorder %v4543, %v5050
      %vm5104 = vcmp.eq.s32.totalorder %v4544, %v5052
      %vm5105 = vcmp.eq.s32.totalorder %v4545, %v5054
      %vm5106 = vcmp.eq.s32.totalorder %v4546, %v5056
      %vm5107 = vcmp.eq.s32.totalorder %v4547, %v5058
      %vm5108 = vcmp.eq.s32.totalorder %v4548, %v5060
      %v5109 = vsel %vm5093, %v3101, %v5077
      %v5110 = vsel %vm5094, %v3116, %v5078
      %v5111 = vsel %vm5095, %v3131, %v5079
      %v5112 = vsel %vm5096, %v3146, %v5080
      %v5113 = vsel %vm5097, %v3161, %v5081
      %v5114 = vsel %vm5098, %v3176, %v5082
      %v5115 = vsel %vm5099, %v3191, %v5083
      %v5116 = vsel %vm5100, %v3206, %v5084
      %v5117 = vsel %vm5101, %v3221, %v5085
      %v5118 = vsel %vm5102, %v3236, %v5086
      %v5119 = vsel %vm5103, %v3251, %v5087
      %v5120 = vsel %vm5104, %v3266, %v5088
      %v5121 = vsel %vm5105, %v3281, %v5089
      %v5122 = vsel %vm5106, %v3296, %v5090
      %v5123 = vsel %vm5107, %v3311, %v5091
      %v5124 = vsel %vm5108, %v3326, %v5092
      %vm5125 = vcmp.eq.s32.totalorder %v4341, %v5030
      %vm5126 = vcmp.eq.s32.totalorder %v4342, %v5032
      %vm5127 = vcmp.eq.s32.totalorder %v4343, %v5034
      %vm5128 = vcmp.eq.s32.totalorder %v4344, %v5036
      %vm5129 = vcmp.eq.s32.totalorder %v4345, %v5038
      %vm5130 = vcmp.eq.s32.totalorder %v4346, %v5040
      %vm5131 = vcmp.eq.s32.totalorder %v4347, %v5042
      %vm5132 = vcmp.eq.s32.totalorder %v4348, %v5044
      %vm5133 = vcmp.eq.s32.totalorder %v4349, %v5046
      %vm5134 = vcmp.eq.s32.totalorder %v4350, %v5048
      %vm5135 = vcmp.eq.s32.totalorder %v4351, %v5050
      %vm5136 = vcmp.eq.s32.totalorder %v4352, %v5052
      %vm5137 = vcmp.eq.s32.totalorder %v4353, %v5054
      %vm5138 = vcmp.eq.s32.totalorder %v4354, %v5056
      %vm5139 = vcmp.eq.s32.totalorder %v4355, %v5058
      %vm5140 = vcmp.eq.s32.totalorder %v4356, %v5060
      %v5141 = vsel %vm5125, %v2778, %v5109
      %v5142 = vsel %vm5126, %v2793, %v5110
      %v5143 = vsel %vm5127, %v2808, %v5111
      %v5144 = vsel %vm5128, %v2823, %v5112
      %v5145 = vsel %vm5129, %v2838, %v5113
      %v5146 = vsel %vm5130, %v2853, %v5114
      %v5147 = vsel %vm5131, %v2868, %v5115
      %v5148 = vsel %vm5132, %v2883, %v5116
      %v5149 = vsel %vm5133, %v2898, %v5117
      %v5150 = vsel %vm5134, %v2913, %v5118
      %v5151 = vsel %vm5135, %v2928, %v5119
      %v5152 = vsel %vm5136, %v2943, %v5120
      %v5153 = vsel %vm5137, %v2958, %v5121
      %v5154 = vsel %vm5138, %v2973, %v5122
      %v5155 = vsel %vm5139, %v2988, %v5123
      %v5156 = vsel %vm5140, %v3003, %v5124
      %vm5157 = vcmp.eq.s32.totalorder %v4149, %v5030
      %vm5158 = vcmp.eq.s32.totalorder %v4150, %v5032
      %vm5159 = vcmp.eq.s32.totalorder %v4151, %v5034
      %vm5160 = vcmp.eq.s32.totalorder %v4152, %v5036
      %vm5161 = vcmp.eq.s32.totalorder %v4153, %v5038
      %vm5162 = vcmp.eq.s32.totalorder %v4154, %v5040
      %vm5163 = vcmp.eq.s32.totalorder %v4155, %v5042
      %vm5164 = vcmp.eq.s32.totalorder %v4156, %v5044
      %vm5165 = vcmp.eq.s32.totalorder %v4157, %v5046
      %vm5166 = vcmp.eq.s32.totalorder %v4158, %v5048
      %vm5167 = vcmp.eq.s32.totalorder %v4159, %v5050
      %vm5168 = vcmp.eq.s32.totalorder %v4160, %v5052
      %vm5169 = vcmp.eq.s32.totalorder %v4161, %v5054
      %vm5170 = vcmp.eq.s32.totalorder %v4162, %v5056
      %vm5171 = vcmp.eq.s32.totalorder %v4163, %v5058
      %vm5172 = vcmp.eq.s32.totalorder %v4164, %v5060
      %v5173 = vsel %vm5157, %v2455, %v5141
      %v5174 = vsel %vm5158, %v2470, %v5142
      %v5175 = vsel %vm5159, %v2485, %v5143
      %v5176 = vsel %vm5160, %v2500, %v5144
      %v5177 = vsel %vm5161, %v2515, %v5145
      %v5178 = vsel %vm5162, %v2530, %v5146
      %v5179 = vsel %vm5163, %v2545, %v5147
      %v5180 = vsel %vm5164, %v2560, %v5148
      %v5181 = vsel %vm5165, %v2575, %v5149
      %v5182 = vsel %vm5166, %v2590, %v5150
      %v5183 = vsel %vm5167, %v2605, %v5151
      %v5184 = vsel %vm5168, %v2620, %v5152
      %v5185 = vsel %vm5169, %v2635, %v5153
      %v5186 = vsel %vm5170, %v2650, %v5154
      %v5187 = vsel %vm5171, %v2665, %v5155
      %v5188 = vsel %vm5172, %v2680, %v5156
      %v5189 = vcvt.s32.f32 %v5173
      %v5190 = vcvt.s32.f32 %v5174
      %v5191 = vcvt.s32.f32 %v5175
      %v5192 = vcvt.s32.f32 %v5176
      %v5193 = vcvt.s32.f32 %v5177
      %v5194 = vcvt.s32.f32 %v5178
      %v5195 = vcvt.s32.f32 %v5179
      %v5196 = vcvt.s32.f32 %v5180
      %v5197 = vcvt.s32.f32 %v5181
      %v5198 = vcvt.s32.f32 %v5182
      %v5199 = vcvt.s32.f32 %v5183
      %v5200 = vcvt.s32.f32 %v5184
      %v5201 = vcvt.s32.f32 %v5185
      %v5202 = vcvt.s32.f32 %v5186
      %v5203 = vcvt.s32.f32 %v5187
      %v5204 = vcvt.s32.f32 %v5188
      %v5221 = vlaneseq
      %v5222 = vshrl.u32 %v5221, 7
      %v5223 = vsub.s32 %v2408, %v5222
      %v5224 = vrot.slane %v5189, %v5223
      %v5225 = vadd.s32 %v2408, 4294967288
      %v5226 = vlaneseq
      %v5227 = vshrl.u32 %v5226, 7
      %v5228 = vsub.s32 %v5225, %v5227
      %v5229 = vrot.slane %v5190, %v5228
      %v5230 = vsel %vm2681, %v5229, %v5224
      %v5231 = vadd.s32 %v2408, 4294967280
      %v5232 = vlaneseq
      %v5233 = vshrl.u32 %v5232, 7
      %v5234 = vsub.s32 %v5231, %v5233
      %v5235 = vrot.slane %v5191, %v5234
      %v5236 = vsel %vm3004, %v5235, %v5230
      %v5237 = vadd.s32 %v2408, 4294967272
      %v5238 = vlaneseq
      %v5239 = vshrl.u32 %v5238, 7
      %v5240 = vsub.s32 %v5237, %v5239
      %v5241 = vrot.slane %v5192, %v5240
      %v5242 = vsel %vm3327, %v5241, %v5236
      %v5243 = vadd.s32 %v2408, 4294967264
      %v5244 = vlaneseq
      %v5245 = vshrl.u32 %v5244, 7
      %v5246 = vsub.s32 %v5243, %v5245
      %v5247 = vrot.slane %v5193, %v5246
      %v5248 = vsel %vm3650, %v5247, %v5242
      %v5249 = vadd.s32 %v2408, 4294967256
      %v5250 = vlaneseq
      %v5251 = vshrl.u32 %v5250, 7
      %v5252 = vsub.s32 %v5249, %v5251
      %v5253 = vrot.slane %v5194, %v5252
      %vm5254 = vcmask 392512
      %v5255 = vsel %vm5254, %v5253, %v5248
      %v5256 = vadd.s32 %v2408, 4294967248
      %v5257 = vlaneseq
      %v5258 = vshrl.u32 %v5257, 7
      %v5259 = vsub.s32 %v5256, %v5258
      %v5260 = vrot.slane %v5195, %v5259
      %vm5261 = vcmask 458112
      %v5262 = vsel %vm5261, %v5260, %v5255
      %v5263 = vadd.s32 %v2408, 4294967240
      %v5264 = vlaneseq
      %v5265 = vshrl.u32 %v5264, 7
      %v5266 = vsub.s32 %v5263, %v5265
      %v5267 = vrot.slane %v5196, %v5266
      %vm5268 = vcmask 523712
      %v5269 = vsel %vm5268, %v5267, %v5262
      %v5270 = vadd.s32 %v2408, 4294967232
      %v5271 = vlaneseq
      %v5272 = vshrl.u32 %v5271, 7
      %v5273 = vsub.s32 %v5270, %v5272
      %v5274 = vrot.slane %v5197, %v5273
      %vm5275 = vcmask 589312
      %v5276 = vsel %vm5275, %v5274, %v5269
      %v5277 = vadd.s32 %v2408, 4294967224
      %v5278 = vlaneseq
      %v5279 = vshrl.u32 %v5278, 7
      %v5280 = vsub.s32 %v5277, %v5279
      %v5281 = vrot.slane %v5198, %v5280
      %vm5282 = vcmask 654912
      %v5283 = vsel %vm5282, %v5281, %v5276
      %v5284 = vadd.s32 %v2408, 4294967216
      %v5285 = vlaneseq
      %v5286 = vshrl.u32 %v5285, 7
      %v5287 = vsub.s32 %v5284, %v5286
      %v5288 = vrot.slane %v5199, %v5287
      %vm5289 = vcmask 720512
      %v5290 = vsel %vm5289, %v5288, %v5283
      %v5291 = vadd.s32 %v2408, 4294967208
      %v5292 = vlaneseq
      %v5293 = vshrl.u32 %v5292, 7
      %v5294 = vsub.s32 %v5291, %v5293
      %v5295 = vrot.slane %v5200, %v5294
      %vm5296 = vcmask 786112
      %v5297 = vsel %vm5296, %v5295, %v5290
      %v5298 = vadd.s32 %v2408, 4294967200
      %v5299 = vlaneseq
      %v5300 = vshrl.u32 %v5299, 7
      %v5301 = vsub.s32 %v5298, %v5300
      %v5302 = vrot.slane %v5201, %v5301
      %vm5303 = vcmask 851712
      %v5304 = vsel %vm5303, %v5302, %v5297
      %v5305 = vadd.s32 %v2408, 4294967192
      %v5306 = vlaneseq
      %v5307 = vshrl.u32 %v5306, 7
      %v5308 = vsub.s32 %v5305, %v5307
      %v5309 = vrot.slane %v5202, %v5308
      %vm5310 = vcmask 917312
      %v5311 = vsel %vm5310, %v5309, %v5304
      %v5312 = vadd.s32 %v2408, 4294967184
      %v5313 = vlaneseq
      %v5314 = vshrl.u32 %v5313, 7
      %v5315 = vsub.s32 %v5312, %v5314
      %v5316 = vrot.slane %v5203, %v5315
      %vm5317 = vcmask 982912
      %v5318 = vsel %vm5317, %v5316, %v5311
      %v5319 = vadd.s32 %v2408, 4294967176
      %v5320 = vlaneseq
      %v5321 = vshrl.u32 %v5320, 7
      %v5322 = vsub.s32 %v5319, %v5321
      %v5323 = vrot.slane %v5204, %v5322
      %vm5324 = vcmask 1048512
      %v5325 = vsel %vm5324, %v5323, %v5318
      %5327 = vst [vmem:[%s384] sm:$0x1] %v5325
      %p5328 = scmp.lt.s32.totalorder %s22, 2
      %s5329 = scalar_select %p5328, %s22, 2
      %s5330 = scalar_lea.vmem %s11, %s5329
      // Predicated region
      $region65: #{pixel_classifier_ensemble_forward.5} parent=63 // pred_check
        %p5331 = pneg %p276
      $region66: #{pixel_classifier_ensemble_forward.5} parent=63 // pred_check_branch
        %5333 = sbr.rel (%p5331) target = $region68
      $region67: #{pixel_classifier_ensemble_forward.5} parent=63 // pred_region
        _
      $region68: #{pixel_classifier_ensemble_forward.5} parent=63 // pred_fallthru
        _
    $region64: #{pixel_classifier_ensemble_forward.5} parent=5 // pred_fallthru
      _
    %p5334 = scmp.le.s32.totalorder 2, %s17
    // Predicated region
    $region69: #{pixel_classifier_ensemble_forward.5} parent=5 // pred_check
      %p5335 = pneg %p5334
    $region70: #{pixel_classifier_ensemble_forward.5} parent=5 // pred_check_branch
      %5337 = sbr.rel (%p5335) target = $region72
    $region71: #{pixel_classifier_ensemble_forward.5} parent=5 // pred_region
      %s5338 = ssub.s32 %s17, 2
      // Predicated region
      $region73: #{pixel_classifier_ensemble_forward.5} parent=71 // pred_check
        %p5339 = pneg %p282
      $region74: #{pixel_classifier_ensemble_forward.5} parent=71 // pred_check_branch
        %5341 = sbr.rel (%p5339) target = $region76
      $region75: #{pixel_classifier_ensemble_forward.5} parent=71 // pred_region
        %p5342 = scmp.lt.s32.totalorder %s23, 2
        %s5343 = scalar_select %p5342, %s23, 2
        %s5344 = scalar_lea.vmem %s11, %s5343
      $region76: #{pixel_classifier_ensemble_forward.5} parent=71 // pred_fallthru
        _
    $region72: #{pixel_classifier_ensemble_forward.5} parent=5 // pred_fallthru
      _
  $region6: #{pixel_classifier_ensemble_forward.5} parent=0 // loop_footer
    %s21 = sadd.s32 1, %s17
  $region7: #{pixel_classifier_ensemble_forward.5} parent=0 // loop_footer_branch
    %16 = sbr.rel target = $region3
  $region8: #{pixel_classifier_ensemble_forward.5} parent=0 // loop_exit
    _

</llo_original>
